<compile_context>
chip_gen: v7x
topology: tpu7x:2x2x1
jax: 0.10.0
libtpu: 0.0.40
codegen_flags: <defaults>
</compile_context>

<pallas_src>
import functools
import numpy as np
import jax
import jax.numpy as jnp
from jax.experimental import pallas as pl
from jax.experimental.pallas import tpu as pltpu


# ----------------------------- Pallas kernels ------------------------------

def _gelu_exact(x):
    # torch.nn.GELU (approximate='none'): 0.5 * x * (1 + erf(x / sqrt(2)))
    return 0.5 * x * (1.0 + jax.lax.erf(x * 0.7071067811865476))


def _heads_l12(a_ref, w1_ref, b1_ref, w2_ref, b2_ref):
    """Layers 1+2 of BOTH heads.  Layer 1 (K=2) on the VPU as broadcast FMAs over the
    concatenated weights; layer 2 as ONE block-diagonal bf16 MXU matmul (K 64->128).
    Returns h2 = [h2_phi | h2_psi] of shape (TN, 2*H2) in f32."""
    a = a_ref[0]                                   # (TN, 2) f32
    w1 = w1_ref[...]                               # (2, 2*H1) f32
    h1 = _gelu_exact(a[:, 0:1] * w1[0:1, :] + a[:, 1:2] * w1[1:2, :] + b1_ref[...])
    h2 = _gelu_exact(
        jnp.dot(h1.astype(jnp.bfloat16), w2_ref[...],
                preferred_element_type=jnp.float32) + b2_ref[...])
    return h2


def _reduce_and_store(v, phi_red, psi_r, phi_red_ref, tsum_ref):
    """psi i-contraction (pure VPU, no one-hot matmuls), phi_red writeback, t_sum accumulation."""
    tn, cin = v.shape
    cout = phi_red.shape[-1]
    # temp[n, o] = sum_i v[n, i] * psi_r[n, i*cout + o]
    # TODO(synk): for larger cin/cout, pad each i-group of psi columns to 128 lanes to avoid
    #             XLU lane extraction on these narrow unaligned slices.
    psi_red = psi_r[:, 0:cout] * v[:, 0:1]
    for i in range(1, cin):
        psi_red = psi_red + psi_r[:, i * cout:(i + 1) * cout] * v[:, i:i + 1]

    phi_red_ref[0] = phi_red

    @pl.when(pl.program_id(2) == 0)
    def _():
        tsum_ref[...] = jnp.zeros_like(tsum_ref)

    tsum_ref[0, 0] += jnp.sum(psi_red, axis=0, keepdims=True)


def _lowrank_kernel_fused34(a_ref, v_ref,
                            w1_ref, b1_ref, w2_ref, b2_ref, w3_ref, b3_ref, w4_ref, b4_ref,
                            phi_red_ref, tsum_ref):
    """Fully head-fused variant (v6e / v7x): layers 3 & 4 are block-diagonal (K=256)."""
    cout = tsum_ref.shape[-1]
    h2 = _heads_l12(a_ref, w1_ref, b1_ref, w2_ref, b2_ref)                 # (TN, 256)
    h3 = _gelu_exact(
        jnp.dot(h2.astype(jnp.bfloat16), w3_ref[...],
                preferred_element_type=jnp.float32) + b3_ref[...])         # (TN, 512)
    y = jnp.dot(h3.astype(jnp.bfloat16), w4_ref[...],
                preferred_element_type=jnp.float32) + b4_ref[...]          # (TN, Cout + Cin*Cout)
    _reduce_and_store(v_ref[0], y[:, :cout], y[:, cout:], phi_red_ref, tsum_ref)


def _lowrank_kernel_split34(a_ref, v_ref,
                            w1_ref, b1_ref, w2_ref, b2_ref,
                            w3p_ref, b3p_ref, w4p_ref, b4p_ref,
                            w3s_ref, b3s_ref, w4s_ref, b4s_ref,
                            phi_red_ref, tsum_ref):
    """v5e-and-older variant: layer 3 (K=128) already saturates the 128-deep MXU, so layers
    3 & 4 stay per-head (no zero-block FLOPs); layers 1-2 remain fused."""
    h2 = _heads_l12(a_ref, w1_ref, b1_ref, w2_ref, b2_ref)                 # (TN, 256)
    hsplit = w3p_ref.shape[0]
    h2b = h2.astype(jnp.bfloat16)
    h3p = _gelu_exact(jnp.dot(h2b[:, :hsplit], w3p_ref[...],
                              preferred_element_type=jnp.float32) + b3p_ref[...])
    h3s = _gelu_exact(jnp.dot(h2b[:, hsplit:], w3s_ref[...],
                              preferred_element_type=jnp.float32) + b3s_ref[...])
    phi_red = jnp.dot(h3p.astype(jnp.bfloat16), w4p_ref[...],
                      preferred_element_type=jnp.float32) + b4p_ref[...]
    psi_r = jnp.dot(h3s.astype(jnp.bfloat16), w4s_ref[...],
                    preferred_element_type=jnp.float32) + b4s_ref[...]
    _reduce_and_store(v_ref[0], phi_red, psi_r, phi_red_ref, tsum_ref)


# ------------------------------- wrapper -------------------------------------

def _default_fuse_l34():
    """Full block-diagonal head fusion fills the 256-deep MXU on v6e/v7x; on the 128-deep
    MXUs of <= v5 it would only add zero-block FLOPs, so fall back to per-head layers 3/4."""
    try:
        kind = jax.devices()[0].device_kind.lower()
    except Exception:
        return True
    return not any(tag in kind for tag in ("v2", "v3", "v4", "v5"))


def _block_diag(wa, wb):
    ka, na = wa.shape
    kb, nb = wb.shape
    out = jnp.zeros((ka + kb, na + nb), wa.dtype)
    return out.at[:ka, :na].set(wa).at[ka:, na:].set(wb)


def lowrank1d_forward(v, a, phi_params, psi_params, *, out_channels, in_channels, rank,
                      tile_n=512, fuse_heads_l34=None, n_parallel=None):
    """v: (B, N, Cin) f32, a: (B, N, 2) f32 -> (B, N, Cout) f32."""
    B, N, cin = v.shape
    assert cin == in_channels
    cout = out_channels
    tn = min(tile_n, N)
    assert N % tn == 0, "N must be divisible by the n-tile size"
    n_tiles = N // tn

    if n_parallel is None:
        # Megacore guard (v7x has 2 TensorCores): if B can't be split evenly, split the
        # n-tile axis instead so both cores get work.
        n_parallel = 2 if (B % 2 == 1 and n_tiles % 2 == 0) else 1
    P = n_parallel
    assert n_tiles % P == 0
    J = n_tiles // P

    if fuse_heads_l34 is None:
        fuse_heads_l34 = _default_fuse_l34()

    w1p, b1p, w2p, b2p, w3p, b3p, w4p, b4p = phi_params
    w1s, b1s, w2s, b2s, w3s, b3s, w4s, b4s = psi_params
    h1, h2, h3 = w1p.shape[1], w2p.shape[1], w3p.shape[1]
    assert w4p.shape[1] == cout * cin * rank

    # Exact (linear) pre-reduction of the final DenseNet layers, done once in the wrapper:
    #   phi is only ever used as sum_{i,r} phi[..., o, i, r]  -> width Cout
    #   psi is only ever used as sum_r   psi[..., o, i, r]    -> width Cin*Cout, (i, o) order
    w4p_red = w4p.reshape(h3, cout, cin * rank).sum(-1)                                     # (h3, Cout)
    b4p_red = b4p.reshape(1, cout, cin * rank).sum(-1)                                      # (1, Cout)
    w4s_red = w4s.reshape(h3, cout, cin, rank).sum(-1).transpose(0, 2, 1).reshape(h3, cin * cout)
    b4s_red = b4s.reshape(1, cout, cin, rank).sum(-1).transpose(0, 2, 1).reshape(1, cin * cout)

    # Head-fused weight packing (bf16 for everything that hits the MXU; biases/layer-1 stay f32).
    bf16 = jnp.bfloat16
    w1f = jnp.concatenate([w1p, w1s], axis=1)                    # (2, 2*h1)   VPU FMA weights
    b1f = jnp.concatenate([b1p, b1s], axis=1)
    w2f = _block_diag(w2p, w2s).astype(bf16)                     # (2*h1, 2*h2)
    b2f = jnp.concatenate([b2p, b2s], axis=1)
    if fuse_heads_l34:
        w3f = _block_diag(w3p, w3s).astype(bf16)                 # (2*h2, 2*h3)
        b3f = jnp.concatenate([b3p, b3s], axis=1)
        w4f = _block_diag(w4p_red, w4s_red).astype(bf16)         # (2*h3, Cout + Cin*Cout)
        b4f = jnp.concatenate([b4p_red, b4s_red], axis=1)
        weights = [w1f, b1f, w2f, b2f, w3f, b3f, w4f, b4f]
        kernel = _lowrank_kernel_fused34
    else:
        weights = [w1f, b1f, w2f, b2f,
                   w3p.astype(bf16), b3p, w4p_red.astype(bf16), b4p_red,
                   w3s.astype(bf16), b3s, w4s_red.astype(bf16), b4s_red]
        kernel = _lowrank_kernel_split34

    grid = (B, P, J)

    def nmap(b, p, j):
        return (b, p * J + j, 0)

    def wmap(b, p, j):
        return (0, 0)

    in_specs = [pl.BlockSpec((1, tn, 2), nmap),                    # a tile
                pl.BlockSpec((1, tn, cin), nmap)]                  # v tile
    in_specs += [pl.BlockSpec(w.shape, wmap) for w in weights]     # resident weights

    out_specs = (
        pl.BlockSpec((1, tn, cout), nmap),                         # phi_red tile
        pl.BlockSpec((1, 1, 1, cout), lambda b, p, j: (b, p, 0, 0)),  # partial t_sum (resident over j)
    )
    out_shape = (
        jax.ShapeDtypeStruct((B, N, cout), jnp.float32),
        jax.ShapeDtypeStruct((B, P, 1, cout), jnp.float32),
    )

    # Advisory cost hint (the two MLP heads dominate).
    mm = sum(int(np.prod(w.shape)) for w in weights if w.dtype == bf16)
    flops = int(B * N * (2 * mm + 8 * h1 + 4 * cin * cout))
    transcendentals = int(B * N * 2 * (h1 + h2 + h3))
    param_bytes = sum(int(np.prod(w.shape)) * w.dtype.itemsize for w in weights)
    bytes_accessed = int(4 * (a.size + v.size + B * N * cout + B * P * cout) + param_bytes)

    phi_red, tsum = pl.pallas_call(
        kernel,
        grid=grid,
        in_specs=in_specs,
        out_specs=out_specs,
        out_shape=out_shape,
        compiler_params=pltpu.CompilerParams(
            dimension_semantics=("parallel", "parallel", "arbitrary"),
            vmem_limit_bytes=32 * 1024 * 1024),   # keep <= 32 MiB: safe on v7x's 64 MiB VMEM
        cost_estimate=pl.CostEstimate(flops=flops, transcendentals=transcendentals,
                                      bytes_accessed=bytes_accessed),
    )(a, v, *weights)

    # Finalize in plain JAX (trivial broadcast multiply; no extra pallas_call overhead):
    #   out[b,m,o] = phi_red[b,m,o] * (sum_p t_sum[b,p,o]) / N
    tsum_total = jnp.sum(tsum, axis=1)                # (B, 1, Cout)
    return phi_red * (tsum_total * (1.0 / float(N)))


# ------------------------- param building -----------------------------------

def make_dense_params(key, layers):
    """Deterministic init mimicking torch.nn.Linear: U(-1/sqrt(fan_in), 1/sqrt(fan_in))."""
    params = []
    for j in range(len(layers) - 1):
        fan_in, fan_out = layers[j], layers[j + 1]
        key, kw, kb = jax.random.split(key, 3)
        bound = 1.0 / np.sqrt(fan_in)
        w = jax.random.uniform(kw, (fan_in, fan_out), jnp.float32, -bound, bound)
        b = jax.random.uniform(kb, (1, fan_out), jnp.float32, -bound, bound)
        params += [w, b]
    return params


# ------------------------------ pure-JAX reference ---------------------------

def mlp_ref(x, params):
    h = x
    n_lin = len(params) // 2
    for j in range(n_lin):
        h = h @ params[2 * j] + params[2 * j + 1]
        if j != n_lin - 1:
            h = 0.5 * h * (1.0 + jax.lax.erf(h * 0.7071067811865476))
    return h


def lowrank1d_ref(v, a, phi_params, psi_params, cout, cin, rank):
    B, n, _ = v.shape
    a_flat = a.reshape(B * n, a.shape[-1])
    phi_eval = mlp_ref(a_flat, phi_params).reshape(B, n, cout, cin, rank)
    psi_eval = mlp_ref(a_flat, psi_params).reshape(B, n, cout, cin, rank)
    temp = jnp.einsum('bnoir,bni->bno', psi_eval, v)
    return jnp.einsum('bno,bmoir->bmo', temp, phi_eval) / n


# ---------------------------------- main -------------------------------------

if __name__ == "__main__":
    key = jax.random.PRNGKey(0)
    auto_fuse = _default_fuse_l34()

    # (B, s, width, rank, tile_n):
    #   case 0: even B (batch axis feeds megacore), 2 n-tiles exercise the t_sum accumulator.
    #   case 1: B == 1 -> auto n_parallel = 2 (keeps both v7x TensorCores busy); also flips the
    #           layer-3/4 fusion flag so both kernel variants are validated on any chip.
    configs = [(2, 1024, 4, 2, 512),
               (1, 512, 4, 1, 128)]

    for idx, (B, s, width, rank, tile_n) in enumerate(configs):
        cin = cout = width
        key, k_v, k_a, k_phi, k_psi = jax.random.split(key, 5)
        v = jax.random.normal(k_v, (B, s, cin), dtype=jnp.float32)
        a = jax.random.normal(k_a, (B, s, 2), dtype=jnp.float32)

        layer_sizes = [2, 64, 128, 256, width * width * rank]
        phi_params = make_dense_params(k_phi, layer_sizes)
        psi_params = make_dense_params(k_psi, layer_sizes)

        fuse = auto_fuse if idx == 0 else (not auto_fuse)
        out = lowrank1d_forward(v, a, phi_params, psi_params,
                                out_channels=cout, in_channels=cin, rank=rank,
                                tile_n=tile_n, fuse_heads_l34=fuse)
        out = jax.block_until_ready(out)

        with jax.default_matmul_precision("highest"):
            ref = jax.block_until_ready(
                lowrank1d_ref(v, a, phi_params, psi_params, cout, cin, rank))

        # bf16 MXU matmuls with f32 accumulation vs a full-f32 reference: tolerance widened
        # accordingly (bf16 eps ~ 4e-3 per rounding, 3 matmul layers + bilinear combine).
        np.testing.assert_allclose(np.asarray(out), np.asarray(ref), rtol=3e-2, atol=5e-3)

    print("KERNEL_OK")
</pallas_src>

<mosaic_0001>
module attributes {stable_mosaic.version = 11 : i64} {
  func.func @_lowrank_kernel_fused34(%arg0: i32, %arg1: i32, %arg2: i32, %arg3: memref<1x512x2xf32, #tpu.memory_space<vmem>>, %arg4: memref<1x512x4xf32, #tpu.memory_space<vmem>>, %arg5: memref<2x128xf32, #tpu.memory_space<vmem>>, %arg6: memref<1x128xf32, #tpu.memory_space<vmem>>, %arg7: memref<128x256xbf16, #tpu.memory_space<vmem>>, %arg8: memref<1x256xf32, #tpu.memory_space<vmem>>, %arg9: memref<256x512xbf16, #tpu.memory_space<vmem>>, %arg10: memref<1x512xf32, #tpu.memory_space<vmem>>, %arg11: memref<512x20xbf16, #tpu.memory_space<vmem>>, %arg12: memref<1x20xf32, #tpu.memory_space<vmem>>, %arg13: memref<1x512x4xf32, #tpu.memory_space<vmem>>, %arg14: memref<1x1x1x4xf32, #tpu.memory_space<vmem>>) attributes {dimension_semantics = [#tpu.dimension_semantics<parallel>, #tpu.dimension_semantics<parallel>, #tpu.dimension_semantics<arbitrary>], iteration_bounds = array<i64: 2, 1, 2>, scalar_prefetch = 0 : i64, scratch_operands = 0 : i64, tpu.core_type = #tpu.core_type<tc>, window_params = [{transform_indices = @transform_0, window_bounds = array<i64: 1, 512, 2>}, {transform_indices = @transform_1, window_bounds = array<i64: 1, 512, 4>}, {pipeline_mode = #tpu.pipeline_mode<synchronous>, transform_indices = @transform_2, window_bounds = array<i64: 2, 128>}, {pipeline_mode = #tpu.pipeline_mode<synchronous>, transform_indices = @transform_3, window_bounds = array<i64: 1, 128>}, {pipeline_mode = #tpu.pipeline_mode<synchronous>, transform_indices = @transform_4, window_bounds = array<i64: 128, 256>}, {pipeline_mode = #tpu.pipeline_mode<synchronous>, transform_indices = @transform_5, window_bounds = array<i64: 1, 256>}, {pipeline_mode = #tpu.pipeline_mode<synchronous>, transform_indices = @transform_6, window_bounds = array<i64: 256, 512>}, {pipeline_mode = #tpu.pipeline_mode<synchronous>, transform_indices = @transform_7, window_bounds = array<i64: 1, 512>}, {pipeline_mode = #tpu.pipeline_mode<synchronous>, transform_indices = @transform_8, window_bounds = array<i64: 512, 20>}, {pipeline_mode = #tpu.pipeline_mode<synchronous>, transform_indices = @transform_9, window_bounds = array<i64: 1, 20>}, {transform_indices = @transform_10, window_bounds = array<i64: 1, 512, 4>}, {transform_indices = @transform_11, window_bounds = array<i64: 1, 1, 1, 4>}]} {
    %c0 = arith.constant 0 : index
    %c0_0 = arith.constant 0 : index
    %c0_1 = arith.constant 0 : index
    %0 = vector.load %arg3[%c0, %c0_0, %c0_1] : memref<1x512x2xf32, #tpu.memory_space<vmem>>, vector<1x512x2xf32>
    %1 = vector.shape_cast %0 : vector<1x512x2xf32> to vector<512x2xf32>
    %c0_2 = arith.constant 0 : index
    %c0_3 = arith.constant 0 : index
    %2 = vector.load %arg5[%c0_2, %c0_3] : memref<2x128xf32, #tpu.memory_space<vmem>>, vector<2x128xf32>
    %3 = vector.extract_strided_slice %1 {offsets = [0, 0], sizes = [512, 1], strides = [1, 1]} : vector<512x2xf32> to vector<512x1xf32>
    %4 = vector.extract_strided_slice %2 {offsets = [0, 0], sizes = [1, 128], strides = [1, 1]} : vector<2x128xf32> to vector<1x128xf32>
    %5 = vector.broadcast %3 : vector<512x1xf32> to vector<512x128xf32>
    %6 = vector.broadcast %4 : vector<1x128xf32> to vector<512x128xf32>
    %7 = arith.mulf %5, %6 : vector<512x128xf32>
    %8 = vector.extract_strided_slice %1 {offsets = [0, 1], sizes = [512, 1], strides = [1, 1]} : vector<512x2xf32> to vector<512x1xf32>
    %9 = vector.extract_strided_slice %2 {offsets = [1, 0], sizes = [1, 128], strides = [1, 1]} : vector<2x128xf32> to vector<1x128xf32>
    %10 = vector.broadcast %8 : vector<512x1xf32> to vector<512x128xf32>
    %11 = vector.broadcast %9 : vector<1x128xf32> to vector<512x128xf32>
    %12 = arith.mulf %10, %11 : vector<512x128xf32>
    %13 = arith.addf %7, %12 : vector<512x128xf32>
    %c0_4 = arith.constant 0 : index
    %c0_5 = arith.constant 0 : index
    %14 = vector.load %arg6[%c0_4, %c0_5] : memref<1x128xf32, #tpu.memory_space<vmem>>, vector<1x128xf32>
    %15 = vector.broadcast %14 : vector<1x128xf32> to vector<512x128xf32>
    %16 = arith.addf %13, %15 : vector<512x128xf32>
    %cst = arith.constant 5.000000e-01 : f32
    %17 = vector.broadcast %cst : f32 to vector<512x128xf32>
    %18 = arith.mulf %17, %16 : vector<512x128xf32>
    %cst_6 = arith.constant 0.707106769 : f32
    %19 = vector.broadcast %cst_6 : f32 to vector<512x128xf32>
    %20 = arith.mulf %16, %19 : vector<512x128xf32>
    %21 = math.erf %20 : vector<512x128xf32>
    %cst_7 = arith.constant 1.000000e+00 : f32
    %22 = vector.broadcast %cst_7 : f32 to vector<512x128xf32>
    %23 = arith.addf %22, %21 : vector<512x128xf32>
    %24 = arith.mulf %18, %23 : vector<512x128xf32>
    %25 = arith.truncf %24 : vector<512x128xf32> to vector<512x128xbf16>
    %c0_8 = arith.constant 0 : index
    %c0_9 = arith.constant 0 : index
    %26 = vector.load %arg7[%c0_8, %c0_9] : memref<128x256xbf16, #tpu.memory_space<vmem>>, vector<128x256xbf16>
    %cst_10 = arith.constant dense<0.000000e+00> : vector<512x256xf32>
    %27 = tpu.matmul %25, %26, %cst_10 {dimension_numbers = #tpu.dot_dimension_numbers<[1], [0], [0], [1], [0, 0, 1, 1], [], []>} : vector<512x128xbf16>, vector<128x256xbf16>, vector<512x256xf32> -> vector<512x256xf32>
    %c0_11 = arith.constant 0 : index
    %c0_12 = arith.constant 0 : index
    %28 = vector.load %arg8[%c0_11, %c0_12] : memref<1x256xf32, #tpu.memory_space<vmem>>, vector<1x256xf32>
    %29 = vector.broadcast %28 : vector<1x256xf32> to vector<512x256xf32>
    %30 = arith.addf %27, %29 : vector<512x256xf32>
    %cst_13 = arith.constant 5.000000e-01 : f32
    %31 = vector.broadcast %cst_13 : f32 to vector<512x256xf32>
    %32 = arith.mulf %31, %30 : vector<512x256xf32>
    %cst_14 = arith.constant 0.707106769 : f32
    %33 = vector.broadcast %cst_14 : f32 to vector<512x256xf32>
    %34 = arith.mulf %30, %33 : vector<512x256xf32>
    %35 = math.erf %34 : vector<512x256xf32>
    %cst_15 = arith.constant 1.000000e+00 : f32
    %36 = vector.broadcast %cst_15 : f32 to vector<512x256xf32>
    %37 = arith.addf %36, %35 : vector<512x256xf32>
    %38 = arith.mulf %32, %37 : vector<512x256xf32>
    %39 = arith.truncf %38 : vector<512x256xf32> to vector<512x256xbf16>
    %c0_16 = arith.constant 0 : index
    %c0_17 = arith.constant 0 : index
    %40 = vector.load %arg9[%c0_16, %c0_17] : memref<256x512xbf16, #tpu.memory_space<vmem>>, vector<256x512xbf16>
    %cst_18 = arith.constant dense<0.000000e+00> : vector<512x512xf32>
    %41 = tpu.matmul %39, %40, %cst_18 {dimension_numbers = #tpu.dot_dimension_numbers<[1], [0], [0], [1], [0, 0, 1, 1], [], []>} : vector<512x256xbf16>, vector<256x512xbf16>, vector<512x512xf32> -> vector<512x512xf32>
    %c0_19 = arith.constant 0 : index
    %c0_20 = arith.constant 0 : index
    %42 = vector.load %arg10[%c0_19, %c0_20] : memref<1x512xf32, #tpu.memory_space<vmem>>, vector<1x512xf32>
    %43 = vector.broadcast %42 : vector<1x512xf32> to vector<512x512xf32>
    %44 = arith.addf %41, %43 : vector<512x512xf32>
    %cst_21 = arith.constant 5.000000e-01 : f32
    %45 = vector.broadcast %cst_21 : f32 to vector<512x512xf32>
    %46 = arith.mulf %45, %44 : vector<512x512xf32>
    %cst_22 = arith.constant 0.707106769 : f32
    %47 = vector.broadcast %cst_22 : f32 to vector<512x512xf32>
    %48 = arith.mulf %44, %47 : vector<512x512xf32>
    %49 = math.erf %48 : vector<512x512xf32>
    %cst_23 = arith.constant 1.000000e+00 : f32
    %50 = vector.broadcast %cst_23 : f32 to vector<512x512xf32>
    %51 = arith.addf %50, %49 : vector<512x512xf32>
    %52 = arith.mulf %46, %51 : vector<512x512xf32>
    %53 = arith.truncf %52 : vector<512x512xf32> to vector<512x512xbf16>
    %c0_24 = arith.constant 0 : index
    %c0_25 = arith.constant 0 : index
    %54 = vector.load %arg11[%c0_24, %c0_25] : memref<512x20xbf16, #tpu.memory_space<vmem>>, vector<512x20xbf16>
    %cst_26 = arith.constant dense<0.000000e+00> : vector<512x20xf32>
    %55 = tpu.matmul %53, %54, %cst_26 {dimension_numbers = #tpu.dot_dimension_numbers<[1], [0], [0], [1], [0, 0, 1, 1], [], []>} : vector<512x512xbf16>, vector<512x20xbf16>, vector<512x20xf32> -> vector<512x20xf32>
    %c0_27 = arith.constant 0 : index
    %c0_28 = arith.constant 0 : index
    %56 = vector.load %arg12[%c0_27, %c0_28] : memref<1x20xf32, #tpu.memory_space<vmem>>, vector<1x20xf32>
    %57 = vector.broadcast %56 : vector<1x20xf32> to vector<512x20xf32>
    %58 = arith.addf %55, %57 : vector<512x20xf32>
    %c0_29 = arith.constant 0 : index
    %c0_30 = arith.constant 0 : index
    %c0_31 = arith.constant 0 : index
    %59 = vector.load %arg4[%c0_29, %c0_30, %c0_31] : memref<1x512x4xf32, #tpu.memory_space<vmem>>, vector<1x512x4xf32>
    %60 = vector.shape_cast %59 : vector<1x512x4xf32> to vector<512x4xf32>
    %61 = vector.extract_strided_slice %58 {offsets = [0, 0], sizes = [512, 4], strides = [1, 1]} : vector<512x20xf32> to vector<512x4xf32>
    %62 = vector.extract_strided_slice %58 {offsets = [0, 4], sizes = [512, 16], strides = [1, 1]} : vector<512x20xf32> to vector<512x16xf32>
    %63 = vector.extract_strided_slice %62 {offsets = [0, 0], sizes = [512, 4], strides = [1, 1]} : vector<512x16xf32> to vector<512x4xf32>
    %64 = vector.extract_strided_slice %60 {offsets = [0, 0], sizes = [512, 1], strides = [1, 1]} : vector<512x4xf32> to vector<512x1xf32>
    %65 = vector.broadcast %64 : vector<512x1xf32> to vector<512x4xf32>
    %66 = arith.mulf %63, %65 : vector<512x4xf32>
    %67 = vector.extract_strided_slice %62 {offsets = [0, 4], sizes = [512, 4], strides = [1, 1]} : vector<512x16xf32> to vector<512x4xf32>
    %68 = vector.extract_strided_slice %60 {offsets = [0, 1], sizes = [512, 1], strides = [1, 1]} : vector<512x4xf32> to vector<512x1xf32>
    %69 = vector.broadcast %68 : vector<512x1xf32> to vector<512x4xf32>
    %70 = arith.mulf %67, %69 : vector<512x4xf32>
    %71 = arith.addf %66, %70 : vector<512x4xf32>
    %72 = vector.extract_strided_slice %62 {offsets = [0, 8], sizes = [512, 4], strides = [1, 1]} : vector<512x16xf32> to vector<512x4xf32>
    %73 = vector.extract_strided_slice %60 {offsets = [0, 2], sizes = [512, 1], strides = [1, 1]} : vector<512x4xf32> to vector<512x1xf32>
    %74 = vector.broadcast %73 : vector<512x1xf32> to vector<512x4xf32>
    %75 = arith.mulf %72, %74 : vector<512x4xf32>
    %76 = arith.addf %71, %75 : vector<512x4xf32>
    %77 = vector.extract_strided_slice %62 {offsets = [0, 12], sizes = [512, 4], strides = [1, 1]} : vector<512x16xf32> to vector<512x4xf32>
    %78 = vector.extract_strided_slice %60 {offsets = [0, 3], sizes = [512, 1], strides = [1, 1]} : vector<512x4xf32> to vector<512x1xf32>
    %79 = vector.broadcast %78 : vector<512x1xf32> to vector<512x4xf32>
    %80 = arith.mulf %77, %79 : vector<512x4xf32>
    %81 = arith.addf %76, %80 : vector<512x4xf32>
    %c0_32 = arith.constant 0 : index
    %c0_33 = arith.constant 0 : index
    %c0_34 = arith.constant 0 : index
    %82 = vector.load %arg13[%c0_32, %c0_33, %c0_34] : memref<1x512x4xf32, #tpu.memory_space<vmem>>, vector<1x512x4xf32>
    %83 = vector.shape_cast %82 : vector<1x512x4xf32> to vector<512x4xf32>
    %84 = vector.shape_cast %61 : vector<512x4xf32> to vector<1x512x4xf32>
    tpu.vector_store %arg13[%c0_32, %c0_33, %c0_34], %84 {strides = array<i32>} : memref<1x512x4xf32, #tpu.memory_space<vmem>>, vector<1x512x4xf32>,
    %c0_i32 = arith.constant 0 : i32
    %85 = arith.cmpi eq, %arg2, %c0_i32 : i32
    %86 = arith.extui %85 : i1 to i32
    %c0_i32_35 = arith.constant 0 : i32
    %87 = arith.cmpi ne, %86, %c0_i32_35 : i32
    scf.if %87 {
      %cst_45 = arith.constant 0.000000e+00 : f32
      %96 = vector.broadcast %cst_45 : f32 to vector<1x1x1x4xf32>
      %c0_46 = arith.constant 0 : index
      %c0_47 = arith.constant 0 : index
      %c0_48 = arith.constant 0 : index
      %c0_49 = arith.constant 0 : index
      %97 = vector.load %arg14[%c0_46, %c0_47, %c0_48, %c0_49] : memref<1x1x1x4xf32, #tpu.memory_space<vmem>>, vector<1x1x1x4xf32>
      tpu.vector_store %arg14[%c0_46, %c0_47, %c0_48, %c0_49], %96 {strides = array<i32>} : memref<1x1x1x4xf32, #tpu.memory_space<vmem>>, vector<1x1x1x4xf32>,
    } else {
    }
    %c0_36 = arith.constant 0 : index
    %c0_37 = arith.constant 0 : index
    %c0_38 = arith.constant 0 : index
    %c0_39 = arith.constant 0 : index
    %88 = vector.load %arg14[%c0_36, %c0_37, %c0_38, %c0_39] : memref<1x1x1x4xf32, #tpu.memory_space<vmem>>, vector<1x1x1x4xf32>
    %89 = vector.shape_cast %88 : vector<1x1x1x4xf32> to vector<1x4xf32>
    %cst_40 = arith.constant dense<0.000000e+00> : vector<4xf32>
    %90 = vector.multi_reduction <add>, %81, %cst_40 [0] : vector<512x4xf32> to vector<4xf32>
    %91 = vector.shape_cast %90 : vector<4xf32> to vector<1x4xf32>
    %92 = arith.addf %89, %91 : vector<1x4xf32>
    %c0_41 = arith.constant 0 : index
    %c0_42 = arith.constant 0 : index
    %c0_43 = arith.constant 0 : index
    %c0_44 = arith.constant 0 : index
    %93 = vector.load %arg14[%c0_41, %c0_42, %c0_43, %c0_44] : memref<1x1x1x4xf32, #tpu.memory_space<vmem>>, vector<1x1x1x4xf32>
    %94 = vector.shape_cast %93 : vector<1x1x1x4xf32> to vector<1x4xf32>
    %95 = vector.shape_cast %92 : vector<1x4xf32> to vector<1x1x1x4xf32>
    tpu.vector_store %arg14[%c0_41, %c0_42, %c0_43, %c0_44], %95 {strides = array<i32>} : memref<1x1x1x4xf32, #tpu.memory_space<vmem>>, vector<1x1x1x4xf32>,
    return
  }
  func.func @transform_0(%arg0: i32, %arg1: i32, %arg2: i32) -> (i32, i32, i32) {
    %c2_i32 = arith.constant 2 : i32
    %0 = arith.muli %arg1, %c2_i32 : i32
    %1 = arith.addi %0, %arg2 : i32
    %c0_i32 = arith.constant 0 : i32
    %c0_i32_0 = arith.constant 0 : i32
    return %arg0, %1, %c0_i32 : i32, i32, i32
  }
  func.func @transform_1(%arg0: i32, %arg1: i32, %arg2: i32) -> (i32, i32, i32) {
    %c2_i32 = arith.constant 2 : i32
    %0 = arith.muli %arg1, %c2_i32 : i32
    %1 = arith.addi %0, %arg2 : i32
    %c0_i32 = arith.constant 0 : i32
    %c0_i32_0 = arith.constant 0 : i32
    return %arg0, %1, %c0_i32 : i32, i32, i32
  }
  func.func @transform_2(%arg0: i32, %arg1: i32, %arg2: i32) -> (i32, i32) {
    %c0_i32 = arith.constant 0 : i32
    %c0_i32_0 = arith.constant 0 : i32
    %c0_i32_1 = arith.constant 0 : i32
    return %c0_i32, %c0_i32_0 : i32, i32
  }
  func.func @transform_3(%arg0: i32, %arg1: i32, %arg2: i32) -> (i32, i32) {
    %c0_i32 = arith.constant 0 : i32
    %c0_i32_0 = arith.constant 0 : i32
    %c0_i32_1 = arith.constant 0 : i32
    return %c0_i32, %c0_i32_0 : i32, i32
  }
  func.func @transform_4(%arg0: i32, %arg1: i32, %arg2: i32) -> (i32, i32) {
    %c0_i32 = arith.constant 0 : i32
    %c0_i32_0 = arith.constant 0 : i32
    %c0_i32_1 = arith.constant 0 : i32
    return %c0_i32, %c0_i32_0 : i32, i32
  }
  func.func @transform_5(%arg0: i32, %arg1: i32, %arg2: i32) -> (i32, i32) {
    %c0_i32 = arith.constant 0 : i32
    %c0_i32_0 = arith.constant 0 : i32
    %c0_i32_1 = arith.constant 0 : i32
    return %c0_i32, %c0_i32_0 : i32, i32
  }
  func.func @transform_6(%arg0: i32, %arg1: i32, %arg2: i32) -> (i32, i32) {
    %c0_i32 = arith.constant 0 : i32
    %c0_i32_0 = arith.constant 0 : i32
    %c0_i32_1 = arith.constant 0 : i32
    return %c0_i32, %c0_i32_0 : i32, i32
  }
  func.func @transform_7(%arg0: i32, %arg1: i32, %arg2: i32) -> (i32, i32) {
    %c0_i32 = arith.constant 0 : i32
    %c0_i32_0 = arith.constant 0 : i32
    %c0_i32_1 = arith.constant 0 : i32
    return %c0_i32, %c0_i32_0 : i32, i32
  }
  func.func @transform_8(%arg0: i32, %arg1: i32, %arg2: i32) -> (i32, i32) {
    %c0_i32 = arith.constant 0 : i32
    %c0_i32_0 = arith.constant 0 : i32
    %c0_i32_1 = arith.constant 0 : i32
    return %c0_i32, %c0_i32_0 : i32, i32
  }
  func.func @transform_9(%arg0: i32, %arg1: i32, %arg2: i32) -> (i32, i32) {
    %c0_i32 = arith.constant 0 : i32
    %c0_i32_0 = arith.constant 0 : i32
    %c0_i32_1 = arith.constant 0 : i32
    return %c0_i32, %c0_i32_0 : i32, i32
  }
  func.func @transform_10(%arg0: i32, %arg1: i32, %arg2: i32) -> (i32, i32, i32) {
    %c2_i32 = arith.constant 2 : i32
    %0 = arith.muli %arg1, %c2_i32 : i32
    %1 = arith.addi %0, %arg2 : i32
    %c0_i32 = arith.constant 0 : i32
    %c0_i32_0 = arith.constant 0 : i32
    return %arg0, %1, %c0_i32 : i32, i32, i32
  }
  func.func @transform_11(%arg0: i32, %arg1: i32, %arg2: i32) -> (i32, i32, i32, i32) {
    %c0_i32 = arith.constant 0 : i32
    %c0_i32_0 = arith.constant 0 : i32
    %c0_i32_1 = arith.constant 0 : i32
    return %arg0, %arg1, %c0_i32, %c0_i32_0 : i32, i32, i32, i32
  }
}

</mosaic_0001>

<llo_original>
// kernel: tpu_custom_call.1
$region0: #{tpu_custom_call.1}
  #allocation0 [shape = 'u32[]', space=smem, size = 0x4, offset = 0x4, fixed_abs, tag = 'smem constant byte address 0x4 - core index']
  #allocation1 [shape = 'u32[144,128]{1,0:T(1,128)}', space=vmem, size = 0x12000, scoped, tag = 'internal scratch']
  %s0 = inlined_call_operand.vmem [shape: f32[2,1024,2], index: 0, kind: input, shape index: {}]
  %s1 = inlined_call_operand.vmem [shape: f32[2,1024,4], index: 1, kind: input, shape index: {}]
  %s2 = inlined_call_operand.vmem [shape: f32[2,128], index: 2, kind: input, shape index: {}]
  %s3 = inlined_call_operand.vmem [shape: f32[1,128], index: 3, kind: input, shape index: {}]
  %s4 = inlined_call_operand.vmem [shape: bf16[128,256], index: 4, kind: input, shape index: {}]
  %s5 = inlined_call_operand.vmem [shape: f32[1,256], index: 5, kind: input, shape index: {}]
  %s6 = inlined_call_operand.vmem [shape: bf16[256,512], index: 6, kind: input, shape index: {}]
  %s7 = inlined_call_operand.vmem [shape: f32[1,512], index: 7, kind: input, shape index: {}]
  %s8 = inlined_call_operand.vmem [shape: bf16[512,20], index: 8, kind: input, shape index: {}]
  %s9 = inlined_call_operand.vmem [shape: f32[1,20], index: 9, kind: input, shape index: {}]
  %s10 = inlined_call_operand.vmem [shape: f32[2,1024,4], index: 10, kind: output, shape index: {0}]
  %s11 = inlined_call_operand.hbm [shape: f32[2,1,1,4], index: 11, kind: output, shape index: {1}]
  %12 = xla_tuple %s10, %s11
  %s13 = sld [smem:[#allocation0]]
  $region85: #{tpu_custom_call.1} parent=0
    _
  %s15 = ssub.s32 1, %s13
  %s16 = scalar_select 0, %s15, %s13
  $region1: #{tpu_custom_call.1} parent=0
    #allocation2 [shape = 'u8[1024]{0}', space=vmem, size = 0x400, scoped, tag = 'output window, operand 1']
    #allocation3 [shape = 's32[2]{0}', space=sflag, size = 0x8, scoped, tag = 'scoped memory for tpu_custom_call.1']
    %17 = vsyncpa [#allocation3], 0
    %s18 = scalar_lea.sflag [#allocation3], 1
    %19 = vsyncpa %s18, 0
    loop: start=0, step=1, limit=6
    $region2: #{tpu_custom_call.1} parent=1 // loop_pre_header
      _
    $region3: #{tpu_custom_call.1} parent=1 // loop_header
      %s21 = sphi 0, %s25
      %p22 = scmp.ge.s32.totalorder %s21, 6
      %s28 = sphi 0, %s47
      %s29 = sphi 0, %s43
      %s30 = sphi 0, %s39
      %s31 = sphi 0, %s28
      %s32 = sphi 0, %s29
      %s33 = sphi 0, %s30
      %s34 = sphi 0, %s31
      %s35 = sphi 0, %s32
      %s36 = sphi 0, %s33
      %s56 = sphi 0, %s58
      %s59 = sphi 0, %s56
      %s60 = sphi 0, %s59
      %s76 = sphi 0, %s60
      %s88 = sphi 0, %s90
      %s91 = sphi 0, %s88
      %s92 = sphi 0, %s91
      %s108 = sphi 0, %s92
      %s112 = sphi 0, %s112
      %s114 = sphi 0, %s112
      %s115 = sphi 0, %s114
      %s129 = sphi 0, %s115
      %s133 = sphi 0, %s133
      %s135 = sphi 0, %s133
      %s136 = sphi 0, %s135
      %s150 = sphi 0, %s136
      %s154 = sphi 0, %s154
      %s156 = sphi 0, %s154
      %s157 = sphi 0, %s156
      %s171 = sphi 0, %s157
      %s175 = sphi 0, %s175
      %s177 = sphi 0, %s175
      %s178 = sphi 0, %s177
      %s192 = sphi 0, %s178
      %s196 = sphi 0, %s196
      %s198 = sphi 0, %s196
      %s199 = sphi 0, %s198
      %s213 = sphi 0, %s199
      %s217 = sphi 0, %s217
      %s219 = sphi 0, %s217
      %s220 = sphi 0, %s219
      %s234 = sphi 0, %s220
      %s238 = sphi 0, %s238
      %s240 = sphi 0, %s238
      %s241 = sphi 0, %s240
      %s255 = sphi 0, %s241
      %s259 = sphi 0, %s259
      %s261 = sphi 0, %s259
      %s262 = sphi 0, %s261
      %s276 = sphi 0, %s262
      %s288 = sphi 0, %s290
      %s291 = sphi 0, %s288
      %s292 = sphi 0, %s291
      %s308 = sphi 0, %s292
      %s316 = sphi 0, %s318
      %s319 = sphi 0, %s316
      %s320 = sphi 0, %s319
      %s336 = sphi 0, %s320
    $region4: #{tpu_custom_call.1} parent=1 // loop_header_branch
      %24 = sbr.rel (%p22) target = $region8
    $region5: #{tpu_custom_call.1} parent=1 // loop_body
      %s26 = ssub.s32 %s21, 1
      %s27 = ssub.s32 %s21, 2
      %s37 = sadd.s32 1, %s30
      %p38 = scmp.ge.s32.totalorder %s37, 2
      %s39 = scalar_select %p38, 0, %s37
      %s40 = sadd.s32 1, %s29
      %s41 = scalar_select %p38, %s40, %s29
      %p42 = scmp.ge.s32.totalorder %s41, 1
      %s43 = scalar_select %p42, 0, %s41
      %s44 = sadd.s32 1, %s28
      %s45 = scalar_select %p42, %s44, %s28
      %p46 = scmp.ge.s32.totalorder %s45, 2
      %s47 = scalar_select %p46, 0, %s45
      %s48 = smul.u32 %s29, 2
      %s49 = sadd.s32 %s48, %s30
      %s50 = smul.u32 %s43, 2
      %s51 = sadd.s32 %s50, %s39
      %s52 = ssub.s32 %s28, %s47
      %s53 = ssub.s32 %s49, %s51
      %s54 = sor.u32 %s52, %s53
      %p55 = scmp.eq.s32.totalorder %s54, 0
      %s57 = sadd.s32 %s56, 1
      %s58 = scalar_select %p55, %s56, %s57
      %p61 = pneg %p55
      %p62 = scmp.eq.s32.totalorder %s21, 3
      %p63 = por %p61, %p62
      %p64 = scmp.ne.s32.totalorder %s56, %s59
      %p65 = scmp.eq.s32.totalorder %s21, 0
      %p66 = por %p64, %p65
      %p67 = scmp.ne.s32.totalorder %s56, %s59
      %p68 = scmp.eq.s32.totalorder %s26, 3
      %p69 = por %p67, %p68
      %p70 = scmp.ne.s32.totalorder %s59, %s60
      %p71 = scmp.eq.s32.totalorder %s26, 0
      %p72 = por %p70, %p71
      %p73 = scmp.ne.s32.totalorder %s59, %s60
      %p74 = scmp.eq.s32.totalorder %s27, 3
      %p75 = por %p73, %p74
      %p77 = scmp.ne.s32.totalorder %s60, %s76
      %p78 = scmp.eq.s32.totalorder %s27, 0
      %p79 = por %p77, %p78
      %s80 = smul.u32 %s29, 2
      %s81 = sadd.s32 %s80, %s30
      %s82 = smul.u32 %s43, 2
      %s83 = sadd.s32 %s82, %s39
      %s84 = ssub.s32 %s28, %s47
      %s85 = ssub.s32 %s81, %s83
      %s86 = sor.u32 %s84, %s85
      %p87 = scmp.eq.s32.totalorder %s86, 0
      %s89 = sadd.s32 %s88, 1
      %s90 = scalar_select %p87, %s88, %s89
      %p93 = pneg %p87
      %p94 = scmp.eq.s32.totalorder %s21, 3
      %p95 = por %p93, %p94
      %p96 = scmp.ne.s32.totalorder %s88, %s91
      %p97 = scmp.eq.s32.totalorder %s21, 0
      %p98 = por %p96, %p97
      %p99 = scmp.ne.s32.totalorder %s88, %s91
      %p100 = scmp.eq.s32.totalorder %s26, 3
      %p101 = por %p99, %p100
      %p102 = scmp.ne.s32.totalorder %s91, %s92
      %p103 = scmp.eq.s32.totalorder %s26, 0
      %p104 = por %p102, %p103
      %p105 = scmp.ne.s32.totalorder %s91, %s92
      %p106 = scmp.eq.s32.totalorder %s27, 3
      %p107 = por %p105, %p106
      %p109 = scmp.ne.s32.totalorder %s92, %s108
      %p110 = scmp.eq.s32.totalorder %s27, 0
      %p111 = por %p109, %p110
      %s113 = sadd.s32 %s112, 1
      %p116 = scmp.eq.s32.totalorder %s21, 3
      %p117 = scmp.ne.s32.totalorder %s112, %s114
      %p118 = scmp.eq.s32.totalorder %s21, 0
      %p119 = por %p117, %p118
      %p120 = scmp.ne.s32.totalorder %s112, %s114
      %p121 = scmp.eq.s32.totalorder %s26, 3
      %p122 = por %p120, %p121
      %p123 = scmp.ne.s32.totalorder %s114, %s115
      %p124 = scmp.eq.s32.totalorder %s26, 0
      %p125 = por %p123, %p124
      %p126 = scmp.ne.s32.totalorder %s114, %s115
      %p127 = scmp.eq.s32.totalorder %s27, 3
      %p128 = por %p126, %p127
      %p130 = scmp.ne.s32.totalorder %s115, %s129
      %p131 = scmp.eq.s32.totalorder %s27, 0
      %p132 = por %p130, %p131
      %s134 = sadd.s32 %s133, 1
      %p137 = scmp.eq.s32.totalorder %s21, 3
      %p138 = scmp.ne.s32.totalorder %s133, %s135
      %p139 = scmp.eq.s32.totalorder %s21, 0
      %p140 = por %p138, %p139
      %p141 = scmp.ne.s32.totalorder %s133, %s135
      %p142 = scmp.eq.s32.totalorder %s26, 3
      %p143 = por %p141, %p142
      %p144 = scmp.ne.s32.totalorder %s135, %s136
      %p145 = scmp.eq.s32.totalorder %s26, 0
      %p146 = por %p144, %p145
      %p147 = scmp.ne.s32.totalorder %s135, %s136
      %p148 = scmp.eq.s32.totalorder %s27, 3
      %p149 = por %p147, %p148
      %p151 = scmp.ne.s32.totalorder %s136, %s150
      %p152 = scmp.eq.s32.totalorder %s27, 0
      %p153 = por %p151, %p152
      %s155 = sadd.s32 %s154, 1
      %p158 = scmp.eq.s32.totalorder %s21, 3
      %p159 = scmp.ne.s32.totalorder %s154, %s156
      %p160 = scmp.eq.s32.totalorder %s21, 0
      %p161 = por %p159, %p160
      %p162 = scmp.ne.s32.totalorder %s154, %s156
      %p163 = scmp.eq.s32.totalorder %s26, 3
      %p164 = por %p162, %p163
      %p165 = scmp.ne.s32.totalorder %s156, %s157
      %p166 = scmp.eq.s32.totalorder %s26, 0
      %p167 = por %p165, %p166
      %p168 = scmp.ne.s32.totalorder %s156, %s157
      %p169 = scmp.eq.s32.totalorder %s27, 3
      %p170 = por %p168, %p169
      %p172 = scmp.ne.s32.totalorder %s157, %s171
      %p173 = scmp.eq.s32.totalorder %s27, 0
      %p174 = por %p172, %p173
      %s176 = sadd.s32 %s175, 1
      %p179 = scmp.eq.s32.totalorder %s21, 3
      %p180 = scmp.ne.s32.totalorder %s175, %s177
      %p181 = scmp.eq.s32.totalorder %s21, 0
      %p182 = por %p180, %p181
      %p183 = scmp.ne.s32.totalorder %s175, %s177
      %p184 = scmp.eq.s32.totalorder %s26, 3
      %p185 = por %p183, %p184
      %p186 = scmp.ne.s32.totalorder %s177, %s178
      %p187 = scmp.eq.s32.totalorder %s26, 0
      %p188 = por %p186, %p187
      %p189 = scmp.ne.s32.totalorder %s177, %s178
      %p190 = scmp.eq.s32.totalorder %s27, 3
      %p191 = por %p189, %p190
      %p193 = scmp.ne.s32.totalorder %s178, %s192
      %p194 = scmp.eq.s32.totalorder %s27, 0
      %p195 = por %p193, %p194
      %s197 = sadd.s32 %s196, 1
      %p200 = scmp.eq.s32.totalorder %s21, 3
      %p201 = scmp.ne.s32.totalorder %s196, %s198
      %p202 = scmp.eq.s32.totalorder %s21, 0
      %p203 = por %p201, %p202
      %p204 = scmp.ne.s32.totalorder %s196, %s198
      %p205 = scmp.eq.s32.totalorder %s26, 3
      %p206 = por %p204, %p205
      %p207 = scmp.ne.s32.totalorder %s198, %s199
      %p208 = scmp.eq.s32.totalorder %s26, 0
      %p209 = por %p207, %p208
      %p210 = scmp.ne.s32.totalorder %s198, %s199
      %p211 = scmp.eq.s32.totalorder %s27, 3
      %p212 = por %p210, %p211
      %p214 = scmp.ne.s32.totalorder %s199, %s213
      %p215 = scmp.eq.s32.totalorder %s27, 0
      %p216 = por %p214, %p215
      %s218 = sadd.s32 %s217, 1
      %p221 = scmp.eq.s32.totalorder %s21, 3
      %p222 = scmp.ne.s32.totalorder %s217, %s219
      %p223 = scmp.eq.s32.totalorder %s21, 0
      %p224 = por %p222, %p223
      %p225 = scmp.ne.s32.totalorder %s217, %s219
      %p226 = scmp.eq.s32.totalorder %s26, 3
      %p227 = por %p225, %p226
      %p228 = scmp.ne.s32.totalorder %s219, %s220
      %p229 = scmp.eq.s32.totalorder %s26, 0
      %p230 = por %p228, %p229
      %p231 = scmp.ne.s32.totalorder %s219, %s220
      %p232 = scmp.eq.s32.totalorder %s27, 3
      %p233 = por %p231, %p232
      %p235 = scmp.ne.s32.totalorder %s220, %s234
      %p236 = scmp.eq.s32.totalorder %s27, 0
      %p237 = por %p235, %p236
      %s239 = sadd.s32 %s238, 1
      %p242 = scmp.eq.s32.totalorder %s21, 3
      %p243 = scmp.ne.s32.totalorder %s238, %s240
      %p244 = scmp.eq.s32.totalorder %s21, 0
      %p245 = por %p243, %p244
      %p246 = scmp.ne.s32.totalorder %s238, %s240
      %p247 = scmp.eq.s32.totalorder %s26, 3
      %p248 = por %p246, %p247
      %p249 = scmp.ne.s32.totalorder %s240, %s241
      %p250 = scmp.eq.s32.totalorder %s26, 0
      %p251 = por %p249, %p250
      %p252 = scmp.ne.s32.totalorder %s240, %s241
      %p253 = scmp.eq.s32.totalorder %s27, 3
      %p254 = por %p252, %p253
      %p256 = scmp.ne.s32.totalorder %s241, %s255
      %p257 = scmp.eq.s32.totalorder %s27, 0
      %p258 = por %p256, %p257
      %s260 = sadd.s32 %s259, 1
      %p263 = scmp.eq.s32.totalorder %s21, 3
      %p264 = scmp.ne.s32.totalorder %s259, %s261
      %p265 = scmp.eq.s32.totalorder %s21, 0
      %p266 = por %p264, %p265
      %p267 = scmp.ne.s32.totalorder %s259, %s261
      %p268 = scmp.eq.s32.totalorder %s26, 3
      %p269 = por %p267, %p268
      %p270 = scmp.ne.s32.totalorder %s261, %s262
      %p271 = scmp.eq.s32.totalorder %s26, 0
      %p272 = por %p270, %p271
      %p273 = scmp.ne.s32.totalorder %s261, %s262
      %p274 = scmp.eq.s32.totalorder %s27, 3
      %p275 = por %p273, %p274
      %p277 = scmp.ne.s32.totalorder %s262, %s276
      %p278 = scmp.eq.s32.totalorder %s27, 0
      %p279 = por %p277, %p278
      %s280 = smul.u32 %s29, 2
      %s281 = sadd.s32 %s280, %s30
      %s282 = smul.u32 %s43, 2
      %s283 = sadd.s32 %s282, %s39
      %s284 = ssub.s32 %s28, %s47
      %s285 = ssub.s32 %s281, %s283
      %s286 = sor.u32 %s284, %s285
      %p287 = scmp.eq.s32.totalorder %s286, 0
      %s289 = sadd.s32 %s288, 1
      %s290 = scalar_select %p287, %s288, %s289
      %p293 = pneg %p287
      %p294 = scmp.eq.s32.totalorder %s21, 3
      %p295 = por %p293, %p294
      %p296 = scmp.ne.s32.totalorder %s288, %s291
      %p297 = scmp.eq.s32.totalorder %s21, 0
      %p298 = por %p296, %p297
      %p299 = scmp.ne.s32.totalorder %s288, %s291
      %p300 = scmp.eq.s32.totalorder %s26, 3
      %p301 = por %p299, %p300
      %p302 = scmp.ne.s32.totalorder %s291, %s292
      %p303 = scmp.eq.s32.totalorder %s26, 0
      %p304 = por %p302, %p303
      %p305 = scmp.ne.s32.totalorder %s291, %s292
      %p306 = scmp.eq.s32.totalorder %s27, 3
      %p307 = por %p305, %p306
      %p309 = scmp.ne.s32.totalorder %s292, %s308
      %p310 = scmp.eq.s32.totalorder %s27, 0
      %p311 = por %p309, %p310
      %s312 = ssub.s32 %s28, %s47
      %s313 = ssub.s32 %s29, %s43
      %s314 = sor.u32 %s312, %s313
      %p315 = scmp.eq.s32.totalorder %s314, 0
      %s317 = sadd.s32 %s316, 1
      %s318 = scalar_select %p315, %s316, %s317
      %p321 = pneg %p315
      %p322 = scmp.eq.s32.totalorder %s21, 3
      %p323 = por %p321, %p322
      %p324 = scmp.ne.s32.totalorder %s316, %s319
      %p325 = scmp.eq.s32.totalorder %s21, 0
      %p326 = por %p324, %p325
      %p327 = scmp.ne.s32.totalorder %s316, %s319
      %p328 = scmp.eq.s32.totalorder %s26, 3
      %p329 = por %p327, %p328
      %p330 = scmp.ne.s32.totalorder %s319, %s320
      %p331 = scmp.eq.s32.totalorder %s26, 0
      %p332 = por %p330, %p331
      %p333 = scmp.ne.s32.totalorder %s319, %s320
      %p334 = scmp.eq.s32.totalorder %s27, 3
      %p335 = por %p333, %p334
      %p337 = scmp.ne.s32.totalorder %s320, %s336
      %p338 = scmp.eq.s32.totalorder %s27, 0
      %p339 = por %p337, %p338
      %p340 = scmp.le.s32.totalorder 1, %s21
      %p341 = scmp.lt.s32.totalorder %s21, 5
      %p342 = pnand %p340, %p341
      %p343 = pneg %p342
      // Predicated region
      $region9: #{tpu_custom_call.1} parent=5 // pred_check
        _
      $region10: #{tpu_custom_call.1} parent=5 // pred_check_branch
        %345 = sbr.rel (%p342) target = $region12
      $region11: #{tpu_custom_call.1} parent=5 // pred_region
        %s346 = ssub.s32 %s21, 1
        // Predicated region
        $region13: #{tpu_custom_call.1} parent=11 // pred_check
          %p347 = pneg %p125
        $region14: #{tpu_custom_call.1} parent=11 // pred_check_branch
          %349 = sbr.rel (%p347) target = $region16
        $region15: #{tpu_custom_call.1} parent=11 // pred_region
          _
        $region16: #{tpu_custom_call.1} parent=11 // pred_fallthru
          _
        // Predicated region
        $region17: #{tpu_custom_call.1} parent=11 // pred_check
          %p350 = pneg %p146
        $region18: #{tpu_custom_call.1} parent=11 // pred_check_branch
          %352 = sbr.rel (%p350) target = $region20
        $region19: #{tpu_custom_call.1} parent=11 // pred_region
          _
        $region20: #{tpu_custom_call.1} parent=11 // pred_fallthru
          _
        // Predicated region
        $region21: #{tpu_custom_call.1} parent=11 // pred_check
          %p353 = pneg %p167
        $region22: #{tpu_custom_call.1} parent=11 // pred_check_branch
          %355 = sbr.rel (%p353) target = $region24
        $region23: #{tpu_custom_call.1} parent=11 // pred_region
          _
        $region24: #{tpu_custom_call.1} parent=11 // pred_fallthru
          _
        // Predicated region
        $region25: #{tpu_custom_call.1} parent=11 // pred_check
          %p356 = pneg %p188
        $region26: #{tpu_custom_call.1} parent=11 // pred_check_branch
          %358 = sbr.rel (%p356) target = $region28
        $region27: #{tpu_custom_call.1} parent=11 // pred_region
          _
        $region28: #{tpu_custom_call.1} parent=11 // pred_fallthru
          _
        // Predicated region
        $region29: #{tpu_custom_call.1} parent=11 // pred_check
          %p359 = pneg %p209
        $region30: #{tpu_custom_call.1} parent=11 // pred_check_branch
          %361 = sbr.rel (%p359) target = $region32
        $region31: #{tpu_custom_call.1} parent=11 // pred_region
          _
        $region32: #{tpu_custom_call.1} parent=11 // pred_fallthru
          _
        // Predicated region
        $region33: #{tpu_custom_call.1} parent=11 // pred_check
          %p362 = pneg %p230
        $region34: #{tpu_custom_call.1} parent=11 // pred_check_branch
          %364 = sbr.rel (%p362) target = $region36
        $region35: #{tpu_custom_call.1} parent=11 // pred_region
          _
        $region36: #{tpu_custom_call.1} parent=11 // pred_fallthru
          _
        // Predicated region
        $region37: #{tpu_custom_call.1} parent=11 // pred_check
          %p365 = pneg %p251
        $region38: #{tpu_custom_call.1} parent=11 // pred_check_branch
          %367 = sbr.rel (%p365) target = $region40
        $region39: #{tpu_custom_call.1} parent=11 // pred_region
          _
        $region40: #{tpu_custom_call.1} parent=11 // pred_fallthru
          _
        // Predicated region
        $region41: #{tpu_custom_call.1} parent=11 // pred_check
          %p368 = pneg %p272
        $region42: #{tpu_custom_call.1} parent=11 // pred_check_branch
          %370 = sbr.rel (%p368) target = $region44
        $region43: #{tpu_custom_call.1} parent=11 // pred_region
          _
        $region44: #{tpu_custom_call.1} parent=11 // pred_fallthru
          _
      $region12: #{tpu_custom_call.1} parent=5 // pred_fallthru
        _
      %p371 = scmp.lt.s32.totalorder %s21, 4
      // Predicated region
      $region45: #{tpu_custom_call.1} parent=5 // pred_check
        %p372 = pneg %p371
      $region46: #{tpu_custom_call.1} parent=5 // pred_check_branch
        %374 = sbr.rel (%p372) target = $region48
      $region47: #{tpu_custom_call.1} parent=5 // pred_region
        // Predicated region
        $region49: #{tpu_custom_call.1} parent=47 // pred_check
          %p375 = pneg %p66
        $region50: #{tpu_custom_call.1} parent=47 // pred_check_branch
          %377 = sbr.rel (%p375) target = $region52
        $region51: #{tpu_custom_call.1} parent=47 // pred_region
          %s378 = smul.u32 %s29, 2
          %s379 = sadd.s32 %s378, %s30
          %s380 = smul.u32 64, %s379
          %p381 = scmp.lt.s32.totalorder %s28, 1
          %s382 = scalar_select %p381, %s28, 1
          %p383 = scmp.lt.s32.totalorder %s380, 127
          %s384 = scalar_select %p383, %s380, 127
          %s385 = smul.addr %s382, 128
          %s386 = sadd.s32 %s384, %s385
          %s387 = smul.addr %s386, 8
          %s388 = scalar_lea.vmem %s0, %s387
          %s389 = smul.u32 %s29, 2
          %s390 = sadd.s32 %s389, %s30
          %s391 = smul.u32 64, %s390
        $region52: #{tpu_custom_call.1} parent=47 // pred_fallthru
          _
        // Predicated region
        $region53: #{tpu_custom_call.1} parent=47 // pred_check
          %p392 = pneg %p98
        $region54: #{tpu_custom_call.1} parent=47 // pred_check_branch
          %394 = sbr.rel (%p392) target = $region56
        $region55: #{tpu_custom_call.1} parent=47 // pred_region
          %s395 = smul.u32 %s29, 2
          %s396 = sadd.s32 %s395, %s30
          %s397 = smul.u32 64, %s396
          %p398 = scmp.lt.s32.totalorder %s28, 1
          %s399 = scalar_select %p398, %s28, 1
          %p400 = scmp.lt.s32.totalorder %s397, 127
          %s401 = scalar_select %p400, %s397, 127
          %s402 = smul.addr %s399, 128
          %s403 = sadd.s32 %s401, %s402
          %s404 = smul.addr %s403, 8
          %s405 = scalar_lea.vmem %s1, %s404
          %s406 = smul.u32 %s29, 2
          %s407 = sadd.s32 %s406, %s30
          %s408 = smul.u32 64, %s407
        $region56: #{tpu_custom_call.1} parent=47 // pred_fallthru
          _
      $region48: #{tpu_custom_call.1} parent=5 // pred_fallthru
        _
      %p409 = scmp.le.s32.totalorder 1, %s21
      %p410 = scmp.lt.s32.totalorder %s21, 5
      %p411 = pnand %p409, %p410
      %p412 = pneg %p411
      // Predicated region
      $region57: #{tpu_custom_call.1} parent=5 // pred_check
        _
      $region58: #{tpu_custom_call.1} parent=5 // pred_check_branch
        %414 = sbr.rel (%p411) target = $region60
      $region59: #{tpu_custom_call.1} parent=5 // pred_region
        %s415 = ssub.s32 %s21, 1
        %s416 = smul.u32 %s32, 2
        %s417 = sadd.s32 %s416, %s33
        %s418 = smul.u32 64, %s417
        %p419 = scmp.lt.s32.totalorder %s31, 1
        %s420 = scalar_select %p419, %s31, 1
        %p421 = scmp.lt.s32.totalorder %s418, 127
        %s422 = scalar_select %p421, %s418, 127
        %s423 = smul.addr %s420, 128
        %s424 = sadd.s32 %s422, %s423
        %s425 = smul.addr %s424, 8
        %s426 = scalar_lea.vmem %s0, %s425
        %p427 = pneg %p72
        %p428 = pneg %p69
        %s429 = smul.u32 %s32, 2
        %s430 = sadd.s32 %s429, %s33
        %s431 = smul.u32 64, %s430
        %p432 = scmp.lt.s32.totalorder %s31, 1
        %s433 = scalar_select %p432, %s31, 1
        %p434 = scmp.lt.s32.totalorder %s431, 127
        %s435 = scalar_select %p434, %s431, 127
        %s436 = smul.addr %s433, 128
        %s437 = sadd.s32 %s435, %s436
        %s438 = smul.addr %s437, 8
        %s439 = scalar_lea.vmem %s1, %s438
        %p440 = pneg %p104
        %p441 = pneg %p101
        %p442 = pneg %p125
        %p443 = pneg %p122
        %p444 = pneg %p146
        %p445 = pneg %p143
        %p446 = pneg %p167
        %p447 = pneg %p164
        %p448 = pneg %p188
        %p449 = pneg %p185
        %p450 = pneg %p209
        %p451 = pneg %p206
        %p452 = pneg %p230
        %p453 = pneg %p227
        %p454 = pneg %p251
        %p455 = pneg %p248
        %p456 = pneg %p272
        %p457 = pneg %p269
        %p458 = pneg %p304
        %p459 = pneg %p301
        %s460 = smul.u32 %s32, 2
        %s461 = sadd.s32 %s460, %s33
        %s462 = smul.u32 64, %s461
        %p463 = scmp.lt.s32.totalorder %s31, 1
        %s464 = scalar_select %p463, %s31, 1
        %p465 = scmp.lt.s32.totalorder %s462, 127
        %s466 = scalar_select %p465, %s462, 127
        %s467 = smul.addr %s464, 128
        %s468 = sadd.s32 %s466, %s467
        %s469 = smul.addr %s468, 8
        %s470 = scalar_lea.vmem %s10, %s469
        %p471 = pneg %p332
        %p472 = pneg %p329
        %s473 = sand.u32 %s319, 1
        %s474 = scalar_lea.sflag [#allocation3], %s473
        %s475 = sand.u32 %s319, 1
        %s476 = scalar_lea.vmem [#allocation2], %s475
        %s477 = smul.u32 %s32, 2
        %s478 = sadd.s32 %s477, %s33
        %s479 = smul.u32 64, %s478
        %p480 = scmp.lt.s32.totalorder %s31, 1
        %s481 = scalar_select %p480, %s31, 1
        %p482 = scmp.lt.s32.totalorder %s479, 127
        %s483 = scalar_select %p482, %s479, 127
        %s484 = smul.addr %s481, 128
        %s485 = sadd.s32 %s483, %s484
        %s486 = smul.addr %s485, 8
        %s487 = scalar_lea.vmem %s0, %s486
        %s488 = smul.u32 %s32, 2
        %s489 = sadd.s32 %s488, %s33
        %s490 = smul.u32 64, %s489
        %s491 = smul.u32 %s32, 2
        %s492 = sadd.s32 %s491, %s33
        %s493 = smul.u32 64, %s492
        %p494 = scmp.lt.s32.totalorder %s31, 1
        %s495 = scalar_select %p494, %s31, 1
        %p496 = scmp.lt.s32.totalorder %s493, 127
        %s497 = scalar_select %p496, %s493, 127
        %s498 = smul.addr %s495, 128
        %s499 = sadd.s32 %s497, %s498
        %s500 = smul.addr %s499, 8
        %s501 = scalar_lea.vmem %s1, %s500
        %s502 = smul.u32 %s32, 2
        %s503 = sadd.s32 %s502, %s33
        %s504 = smul.u32 64, %s503
        %s505 = smul.u32 %s32, 2
        %s506 = sadd.s32 %s505, %s33
        %s507 = smul.u32 64, %s506
        %p508 = scmp.lt.s32.totalorder %s31, 1
        %s509 = scalar_select %p508, %s31, 1
        %p510 = scmp.lt.s32.totalorder %s507, 127
        %s511 = scalar_select %p510, %s507, 127
        %s512 = smul.addr %s509, 128
        %s513 = sadd.s32 %s511, %s512
        %s514 = smul.addr %s513, 8
        %s515 = scalar_lea.vmem %s10, %s514
        %s516 = smul.u32 %s32, 2
        %s517 = sadd.s32 %s516, %s33
        %s518 = smul.u32 64, %s517
        %v520 = vld [vmem:[%s487] sm:$0xff]
        %v521 = vld [vmem:[%s487 + $0x8] sm:$0xff]
        %v522 = vld [vmem:[%s487 + $0x10] sm:$0xff]
        %v523 = vld [vmem:[%s487 + $0x18] sm:$0xff]
        %v524 = vld [vmem:[%s487 + $0x20] sm:$0xff]
        %v525 = vld [vmem:[%s487 + $0x28] sm:$0xff]
        %v526 = vld [vmem:[%s487 + $0x30] sm:$0xff]
        %v527 = vld [vmem:[%s487 + $0x38] sm:$0xff]
        %v528 = vld [vmem:[%s487 + $0x40] sm:$0xff]
        %v529 = vld [vmem:[%s487 + $0x48] sm:$0xff]
        %v530 = vld [vmem:[%s487 + $0x50] sm:$0xff]
        %v531 = vld [vmem:[%s487 + $0x58] sm:$0xff]
        %v532 = vld [vmem:[%s487 + $0x60] sm:$0xff]
        %v533 = vld [vmem:[%s487 + $0x68] sm:$0xff]
        %v534 = vld [vmem:[%s487 + $0x70] sm:$0xff]
        %v535 = vld [vmem:[%s487 + $0x78] sm:$0xff]
        %v536 = vld [vmem:[%s487 + $0x80] sm:$0xff]
        %v537 = vld [vmem:[%s487 + $0x88] sm:$0xff]
        %v538 = vld [vmem:[%s487 + $0x90] sm:$0xff]
        %v539 = vld [vmem:[%s487 + $0x98] sm:$0xff]
        %v540 = vld [vmem:[%s487 + $0xa0] sm:$0xff]
        %v541 = vld [vmem:[%s487 + $0xa8] sm:$0xff]
        %v542 = vld [vmem:[%s487 + $0xb0] sm:$0xff]
        %v543 = vld [vmem:[%s487 + $0xb8] sm:$0xff]
        %v544 = vld [vmem:[%s487 + $0xc0] sm:$0xff]
        %v545 = vld [vmem:[%s487 + $0xc8] sm:$0xff]
        %v546 = vld [vmem:[%s487 + $0xd0] sm:$0xff]
        %v547 = vld [vmem:[%s487 + $0xd8] sm:$0xff]
        %v548 = vld [vmem:[%s487 + $0xe0] sm:$0xff]
        %v549 = vld [vmem:[%s487 + $0xe8] sm:$0xff]
        %v550 = vld [vmem:[%s487 + $0xf0] sm:$0xff]
        %v551 = vld [vmem:[%s487 + $0xf8] sm:$0xff]
        %v552 = vld [vmem:[%s487 + $0x100] sm:$0xff]
        %v553 = vld [vmem:[%s487 + $0x108] sm:$0xff]
        %v554 = vld [vmem:[%s487 + $0x110] sm:$0xff]
        %v555 = vld [vmem:[%s487 + $0x118] sm:$0xff]
        %v556 = vld [vmem:[%s487 + $0x120] sm:$0xff]
        %v557 = vld [vmem:[%s487 + $0x128] sm:$0xff]
        %v558 = vld [vmem:[%s487 + $0x130] sm:$0xff]
        %v559 = vld [vmem:[%s487 + $0x138] sm:$0xff]
        %v560 = vld [vmem:[%s487 + $0x140] sm:$0xff]
        %v561 = vld [vmem:[%s487 + $0x148] sm:$0xff]
        %v562 = vld [vmem:[%s487 + $0x150] sm:$0xff]
        %v563 = vld [vmem:[%s487 + $0x158] sm:$0xff]
        %v564 = vld [vmem:[%s487 + $0x160] sm:$0xff]
        %v565 = vld [vmem:[%s487 + $0x168] sm:$0xff]
        %v566 = vld [vmem:[%s487 + $0x170] sm:$0xff]
        %v567 = vld [vmem:[%s487 + $0x178] sm:$0xff]
        %v568 = vld [vmem:[%s487 + $0x180] sm:$0xff]
        %v569 = vld [vmem:[%s487 + $0x188] sm:$0xff]
        %v570 = vld [vmem:[%s487 + $0x190] sm:$0xff]
        %v571 = vld [vmem:[%s487 + $0x198] sm:$0xff]
        %v572 = vld [vmem:[%s487 + $0x1a0] sm:$0xff]
        %v573 = vld [vmem:[%s487 + $0x1a8] sm:$0xff]
        %v574 = vld [vmem:[%s487 + $0x1b0] sm:$0xff]
        %v575 = vld [vmem:[%s487 + $0x1b8] sm:$0xff]
        %v576 = vld [vmem:[%s487 + $0x1c0] sm:$0xff]
        %v577 = vld [vmem:[%s487 + $0x1c8] sm:$0xff]
        %v578 = vld [vmem:[%s487 + $0x1d0] sm:$0xff]
        %v579 = vld [vmem:[%s487 + $0x1d8] sm:$0xff]
        %v580 = vld [vmem:[%s487 + $0x1e0] sm:$0xff]
        %v581 = vld [vmem:[%s487 + $0x1e8] sm:$0xff]
        %v582 = vld [vmem:[%s487 + $0x1f0] sm:$0xff]
        %v583 = vld [vmem:[%s487 + $0x1f8] sm:$0xff]
        %v584 = vld [vmem:[%s2] sm:$0x3]
        %586 = vset.pattern.permute.xlu0 0
        %587 = vperm.xlu0 %586, %v520
        %v588 = vpop.permute.xlu0 %587
        %591 = vset.pattern.permute.xlu0 0
        %592 = vperm.xlu0 %591, %v521
        %v593 = vpop.permute.xlu0 %592
        %596 = vset.pattern.permute.xlu0 0
        %597 = vperm.xlu0 %596, %v522
        %v598 = vpop.permute.xlu0 %597
        %601 = vset.pattern.permute.xlu0 0
        %602 = vperm.xlu0 %601, %v523
        %v603 = vpop.permute.xlu0 %602
        %606 = vset.pattern.permute.xlu0 0
        %607 = vperm.xlu0 %606, %v524
        %v608 = vpop.permute.xlu0 %607
        %611 = vset.pattern.permute.xlu0 0
        %612 = vperm.xlu0 %611, %v525
        %v613 = vpop.permute.xlu0 %612
        %616 = vset.pattern.permute.xlu0 0
        %617 = vperm.xlu0 %616, %v526
        %v618 = vpop.permute.xlu0 %617
        %621 = vset.pattern.permute.xlu0 0
        %622 = vperm.xlu0 %621, %v527
        %v623 = vpop.permute.xlu0 %622
        %626 = vset.pattern.permute.xlu0 0
        %627 = vperm.xlu0 %626, %v528
        %v628 = vpop.permute.xlu0 %627
        %631 = vset.pattern.permute.xlu0 0
        %632 = vperm.xlu0 %631, %v529
        %v633 = vpop.permute.xlu0 %632
        %636 = vset.pattern.permute.xlu0 0
        %637 = vperm.xlu0 %636, %v530
        %v638 = vpop.permute.xlu0 %637
        %641 = vset.pattern.permute.xlu0 0
        %642 = vperm.xlu0 %641, %v531
        %v643 = vpop.permute.xlu0 %642
        %646 = vset.pattern.permute.xlu0 0
        %647 = vperm.xlu0 %646, %v532
        %v648 = vpop.permute.xlu0 %647
        %651 = vset.pattern.permute.xlu0 0
        %652 = vperm.xlu0 %651, %v533
        %v653 = vpop.permute.xlu0 %652
        %656 = vset.pattern.permute.xlu0 0
        %657 = vperm.xlu0 %656, %v534
        %v658 = vpop.permute.xlu0 %657
        %661 = vset.pattern.permute.xlu0 0
        %662 = vperm.xlu0 %661, %v535
        %v663 = vpop.permute.xlu0 %662
        %666 = vset.pattern.permute.xlu0 0
        %667 = vperm.xlu0 %666, %v536
        %v668 = vpop.permute.xlu0 %667
        %671 = vset.pattern.permute.xlu0 0
        %672 = vperm.xlu0 %671, %v537
        %v673 = vpop.permute.xlu0 %672
        %676 = vset.pattern.permute.xlu0 0
        %677 = vperm.xlu0 %676, %v538
        %v678 = vpop.permute.xlu0 %677
        %681 = vset.pattern.permute.xlu0 0
        %682 = vperm.xlu0 %681, %v539
        %v683 = vpop.permute.xlu0 %682
        %686 = vset.pattern.permute.xlu0 0
        %687 = vperm.xlu0 %686, %v540
        %v688 = vpop.permute.xlu0 %687
        %691 = vset.pattern.permute.xlu0 0
        %692 = vperm.xlu0 %691, %v541
        %v693 = vpop.permute.xlu0 %692
        %696 = vset.pattern.permute.xlu0 0
        %697 = vperm.xlu0 %696, %v542
        %v698 = vpop.permute.xlu0 %697
        %701 = vset.pattern.permute.xlu0 0
        %702 = vperm.xlu0 %701, %v543
        %v703 = vpop.permute.xlu0 %702
        %706 = vset.pattern.permute.xlu0 0
        %707 = vperm.xlu0 %706, %v544
        %v708 = vpop.permute.xlu0 %707
        %711 = vset.pattern.permute.xlu0 0
        %712 = vperm.xlu0 %711, %v545
        %v713 = vpop.permute.xlu0 %712
        %716 = vset.pattern.permute.xlu0 0
        %717 = vperm.xlu0 %716, %v546
        %v718 = vpop.permute.xlu0 %717
        %721 = vset.pattern.permute.xlu0 0
        %722 = vperm.xlu0 %721, %v547
        %v723 = vpop.permute.xlu0 %722
        %726 = vset.pattern.permute.xlu0 0
        %727 = vperm.xlu0 %726, %v548
        %v728 = vpop.permute.xlu0 %727
        %731 = vset.pattern.permute.xlu0 0
        %732 = vperm.xlu0 %731, %v549
        %v733 = vpop.permute.xlu0 %732
        %736 = vset.pattern.permute.xlu0 0
        %737 = vperm.xlu0 %736, %v550
        %v738 = vpop.permute.xlu0 %737
        %741 = vset.pattern.permute.xlu0 0
        %742 = vperm.xlu0 %741, %v551
        %v743 = vpop.permute.xlu0 %742
        %746 = vset.pattern.permute.xlu0 0
        %747 = vperm.xlu0 %746, %v552
        %v748 = vpop.permute.xlu0 %747
        %751 = vset.pattern.permute.xlu0 0
        %752 = vperm.xlu0 %751, %v553
        %v753 = vpop.permute.xlu0 %752
        %756 = vset.pattern.permute.xlu0 0
        %757 = vperm.xlu0 %756, %v554
        %v758 = vpop.permute.xlu0 %757
        %761 = vset.pattern.permute.xlu0 0
        %762 = vperm.xlu0 %761, %v555
        %v763 = vpop.permute.xlu0 %762
        %766 = vset.pattern.permute.xlu0 0
        %767 = vperm.xlu0 %766, %v556
        %v768 = vpop.permute.xlu0 %767
        %771 = vset.pattern.permute.xlu0 0
        %772 = vperm.xlu0 %771, %v557
        %v773 = vpop.permute.xlu0 %772
        %776 = vset.pattern.permute.xlu0 0
        %777 = vperm.xlu0 %776, %v558
        %v778 = vpop.permute.xlu0 %777
        %781 = vset.pattern.permute.xlu0 0
        %782 = vperm.xlu0 %781, %v559
        %v783 = vpop.permute.xlu0 %782
        %786 = vset.pattern.permute.xlu0 0
        %787 = vperm.xlu0 %786, %v560
        %v788 = vpop.permute.xlu0 %787
        %791 = vset.pattern.permute.xlu0 0
        %792 = vperm.xlu0 %791, %v561
        %v793 = vpop.permute.xlu0 %792
        %796 = vset.pattern.permute.xlu0 0
        %797 = vperm.xlu0 %796, %v562
        %v798 = vpop.permute.xlu0 %797
        %801 = vset.pattern.permute.xlu0 0
        %802 = vperm.xlu0 %801, %v563
        %v803 = vpop.permute.xlu0 %802
        %806 = vset.pattern.permute.xlu0 0
        %807 = vperm.xlu0 %806, %v564
        %v808 = vpop.permute.xlu0 %807
        %811 = vset.pattern.permute.xlu0 0
        %812 = vperm.xlu0 %811, %v565
        %v813 = vpop.permute.xlu0 %812
        %816 = vset.pattern.permute.xlu0 0
        %817 = vperm.xlu0 %816, %v566
        %v818 = vpop.permute.xlu0 %817
        %821 = vset.pattern.permute.xlu0 0
        %822 = vperm.xlu0 %821, %v567
        %v823 = vpop.permute.xlu0 %822
        %826 = vset.pattern.permute.xlu0 0
        %827 = vperm.xlu0 %826, %v568
        %v828 = vpop.permute.xlu0 %827
        %831 = vset.pattern.permute.xlu0 0
        %832 = vperm.xlu0 %831, %v569
        %v833 = vpop.permute.xlu0 %832
        %836 = vset.pattern.permute.xlu0 0
        %837 = vperm.xlu0 %836, %v570
        %v838 = vpop.permute.xlu0 %837
        %841 = vset.pattern.permute.xlu0 0
        %842 = vperm.xlu0 %841, %v571
        %v843 = vpop.permute.xlu0 %842
        %846 = vset.pattern.permute.xlu0 0
        %847 = vperm.xlu0 %846, %v572
        %v848 = vpop.permute.xlu0 %847
        %851 = vset.pattern.permute.xlu0 0
        %852 = vperm.xlu0 %851, %v573
        %v853 = vpop.permute.xlu0 %852
        %856 = vset.pattern.permute.xlu0 0
        %857 = vperm.xlu0 %856, %v574
        %v858 = vpop.permute.xlu0 %857
        %861 = vset.pattern.permute.xlu0 0
        %862 = vperm.xlu0 %861, %v575
        %v863 = vpop.permute.xlu0 %862
        %866 = vset.pattern.permute.xlu0 0
        %867 = vperm.xlu0 %866, %v576
        %v868 = vpop.permute.xlu0 %867
        %871 = vset.pattern.permute.xlu0 0
        %872 = vperm.xlu0 %871, %v577
        %v873 = vpop.permute.xlu0 %872
        %876 = vset.pattern.permute.xlu0 0
        %877 = vperm.xlu0 %876, %v578
        %v878 = vpop.permute.xlu0 %877
        %881 = vset.pattern.permute.xlu0 0
        %882 = vperm.xlu0 %881, %v579
        %v883 = vpop.permute.xlu0 %882
        %886 = vset.pattern.permute.xlu0 0
        %887 = vperm.xlu0 %886, %v580
        %v888 = vpop.permute.xlu0 %887
        %891 = vset.pattern.permute.xlu0 0
        %892 = vperm.xlu0 %891, %v581
        %v893 = vpop.permute.xlu0 %892
        %896 = vset.pattern.permute.xlu0 0
        %897 = vperm.xlu0 %896, %v582
        %v898 = vpop.permute.xlu0 %897
        %901 = vset.pattern.permute.xlu0 0
        %902 = vperm.xlu0 %901, %v583
        %v903 = vpop.permute.xlu0 %902
        %v905 = vlaneseq
        %v906 = vshrl.u32 %v905, 7
        %v907 = vsub.s32 0, %v906
        %v908 = vrot.slane %v584, %v907
        %v909 = vmul.f32 %v588, %v908
        %v910 = vmul.f32 %v593, %v908
        %v911 = vmul.f32 %v598, %v908
        %v912 = vmul.f32 %v603, %v908
        %v913 = vmul.f32 %v608, %v908
        %v914 = vmul.f32 %v613, %v908
        %v915 = vmul.f32 %v618, %v908
        %v916 = vmul.f32 %v623, %v908
        %v917 = vmul.f32 %v628, %v908
        %v918 = vmul.f32 %v633, %v908
        %v919 = vmul.f32 %v638, %v908
        %v920 = vmul.f32 %v643, %v908
        %v921 = vmul.f32 %v648, %v908
        %v922 = vmul.f32 %v653, %v908
        %v923 = vmul.f32 %v658, %v908
        %v924 = vmul.f32 %v663, %v908
        %v925 = vmul.f32 %v668, %v908
        %v926 = vmul.f32 %v673, %v908
        %v927 = vmul.f32 %v678, %v908
        %v928 = vmul.f32 %v683, %v908
        %v929 = vmul.f32 %v688, %v908
        %v930 = vmul.f32 %v693, %v908
        %v931 = vmul.f32 %v698, %v908
        %v932 = vmul.f32 %v703, %v908
        %v933 = vmul.f32 %v708, %v908
        %v934 = vmul.f32 %v713, %v908
        %v935 = vmul.f32 %v718, %v908
        %v936 = vmul.f32 %v723, %v908
        %v937 = vmul.f32 %v728, %v908
        %v938 = vmul.f32 %v733, %v908
        %v939 = vmul.f32 %v738, %v908
        %v940 = vmul.f32 %v743, %v908
        %v941 = vmul.f32 %v748, %v908
        %v942 = vmul.f32 %v753, %v908
        %v943 = vmul.f32 %v758, %v908
        %v944 = vmul.f32 %v763, %v908
        %v945 = vmul.f32 %v768, %v908
        %v946 = vmul.f32 %v773, %v908
        %v947 = vmul.f32 %v778, %v908
        %v948 = vmul.f32 %v783, %v908
        %v949 = vmul.f32 %v788, %v908
        %v950 = vmul.f32 %v793, %v908
        %v951 = vmul.f32 %v798, %v908
        %v952 = vmul.f32 %v803, %v908
        %v953 = vmul.f32 %v808, %v908
        %v954 = vmul.f32 %v813, %v908
        %v955 = vmul.f32 %v818, %v908
        %v956 = vmul.f32 %v823, %v908
        %v957 = vmul.f32 %v828, %v908
        %v958 = vmul.f32 %v833, %v908
        %v959 = vmul.f32 %v838, %v908
        %v960 = vmul.f32 %v843, %v908
        %v961 = vmul.f32 %v848, %v908
        %v962 = vmul.f32 %v853, %v908
        %v963 = vmul.f32 %v858, %v908
        %v964 = vmul.f32 %v863, %v908
        %v965 = vmul.f32 %v868, %v908
        %v966 = vmul.f32 %v873, %v908
        %v967 = vmul.f32 %v878, %v908
        %v968 = vmul.f32 %v883, %v908
        %v969 = vmul.f32 %v888, %v908
        %v970 = vmul.f32 %v893, %v908
        %v971 = vmul.f32 %v898, %v908
        %v972 = vmul.f32 %v903, %v908
        %973 = vset.pattern.permute.xlu0 1
        %974 = vperm.xlu0 %973, %v520
        %v975 = vpop.permute.xlu0 %974
        %977 = vset.pattern.permute.xlu0 1
        %978 = vperm.xlu0 %977, %v521
        %v979 = vpop.permute.xlu0 %978
        %981 = vset.pattern.permute.xlu0 1
        %982 = vperm.xlu0 %981, %v522
        %v983 = vpop.permute.xlu0 %982
        %985 = vset.pattern.permute.xlu0 1
        %986 = vperm.xlu0 %985, %v523
        %v987 = vpop.permute.xlu0 %986
        %989 = vset.pattern.permute.xlu0 1
        %990 = vperm.xlu0 %989, %v524
        %v991 = vpop.permute.xlu0 %990
        %993 = vset.pattern.permute.xlu0 1
        %994 = vperm.xlu0 %993, %v525
        %v995 = vpop.permute.xlu0 %994
        %997 = vset.pattern.permute.xlu0 1
        %998 = vperm.xlu0 %997, %v526
        %v999 = vpop.permute.xlu0 %998
        %1001 = vset.pattern.permute.xlu0 1
        %1002 = vperm.xlu0 %1001, %v527
        %v1003 = vpop.permute.xlu0 %1002
        %1005 = vset.pattern.permute.xlu0 1
        %1006 = vperm.xlu0 %1005, %v528
        %v1007 = vpop.permute.xlu0 %1006
        %1009 = vset.pattern.permute.xlu0 1
        %1010 = vperm.xlu0 %1009, %v529
        %v1011 = vpop.permute.xlu0 %1010
        %1013 = vset.pattern.permute.xlu0 1
        %1014 = vperm.xlu0 %1013, %v530
        %v1015 = vpop.permute.xlu0 %1014
        %1017 = vset.pattern.permute.xlu0 1
        %1018 = vperm.xlu0 %1017, %v531
        %v1019 = vpop.permute.xlu0 %1018
        %1021 = vset.pattern.permute.xlu0 1
        %1022 = vperm.xlu0 %1021, %v532
        %v1023 = vpop.permute.xlu0 %1022
        %1025 = vset.pattern.permute.xlu0 1
        %1026 = vperm.xlu0 %1025, %v533
        %v1027 = vpop.permute.xlu0 %1026
        %1029 = vset.pattern.permute.xlu0 1
        %1030 = vperm.xlu0 %1029, %v534
        %v1031 = vpop.permute.xlu0 %1030
        %1033 = vset.pattern.permute.xlu0 1
        %1034 = vperm.xlu0 %1033, %v535
        %v1035 = vpop.permute.xlu0 %1034
        %1037 = vset.pattern.permute.xlu0 1
        %1038 = vperm.xlu0 %1037, %v536
        %v1039 = vpop.permute.xlu0 %1038
        %1041 = vset.pattern.permute.xlu0 1
        %1042 = vperm.xlu0 %1041, %v537
        %v1043 = vpop.permute.xlu0 %1042
        %1045 = vset.pattern.permute.xlu0 1
        %1046 = vperm.xlu0 %1045, %v538
        %v1047 = vpop.permute.xlu0 %1046
        %1049 = vset.pattern.permute.xlu0 1
        %1050 = vperm.xlu0 %1049, %v539
        %v1051 = vpop.permute.xlu0 %1050
        %1053 = vset.pattern.permute.xlu0 1
        %1054 = vperm.xlu0 %1053, %v540
        %v1055 = vpop.permute.xlu0 %1054
        %1057 = vset.pattern.permute.xlu0 1
        %1058 = vperm.xlu0 %1057, %v541
        %v1059 = vpop.permute.xlu0 %1058
        %1061 = vset.pattern.permute.xlu0 1
        %1062 = vperm.xlu0 %1061, %v542
        %v1063 = vpop.permute.xlu0 %1062
        %1065 = vset.pattern.permute.xlu0 1
        %1066 = vperm.xlu0 %1065, %v543
        %v1067 = vpop.permute.xlu0 %1066
        %1069 = vset.pattern.permute.xlu0 1
        %1070 = vperm.xlu0 %1069, %v544
        %v1071 = vpop.permute.xlu0 %1070
        %1073 = vset.pattern.permute.xlu0 1
        %1074 = vperm.xlu0 %1073, %v545
        %v1075 = vpop.permute.xlu0 %1074
        %1077 = vset.pattern.permute.xlu0 1
        %1078 = vperm.xlu0 %1077, %v546
        %v1079 = vpop.permute.xlu0 %1078
        %1081 = vset.pattern.permute.xlu0 1
        %1082 = vperm.xlu0 %1081, %v547
        %v1083 = vpop.permute.xlu0 %1082
        %1085 = vset.pattern.permute.xlu0 1
        %1086 = vperm.xlu0 %1085, %v548
        %v1087 = vpop.permute.xlu0 %1086
        %1089 = vset.pattern.permute.xlu0 1
        %1090 = vperm.xlu0 %1089, %v549
        %v1091 = vpop.permute.xlu0 %1090
        %1093 = vset.pattern.permute.xlu0 1
        %1094 = vperm.xlu0 %1093, %v550
        %v1095 = vpop.permute.xlu0 %1094
        %1097 = vset.pattern.permute.xlu0 1
        %1098 = vperm.xlu0 %1097, %v551
        %v1099 = vpop.permute.xlu0 %1098
        %1101 = vset.pattern.permute.xlu0 1
        %1102 = vperm.xlu0 %1101, %v552
        %v1103 = vpop.permute.xlu0 %1102
        %1105 = vset.pattern.permute.xlu0 1
        %1106 = vperm.xlu0 %1105, %v553
        %v1107 = vpop.permute.xlu0 %1106
        %1109 = vset.pattern.permute.xlu0 1
        %1110 = vperm.xlu0 %1109, %v554
        %v1111 = vpop.permute.xlu0 %1110
        %1113 = vset.pattern.permute.xlu0 1
        %1114 = vperm.xlu0 %1113, %v555
        %v1115 = vpop.permute.xlu0 %1114
        %1117 = vset.pattern.permute.xlu0 1
        %1118 = vperm.xlu0 %1117, %v556
        %v1119 = vpop.permute.xlu0 %1118
        %1121 = vset.pattern.permute.xlu0 1
        %1122 = vperm.xlu0 %1121, %v557
        %v1123 = vpop.permute.xlu0 %1122
        %1125 = vset.pattern.permute.xlu0 1
        %1126 = vperm.xlu0 %1125, %v558
        %v1127 = vpop.permute.xlu0 %1126
        %1129 = vset.pattern.permute.xlu0 1
        %1130 = vperm.xlu0 %1129, %v559
        %v1131 = vpop.permute.xlu0 %1130
        %1133 = vset.pattern.permute.xlu0 1
        %1134 = vperm.xlu0 %1133, %v560
        %v1135 = vpop.permute.xlu0 %1134
        %1137 = vset.pattern.permute.xlu0 1
        %1138 = vperm.xlu0 %1137, %v561
        %v1139 = vpop.permute.xlu0 %1138
        %1141 = vset.pattern.permute.xlu0 1
        %1142 = vperm.xlu0 %1141, %v562
        %v1143 = vpop.permute.xlu0 %1142
        %1145 = vset.pattern.permute.xlu0 1
        %1146 = vperm.xlu0 %1145, %v563
        %v1147 = vpop.permute.xlu0 %1146
        %1149 = vset.pattern.permute.xlu0 1
        %1150 = vperm.xlu0 %1149, %v564
        %v1151 = vpop.permute.xlu0 %1150
        %1153 = vset.pattern.permute.xlu0 1
        %1154 = vperm.xlu0 %1153, %v565
        %v1155 = vpop.permute.xlu0 %1154
        %1157 = vset.pattern.permute.xlu0 1
        %1158 = vperm.xlu0 %1157, %v566
        %v1159 = vpop.permute.xlu0 %1158
        %1161 = vset.pattern.permute.xlu0 1
        %1162 = vperm.xlu0 %1161, %v567
        %v1163 = vpop.permute.xlu0 %1162
        %1165 = vset.pattern.permute.xlu0 1
        %1166 = vperm.xlu0 %1165, %v568
        %v1167 = vpop.permute.xlu0 %1166
        %1169 = vset.pattern.permute.xlu0 1
        %1170 = vperm.xlu0 %1169, %v569
        %v1171 = vpop.permute.xlu0 %1170
        %1173 = vset.pattern.permute.xlu0 1
        %1174 = vperm.xlu0 %1173, %v570
        %v1175 = vpop.permute.xlu0 %1174
        %1177 = vset.pattern.permute.xlu0 1
        %1178 = vperm.xlu0 %1177, %v571
        %v1179 = vpop.permute.xlu0 %1178
        %1181 = vset.pattern.permute.xlu0 1
        %1182 = vperm.xlu0 %1181, %v572
        %v1183 = vpop.permute.xlu0 %1182
        %1185 = vset.pattern.permute.xlu0 1
        %1186 = vperm.xlu0 %1185, %v573
        %v1187 = vpop.permute.xlu0 %1186
        %1189 = vset.pattern.permute.xlu0 1
        %1190 = vperm.xlu0 %1189, %v574
        %v1191 = vpop.permute.xlu0 %1190
        %1193 = vset.pattern.permute.xlu0 1
        %1194 = vperm.xlu0 %1193, %v575
        %v1195 = vpop.permute.xlu0 %1194
        %1197 = vset.pattern.permute.xlu0 1
        %1198 = vperm.xlu0 %1197, %v576
        %v1199 = vpop.permute.xlu0 %1198
        %1201 = vset.pattern.permute.xlu0 1
        %1202 = vperm.xlu0 %1201, %v577
        %v1203 = vpop.permute.xlu0 %1202
        %1205 = vset.pattern.permute.xlu0 1
        %1206 = vperm.xlu0 %1205, %v578
        %v1207 = vpop.permute.xlu0 %1206
        %1209 = vset.pattern.permute.xlu0 1
        %1210 = vperm.xlu0 %1209, %v579
        %v1211 = vpop.permute.xlu0 %1210
        %1213 = vset.pattern.permute.xlu0 1
        %1214 = vperm.xlu0 %1213, %v580
        %v1215 = vpop.permute.xlu0 %1214
        %1217 = vset.pattern.permute.xlu0 1
        %1218 = vperm.xlu0 %1217, %v581
        %v1219 = vpop.permute.xlu0 %1218
        %1221 = vset.pattern.permute.xlu0 1
        %1222 = vperm.xlu0 %1221, %v582
        %v1223 = vpop.permute.xlu0 %1222
        %1225 = vset.pattern.permute.xlu0 1
        %1226 = vperm.xlu0 %1225, %v583
        %v1227 = vpop.permute.xlu0 %1226
        %v1229 = vlaneseq
        %v1230 = vshrl.u32 %v1229, 7
        %v1231 = vsub.s32 1, %v1230
        %v1232 = vrot.slane %v584, %v1231
        %v1233 = vmul.f32 %v975, %v1232
        %v1234 = vmul.f32 %v979, %v1232
        %v1235 = vmul.f32 %v983, %v1232
        %v1236 = vmul.f32 %v987, %v1232
        %v1237 = vmul.f32 %v991, %v1232
        %v1238 = vmul.f32 %v995, %v1232
        %v1239 = vmul.f32 %v999, %v1232
        %v1240 = vmul.f32 %v1003, %v1232
        %v1241 = vmul.f32 %v1007, %v1232
        %v1242 = vmul.f32 %v1011, %v1232
        %v1243 = vmul.f32 %v1015, %v1232
        %v1244 = vmul.f32 %v1019, %v1232
        %v1245 = vmul.f32 %v1023, %v1232
        %v1246 = vmul.f32 %v1027, %v1232
        %v1247 = vmul.f32 %v1031, %v1232
        %v1248 = vmul.f32 %v1035, %v1232
        %v1249 = vmul.f32 %v1039, %v1232
        %v1250 = vmul.f32 %v1043, %v1232
        %v1251 = vmul.f32 %v1047, %v1232
        %v1252 = vmul.f32 %v1051, %v1232
        %v1253 = vmul.f32 %v1055, %v1232
        %v1254 = vmul.f32 %v1059, %v1232
        %v1255 = vmul.f32 %v1063, %v1232
        %v1256 = vmul.f32 %v1067, %v1232
        %v1257 = vmul.f32 %v1071, %v1232
        %v1258 = vmul.f32 %v1075, %v1232
        %v1259 = vmul.f32 %v1079, %v1232
        %v1260 = vmul.f32 %v1083, %v1232
        %v1261 = vmul.f32 %v1087, %v1232
        %v1262 = vmul.f32 %v1091, %v1232
        %v1263 = vmul.f32 %v1095, %v1232
        %v1264 = vmul.f32 %v1099, %v1232
        %v1265 = vmul.f32 %v1103, %v1232
        %v1266 = vmul.f32 %v1107, %v1232
        %v1267 = vmul.f32 %v1111, %v1232
        %v1268 = vmul.f32 %v1115, %v1232
        %v1269 = vmul.f32 %v1119, %v1232
        %v1270 = vmul.f32 %v1123, %v1232
        %v1271 = vmul.f32 %v1127, %v1232
        %v1272 = vmul.f32 %v1131, %v1232
        %v1273 = vmul.f32 %v1135, %v1232
        %v1274 = vmul.f32 %v1139, %v1232
        %v1275 = vmul.f32 %v1143, %v1232
        %v1276 = vmul.f32 %v1147, %v1232
        %v1277 = vmul.f32 %v1151, %v1232
        %v1278 = vmul.f32 %v1155, %v1232
        %v1279 = vmul.f32 %v1159, %v1232
        %v1280 = vmul.f32 %v1163, %v1232
        %v1281 = vmul.f32 %v1167, %v1232
        %v1282 = vmul.f32 %v1171, %v1232
        %v1283 = vmul.f32 %v1175, %v1232
        %v1284 = vmul.f32 %v1179, %v1232
        %v1285 = vmul.f32 %v1183, %v1232
        %v1286 = vmul.f32 %v1187, %v1232
        %v1287 = vmul.f32 %v1191, %v1232
        %v1288 = vmul.f32 %v1195, %v1232
        %v1289 = vmul.f32 %v1199, %v1232
        %v1290 = vmul.f32 %v1203, %v1232
        %v1291 = vmul.f32 %v1207, %v1232
        %v1292 = vmul.f32 %v1211, %v1232
        %v1293 = vmul.f32 %v1215, %v1232
        %v1294 = vmul.f32 %v1219, %v1232
        %v1295 = vmul.f32 %v1223, %v1232
        %v1296 = vmul.f32 %v1227, %v1232
        %v1297 = vadd.f32 %v909, %v1233
        %v1298 = vadd.f32 %v910, %v1234
        %v1299 = vadd.f32 %v911, %v1235
        %v1300 = vadd.f32 %v912, %v1236
        %v1301 = vadd.f32 %v913, %v1237
        %v1302 = vadd.f32 %v914, %v1238
        %v1303 = vadd.f32 %v915, %v1239
        %v1304 = vadd.f32 %v916, %v1240
        %v1305 = vadd.f32 %v917, %v1241
        %v1306 = vadd.f32 %v918, %v1242
        %v1307 = vadd.f32 %v919, %v1243
        %v1308 = vadd.f32 %v920, %v1244
        %v1309 = vadd.f32 %v921, %v1245
        %v1310 = vadd.f32 %v922, %v1246
        %v1311 = vadd.f32 %v923, %v1247
        %v1312 = vadd.f32 %v924, %v1248
        %v1313 = vadd.f32 %v925, %v1249
        %v1314 = vadd.f32 %v926, %v1250
        %v1315 = vadd.f32 %v927, %v1251
        %v1316 = vadd.f32 %v928, %v1252
        %v1317 = vadd.f32 %v929, %v1253
        %v1318 = vadd.f32 %v930, %v1254
        %v1319 = vadd.f32 %v931, %v1255
        %v1320 = vadd.f32 %v932, %v1256
        %v1321 = vadd.f32 %v933, %v1257
        %v1322 = vadd.f32 %v934, %v1258
        %v1323 = vadd.f32 %v935, %v1259
        %v1324 = vadd.f32 %v936, %v1260
        %v1325 = vadd.f32 %v937, %v1261
        %v1326 = vadd.f32 %v938, %v1262
        %v1327 = vadd.f32 %v939, %v1263
        %v1328 = vadd.f32 %v940, %v1264
        %v1329 = vadd.f32 %v941, %v1265
        %v1330 = vadd.f32 %v942, %v1266
        %v1331 = vadd.f32 %v943, %v1267
        %v1332 = vadd.f32 %v944, %v1268
        %v1333 = vadd.f32 %v945, %v1269
        %v1334 = vadd.f32 %v946, %v1270
        %v1335 = vadd.f32 %v947, %v1271
        %v1336 = vadd.f32 %v948, %v1272
        %v1337 = vadd.f32 %v949, %v1273
        %v1338 = vadd.f32 %v950, %v1274
        %v1339 = vadd.f32 %v951, %v1275
        %v1340 = vadd.f32 %v952, %v1276
        %v1341 = vadd.f32 %v953, %v1277
        %v1342 = vadd.f32 %v954, %v1278
        %v1343 = vadd.f32 %v955, %v1279
        %v1344 = vadd.f32 %v956, %v1280
        %v1345 = vadd.f32 %v957, %v1281
        %v1346 = vadd.f32 %v958, %v1282
        %v1347 = vadd.f32 %v959, %v1283
        %v1348 = vadd.f32 %v960, %v1284
        %v1349 = vadd.f32 %v961, %v1285
        %v1350 = vadd.f32 %v962, %v1286
        %v1351 = vadd.f32 %v963, %v1287
        %v1352 = vadd.f32 %v964, %v1288
        %v1353 = vadd.f32 %v965, %v1289
        %v1354 = vadd.f32 %v966, %v1290
        %v1355 = vadd.f32 %v967, %v1291
        %v1356 = vadd.f32 %v968, %v1292
        %v1357 = vadd.f32 %v969, %v1293
        %v1358 = vadd.f32 %v970, %v1294
        %v1359 = vadd.f32 %v971, %v1295
        %v1360 = vadd.f32 %v972, %v1296
        %v1361 = vld [vmem:[%s3] sm:$0x1]
        %v1363 = vlaneseq
        %v1364 = vshrl.u32 %v1363, 7
        %v1365 = vsub.s32 0, %v1364
        %v1366 = vrot.slane %v1361, %v1365
        %v1368 = vadd.f32 %v1297, %v1366
        %v1369 = vadd.f32 %v1298, %v1366
        %v1370 = vadd.f32 %v1299, %v1366
        %v1371 = vadd.f32 %v1300, %v1366
        %v1372 = vadd.f32 %v1301, %v1366
        %v1373 = vadd.f32 %v1302, %v1366
        %v1374 = vadd.f32 %v1303, %v1366
        %v1375 = vadd.f32 %v1304, %v1366
        %v1376 = vadd.f32 %v1305, %v1366
        %v1377 = vadd.f32 %v1306, %v1366
        %v1378 = vadd.f32 %v1307, %v1366
        %v1379 = vadd.f32 %v1308, %v1366
        %v1380 = vadd.f32 %v1309, %v1366
        %v1381 = vadd.f32 %v1310, %v1366
        %v1382 = vadd.f32 %v1311, %v1366
        %v1383 = vadd.f32 %v1312, %v1366
        %v1384 = vadd.f32 %v1313, %v1366
        %v1385 = vadd.f32 %v1314, %v1366
        %v1386 = vadd.f32 %v1315, %v1366
        %v1387 = vadd.f32 %v1316, %v1366
        %v1388 = vadd.f32 %v1317, %v1366
        %v1389 = vadd.f32 %v1318, %v1366
        %v1390 = vadd.f32 %v1319, %v1366
        %v1391 = vadd.f32 %v1320, %v1366
        %v1392 = vadd.f32 %v1321, %v1366
        %v1393 = vadd.f32 %v1322, %v1366
        %v1394 = vadd.f32 %v1323, %v1366
        %v1395 = vadd.f32 %v1324, %v1366
        %v1396 = vadd.f32 %v1325, %v1366
        %v1397 = vadd.f32 %v1326, %v1366
        %v1398 = vadd.f32 %v1327, %v1366
        %v1399 = vadd.f32 %v1328, %v1366
        %v1400 = vadd.f32 %v1329, %v1366
        %v1401 = vadd.f32 %v1330, %v1366
        %v1402 = vadd.f32 %v1331, %v1366
        %v1403 = vadd.f32 %v1332, %v1366
        %v1404 = vadd.f32 %v1333, %v1366
        %v1405 = vadd.f32 %v1334, %v1366
        %v1406 = vadd.f32 %v1335, %v1366
        %v1407 = vadd.f32 %v1336, %v1366
        %v1408 = vadd.f32 %v1337, %v1366
        %v1409 = vadd.f32 %v1338, %v1366
        %v1410 = vadd.f32 %v1339, %v1366
        %v1411 = vadd.f32 %v1340, %v1366
        %v1412 = vadd.f32 %v1341, %v1366
        %v1413 = vadd.f32 %v1342, %v1366
        %v1414 = vadd.f32 %v1343, %v1366
        %v1415 = vadd.f32 %v1344, %v1366
        %v1416 = vadd.f32 %v1345, %v1366
        %v1417 = vadd.f32 %v1346, %v1366
        %v1418 = vadd.f32 %v1347, %v1366
        %v1419 = vadd.f32 %v1348, %v1366
        %v1420 = vadd.f32 %v1349, %v1366
        %v1421 = vadd.f32 %v1350, %v1366
        %v1422 = vadd.f32 %v1351, %v1366
        %v1423 = vadd.f32 %v1352, %v1366
        %v1424 = vadd.f32 %v1353, %v1366
        %v1425 = vadd.f32 %v1354, %v1366
        %v1426 = vadd.f32 %v1355, %v1366
        %v1427 = vadd.f32 %v1356, %v1366
        %v1428 = vadd.f32 %v1357, %v1366
        %v1429 = vadd.f32 %v1358, %v1366
        %v1430 = vadd.f32 %v1359, %v1366
        %v1431 = vadd.f32 %v1360, %v1366
        %v1432 = vmul.f32 %v1368, 0.5
        %v1433 = vmul.f32 %v1369, 0.5
        %v1434 = vmul.f32 %v1370, 0.5
        %v1435 = vmul.f32 %v1371, 0.5
        %v1436 = vmul.f32 %v1372, 0.5
        %v1437 = vmul.f32 %v1373, 0.5
        %v1438 = vmul.f32 %v1374, 0.5
        %v1439 = vmul.f32 %v1375, 0.5
        %v1440 = vmul.f32 %v1376, 0.5
        %v1441 = vmul.f32 %v1377, 0.5
        %v1442 = vmul.f32 %v1378, 0.5
        %v1443 = vmul.f32 %v1379, 0.5
        %v1444 = vmul.f32 %v1380, 0.5
        %v1445 = vmul.f32 %v1381, 0.5
        %v1446 = vmul.f32 %v1382, 0.5
        %v1447 = vmul.f32 %v1383, 0.5
        %v1448 = vmul.f32 %v1384, 0.5
        %v1449 = vmul.f32 %v1385, 0.5
        %v1450 = vmul.f32 %v1386, 0.5
        %v1451 = vmul.f32 %v1387, 0.5
        %v1452 = vmul.f32 %v1388, 0.5
        %v1453 = vmul.f32 %v1389, 0.5
        %v1454 = vmul.f32 %v1390, 0.5
        %v1455 = vmul.f32 %v1391, 0.5
        %v1456 = vmul.f32 %v1392, 0.5
        %v1457 = vmul.f32 %v1393, 0.5
        %v1458 = vmul.f32 %v1394, 0.5
        %v1459 = vmul.f32 %v1395, 0.5
        %v1460 = vmul.f32 %v1396, 0.5
        %v1461 = vmul.f32 %v1397, 0.5
        %v1462 = vmul.f32 %v1398, 0.5
        %v1463 = vmul.f32 %v1399, 0.5
        %v1464 = vmul.f32 %v1400, 0.5
        %v1465 = vmul.f32 %v1401, 0.5
        %v1466 = vmul.f32 %v1402, 0.5
        %v1467 = vmul.f32 %v1403, 0.5
        %v1468 = vmul.f32 %v1404, 0.5
        %v1469 = vmul.f32 %v1405, 0.5
        %v1470 = vmul.f32 %v1406, 0.5
        %v1471 = vmul.f32 %v1407, 0.5
        %v1472 = vmul.f32 %v1408, 0.5
        %v1473 = vmul.f32 %v1409, 0.5
        %v1474 = vmul.f32 %v1410, 0.5
        %v1475 = vmul.f32 %v1411, 0.5
        %v1476 = vmul.f32 %v1412, 0.5
        %v1477 = vmul.f32 %v1413, 0.5
        %v1478 = vmul.f32 %v1414, 0.5
        %v1479 = vmul.f32 %v1415, 0.5
        %v1480 = vmul.f32 %v1416, 0.5
        %v1481 = vmul.f32 %v1417, 0.5
        %v1482 = vmul.f32 %v1418, 0.5
        %v1483 = vmul.f32 %v1419, 0.5
        %v1484 = vmul.f32 %v1420, 0.5
        %v1485 = vmul.f32 %v1421, 0.5
        %v1486 = vmul.f32 %v1422, 0.5
        %v1487 = vmul.f32 %v1423, 0.5
        %v1488 = vmul.f32 %v1424, 0.5
        %v1489 = vmul.f32 %v1425, 0.5
        %v1490 = vmul.f32 %v1426, 0.5
        %v1491 = vmul.f32 %v1427, 0.5
        %v1492 = vmul.f32 %v1428, 0.5
        %v1493 = vmul.f32 %v1429, 0.5
        %v1494 = vmul.f32 %v1430, 0.5
        %v1495 = vmul.f32 %v1431, 0.5
        %v1496 = vmul.f32 %v1368, 0.70710677
        %v1497 = vmul.f32 %v1369, 0.70710677
        %v1498 = vmul.f32 %v1370, 0.70710677
        %v1499 = vmul.f32 %v1371, 0.70710677
        %v1500 = vmul.f32 %v1372, 0.70710677
        %v1501 = vmul.f32 %v1373, 0.70710677
        %v1502 = vmul.f32 %v1374, 0.70710677
        %v1503 = vmul.f32 %v1375, 0.70710677
        %v1504 = vmul.f32 %v1376, 0.70710677
        %v1505 = vmul.f32 %v1377, 0.70710677
        %v1506 = vmul.f32 %v1378, 0.70710677
        %v1507 = vmul.f32 %v1379, 0.70710677
        %v1508 = vmul.f32 %v1380, 0.70710677
        %v1509 = vmul.f32 %v1381, 0.70710677
        %v1510 = vmul.f32 %v1382, 0.70710677
        %v1511 = vmul.f32 %v1383, 0.70710677
        %v1512 = vmul.f32 %v1384, 0.70710677
        %v1513 = vmul.f32 %v1385, 0.70710677
        %v1514 = vmul.f32 %v1386, 0.70710677
        %v1515 = vmul.f32 %v1387, 0.70710677
        %v1516 = vmul.f32 %v1388, 0.70710677
        %v1517 = vmul.f32 %v1389, 0.70710677
        %v1518 = vmul.f32 %v1390, 0.70710677
        %v1519 = vmul.f32 %v1391, 0.70710677
        %v1520 = vmul.f32 %v1392, 0.70710677
        %v1521 = vmul.f32 %v1393, 0.70710677
        %v1522 = vmul.f32 %v1394, 0.70710677
        %v1523 = vmul.f32 %v1395, 0.70710677
        %v1524 = vmul.f32 %v1396, 0.70710677
        %v1525 = vmul.f32 %v1397, 0.70710677
        %v1526 = vmul.f32 %v1398, 0.70710677
        %v1527 = vmul.f32 %v1399, 0.70710677
        %v1528 = vmul.f32 %v1400, 0.70710677
        %v1529 = vmul.f32 %v1401, 0.70710677
        %v1530 = vmul.f32 %v1402, 0.70710677
        %v1531 = vmul.f32 %v1403, 0.70710677
        %v1532 = vmul.f32 %v1404, 0.70710677
        %v1533 = vmul.f32 %v1405, 0.70710677
        %v1534 = vmul.f32 %v1406, 0.70710677
        %v1535 = vmul.f32 %v1407, 0.70710677
        %v1536 = vmul.f32 %v1408, 0.70710677
        %v1537 = vmul.f32 %v1409, 0.70710677
        %v1538 = vmul.f32 %v1410, 0.70710677
        %v1539 = vmul.f32 %v1411, 0.70710677
        %v1540 = vmul.f32 %v1412, 0.70710677
        %v1541 = vmul.f32 %v1413, 0.70710677
        %v1542 = vmul.f32 %v1414, 0.70710677
        %v1543 = vmul.f32 %v1415, 0.70710677
        %v1544 = vmul.f32 %v1416, 0.70710677
        %v1545 = vmul.f32 %v1417, 0.70710677
        %v1546 = vmul.f32 %v1418, 0.70710677
        %v1547 = vmul.f32 %v1419, 0.70710677
        %v1548 = vmul.f32 %v1420, 0.70710677
        %v1549 = vmul.f32 %v1421, 0.70710677
        %v1550 = vmul.f32 %v1422, 0.70710677
        %v1551 = vmul.f32 %v1423, 0.70710677
        %v1552 = vmul.f32 %v1424, 0.70710677
        %v1553 = vmul.f32 %v1425, 0.70710677
        %v1554 = vmul.f32 %v1426, 0.70710677
        %v1555 = vmul.f32 %v1427, 0.70710677
        %v1556 = vmul.f32 %v1428, 0.70710677
        %v1557 = vmul.f32 %v1429, 0.70710677
        %v1558 = vmul.f32 %v1430, 0.70710677
        %v1559 = vmul.f32 %v1431, 0.70710677
        %v1560 = verf.f32.pop %v1496
        %v1561 = verf.f32.pop %v1497
        %v1562 = verf.f32.pop %v1498
        %v1563 = verf.f32.pop %v1499
        %v1564 = verf.f32.pop %v1500
        %v1565 = verf.f32.pop %v1501
        %v1566 = verf.f32.pop %v1502
        %v1567 = verf.f32.pop %v1503
        %v1568 = verf.f32.pop %v1504
        %v1569 = verf.f32.pop %v1505
        %v1570 = verf.f32.pop %v1506
        %v1571 = verf.f32.pop %v1507
        %v1572 = verf.f32.pop %v1508
        %v1573 = verf.f32.pop %v1509
        %v1574 = verf.f32.pop %v1510
        %v1575 = verf.f32.pop %v1511
        %v1576 = verf.f32.pop %v1512
        %v1577 = verf.f32.pop %v1513
        %v1578 = verf.f32.pop %v1514
        %v1579 = verf.f32.pop %v1515
        %v1580 = verf.f32.pop %v1516
        %v1581 = verf.f32.pop %v1517
        %v1582 = verf.f32.pop %v1518
        %v1583 = verf.f32.pop %v1519
        %v1584 = verf.f32.pop %v1520
        %v1585 = verf.f32.pop %v1521
        %v1586 = verf.f32.pop %v1522
        %v1587 = verf.f32.pop %v1523
        %v1588 = verf.f32.pop %v1524
        %v1589 = verf.f32.pop %v1525
        %v1590 = verf.f32.pop %v1526
        %v1591 = verf.f32.pop %v1527
        %v1592 = verf.f32.pop %v1528
        %v1593 = verf.f32.pop %v1529
        %v1594 = verf.f32.pop %v1530
        %v1595 = verf.f32.pop %v1531
        %v1596 = verf.f32.pop %v1532
        %v1597 = verf.f32.pop %v1533
        %v1598 = verf.f32.pop %v1534
        %v1599 = verf.f32.pop %v1535
        %v1600 = verf.f32.pop %v1536
        %v1601 = verf.f32.pop %v1537
        %v1602 = verf.f32.pop %v1538
        %v1603 = verf.f32.pop %v1539
        %v1604 = verf.f32.pop %v1540
        %v1605 = verf.f32.pop %v1541
        %v1606 = verf.f32.pop %v1542
        %v1607 = verf.f32.pop %v1543
        %v1608 = verf.f32.pop %v1544
        %v1609 = verf.f32.pop %v1545
        %v1610 = verf.f32.pop %v1546
        %v1611 = verf.f32.pop %v1547
        %v1612 = verf.f32.pop %v1548
        %v1613 = verf.f32.pop %v1549
        %v1614 = verf.f32.pop %v1550
        %v1615 = verf.f32.pop %v1551
        %v1616 = verf.f32.pop %v1552
        %v1617 = verf.f32.pop %v1553
        %v1618 = verf.f32.pop %v1554
        %v1619 = verf.f32.pop %v1555
        %v1620 = verf.f32.pop %v1556
        %v1621 = verf.f32.pop %v1557
        %v1622 = verf.f32.pop %v1558
        %v1623 = verf.f32.pop %v1559
        %v1624 = vadd.f32 %v1560, 1.0
        %v1625 = vadd.f32 %v1561, 1.0
        %v1626 = vadd.f32 %v1562, 1.0
        %v1627 = vadd.f32 %v1563, 1.0
        %v1628 = vadd.f32 %v1564, 1.0
        %v1629 = vadd.f32 %v1565, 1.0
        %v1630 = vadd.f32 %v1566, 1.0
        %v1631 = vadd.f32 %v1567, 1.0
        %v1632 = vadd.f32 %v1568, 1.0
        %v1633 = vadd.f32 %v1569, 1.0
        %v1634 = vadd.f32 %v1570, 1.0
        %v1635 = vadd.f32 %v1571, 1.0
        %v1636 = vadd.f32 %v1572, 1.0
        %v1637 = vadd.f32 %v1573, 1.0
        %v1638 = vadd.f32 %v1574, 1.0
        %v1639 = vadd.f32 %v1575, 1.0
        %v1640 = vadd.f32 %v1576, 1.0
        %v1641 = vadd.f32 %v1577, 1.0
        %v1642 = vadd.f32 %v1578, 1.0
        %v1643 = vadd.f32 %v1579, 1.0
        %v1644 = vadd.f32 %v1580, 1.0
        %v1645 = vadd.f32 %v1581, 1.0
        %v1646 = vadd.f32 %v1582, 1.0
        %v1647 = vadd.f32 %v1583, 1.0
        %v1648 = vadd.f32 %v1584, 1.0
        %v1649 = vadd.f32 %v1585, 1.0
        %v1650 = vadd.f32 %v1586, 1.0
        %v1651 = vadd.f32 %v1587, 1.0
        %v1652 = vadd.f32 %v1588, 1.0
        %v1653 = vadd.f32 %v1589, 1.0
        %v1654 = vadd.f32 %v1590, 1.0
        %v1655 = vadd.f32 %v1591, 1.0
        %v1656 = vadd.f32 %v1592, 1.0
        %v1657 = vadd.f32 %v1593, 1.0
        %v1658 = vadd.f32 %v1594, 1.0
        %v1659 = vadd.f32 %v1595, 1.0
        %v1660 = vadd.f32 %v1596, 1.0
        %v1661 = vadd.f32 %v1597, 1.0
        %v1662 = vadd.f32 %v1598, 1.0
        %v1663 = vadd.f32 %v1599, 1.0
        %v1664 = vadd.f32 %v1600, 1.0
        %v1665 = vadd.f32 %v1601, 1.0
        %v1666 = vadd.f32 %v1602, 1.0
        %v1667 = vadd.f32 %v1603, 1.0
        %v1668 = vadd.f32 %v1604, 1.0
        %v1669 = vadd.f32 %v1605, 1.0
        %v1670 = vadd.f32 %v1606, 1.0
        %v1671 = vadd.f32 %v1607, 1.0
        %v1672 = vadd.f32 %v1608, 1.0
        %v1673 = vadd.f32 %v1609, 1.0
        %v1674 = vadd.f32 %v1610, 1.0
        %v1675 = vadd.f32 %v1611, 1.0
        %v1676 = vadd.f32 %v1612, 1.0
        %v1677 = vadd.f32 %v1613, 1.0
        %v1678 = vadd.f32 %v1614, 1.0
        %v1679 = vadd.f32 %v1615, 1.0
        %v1680 = vadd.f32 %v1616, 1.0
        %v1681 = vadd.f32 %v1617, 1.0
        %v1682 = vadd.f32 %v1618, 1.0
        %v1683 = vadd.f32 %v1619, 1.0
        %v1684 = vadd.f32 %v1620, 1.0
        %v1685 = vadd.f32 %v1621, 1.0
        %v1686 = vadd.f32 %v1622, 1.0
        %v1687 = vadd.f32 %v1623, 1.0
        %v1688 = vmul.f32 %v1432, %v1624
        %v1689 = vmul.f32 %v1433, %v1625
        %v1690 = vmul.f32 %v1434, %v1626
        %v1691 = vmul.f32 %v1435, %v1627
        %v1692 = vmul.f32 %v1436, %v1628
        %v1693 = vmul.f32 %v1437, %v1629
        %v1694 = vmul.f32 %v1438, %v1630
        %v1695 = vmul.f32 %v1439, %v1631
        %v1696 = vmul.f32 %v1440, %v1632
        %v1697 = vmul.f32 %v1441, %v1633
        %v1698 = vmul.f32 %v1442, %v1634
        %v1699 = vmul.f32 %v1443, %v1635
        %v1700 = vmul.f32 %v1444, %v1636
        %v1701 = vmul.f32 %v1445, %v1637
        %v1702 = vmul.f32 %v1446, %v1638
        %v1703 = vmul.f32 %v1447, %v1639
        %v1704 = vmul.f32 %v1448, %v1640
        %v1705 = vmul.f32 %v1449, %v1641
        %v1706 = vmul.f32 %v1450, %v1642
        %v1707 = vmul.f32 %v1451, %v1643
        %v1708 = vmul.f32 %v1452, %v1644
        %v1709 = vmul.f32 %v1453, %v1645
        %v1710 = vmul.f32 %v1454, %v1646
        %v1711 = vmul.f32 %v1455, %v1647
        %v1712 = vmul.f32 %v1456, %v1648
        %v1713 = vmul.f32 %v1457, %v1649
        %v1714 = vmul.f32 %v1458, %v1650
        %v1715 = vmul.f32 %v1459, %v1651
        %v1716 = vmul.f32 %v1460, %v1652
        %v1717 = vmul.f32 %v1461, %v1653
        %v1718 = vmul.f32 %v1462, %v1654
        %v1719 = vmul.f32 %v1463, %v1655
        %v1720 = vmul.f32 %v1464, %v1656
        %v1721 = vmul.f32 %v1465, %v1657
        %v1722 = vmul.f32 %v1466, %v1658
        %v1723 = vmul.f32 %v1467, %v1659
        %v1724 = vmul.f32 %v1468, %v1660
        %v1725 = vmul.f32 %v1469, %v1661
        %v1726 = vmul.f32 %v1470, %v1662
        %v1727 = vmul.f32 %v1471, %v1663
        %v1728 = vmul.f32 %v1472, %v1664
        %v1729 = vmul.f32 %v1473, %v1665
        %v1730 = vmul.f32 %v1474, %v1666
        %v1731 = vmul.f32 %v1475, %v1667
        %v1732 = vmul.f32 %v1476, %v1668
        %v1733 = vmul.f32 %v1477, %v1669
        %v1734 = vmul.f32 %v1478, %v1670
        %v1735 = vmul.f32 %v1479, %v1671
        %v1736 = vmul.f32 %v1480, %v1672
        %v1737 = vmul.f32 %v1481, %v1673
        %v1738 = vmul.f32 %v1482, %v1674
        %v1739 = vmul.f32 %v1483, %v1675
        %v1740 = vmul.f32 %v1484, %v1676
        %v1741 = vmul.f32 %v1485, %v1677
        %v1742 = vmul.f32 %v1486, %v1678
        %v1743 = vmul.f32 %v1487, %v1679
        %v1744 = vmul.f32 %v1488, %v1680
        %v1745 = vmul.f32 %v1489, %v1681
        %v1746 = vmul.f32 %v1490, %v1682
        %v1747 = vmul.f32 %v1491, %v1683
        %v1748 = vmul.f32 %v1492, %v1684
        %v1749 = vmul.f32 %v1493, %v1685
        %v1750 = vmul.f32 %v1494, %v1686
        %v1751 = vmul.f32 %v1495, %v1687
        %v1752 = vpack.c.bf16 %v1689, %v1688
        %v1753 = vpack.c.bf16 %v1691, %v1690
        %v1754 = vpack.c.bf16 %v1693, %v1692
        %v1755 = vpack.c.bf16 %v1695, %v1694
        %v1756 = vpack.c.bf16 %v1697, %v1696
        %v1757 = vpack.c.bf16 %v1699, %v1698
        %v1758 = vpack.c.bf16 %v1701, %v1700
        %v1759 = vpack.c.bf16 %v1703, %v1702
        %v1760 = vpack.c.bf16 %v1705, %v1704
        %v1761 = vpack.c.bf16 %v1707, %v1706
        %v1762 = vpack.c.bf16 %v1709, %v1708
        %v1763 = vpack.c.bf16 %v1711, %v1710
        %v1764 = vpack.c.bf16 %v1713, %v1712
        %v1765 = vpack.c.bf16 %v1715, %v1714
        %v1766 = vpack.c.bf16 %v1717, %v1716
        %v1767 = vpack.c.bf16 %v1719, %v1718
        %v1768 = vpack.c.bf16 %v1721, %v1720
        %v1769 = vpack.c.bf16 %v1723, %v1722
        %v1770 = vpack.c.bf16 %v1725, %v1724
        %v1771 = vpack.c.bf16 %v1727, %v1726
        %v1772 = vpack.c.bf16 %v1729, %v1728
        %v1773 = vpack.c.bf16 %v1731, %v1730
        %v1774 = vpack.c.bf16 %v1733, %v1732
        %v1775 = vpack.c.bf16 %v1735, %v1734
        %v1776 = vpack.c.bf16 %v1737, %v1736
        %v1777 = vpack.c.bf16 %v1739, %v1738
        %v1778 = vpack.c.bf16 %v1741, %v1740
        %v1779 = vpack.c.bf16 %v1743, %v1742
        %v1780 = vpack.c.bf16 %v1745, %v1744
        %v1781 = vpack.c.bf16 %v1747, %v1746
        %v1782 = vpack.c.bf16 %v1749, %v1748
        %v1783 = vpack.c.bf16 %v1751, %v1750
        %v1784 = vld [vmem:[%s4] sm:$0xff]
        %v1785 = vld [vmem:[%s4 + $0x8] sm:$0xff]
        %v1786 = vld [vmem:[%s4 + $0x10] sm:$0xff]
        %v1787 = vld [vmem:[%s4 + $0x18] sm:$0xff]
        %v1788 = vld [vmem:[%s4 + $0x20] sm:$0xff]
        %v1789 = vld [vmem:[%s4 + $0x28] sm:$0xff]
        %v1790 = vld [vmem:[%s4 + $0x30] sm:$0xff]
        %v1791 = vld [vmem:[%s4 + $0x38] sm:$0xff]
        %v1792 = vld [vmem:[%s4 + $0x40] sm:$0xff]
        %v1793 = vld [vmem:[%s4 + $0x48] sm:$0xff]
        %v1794 = vld [vmem:[%s4 + $0x50] sm:$0xff]
        %v1795 = vld [vmem:[%s4 + $0x58] sm:$0xff]
        %v1796 = vld [vmem:[%s4 + $0x60] sm:$0xff]
        %v1797 = vld [vmem:[%s4 + $0x68] sm:$0xff]
        %v1798 = vld [vmem:[%s4 + $0x70] sm:$0xff]
        %v1799 = vld [vmem:[%s4 + $0x78] sm:$0xff]
        %v1800 = vld [vmem:[%s5] sm:$0x3]
        %v1802 = vlaneseq
        %v1803 = vshrl.u32 %v1802, 7
        %v1804 = vsub.s32 0, %v1803
        %v1805 = vrot.slane %v1800, %v1804
        %v1806 = vlaneseq
        %v1807 = vshrl.u32 %v1806, 7
        %v1808 = vsub.s32 1, %v1807
        %v1809 = vrot.slane %v1800, %v1808
        %v1828 = vunpack.c.l.b16 %v1784
        %v1829 = vunpack.c.h.b16 %v1784
        %v1830 = vunpack.c.l.b16 %v1785
        %v1831 = vunpack.c.h.b16 %v1785
        %v1832 = vunpack.c.l.b16 %v1786
        %v1833 = vunpack.c.h.b16 %v1786
        %v1834 = vunpack.c.l.b16 %v1787
        %v1835 = vunpack.c.h.b16 %v1787
        %v1836 = vunpack.c.l.b16 %v1788
        %v1837 = vunpack.c.h.b16 %v1788
        %v1838 = vunpack.c.l.b16 %v1789
        %v1839 = vunpack.c.h.b16 %v1789
        %v1840 = vunpack.c.l.b16 %v1790
        %v1841 = vunpack.c.h.b16 %v1790
        %v1842 = vunpack.c.l.b16 %v1791
        %v1843 = vunpack.c.h.b16 %v1791
        %v1844 = vunpack.c.l.b16 %v1792
        %v1845 = vunpack.c.h.b16 %v1792
        %v1846 = vunpack.c.l.b16 %v1793
        %v1847 = vunpack.c.h.b16 %v1793
        %v1848 = vunpack.c.l.b16 %v1794
        %v1849 = vunpack.c.h.b16 %v1794
        %v1850 = vunpack.c.l.b16 %v1795
        %v1851 = vunpack.c.h.b16 %v1795
        %v1852 = vunpack.c.l.b16 %v1796
        %v1853 = vunpack.c.h.b16 %v1796
        %v1854 = vunpack.c.l.b16 %v1797
        %v1855 = vunpack.c.h.b16 %v1797
        %v1856 = vunpack.c.l.b16 %v1798
        %v1857 = vunpack.c.h.b16 %v1798
        %v1858 = vunpack.c.l.b16 %v1799
        %v1859 = vunpack.c.h.b16 %v1799
        %v1860 = vpack.c.b16 %v1830, %v1828
        %v1861 = vpack.c.b16 %v1831, %v1829
        %v1862 = vpack.c.b16 %v1834, %v1832
        %v1863 = vpack.c.b16 %v1835, %v1833
        %v1864 = vpack.c.b16 %v1838, %v1836
        %v1865 = vpack.c.b16 %v1839, %v1837
        %v1866 = vpack.c.b16 %v1842, %v1840
        %v1867 = vpack.c.b16 %v1843, %v1841
        %v1868 = vpack.c.b16 %v1846, %v1844
        %v1869 = vpack.c.b16 %v1847, %v1845
        %v1870 = vpack.c.b16 %v1850, %v1848
        %v1871 = vpack.c.b16 %v1851, %v1849
        %v1872 = vpack.c.b16 %v1854, %v1852
        %v1873 = vpack.c.b16 %v1855, %v1853
        %v1874 = vpack.c.b16 %v1858, %v1856
        %v1875 = vpack.c.b16 %v1859, %v1857
        %1892 = vmatprep.subr.bf16.mxu0 %v1861
        %1893 = vmatpush1.bf16.msra.mxu0 %v1860
        %1894 = vmatprep.subr.bf16.mxu0 %v1863
        %1895 = vmatpush1.bf16.msra.mxu0 %v1862
        %1896 = vmatprep.subr.bf16.mxu0 %v1865
        %1897 = vmatpush1.bf16.msra.mxu0 %v1864
        %1898 = vmatprep.subr.bf16.mxu0 %v1867
        %1899 = vmatpush1.bf16.msra.mxu0 %v1866
        %1900 = vmatprep.subr.bf16.mxu0 %v1869
        %1901 = vmatpush1.bf16.msra.mxu0 %v1868
        %1902 = vmatprep.subr.bf16.mxu0 %v1871
        %1903 = vmatpush1.bf16.msra.mxu0 %v1870
        %1904 = vmatprep.subr.bf16.mxu0 %v1873
        %1905 = vmatpush1.bf16.msra.mxu0 %v1872
        %1906 = vmatprep.subr.bf16.mxu0 %v1875
        %1907 = vmatpush1.bf16.msra.mxu0 %v1874
        %1908 = vmatprep.subr.bf16.mxu0 0
        %1909 = vmatpush1.bf16.msra.mxu0 0
        %1910 = vmatprep.subr.bf16.mxu0 0
        %1911 = vmatpush1.bf16.msra.mxu0 0
        %1912 = vmatprep.subr.bf16.mxu0 0
        %1913 = vmatpush1.bf16.msra.mxu0 0
        %1914 = vmatprep.subr.bf16.mxu0 0
        %1915 = vmatpush1.bf16.msra.mxu0 0
        %1916 = vmatprep.subr.bf16.mxu0 0
        %1917 = vmatpush1.bf16.msra.mxu0 0
        %1918 = vmatprep.subr.bf16.mxu0 0
        %1919 = vmatpush1.bf16.msra.mxu0 0
        %1920 = vmatprep.subr.bf16.mxu0 0
        %1921 = vmatpush1.bf16.msra.mxu0 0
        %1922 = vmatprep.subr.bf16.mxu0 0
        %1923 = vmatpush1.bf16.msra.mxu0 0
        %1924 = vmatprep.mubr.bf16.mxu0 0
        %1925 = vmatmul.mubr.bf16.gmra.mrb[0].mxu0 %v1752
        %v1926 = vpop.f32.mrb[0].mxu0
        %v1927 = vadd.f32 %v1805, %v1926
        %v1928 = vpop.f32.mrb[0].mxu0
        %v1929 = vadd.f32 %v1809, %v1928
        %v1930 = vpop.f32.mrb[0].mxu0
        %v1931 = vadd.f32 %v1805, %v1930
        %v1932 = vpop.f32.mrb[0].mxu0
        %v1933 = vadd.f32 %v1809, %v1932
        %1934 = vmatprep.mubr.bf16.mxu0 0
        %1935 = vmatmul.mubr.bf16.gmra.mrb[0].mxu0 %v1753
        %v1936 = vpop.f32.mrb[0].mxu0
        %v1937 = vadd.f32 %v1805, %v1936
        %v1938 = vpop.f32.mrb[0].mxu0
        %v1939 = vadd.f32 %v1809, %v1938
        %v1940 = vpop.f32.mrb[0].mxu0
        %v1941 = vadd.f32 %v1805, %v1940
        %v1942 = vpop.f32.mrb[0].mxu0
        %v1943 = vadd.f32 %v1809, %v1942
        %1944 = vmatprep.mubr.bf16.mxu0 0
        %1945 = vmatmul.mubr.bf16.gmra.mrb[0].mxu0 %v1754
        %v1946 = vpop.f32.mrb[0].mxu0
        %v1947 = vadd.f32 %v1805, %v1946
        %v1948 = vpop.f32.mrb[0].mxu0
        %v1949 = vadd.f32 %v1809, %v1948
        %v1950 = vpop.f32.mrb[0].mxu0
        %v1951 = vadd.f32 %v1805, %v1950
        %v1952 = vpop.f32.mrb[0].mxu0
        %v1953 = vadd.f32 %v1809, %v1952
        %1954 = vmatprep.mubr.bf16.mxu0 0
        %1955 = vmatmul.mubr.bf16.gmra.mrb[0].mxu0 %v1755
        %v1956 = vpop.f32.mrb[0].mxu0
        %v1957 = vadd.f32 %v1805, %v1956
        %v1958 = vpop.f32.mrb[0].mxu0
        %v1959 = vadd.f32 %v1809, %v1958
        %v1960 = vpop.f32.mrb[0].mxu0
        %v1961 = vadd.f32 %v1805, %v1960
        %v1962 = vpop.f32.mrb[0].mxu0
        %v1963 = vadd.f32 %v1809, %v1962
        %1964 = vmatprep.mubr.bf16.mxu0 0
        %1965 = vmatmul.mubr.bf16.gmra.mrb[0].mxu0 %v1756
        %v1966 = vpop.f32.mrb[0].mxu0
        %v1967 = vadd.f32 %v1805, %v1966
        %v1968 = vpop.f32.mrb[0].mxu0
        %v1969 = vadd.f32 %v1809, %v1968
        %v1970 = vpop.f32.mrb[0].mxu0
        %v1971 = vadd.f32 %v1805, %v1970
        %v1972 = vpop.f32.mrb[0].mxu0
        %v1973 = vadd.f32 %v1809, %v1972
        %1974 = vmatprep.mubr.bf16.mxu0 0
        %1975 = vmatmul.mubr.bf16.gmra.mrb[0].mxu0 %v1757
        %v1976 = vpop.f32.mrb[0].mxu0
        %v1977 = vadd.f32 %v1805, %v1976
        %v1978 = vpop.f32.mrb[0].mxu0
        %v1979 = vadd.f32 %v1809, %v1978
        %v1980 = vpop.f32.mrb[0].mxu0
        %v1981 = vadd.f32 %v1805, %v1980
        %v1982 = vpop.f32.mrb[0].mxu0
        %v1983 = vadd.f32 %v1809, %v1982
        %1984 = vmatprep.mubr.bf16.mxu0 0
        %1985 = vmatmul.mubr.bf16.gmra.mrb[0].mxu0 %v1758
        %v1986 = vpop.f32.mrb[0].mxu0
        %v1987 = vadd.f32 %v1805, %v1986
        %v1988 = vpop.f32.mrb[0].mxu0
        %v1989 = vadd.f32 %v1809, %v1988
        %v1990 = vpop.f32.mrb[0].mxu0
        %v1991 = vadd.f32 %v1805, %v1990
        %v1992 = vpop.f32.mrb[0].mxu0
        %v1993 = vadd.f32 %v1809, %v1992
        %1994 = vmatprep.mubr.bf16.mxu0 0
        %1995 = vmatmul.mubr.bf16.gmra.mrb[0].mxu0 %v1759
        %v1996 = vpop.f32.mrb[0].mxu0
        %v1997 = vadd.f32 %v1805, %v1996
        %v1998 = vpop.f32.mrb[0].mxu0
        %v1999 = vadd.f32 %v1809, %v1998
        %v2000 = vpop.f32.mrb[0].mxu0
        %v2001 = vadd.f32 %v1805, %v2000
        %v2002 = vpop.f32.mrb[0].mxu0
        %v2003 = vadd.f32 %v1809, %v2002
        %2004 = vmatprep.mubr.bf16.mxu0 0
        %2005 = vmatmul.mubr.bf16.gmra.mrb[0].mxu0 %v1760
        %v2006 = vpop.f32.mrb[0].mxu0
        %v2007 = vadd.f32 %v1805, %v2006
        %v2008 = vpop.f32.mrb[0].mxu0
        %v2009 = vadd.f32 %v1809, %v2008
        %v2010 = vpop.f32.mrb[0].mxu0
        %v2011 = vadd.f32 %v1805, %v2010
        %v2012 = vpop.f32.mrb[0].mxu0
        %v2013 = vadd.f32 %v1809, %v2012
        %2014 = vmatprep.mubr.bf16.mxu0 0
        %2015 = vmatmul.mubr.bf16.gmra.mrb[0].mxu0 %v1761
        %v2016 = vpop.f32.mrb[0].mxu0
        %v2017 = vadd.f32 %v1805, %v2016
        %v2018 = vpop.f32.mrb[0].mxu0
        %v2019 = vadd.f32 %v1809, %v2018
        %v2020 = vpop.f32.mrb[0].mxu0
        %v2021 = vadd.f32 %v1805, %v2020
        %v2022 = vpop.f32.mrb[0].mxu0
        %v2023 = vadd.f32 %v1809, %v2022
        %2024 = vmatprep.mubr.bf16.mxu0 0
        %2025 = vmatmul.mubr.bf16.gmra.mrb[0].mxu0 %v1762
        %v2026 = vpop.f32.mrb[0].mxu0
        %v2027 = vadd.f32 %v1805, %v2026
        %v2028 = vpop.f32.mrb[0].mxu0
        %v2029 = vadd.f32 %v1809, %v2028
        %v2030 = vpop.f32.mrb[0].mxu0
        %v2031 = vadd.f32 %v1805, %v2030
        %v2032 = vpop.f32.mrb[0].mxu0
        %v2033 = vadd.f32 %v1809, %v2032
        %2034 = vmatprep.mubr.bf16.mxu0 0
        %2035 = vmatmul.mubr.bf16.gmra.mrb[0].mxu0 %v1763
        %v2036 = vpop.f32.mrb[0].mxu0
        %v2037 = vadd.f32 %v1805, %v2036
        %v2038 = vpop.f32.mrb[0].mxu0
        %v2039 = vadd.f32 %v1809, %v2038
        %v2040 = vpop.f32.mrb[0].mxu0
        %v2041 = vadd.f32 %v1805, %v2040
        %v2042 = vpop.f32.mrb[0].mxu0
        %v2043 = vadd.f32 %v1809, %v2042
        %2044 = vmatprep.mubr.bf16.mxu0 0
        %2045 = vmatmul.mubr.bf16.gmra.mrb[0].mxu0 %v1764
        %v2046 = vpop.f32.mrb[0].mxu0
        %v2047 = vadd.f32 %v1805, %v2046
        %v2048 = vpop.f32.mrb[0].mxu0
        %v2049 = vadd.f32 %v1809, %v2048
        %v2050 = vpop.f32.mrb[0].mxu0
        %v2051 = vadd.f32 %v1805, %v2050
        %v2052 = vpop.f32.mrb[0].mxu0
        %v2053 = vadd.f32 %v1809, %v2052
        %2054 = vmatprep.mubr.bf16.mxu0 0
        %2055 = vmatmul.mubr.bf16.gmra.mrb[0].mxu0 %v1765
        %v2056 = vpop.f32.mrb[0].mxu0
        %v2057 = vadd.f32 %v1805, %v2056
        %v2058 = vpop.f32.mrb[0].mxu0
        %v2059 = vadd.f32 %v1809, %v2058
        %v2060 = vpop.f32.mrb[0].mxu0
        %v2061 = vadd.f32 %v1805, %v2060
        %v2062 = vpop.f32.mrb[0].mxu0
        %v2063 = vadd.f32 %v1809, %v2062
        %2064 = vmatprep.mubr.bf16.mxu0 0
        %2065 = vmatmul.mubr.bf16.gmra.mrb[0].mxu0 %v1766
        %v2066 = vpop.f32.mrb[0].mxu0
        %v2067 = vadd.f32 %v1805, %v2066
        %v2068 = vpop.f32.mrb[0].mxu0
        %v2069 = vadd.f32 %v1809, %v2068
        %v2070 = vpop.f32.mrb[0].mxu0
        %v2071 = vadd.f32 %v1805, %v2070
        %v2072 = vpop.f32.mrb[0].mxu0
        %v2073 = vadd.f32 %v1809, %v2072
        %2074 = vmatprep.mubr.bf16.mxu0 0
        %2075 = vmatmul.mubr.bf16.gmra.mrb[0].mxu0 %v1767
        %v2076 = vpop.f32.mrb[0].mxu0
        %v2077 = vadd.f32 %v1805, %v2076
        %v2078 = vpop.f32.mrb[0].mxu0
        %v2079 = vadd.f32 %v1809, %v2078
        %v2080 = vpop.f32.mrb[0].mxu0
        %v2081 = vadd.f32 %v1805, %v2080
        %v2082 = vpop.f32.mrb[0].mxu0
        %v2083 = vadd.f32 %v1809, %v2082
        %2084 = vmatprep.mubr.bf16.mxu0 0
        %2085 = vmatmul.mubr.bf16.gmra.mrb[0].mxu0 %v1768
        %v2086 = vpop.f32.mrb[0].mxu0
        %v2087 = vadd.f32 %v1805, %v2086
        %v2088 = vpop.f32.mrb[0].mxu0
        %v2089 = vadd.f32 %v1809, %v2088
        %v2090 = vpop.f32.mrb[0].mxu0
        %v2091 = vadd.f32 %v1805, %v2090
        %v2092 = vpop.f32.mrb[0].mxu0
        %v2093 = vadd.f32 %v1809, %v2092
        %2094 = vmatprep.mubr.bf16.mxu0 0
        %2095 = vmatmul.mubr.bf16.gmra.mrb[0].mxu0 %v1769
        %v2096 = vpop.f32.mrb[0].mxu0
        %v2097 = vadd.f32 %v1805, %v2096
        %v2098 = vpop.f32.mrb[0].mxu0
        %v2099 = vadd.f32 %v1809, %v2098
        %v2100 = vpop.f32.mrb[0].mxu0
        %v2101 = vadd.f32 %v1805, %v2100
        %v2102 = vpop.f32.mrb[0].mxu0
        %v2103 = vadd.f32 %v1809, %v2102
        %2104 = vmatprep.mubr.bf16.mxu0 0
        %2105 = vmatmul.mubr.bf16.gmra.mrb[0].mxu0 %v1770
        %v2106 = vpop.f32.mrb[0].mxu0
        %v2107 = vadd.f32 %v1805, %v2106
        %v2108 = vpop.f32.mrb[0].mxu0
        %v2109 = vadd.f32 %v1809, %v2108
        %v2110 = vpop.f32.mrb[0].mxu0
        %v2111 = vadd.f32 %v1805, %v2110
        %v2112 = vpop.f32.mrb[0].mxu0
        %v2113 = vadd.f32 %v1809, %v2112
        %2114 = vmatprep.mubr.bf16.mxu0 0
        %2115 = vmatmul.mubr.bf16.gmra.mrb[0].mxu0 %v1771
        %v2116 = vpop.f32.mrb[0].mxu0
        %v2117 = vadd.f32 %v1805, %v2116
        %v2118 = vpop.f32.mrb[0].mxu0
        %v2119 = vadd.f32 %v1809, %v2118
        %v2120 = vpop.f32.mrb[0].mxu0
        %v2121 = vadd.f32 %v1805, %v2120
        %v2122 = vpop.f32.mrb[0].mxu0
        %v2123 = vadd.f32 %v1809, %v2122
        %2124 = vmatprep.mubr.bf16.mxu0 0
        %2125 = vmatmul.mubr.bf16.gmra.mrb[0].mxu0 %v1772
        %v2126 = vpop.f32.mrb[0].mxu0
        %v2127 = vadd.f32 %v1805, %v2126
        %v2128 = vpop.f32.mrb[0].mxu0
        %v2129 = vadd.f32 %v1809, %v2128
        %v2130 = vpop.f32.mrb[0].mxu0
        %v2131 = vadd.f32 %v1805, %v2130
        %v2132 = vpop.f32.mrb[0].mxu0
        %v2133 = vadd.f32 %v1809, %v2132
        %2134 = vmatprep.mubr.bf16.mxu0 0
        %2135 = vmatmul.mubr.bf16.gmra.mrb[0].mxu0 %v1773
        %v2136 = vpop.f32.mrb[0].mxu0
        %v2137 = vadd.f32 %v1805, %v2136
        %v2138 = vpop.f32.mrb[0].mxu0
        %v2139 = vadd.f32 %v1809, %v2138
        %v2140 = vpop.f32.mrb[0].mxu0
        %v2141 = vadd.f32 %v1805, %v2140
        %v2142 = vpop.f32.mrb[0].mxu0
        %v2143 = vadd.f32 %v1809, %v2142
        %2144 = vmatprep.mubr.bf16.mxu0 0
        %2145 = vmatmul.mubr.bf16.gmra.mrb[0].mxu0 %v1774
        %v2146 = vpop.f32.mrb[0].mxu0
        %v2147 = vadd.f32 %v1805, %v2146
        %v2148 = vpop.f32.mrb[0].mxu0
        %v2149 = vadd.f32 %v1809, %v2148
        %v2150 = vpop.f32.mrb[0].mxu0
        %v2151 = vadd.f32 %v1805, %v2150
        %v2152 = vpop.f32.mrb[0].mxu0
        %v2153 = vadd.f32 %v1809, %v2152
        %2154 = vmatprep.mubr.bf16.mxu0 0
        %2155 = vmatmul.mubr.bf16.gmra.mrb[0].mxu0 %v1775
        %v2156 = vpop.f32.mrb[0].mxu0
        %v2157 = vadd.f32 %v1805, %v2156
        %v2158 = vpop.f32.mrb[0].mxu0
        %v2159 = vadd.f32 %v1809, %v2158
        %v2160 = vpop.f32.mrb[0].mxu0
        %v2161 = vadd.f32 %v1805, %v2160
        %v2162 = vpop.f32.mrb[0].mxu0
        %v2163 = vadd.f32 %v1809, %v2162
        %2164 = vmatprep.mubr.bf16.mxu0 0
        %2165 = vmatmul.mubr.bf16.gmra.mrb[0].mxu0 %v1776
        %v2166 = vpop.f32.mrb[0].mxu0
        %v2167 = vadd.f32 %v1805, %v2166
        %v2168 = vpop.f32.mrb[0].mxu0
        %v2169 = vadd.f32 %v1809, %v2168
        %v2170 = vpop.f32.mrb[0].mxu0
        %v2171 = vadd.f32 %v1805, %v2170
        %v2172 = vpop.f32.mrb[0].mxu0
        %v2173 = vadd.f32 %v1809, %v2172
        %2174 = vmatprep.mubr.bf16.mxu0 0
        %2175 = vmatmul.mubr.bf16.gmra.mrb[0].mxu0 %v1777
        %v2176 = vpop.f32.mrb[0].mxu0
        %v2177 = vadd.f32 %v1805, %v2176
        %v2178 = vpop.f32.mrb[0].mxu0
        %v2179 = vadd.f32 %v1809, %v2178
        %v2180 = vpop.f32.mrb[0].mxu0
        %v2181 = vadd.f32 %v1805, %v2180
        %v2182 = vpop.f32.mrb[0].mxu0
        %v2183 = vadd.f32 %v1809, %v2182
        %2184 = vmatprep.mubr.bf16.mxu0 0
        %2185 = vmatmul.mubr.bf16.gmra.mrb[0].mxu0 %v1778
        %v2186 = vpop.f32.mrb[0].mxu0
        %v2187 = vadd.f32 %v1805, %v2186
        %v2188 = vpop.f32.mrb[0].mxu0
        %v2189 = vadd.f32 %v1809, %v2188
        %v2190 = vpop.f32.mrb[0].mxu0
        %v2191 = vadd.f32 %v1805, %v2190
        %v2192 = vpop.f32.mrb[0].mxu0
        %v2193 = vadd.f32 %v1809, %v2192
        %2194 = vmatprep.mubr.bf16.mxu0 0
        %2195 = vmatmul.mubr.bf16.gmra.mrb[0].mxu0 %v1779
        %v2196 = vpop.f32.mrb[0].mxu0
        %v2197 = vadd.f32 %v1805, %v2196
        %v2198 = vpop.f32.mrb[0].mxu0
        %v2199 = vadd.f32 %v1809, %v2198
        %v2200 = vpop.f32.mrb[0].mxu0
        %v2201 = vadd.f32 %v1805, %v2200
        %v2202 = vpop.f32.mrb[0].mxu0
        %v2203 = vadd.f32 %v1809, %v2202
        %2204 = vmatprep.mubr.bf16.mxu0 0
        %2205 = vmatmul.mubr.bf16.gmra.mrb[0].mxu0 %v1780
        %v2206 = vpop.f32.mrb[0].mxu0
        %v2207 = vadd.f32 %v1805, %v2206
        %v2208 = vpop.f32.mrb[0].mxu0
        %v2209 = vadd.f32 %v1809, %v2208
        %v2210 = vpop.f32.mrb[0].mxu0
        %v2211 = vadd.f32 %v1805, %v2210
        %v2212 = vpop.f32.mrb[0].mxu0
        %v2213 = vadd.f32 %v1809, %v2212
        %2214 = vmatprep.mubr.bf16.mxu0 0
        %2215 = vmatmul.mubr.bf16.gmra.mrb[0].mxu0 %v1781
        %v2216 = vpop.f32.mrb[0].mxu0
        %v2217 = vadd.f32 %v1805, %v2216
        %v2218 = vpop.f32.mrb[0].mxu0
        %v2219 = vadd.f32 %v1809, %v2218
        %v2220 = vpop.f32.mrb[0].mxu0
        %v2221 = vadd.f32 %v1805, %v2220
        %v2222 = vpop.f32.mrb[0].mxu0
        %v2223 = vadd.f32 %v1809, %v2222
        %2224 = vmatprep.mubr.bf16.mxu0 0
        %2225 = vmatmul.mubr.bf16.gmra.mrb[0].mxu0 %v1782
        %v2226 = vpop.f32.mrb[0].mxu0
        %v2227 = vadd.f32 %v1805, %v2226
        %v2228 = vpop.f32.mrb[0].mxu0
        %v2229 = vadd.f32 %v1809, %v2228
        %v2230 = vpop.f32.mrb[0].mxu0
        %v2231 = vadd.f32 %v1805, %v2230
        %v2232 = vpop.f32.mrb[0].mxu0
        %v2233 = vadd.f32 %v1809, %v2232
        %2234 = vmatprep.mubr.bf16.mxu0 0
        %2235 = vmatmul.mubr.bf16.gmra.mrb[0].mxu0 %v1783
        %v2236 = vpop.f32.mrb[0].mxu0
        %v2237 = vadd.f32 %v1805, %v2236
        %v2238 = vpop.f32.mrb[0].mxu0
        %v2239 = vadd.f32 %v1809, %v2238
        %v2240 = vpop.f32.mrb[0].mxu0
        %v2241 = vadd.f32 %v1805, %v2240
        %v2242 = vpop.f32.mrb[0].mxu0
        %v2243 = vadd.f32 %v1809, %v2242
        %2244 = vdwg.mxu0
        %v2245 = vmul.f32 %v1927, 0.5
        %v2246 = vmul.f32 %v1929, 0.5
        %v2247 = vmul.f32 %v1931, 0.5
        %v2248 = vmul.f32 %v1933, 0.5
        %v2249 = vmul.f32 %v1937, 0.5
        %v2250 = vmul.f32 %v1939, 0.5
        %v2251 = vmul.f32 %v1941, 0.5
        %v2252 = vmul.f32 %v1943, 0.5
        %v2253 = vmul.f32 %v1947, 0.5
        %v2254 = vmul.f32 %v1949, 0.5
        %v2255 = vmul.f32 %v1951, 0.5
        %v2256 = vmul.f32 %v1953, 0.5
        %v2257 = vmul.f32 %v1957, 0.5
        %v2258 = vmul.f32 %v1959, 0.5
        %v2259 = vmul.f32 %v1961, 0.5
        %v2260 = vmul.f32 %v1963, 0.5
        %v2261 = vmul.f32 %v1967, 0.5
        %v2262 = vmul.f32 %v1969, 0.5
        %v2263 = vmul.f32 %v1971, 0.5
        %v2264 = vmul.f32 %v1973, 0.5
        %v2265 = vmul.f32 %v1977, 0.5
        %v2266 = vmul.f32 %v1979, 0.5
        %v2267 = vmul.f32 %v1981, 0.5
        %v2268 = vmul.f32 %v1983, 0.5
        %v2269 = vmul.f32 %v1987, 0.5
        %v2270 = vmul.f32 %v1989, 0.5
        %v2271 = vmul.f32 %v1991, 0.5
        %v2272 = vmul.f32 %v1993, 0.5
        %v2273 = vmul.f32 %v1997, 0.5
        %v2274 = vmul.f32 %v1999, 0.5
        %v2275 = vmul.f32 %v2001, 0.5
        %v2276 = vmul.f32 %v2003, 0.5
        %v2277 = vmul.f32 %v2007, 0.5
        %v2278 = vmul.f32 %v2009, 0.5
        %v2279 = vmul.f32 %v2011, 0.5
        %v2280 = vmul.f32 %v2013, 0.5
        %v2281 = vmul.f32 %v2017, 0.5
        %v2282 = vmul.f32 %v2019, 0.5
        %v2283 = vmul.f32 %v2021, 0.5
        %v2284 = vmul.f32 %v2023, 0.5
        %v2285 = vmul.f32 %v2027, 0.5
        %v2286 = vmul.f32 %v2029, 0.5
        %v2287 = vmul.f32 %v2031, 0.5
        %v2288 = vmul.f32 %v2033, 0.5
        %v2289 = vmul.f32 %v2037, 0.5
        %v2290 = vmul.f32 %v2039, 0.5
        %v2291 = vmul.f32 %v2041, 0.5
        %v2292 = vmul.f32 %v2043, 0.5
        %v2293 = vmul.f32 %v2047, 0.5
        %v2294 = vmul.f32 %v2049, 0.5
        %v2295 = vmul.f32 %v2051, 0.5
        %v2296 = vmul.f32 %v2053, 0.5
        %v2297 = vmul.f32 %v2057, 0.5
        %v2298 = vmul.f32 %v2059, 0.5
        %v2299 = vmul.f32 %v2061, 0.5
        %v2300 = vmul.f32 %v2063, 0.5
        %v2301 = vmul.f32 %v2067, 0.5
        %v2302 = vmul.f32 %v2069, 0.5
        %v2303 = vmul.f32 %v2071, 0.5
        %v2304 = vmul.f32 %v2073, 0.5
        %v2305 = vmul.f32 %v2077, 0.5
        %v2306 = vmul.f32 %v2079, 0.5
        %v2307 = vmul.f32 %v2081, 0.5
        %v2308 = vmul.f32 %v2083, 0.5
        %v2309 = vmul.f32 %v2087, 0.5
        %v2310 = vmul.f32 %v2089, 0.5
        %v2311 = vmul.f32 %v2091, 0.5
        %v2312 = vmul.f32 %v2093, 0.5
        %v2313 = vmul.f32 %v2097, 0.5
        %v2314 = vmul.f32 %v2099, 0.5
        %v2315 = vmul.f32 %v2101, 0.5
        %v2316 = vmul.f32 %v2103, 0.5
        %v2317 = vmul.f32 %v2107, 0.5
        %v2318 = vmul.f32 %v2109, 0.5
        %v2319 = vmul.f32 %v2111, 0.5
        %v2320 = vmul.f32 %v2113, 0.5
        %v2321 = vmul.f32 %v2117, 0.5
        %v2322 = vmul.f32 %v2119, 0.5
        %v2323 = vmul.f32 %v2121, 0.5
        %v2324 = vmul.f32 %v2123, 0.5
        %v2325 = vmul.f32 %v2127, 0.5
        %v2326 = vmul.f32 %v2129, 0.5
        %v2327 = vmul.f32 %v2131, 0.5
        %v2328 = vmul.f32 %v2133, 0.5
        %v2329 = vmul.f32 %v2137, 0.5
        %v2330 = vmul.f32 %v2139, 0.5
        %v2331 = vmul.f32 %v2141, 0.5
        %v2332 = vmul.f32 %v2143, 0.5
        %v2333 = vmul.f32 %v2147, 0.5
        %v2334 = vmul.f32 %v2149, 0.5
        %v2335 = vmul.f32 %v2151, 0.5
        %v2336 = vmul.f32 %v2153, 0.5
        %v2337 = vmul.f32 %v2157, 0.5
        %v2338 = vmul.f32 %v2159, 0.5
        %v2339 = vmul.f32 %v2161, 0.5
        %v2340 = vmul.f32 %v2163, 0.5
        %v2341 = vmul.f32 %v2167, 0.5
        %v2342 = vmul.f32 %v2169, 0.5
        %v2343 = vmul.f32 %v2171, 0.5
        %v2344 = vmul.f32 %v2173, 0.5
        %v2345 = vmul.f32 %v2177, 0.5
        %v2346 = vmul.f32 %v2179, 0.5
        %v2347 = vmul.f32 %v2181, 0.5
        %v2348 = vmul.f32 %v2183, 0.5
        %v2349 = vmul.f32 %v2187, 0.5
        %v2350 = vmul.f32 %v2189, 0.5
        %v2351 = vmul.f32 %v2191, 0.5
        %v2352 = vmul.f32 %v2193, 0.5
        %v2353 = vmul.f32 %v2197, 0.5
        %v2354 = vmul.f32 %v2199, 0.5
        %v2355 = vmul.f32 %v2201, 0.5
        %v2356 = vmul.f32 %v2203, 0.5
        %v2357 = vmul.f32 %v2207, 0.5
        %v2358 = vmul.f32 %v2209, 0.5
        %v2359 = vmul.f32 %v2211, 0.5
        %v2360 = vmul.f32 %v2213, 0.5
        %v2361 = vmul.f32 %v2217, 0.5
        %v2362 = vmul.f32 %v2219, 0.5
        %v2363 = vmul.f32 %v2221, 0.5
        %v2364 = vmul.f32 %v2223, 0.5
        %v2365 = vmul.f32 %v2227, 0.5
        %v2366 = vmul.f32 %v2229, 0.5
        %v2367 = vmul.f32 %v2231, 0.5
        %v2368 = vmul.f32 %v2233, 0.5
        %v2369 = vmul.f32 %v2237, 0.5
        %v2370 = vmul.f32 %v2239, 0.5
        %v2371 = vmul.f32 %v2241, 0.5
        %v2372 = vmul.f32 %v2243, 0.5
        %v2373 = vmul.f32 %v1927, 0.70710677
        %v2374 = vmul.f32 %v1929, 0.70710677
        %v2375 = vmul.f32 %v1931, 0.70710677
        %v2376 = vmul.f32 %v1933, 0.70710677
        %v2377 = vmul.f32 %v1937, 0.70710677
        %v2378 = vmul.f32 %v1939, 0.70710677
        %v2379 = vmul.f32 %v1941, 0.70710677
        %v2380 = vmul.f32 %v1943, 0.70710677
        %v2381 = vmul.f32 %v1947, 0.70710677
        %v2382 = vmul.f32 %v1949, 0.70710677
        %v2383 = vmul.f32 %v1951, 0.70710677
        %v2384 = vmul.f32 %v1953, 0.70710677
        %v2385 = vmul.f32 %v1957, 0.70710677
        %v2386 = vmul.f32 %v1959, 0.70710677
        %v2387 = vmul.f32 %v1961, 0.70710677
        %v2388 = vmul.f32 %v1963, 0.70710677
        %v2389 = vmul.f32 %v1967, 0.70710677
        %v2390 = vmul.f32 %v1969, 0.70710677
        %v2391 = vmul.f32 %v1971, 0.70710677
        %v2392 = vmul.f32 %v1973, 0.70710677
        %v2393 = vmul.f32 %v1977, 0.70710677
        %v2394 = vmul.f32 %v1979, 0.70710677
        %v2395 = vmul.f32 %v1981, 0.70710677
        %v2396 = vmul.f32 %v1983, 0.70710677
        %v2397 = vmul.f32 %v1987, 0.70710677
        %v2398 = vmul.f32 %v1989, 0.70710677
        %v2399 = vmul.f32 %v1991, 0.70710677
        %v2400 = vmul.f32 %v1993, 0.70710677
        %v2401 = vmul.f32 %v1997, 0.70710677
        %v2402 = vmul.f32 %v1999, 0.70710677
        %v2403 = vmul.f32 %v2001, 0.70710677
        %v2404 = vmul.f32 %v2003, 0.70710677
        %v2405 = vmul.f32 %v2007, 0.70710677
        %v2406 = vmul.f32 %v2009, 0.70710677
        %v2407 = vmul.f32 %v2011, 0.70710677
        %v2408 = vmul.f32 %v2013, 0.70710677
        %v2409 = vmul.f32 %v2017, 0.70710677
        %v2410 = vmul.f32 %v2019, 0.70710677
        %v2411 = vmul.f32 %v2021, 0.70710677
        %v2412 = vmul.f32 %v2023, 0.70710677
        %v2413 = vmul.f32 %v2027, 0.70710677
        %v2414 = vmul.f32 %v2029, 0.70710677
        %v2415 = vmul.f32 %v2031, 0.70710677
        %v2416 = vmul.f32 %v2033, 0.70710677
        %v2417 = vmul.f32 %v2037, 0.70710677
        %v2418 = vmul.f32 %v2039, 0.70710677
        %v2419 = vmul.f32 %v2041, 0.70710677
        %v2420 = vmul.f32 %v2043, 0.70710677
        %v2421 = vmul.f32 %v2047, 0.70710677
        %v2422 = vmul.f32 %v2049, 0.70710677
        %v2423 = vmul.f32 %v2051, 0.70710677
        %v2424 = vmul.f32 %v2053, 0.70710677
        %v2425 = vmul.f32 %v2057, 0.70710677
        %v2426 = vmul.f32 %v2059, 0.70710677
        %v2427 = vmul.f32 %v2061, 0.70710677
        %v2428 = vmul.f32 %v2063, 0.70710677
        %v2429 = vmul.f32 %v2067, 0.70710677
        %v2430 = vmul.f32 %v2069, 0.70710677
        %v2431 = vmul.f32 %v2071, 0.70710677
        %v2432 = vmul.f32 %v2073, 0.70710677
        %v2433 = vmul.f32 %v2077, 0.70710677
        %v2434 = vmul.f32 %v2079, 0.70710677
        %v2435 = vmul.f32 %v2081, 0.70710677
        %v2436 = vmul.f32 %v2083, 0.70710677
        %v2437 = vmul.f32 %v2087, 0.70710677
        %v2438 = vmul.f32 %v2089, 0.70710677
        %v2439 = vmul.f32 %v2091, 0.70710677
        %v2440 = vmul.f32 %v2093, 0.70710677
        %v2441 = vmul.f32 %v2097, 0.70710677
        %v2442 = vmul.f32 %v2099, 0.70710677
        %v2443 = vmul.f32 %v2101, 0.70710677
        %v2444 = vmul.f32 %v2103, 0.70710677
        %v2445 = vmul.f32 %v2107, 0.70710677
        %v2446 = vmul.f32 %v2109, 0.70710677
        %v2447 = vmul.f32 %v2111, 0.70710677
        %v2448 = vmul.f32 %v2113, 0.70710677
        %v2449 = vmul.f32 %v2117, 0.70710677
        %v2450 = vmul.f32 %v2119, 0.70710677
        %v2451 = vmul.f32 %v2121, 0.70710677
        %v2452 = vmul.f32 %v2123, 0.70710677
        %v2453 = vmul.f32 %v2127, 0.70710677
        %v2454 = vmul.f32 %v2129, 0.70710677
        %v2455 = vmul.f32 %v2131, 0.70710677
        %v2456 = vmul.f32 %v2133, 0.70710677
        %v2457 = vmul.f32 %v2137, 0.70710677
        %v2458 = vmul.f32 %v2139, 0.70710677
        %v2459 = vmul.f32 %v2141, 0.70710677
        %v2460 = vmul.f32 %v2143, 0.70710677
        %v2461 = vmul.f32 %v2147, 0.70710677
        %v2462 = vmul.f32 %v2149, 0.70710677
        %v2463 = vmul.f32 %v2151, 0.70710677
        %v2464 = vmul.f32 %v2153, 0.70710677
        %v2465 = vmul.f32 %v2157, 0.70710677
        %v2466 = vmul.f32 %v2159, 0.70710677
        %v2467 = vmul.f32 %v2161, 0.70710677
        %v2468 = vmul.f32 %v2163, 0.70710677
        %v2469 = vmul.f32 %v2167, 0.70710677
        %v2470 = vmul.f32 %v2169, 0.70710677
        %v2471 = vmul.f32 %v2171, 0.70710677
        %v2472 = vmul.f32 %v2173, 0.70710677
        %v2473 = vmul.f32 %v2177, 0.70710677
        %v2474 = vmul.f32 %v2179, 0.70710677
        %v2475 = vmul.f32 %v2181, 0.70710677
        %v2476 = vmul.f32 %v2183, 0.70710677
        %v2477 = vmul.f32 %v2187, 0.70710677
        %v2478 = vmul.f32 %v2189, 0.70710677
        %v2479 = vmul.f32 %v2191, 0.70710677
        %v2480 = vmul.f32 %v2193, 0.70710677
        %v2481 = vmul.f32 %v2197, 0.70710677
        %v2482 = vmul.f32 %v2199, 0.70710677
        %v2483 = vmul.f32 %v2201, 0.70710677
        %v2484 = vmul.f32 %v2203, 0.70710677
        %v2485 = vmul.f32 %v2207, 0.70710677
        %v2486 = vmul.f32 %v2209, 0.70710677
        %v2487 = vmul.f32 %v2211, 0.70710677
        %v2488 = vmul.f32 %v2213, 0.70710677
        %v2489 = vmul.f32 %v2217, 0.70710677
        %v2490 = vmul.f32 %v2219, 0.70710677
        %v2491 = vmul.f32 %v2221, 0.70710677
        %v2492 = vmul.f32 %v2223, 0.70710677
        %v2493 = vmul.f32 %v2227, 0.70710677
        %v2494 = vmul.f32 %v2229, 0.70710677
        %v2495 = vmul.f32 %v2231, 0.70710677
        %v2496 = vmul.f32 %v2233, 0.70710677
        %v2497 = vmul.f32 %v2237, 0.70710677
        %v2498 = vmul.f32 %v2239, 0.70710677
        %v2499 = vmul.f32 %v2241, 0.70710677
        %v2500 = vmul.f32 %v2243, 0.70710677
        %v2501 = verf.f32.pop %v2373
        %v2502 = verf.f32.pop %v2374
        %v2503 = verf.f32.pop %v2375
        %v2504 = verf.f32.pop %v2376
        %v2505 = verf.f32.pop %v2377
        %v2506 = verf.f32.pop %v2378
        %v2507 = verf.f32.pop %v2379
        %v2508 = verf.f32.pop %v2380
        %v2509 = verf.f32.pop %v2381
        %v2510 = verf.f32.pop %v2382
        %v2511 = verf.f32.pop %v2383
        %v2512 = verf.f32.pop %v2384
        %v2513 = verf.f32.pop %v2385
        %v2514 = verf.f32.pop %v2386
        %v2515 = verf.f32.pop %v2387
        %v2516 = verf.f32.pop %v2388
        %v2517 = verf.f32.pop %v2389
        %v2518 = verf.f32.pop %v2390
        %v2519 = verf.f32.pop %v2391
        %v2520 = verf.f32.pop %v2392
        %v2521 = verf.f32.pop %v2393
        %v2522 = verf.f32.pop %v2394
        %v2523 = verf.f32.pop %v2395
        %v2524 = verf.f32.pop %v2396
        %v2525 = verf.f32.pop %v2397
        %v2526 = verf.f32.pop %v2398
        %v2527 = verf.f32.pop %v2399
        %v2528 = verf.f32.pop %v2400
        %v2529 = verf.f32.pop %v2401
        %v2530 = verf.f32.pop %v2402
        %v2531 = verf.f32.pop %v2403
        %v2532 = verf.f32.pop %v2404
        %v2533 = verf.f32.pop %v2405
        %v2534 = verf.f32.pop %v2406
        %v2535 = verf.f32.pop %v2407
        %v2536 = verf.f32.pop %v2408
        %v2537 = verf.f32.pop %v2409
        %v2538 = verf.f32.pop %v2410
        %v2539 = verf.f32.pop %v2411
        %v2540 = verf.f32.pop %v2412
        %v2541 = verf.f32.pop %v2413
        %v2542 = verf.f32.pop %v2414
        %v2543 = verf.f32.pop %v2415
        %v2544 = verf.f32.pop %v2416
        %v2545 = verf.f32.pop %v2417
        %v2546 = verf.f32.pop %v2418
        %v2547 = verf.f32.pop %v2419
        %v2548 = verf.f32.pop %v2420
        %v2549 = verf.f32.pop %v2421
        %v2550 = verf.f32.pop %v2422
        %v2551 = verf.f32.pop %v2423
        %v2552 = verf.f32.pop %v2424
        %v2553 = verf.f32.pop %v2425
        %v2554 = verf.f32.pop %v2426
        %v2555 = verf.f32.pop %v2427
        %v2556 = verf.f32.pop %v2428
        %v2557 = verf.f32.pop %v2429
        %v2558 = verf.f32.pop %v2430
        %v2559 = verf.f32.pop %v2431
        %v2560 = verf.f32.pop %v2432
        %v2561 = verf.f32.pop %v2433
        %v2562 = verf.f32.pop %v2434
        %v2563 = verf.f32.pop %v2435
        %v2564 = verf.f32.pop %v2436
        %v2565 = verf.f32.pop %v2437
        %v2566 = verf.f32.pop %v2438
        %v2567 = verf.f32.pop %v2439
        %v2568 = verf.f32.pop %v2440
        %v2569 = verf.f32.pop %v2441
        %v2570 = verf.f32.pop %v2442
        %v2571 = verf.f32.pop %v2443
        %v2572 = verf.f32.pop %v2444
        %v2573 = verf.f32.pop %v2445
        %v2574 = verf.f32.pop %v2446
        %v2575 = verf.f32.pop %v2447
        %v2576 = verf.f32.pop %v2448
        %v2577 = verf.f32.pop %v2449
        %v2578 = verf.f32.pop %v2450
        %v2579 = verf.f32.pop %v2451
        %v2580 = verf.f32.pop %v2452
        %v2581 = verf.f32.pop %v2453
        %v2582 = verf.f32.pop %v2454
        %v2583 = verf.f32.pop %v2455
        %v2584 = verf.f32.pop %v2456
        %v2585 = verf.f32.pop %v2457
        %v2586 = verf.f32.pop %v2458
        %v2587 = verf.f32.pop %v2459
        %v2588 = verf.f32.pop %v2460
        %v2589 = verf.f32.pop %v2461
        %v2590 = verf.f32.pop %v2462
        %v2591 = verf.f32.pop %v2463
        %v2592 = verf.f32.pop %v2464
        %v2593 = verf.f32.pop %v2465
        %v2594 = verf.f32.pop %v2466
        %v2595 = verf.f32.pop %v2467
        %v2596 = verf.f32.pop %v2468
        %v2597 = verf.f32.pop %v2469
        %v2598 = verf.f32.pop %v2470
        %v2599 = verf.f32.pop %v2471
        %v2600 = verf.f32.pop %v2472
        %v2601 = verf.f32.pop %v2473
        %v2602 = verf.f32.pop %v2474
        %v2603 = verf.f32.pop %v2475
        %v2604 = verf.f32.pop %v2476
        %v2605 = verf.f32.pop %v2477
        %v2606 = verf.f32.pop %v2478
        %v2607 = verf.f32.pop %v2479
        %v2608 = verf.f32.pop %v2480
        %v2609 = verf.f32.pop %v2481
        %v2610 = verf.f32.pop %v2482
        %v2611 = verf.f32.pop %v2483
        %v2612 = verf.f32.pop %v2484
        %v2613 = verf.f32.pop %v2485
        %v2614 = verf.f32.pop %v2486
        %v2615 = verf.f32.pop %v2487
        %v2616 = verf.f32.pop %v2488
        %v2617 = verf.f32.pop %v2489
        %v2618 = verf.f32.pop %v2490
        %v2619 = verf.f32.pop %v2491
        %v2620 = verf.f32.pop %v2492
        %v2621 = verf.f32.pop %v2493
        %v2622 = verf.f32.pop %v2494
        %v2623 = verf.f32.pop %v2495
        %v2624 = verf.f32.pop %v2496
        %v2625 = verf.f32.pop %v2497
        %v2626 = verf.f32.pop %v2498
        %v2627 = verf.f32.pop %v2499
        %v2628 = verf.f32.pop %v2500
        %v2629 = vadd.f32 %v2501, 1.0
        %v2630 = vadd.f32 %v2502, 1.0
        %v2631 = vadd.f32 %v2503, 1.0
        %v2632 = vadd.f32 %v2504, 1.0
        %v2633 = vadd.f32 %v2505, 1.0
        %v2634 = vadd.f32 %v2506, 1.0
        %v2635 = vadd.f32 %v2507, 1.0
        %v2636 = vadd.f32 %v2508, 1.0
        %v2637 = vadd.f32 %v2509, 1.0
        %v2638 = vadd.f32 %v2510, 1.0
        %v2639 = vadd.f32 %v2511, 1.0
        %v2640 = vadd.f32 %v2512, 1.0
        %v2641 = vadd.f32 %v2513, 1.0
        %v2642 = vadd.f32 %v2514, 1.0
        %v2643 = vadd.f32 %v2515, 1.0
        %v2644 = vadd.f32 %v2516, 1.0
        %v2645 = vadd.f32 %v2517, 1.0
        %v2646 = vadd.f32 %v2518, 1.0
        %v2647 = vadd.f32 %v2519, 1.0
        %v2648 = vadd.f32 %v2520, 1.0
        %v2649 = vadd.f32 %v2521, 1.0
        %v2650 = vadd.f32 %v2522, 1.0
        %v2651 = vadd.f32 %v2523, 1.0
        %v2652 = vadd.f32 %v2524, 1.0
        %v2653 = vadd.f32 %v2525, 1.0
        %v2654 = vadd.f32 %v2526, 1.0
        %v2655 = vadd.f32 %v2527, 1.0
        %v2656 = vadd.f32 %v2528, 1.0
        %v2657 = vadd.f32 %v2529, 1.0
        %v2658 = vadd.f32 %v2530, 1.0
        %v2659 = vadd.f32 %v2531, 1.0
        %v2660 = vadd.f32 %v2532, 1.0
        %v2661 = vadd.f32 %v2533, 1.0
        %v2662 = vadd.f32 %v2534, 1.0
        %v2663 = vadd.f32 %v2535, 1.0
        %v2664 = vadd.f32 %v2536, 1.0
        %v2665 = vadd.f32 %v2537, 1.0
        %v2666 = vadd.f32 %v2538, 1.0
        %v2667 = vadd.f32 %v2539, 1.0
        %v2668 = vadd.f32 %v2540, 1.0
        %v2669 = vadd.f32 %v2541, 1.0
        %v2670 = vadd.f32 %v2542, 1.0
        %v2671 = vadd.f32 %v2543, 1.0
        %v2672 = vadd.f32 %v2544, 1.0
        %v2673 = vadd.f32 %v2545, 1.0
        %v2674 = vadd.f32 %v2546, 1.0
        %v2675 = vadd.f32 %v2547, 1.0
        %v2676 = vadd.f32 %v2548, 1.0
        %v2677 = vadd.f32 %v2549, 1.0
        %v2678 = vadd.f32 %v2550, 1.0
        %v2679 = vadd.f32 %v2551, 1.0
        %v2680 = vadd.f32 %v2552, 1.0
        %v2681 = vadd.f32 %v2553, 1.0
        %v2682 = vadd.f32 %v2554, 1.0
        %v2683 = vadd.f32 %v2555, 1.0
        %v2684 = vadd.f32 %v2556, 1.0
        %v2685 = vadd.f32 %v2557, 1.0
        %v2686 = vadd.f32 %v2558, 1.0
        %v2687 = vadd.f32 %v2559, 1.0
        %v2688 = vadd.f32 %v2560, 1.0
        %v2689 = vadd.f32 %v2561, 1.0
        %v2690 = vadd.f32 %v2562, 1.0
        %v2691 = vadd.f32 %v2563, 1.0
        %v2692 = vadd.f32 %v2564, 1.0
        %v2693 = vadd.f32 %v2565, 1.0
        %v2694 = vadd.f32 %v2566, 1.0
        %v2695 = vadd.f32 %v2567, 1.0
        %v2696 = vadd.f32 %v2568, 1.0
        %v2697 = vadd.f32 %v2569, 1.0
        %v2698 = vadd.f32 %v2570, 1.0
        %v2699 = vadd.f32 %v2571, 1.0
        %v2700 = vadd.f32 %v2572, 1.0
        %v2701 = vadd.f32 %v2573, 1.0
        %v2702 = vadd.f32 %v2574, 1.0
        %v2703 = vadd.f32 %v2575, 1.0
        %v2704 = vadd.f32 %v2576, 1.0
        %v2705 = vadd.f32 %v2577, 1.0
        %v2706 = vadd.f32 %v2578, 1.0
        %v2707 = vadd.f32 %v2579, 1.0
        %v2708 = vadd.f32 %v2580, 1.0
        %v2709 = vadd.f32 %v2581, 1.0
        %v2710 = vadd.f32 %v2582, 1.0
        %v2711 = vadd.f32 %v2583, 1.0
        %v2712 = vadd.f32 %v2584, 1.0
        %v2713 = vadd.f32 %v2585, 1.0
        %v2714 = vadd.f32 %v2586, 1.0
        %v2715 = vadd.f32 %v2587, 1.0
        %v2716 = vadd.f32 %v2588, 1.0
        %v2717 = vadd.f32 %v2589, 1.0
        %v2718 = vadd.f32 %v2590, 1.0
        %v2719 = vadd.f32 %v2591, 1.0
        %v2720 = vadd.f32 %v2592, 1.0
        %v2721 = vadd.f32 %v2593, 1.0
        %v2722 = vadd.f32 %v2594, 1.0
        %v2723 = vadd.f32 %v2595, 1.0
        %v2724 = vadd.f32 %v2596, 1.0
        %v2725 = vadd.f32 %v2597, 1.0
        %v2726 = vadd.f32 %v2598, 1.0
        %v2727 = vadd.f32 %v2599, 1.0
        %v2728 = vadd.f32 %v2600, 1.0
        %v2729 = vadd.f32 %v2601, 1.0
        %v2730 = vadd.f32 %v2602, 1.0
        %v2731 = vadd.f32 %v2603, 1.0
        %v2732 = vadd.f32 %v2604, 1.0
        %v2733 = vadd.f32 %v2605, 1.0
        %v2734 = vadd.f32 %v2606, 1.0
        %v2735 = vadd.f32 %v2607, 1.0
        %v2736 = vadd.f32 %v2608, 1.0
        %v2737 = vadd.f32 %v2609, 1.0
        %v2738 = vadd.f32 %v2610, 1.0
        %v2739 = vadd.f32 %v2611, 1.0
        %v2740 = vadd.f32 %v2612, 1.0
        %v2741 = vadd.f32 %v2613, 1.0
        %v2742 = vadd.f32 %v2614, 1.0
        %v2743 = vadd.f32 %v2615, 1.0
        %v2744 = vadd.f32 %v2616, 1.0
        %v2745 = vadd.f32 %v2617, 1.0
        %v2746 = vadd.f32 %v2618, 1.0
        %v2747 = vadd.f32 %v2619, 1.0
        %v2748 = vadd.f32 %v2620, 1.0
        %v2749 = vadd.f32 %v2621, 1.0
        %v2750 = vadd.f32 %v2622, 1.0
        %v2751 = vadd.f32 %v2623, 1.0
        %v2752 = vadd.f32 %v2624, 1.0
        %v2753 = vadd.f32 %v2625, 1.0
        %v2754 = vadd.f32 %v2626, 1.0
        %v2755 = vadd.f32 %v2627, 1.0
        %v2756 = vadd.f32 %v2628, 1.0
        %v2757 = vmul.f32 %v2245, %v2629
        %v2758 = vmul.f32 %v2246, %v2630
        %v2759 = vmul.f32 %v2247, %v2631
        %v2760 = vmul.f32 %v2248, %v2632
        %v2761 = vmul.f32 %v2249, %v2633
        %v2762 = vmul.f32 %v2250, %v2634
        %v2763 = vmul.f32 %v2251, %v2635
        %v2764 = vmul.f32 %v2252, %v2636
        %v2765 = vmul.f32 %v2253, %v2637
        %v2766 = vmul.f32 %v2254, %v2638
        %v2767 = vmul.f32 %v2255, %v2639
        %v2768 = vmul.f32 %v2256, %v2640
        %v2769 = vmul.f32 %v2257, %v2641
        %v2770 = vmul.f32 %v2258, %v2642
        %v2771 = vmul.f32 %v2259, %v2643
        %v2772 = vmul.f32 %v2260, %v2644
        %v2773 = vmul.f32 %v2261, %v2645
        %v2774 = vmul.f32 %v2262, %v2646
        %v2775 = vmul.f32 %v2263, %v2647
        %v2776 = vmul.f32 %v2264, %v2648
        %v2777 = vmul.f32 %v2265, %v2649
        %v2778 = vmul.f32 %v2266, %v2650
        %v2779 = vmul.f32 %v2267, %v2651
        %v2780 = vmul.f32 %v2268, %v2652
        %v2781 = vmul.f32 %v2269, %v2653
        %v2782 = vmul.f32 %v2270, %v2654
        %v2783 = vmul.f32 %v2271, %v2655
        %v2784 = vmul.f32 %v2272, %v2656
        %v2785 = vmul.f32 %v2273, %v2657
        %v2786 = vmul.f32 %v2274, %v2658
        %v2787 = vmul.f32 %v2275, %v2659
        %v2788 = vmul.f32 %v2276, %v2660
        %v2789 = vmul.f32 %v2277, %v2661
        %v2790 = vmul.f32 %v2278, %v2662
        %v2791 = vmul.f32 %v2279, %v2663
        %v2792 = vmul.f32 %v2280, %v2664
        %v2793 = vmul.f32 %v2281, %v2665
        %v2794 = vmul.f32 %v2282, %v2666
        %v2795 = vmul.f32 %v2283, %v2667
        %v2796 = vmul.f32 %v2284, %v2668
        %v2797 = vmul.f32 %v2285, %v2669
        %v2798 = vmul.f32 %v2286, %v2670
        %v2799 = vmul.f32 %v2287, %v2671
        %v2800 = vmul.f32 %v2288, %v2672
        %v2801 = vmul.f32 %v2289, %v2673
        %v2802 = vmul.f32 %v2290, %v2674
        %v2803 = vmul.f32 %v2291, %v2675
        %v2804 = vmul.f32 %v2292, %v2676
        %v2805 = vmul.f32 %v2293, %v2677
        %v2806 = vmul.f32 %v2294, %v2678
        %v2807 = vmul.f32 %v2295, %v2679
        %v2808 = vmul.f32 %v2296, %v2680
        %v2809 = vmul.f32 %v2297, %v2681
        %v2810 = vmul.f32 %v2298, %v2682
        %v2811 = vmul.f32 %v2299, %v2683
        %v2812 = vmul.f32 %v2300, %v2684
        %v2813 = vmul.f32 %v2301, %v2685
        %v2814 = vmul.f32 %v2302, %v2686
        %v2815 = vmul.f32 %v2303, %v2687
        %v2816 = vmul.f32 %v2304, %v2688
        %v2817 = vmul.f32 %v2305, %v2689
        %v2818 = vmul.f32 %v2306, %v2690
        %v2819 = vmul.f32 %v2307, %v2691
        %v2820 = vmul.f32 %v2308, %v2692
        %v2821 = vmul.f32 %v2309, %v2693
        %v2822 = vmul.f32 %v2310, %v2694
        %v2823 = vmul.f32 %v2311, %v2695
        %v2824 = vmul.f32 %v2312, %v2696
        %v2825 = vmul.f32 %v2313, %v2697
        %v2826 = vmul.f32 %v2314, %v2698
        %v2827 = vmul.f32 %v2315, %v2699
        %v2828 = vmul.f32 %v2316, %v2700
        %v2829 = vmul.f32 %v2317, %v2701
        %v2830 = vmul.f32 %v2318, %v2702
        %v2831 = vmul.f32 %v2319, %v2703
        %v2832 = vmul.f32 %v2320, %v2704
        %v2833 = vmul.f32 %v2321, %v2705
        %v2834 = vmul.f32 %v2322, %v2706
        %v2835 = vmul.f32 %v2323, %v2707
        %v2836 = vmul.f32 %v2324, %v2708
        %v2837 = vmul.f32 %v2325, %v2709
        %v2838 = vmul.f32 %v2326, %v2710
        %v2839 = vmul.f32 %v2327, %v2711
        %v2840 = vmul.f32 %v2328, %v2712
        %v2841 = vmul.f32 %v2329, %v2713
        %v2842 = vmul.f32 %v2330, %v2714
        %v2843 = vmul.f32 %v2331, %v2715
        %v2844 = vmul.f32 %v2332, %v2716
        %v2845 = vmul.f32 %v2333, %v2717
        %v2846 = vmul.f32 %v2334, %v2718
        %v2847 = vmul.f32 %v2335, %v2719
        %v2848 = vmul.f32 %v2336, %v2720
        %v2849 = vmul.f32 %v2337, %v2721
        %v2850 = vmul.f32 %v2338, %v2722
        %v2851 = vmul.f32 %v2339, %v2723
        %v2852 = vmul.f32 %v2340, %v2724
        %v2853 = vmul.f32 %v2341, %v2725
        %v2854 = vmul.f32 %v2342, %v2726
        %v2855 = vmul.f32 %v2343, %v2727
        %v2856 = vmul.f32 %v2344, %v2728
        %v2857 = vmul.f32 %v2345, %v2729
        %v2858 = vmul.f32 %v2346, %v2730
        %v2859 = vmul.f32 %v2347, %v2731
        %v2860 = vmul.f32 %v2348, %v2732
        %v2861 = vmul.f32 %v2349, %v2733
        %v2862 = vmul.f32 %v2350, %v2734
        %v2863 = vmul.f32 %v2351, %v2735
        %v2864 = vmul.f32 %v2352, %v2736
        %v2865 = vmul.f32 %v2353, %v2737
        %v2866 = vmul.f32 %v2354, %v2738
        %v2867 = vmul.f32 %v2355, %v2739
        %v2868 = vmul.f32 %v2356, %v2740
        %v2869 = vmul.f32 %v2357, %v2741
        %v2870 = vmul.f32 %v2358, %v2742
        %v2871 = vmul.f32 %v2359, %v2743
        %v2872 = vmul.f32 %v2360, %v2744
        %v2873 = vmul.f32 %v2361, %v2745
        %v2874 = vmul.f32 %v2362, %v2746
        %v2875 = vmul.f32 %v2363, %v2747
        %v2876 = vmul.f32 %v2364, %v2748
        %v2877 = vmul.f32 %v2365, %v2749
        %v2878 = vmul.f32 %v2366, %v2750
        %v2879 = vmul.f32 %v2367, %v2751
        %v2880 = vmul.f32 %v2368, %v2752
        %v2881 = vmul.f32 %v2369, %v2753
        %v2882 = vmul.f32 %v2370, %v2754
        %v2883 = vmul.f32 %v2371, %v2755
        %v2884 = vmul.f32 %v2372, %v2756
        %v2885 = vpack.c.bf16 %v2759, %v2757
        %v2886 = vpack.c.bf16 %v2760, %v2758
        %v2887 = vpack.c.bf16 %v2763, %v2761
        %v2888 = vpack.c.bf16 %v2764, %v2762
        %v2889 = vpack.c.bf16 %v2767, %v2765
        %v2890 = vpack.c.bf16 %v2768, %v2766
        %v2891 = vpack.c.bf16 %v2771, %v2769
        %v2892 = vpack.c.bf16 %v2772, %v2770
        %v2893 = vpack.c.bf16 %v2775, %v2773
        %v2894 = vpack.c.bf16 %v2776, %v2774
        %v2895 = vpack.c.bf16 %v2779, %v2777
        %v2896 = vpack.c.bf16 %v2780, %v2778
        %v2897 = vpack.c.bf16 %v2783, %v2781
        %v2898 = vpack.c.bf16 %v2784, %v2782
        %v2899 = vpack.c.bf16 %v2787, %v2785
        %v2900 = vpack.c.bf16 %v2788, %v2786
        %v2901 = vpack.c.bf16 %v2791, %v2789
        %v2902 = vpack.c.bf16 %v2792, %v2790
        %v2903 = vpack.c.bf16 %v2795, %v2793
        %v2904 = vpack.c.bf16 %v2796, %v2794
        %v2905 = vpack.c.bf16 %v2799, %v2797
        %v2906 = vpack.c.bf16 %v2800, %v2798
        %v2907 = vpack.c.bf16 %v2803, %v2801
        %v2908 = vpack.c.bf16 %v2804, %v2802
        %v2909 = vpack.c.bf16 %v2807, %v2805
        %v2910 = vpack.c.bf16 %v2808, %v2806
        %v2911 = vpack.c.bf16 %v2811, %v2809
        %v2912 = vpack.c.bf16 %v2812, %v2810
        %v2913 = vpack.c.bf16 %v2815, %v2813
        %v2914 = vpack.c.bf16 %v2816, %v2814
        %v2915 = vpack.c.bf16 %v2819, %v2817
        %v2916 = vpack.c.bf16 %v2820, %v2818
        %v2917 = vpack.c.bf16 %v2823, %v2821
        %v2918 = vpack.c.bf16 %v2824, %v2822
        %v2919 = vpack.c.bf16 %v2827, %v2825
        %v2920 = vpack.c.bf16 %v2828, %v2826
        %v2921 = vpack.c.bf16 %v2831, %v2829
        %v2922 = vpack.c.bf16 %v2832, %v2830
        %v2923 = vpack.c.bf16 %v2835, %v2833
        %v2924 = vpack.c.bf16 %v2836, %v2834
        %v2925 = vpack.c.bf16 %v2839, %v2837
        %v2926 = vpack.c.bf16 %v2840, %v2838
        %v2927 = vpack.c.bf16 %v2843, %v2841
        %v2928 = vpack.c.bf16 %v2844, %v2842
        %v2929 = vpack.c.bf16 %v2847, %v2845
        %v2930 = vpack.c.bf16 %v2848, %v2846
        %v2931 = vpack.c.bf16 %v2851, %v2849
        %v2932 = vpack.c.bf16 %v2852, %v2850
        %v2933 = vpack.c.bf16 %v2855, %v2853
        %v2934 = vpack.c.bf16 %v2856, %v2854
        %v2935 = vpack.c.bf16 %v2859, %v2857
        %v2936 = vpack.c.bf16 %v2860, %v2858
        %v2937 = vpack.c.bf16 %v2863, %v2861
        %v2938 = vpack.c.bf16 %v2864, %v2862
        %v2939 = vpack.c.bf16 %v2867, %v2865
        %v2940 = vpack.c.bf16 %v2868, %v2866
        %v2941 = vpack.c.bf16 %v2871, %v2869
        %v2942 = vpack.c.bf16 %v2872, %v2870
        %v2943 = vpack.c.bf16 %v2875, %v2873
        %v2944 = vpack.c.bf16 %v2876, %v2874
        %v2945 = vpack.c.bf16 %v2879, %v2877
        %v2946 = vpack.c.bf16 %v2880, %v2878
        %v2947 = vpack.c.bf16 %v2883, %v2881
        %v2948 = vpack.c.bf16 %v2884, %v2882
        %v2949 = vld [vmem:[%s6] sm:$0xff]
        %v2950 = vld [vmem:[%s6 + $0x8] sm:$0xff]
        %v2951 = vld [vmem:[%s6 + $0x10] sm:$0xff]
        %v2952 = vld [vmem:[%s6 + $0x18] sm:$0xff]
        %v2953 = vld [vmem:[%s6 + $0x20] sm:$0xff]
        %v2954 = vld [vmem:[%s6 + $0x28] sm:$0xff]
        %v2955 = vld [vmem:[%s6 + $0x30] sm:$0xff]
        %v2956 = vld [vmem:[%s6 + $0x38] sm:$0xff]
        %v2957 = vld [vmem:[%s6 + $0x40] sm:$0xff]
        %v2958 = vld [vmem:[%s6 + $0x48] sm:$0xff]
        %v2959 = vld [vmem:[%s6 + $0x50] sm:$0xff]
        %v2960 = vld [vmem:[%s6 + $0x58] sm:$0xff]
        %v2961 = vld [vmem:[%s6 + $0x60] sm:$0xff]
        %v2962 = vld [vmem:[%s6 + $0x68] sm:$0xff]
        %v2963 = vld [vmem:[%s6 + $0x70] sm:$0xff]
        %v2964 = vld [vmem:[%s6 + $0x78] sm:$0xff]
        %v2965 = vld [vmem:[%s6 + $0x80] sm:$0xff]
        %v2966 = vld [vmem:[%s6 + $0x88] sm:$0xff]
        %v2967 = vld [vmem:[%s6 + $0x90] sm:$0xff]
        %v2968 = vld [vmem:[%s6 + $0x98] sm:$0xff]
        %v2969 = vld [vmem:[%s6 + $0xa0] sm:$0xff]
        %v2970 = vld [vmem:[%s6 + $0xa8] sm:$0xff]
        %v2971 = vld [vmem:[%s6 + $0xb0] sm:$0xff]
        %v2972 = vld [vmem:[%s6 + $0xb8] sm:$0xff]
        %v2973 = vld [vmem:[%s6 + $0xc0] sm:$0xff]
        %v2974 = vld [vmem:[%s6 + $0xc8] sm:$0xff]
        %v2975 = vld [vmem:[%s6 + $0xd0] sm:$0xff]
        %v2976 = vld [vmem:[%s6 + $0xd8] sm:$0xff]
        %v2977 = vld [vmem:[%s6 + $0xe0] sm:$0xff]
        %v2978 = vld [vmem:[%s6 + $0xe8] sm:$0xff]
        %v2979 = vld [vmem:[%s6 + $0xf0] sm:$0xff]
        %v2980 = vld [vmem:[%s6 + $0xf8] sm:$0xff]
        %v2981 = vld [vmem:[%s6 + $0x100] sm:$0xff]
        %v2982 = vld [vmem:[%s6 + $0x108] sm:$0xff]
        %v2983 = vld [vmem:[%s6 + $0x110] sm:$0xff]
        %v2984 = vld [vmem:[%s6 + $0x118] sm:$0xff]
        %v2985 = vld [vmem:[%s6 + $0x120] sm:$0xff]
        %v2986 = vld [vmem:[%s6 + $0x128] sm:$0xff]
        %v2987 = vld [vmem:[%s6 + $0x130] sm:$0xff]
        %v2988 = vld [vmem:[%s6 + $0x138] sm:$0xff]
        %v2989 = vld [vmem:[%s6 + $0x140] sm:$0xff]
        %v2990 = vld [vmem:[%s6 + $0x148] sm:$0xff]
        %v2991 = vld [vmem:[%s6 + $0x150] sm:$0xff]
        %v2992 = vld [vmem:[%s6 + $0x158] sm:$0xff]
        %v2993 = vld [vmem:[%s6 + $0x160] sm:$0xff]
        %v2994 = vld [vmem:[%s6 + $0x168] sm:$0xff]
        %v2995 = vld [vmem:[%s6 + $0x170] sm:$0xff]
        %v2996 = vld [vmem:[%s6 + $0x178] sm:$0xff]
        %v2997 = vld [vmem:[%s6 + $0x180] sm:$0xff]
        %v2998 = vld [vmem:[%s6 + $0x188] sm:$0xff]
        %v2999 = vld [vmem:[%s6 + $0x190] sm:$0xff]
        %v3000 = vld [vmem:[%s6 + $0x198] sm:$0xff]
        %v3001 = vld [vmem:[%s6 + $0x1a0] sm:$0xff]
        %v3002 = vld [vmem:[%s6 + $0x1a8] sm:$0xff]
        %v3003 = vld [vmem:[%s6 + $0x1b0] sm:$0xff]
        %v3004 = vld [vmem:[%s6 + $0x1b8] sm:$0xff]
        %v3005 = vld [vmem:[%s6 + $0x1c0] sm:$0xff]
        %v3006 = vld [vmem:[%s6 + $0x1c8] sm:$0xff]
        %v3007 = vld [vmem:[%s6 + $0x1d0] sm:$0xff]
        %v3008 = vld [vmem:[%s6 + $0x1d8] sm:$0xff]
        %v3009 = vld [vmem:[%s6 + $0x1e0] sm:$0xff]
        %v3010 = vld [vmem:[%s6 + $0x1e8] sm:$0xff]
        %v3011 = vld [vmem:[%s6 + $0x1f0] sm:$0xff]
        %v3012 = vld [vmem:[%s6 + $0x1f8] sm:$0xff]
        %v3013 = vld [vmem:[%s7] sm:$0xf]
        %v3015 = vlaneseq
        %v3016 = vshrl.u32 %v3015, 7
        %v3017 = vsub.s32 0, %v3016
        %v3018 = vrot.slane %v3013, %v3017
        %v3019 = vlaneseq
        %v3020 = vshrl.u32 %v3019, 7
        %v3021 = vsub.s32 1, %v3020
        %v3022 = vrot.slane %v3013, %v3021
        %v3023 = vlaneseq
        %v3024 = vshrl.u32 %v3023, 7
        %v3025 = vsub.s32 2, %v3024
        %v3026 = vrot.slane %v3013, %v3025
        %v3027 = vlaneseq
        %v3028 = vshrl.u32 %v3027, 7
        %v3029 = vsub.s32 3, %v3028
        %v3030 = vrot.slane %v3013, %v3029
        %v3099 = vunpack.c.l.b16 %v2949
        %v3100 = vunpack.c.h.b16 %v2949
        %v3101 = vunpack.c.l.b16 %v2950
        %v3102 = vunpack.c.h.b16 %v2950
        %v3103 = vunpack.c.l.b16 %v2951
        %v3104 = vunpack.c.h.b16 %v2951
        %v3105 = vunpack.c.l.b16 %v2952
        %v3106 = vunpack.c.h.b16 %v2952
        %v3107 = vunpack.c.l.b16 %v2953
        %v3108 = vunpack.c.h.b16 %v2953
        %v3109 = vunpack.c.l.b16 %v2954
        %v3110 = vunpack.c.h.b16 %v2954
        %v3111 = vunpack.c.l.b16 %v2955
        %v3112 = vunpack.c.h.b16 %v2955
        %v3113 = vunpack.c.l.b16 %v2956
        %v3114 = vunpack.c.h.b16 %v2956
        %v3115 = vunpack.c.l.b16 %v2957
        %v3116 = vunpack.c.h.b16 %v2957
        %v3117 = vunpack.c.l.b16 %v2958
        %v3118 = vunpack.c.h.b16 %v2958
        %v3119 = vunpack.c.l.b16 %v2959
        %v3120 = vunpack.c.h.b16 %v2959
        %v3121 = vunpack.c.l.b16 %v2960
        %v3122 = vunpack.c.h.b16 %v2960
        %v3123 = vunpack.c.l.b16 %v2961
        %v3124 = vunpack.c.h.b16 %v2961
        %v3125 = vunpack.c.l.b16 %v2962
        %v3126 = vunpack.c.h.b16 %v2962
        %v3127 = vunpack.c.l.b16 %v2963
        %v3128 = vunpack.c.h.b16 %v2963
        %v3129 = vunpack.c.l.b16 %v2964
        %v3130 = vunpack.c.h.b16 %v2964
        %v3131 = vunpack.c.l.b16 %v2965
        %v3132 = vunpack.c.h.b16 %v2965
        %v3133 = vunpack.c.l.b16 %v2966
        %v3134 = vunpack.c.h.b16 %v2966
        %v3135 = vunpack.c.l.b16 %v2967
        %v3136 = vunpack.c.h.b16 %v2967
        %v3137 = vunpack.c.l.b16 %v2968
        %v3138 = vunpack.c.h.b16 %v2968
        %v3139 = vunpack.c.l.b16 %v2969
        %v3140 = vunpack.c.h.b16 %v2969
        %v3141 = vunpack.c.l.b16 %v2970
        %v3142 = vunpack.c.h.b16 %v2970
        %v3143 = vunpack.c.l.b16 %v2971
        %v3144 = vunpack.c.h.b16 %v2971
        %v3145 = vunpack.c.l.b16 %v2972
        %v3146 = vunpack.c.h.b16 %v2972
        %v3147 = vunpack.c.l.b16 %v2973
        %v3148 = vunpack.c.h.b16 %v2973
        %v3149 = vunpack.c.l.b16 %v2974
        %v3150 = vunpack.c.h.b16 %v2974
        %v3151 = vunpack.c.l.b16 %v2975
        %v3152 = vunpack.c.h.b16 %v2975
        %v3153 = vunpack.c.l.b16 %v2976
        %v3154 = vunpack.c.h.b16 %v2976
        %v3155 = vunpack.c.l.b16 %v2977
        %v3156 = vunpack.c.h.b16 %v2977
        %v3157 = vunpack.c.l.b16 %v2978
        %v3158 = vunpack.c.h.b16 %v2978
        %v3159 = vunpack.c.l.b16 %v2979
        %v3160 = vunpack.c.h.b16 %v2979
        %v3161 = vunpack.c.l.b16 %v2980
        %v3162 = vunpack.c.h.b16 %v2980
        %v3163 = vunpack.c.l.b16 %v2981
        %v3164 = vunpack.c.h.b16 %v2981
        %v3165 = vunpack.c.l.b16 %v2982
        %v3166 = vunpack.c.h.b16 %v2982
        %v3167 = vunpack.c.l.b16 %v2983
        %v3168 = vunpack.c.h.b16 %v2983
        %v3169 = vunpack.c.l.b16 %v2984
        %v3170 = vunpack.c.h.b16 %v2984
        %v3171 = vunpack.c.l.b16 %v2985
        %v3172 = vunpack.c.h.b16 %v2985
        %v3173 = vunpack.c.l.b16 %v2986
        %v3174 = vunpack.c.h.b16 %v2986
        %v3175 = vunpack.c.l.b16 %v2987
        %v3176 = vunpack.c.h.b16 %v2987
        %v3177 = vunpack.c.l.b16 %v2988
        %v3178 = vunpack.c.h.b16 %v2988
        %v3179 = vunpack.c.l.b16 %v2989
        %v3180 = vunpack.c.h.b16 %v2989
        %v3181 = vunpack.c.l.b16 %v2990
        %v3182 = vunpack.c.h.b16 %v2990
        %v3183 = vunpack.c.l.b16 %v2991
        %v3184 = vunpack.c.h.b16 %v2991
        %v3185 = vunpack.c.l.b16 %v2992
        %v3186 = vunpack.c.h.b16 %v2992
        %v3187 = vunpack.c.l.b16 %v2993
        %v3188 = vunpack.c.h.b16 %v2993
        %v3189 = vunpack.c.l.b16 %v2994
        %v3190 = vunpack.c.h.b16 %v2994
        %v3191 = vunpack.c.l.b16 %v2995
        %v3192 = vunpack.c.h.b16 %v2995
        %v3193 = vunpack.c.l.b16 %v2996
        %v3194 = vunpack.c.h.b16 %v2996
        %v3195 = vunpack.c.l.b16 %v2997
        %v3196 = vunpack.c.h.b16 %v2997
        %v3197 = vunpack.c.l.b16 %v2998
        %v3198 = vunpack.c.h.b16 %v2998
        %v3199 = vunpack.c.l.b16 %v2999
        %v3200 = vunpack.c.h.b16 %v2999
        %v3201 = vunpack.c.l.b16 %v3000
        %v3202 = vunpack.c.h.b16 %v3000
        %v3203 = vunpack.c.l.b16 %v3001
        %v3204 = vunpack.c.h.b16 %v3001
        %v3205 = vunpack.c.l.b16 %v3002
        %v3206 = vunpack.c.h.b16 %v3002
        %v3207 = vunpack.c.l.b16 %v3003
        %v3208 = vunpack.c.h.b16 %v3003
        %v3209 = vunpack.c.l.b16 %v3004
        %v3210 = vunpack.c.h.b16 %v3004
        %v3211 = vunpack.c.l.b16 %v3005
        %v3212 = vunpack.c.h.b16 %v3005
        %v3213 = vunpack.c.l.b16 %v3006
        %v3214 = vunpack.c.h.b16 %v3006
        %v3215 = vunpack.c.l.b16 %v3007
        %v3216 = vunpack.c.h.b16 %v3007
        %v3217 = vunpack.c.l.b16 %v3008
        %v3218 = vunpack.c.h.b16 %v3008
        %v3219 = vunpack.c.l.b16 %v3009
        %v3220 = vunpack.c.h.b16 %v3009
        %v3221 = vunpack.c.l.b16 %v3010
        %v3222 = vunpack.c.h.b16 %v3010
        %v3223 = vunpack.c.l.b16 %v3011
        %v3224 = vunpack.c.h.b16 %v3011
        %v3225 = vunpack.c.l.b16 %v3012
        %v3226 = vunpack.c.h.b16 %v3012
        %v3227 = vpack.c.b16 %v3103, %v3099
        %v3228 = vpack.c.b16 %v3104, %v3100
        %v3229 = vpack.c.b16 %v3105, %v3101
        %v3230 = vpack.c.b16 %v3106, %v3102
        %v3231 = vpack.c.b16 %v3111, %v3107
        %v3232 = vpack.c.b16 %v3112, %v3108
        %v3233 = vpack.c.b16 %v3113, %v3109
        %v3234 = vpack.c.b16 %v3114, %v3110
        %v3235 = vpack.c.b16 %v3119, %v3115
        %v3236 = vpack.c.b16 %v3120, %v3116
        %v3237 = vpack.c.b16 %v3121, %v3117
        %v3238 = vpack.c.b16 %v3122, %v3118
        %v3239 = vpack.c.b16 %v3127, %v3123
        %v3240 = vpack.c.b16 %v3128, %v3124
        %v3241 = vpack.c.b16 %v3129, %v3125
        %v3242 = vpack.c.b16 %v3130, %v3126
        %v3243 = vpack.c.b16 %v3135, %v3131
        %v3244 = vpack.c.b16 %v3136, %v3132
        %v3245 = vpack.c.b16 %v3137, %v3133
        %v3246 = vpack.c.b16 %v3138, %v3134
        %v3247 = vpack.c.b16 %v3143, %v3139
        %v3248 = vpack.c.b16 %v3144, %v3140
        %v3249 = vpack.c.b16 %v3145, %v3141
        %v3250 = vpack.c.b16 %v3146, %v3142
        %v3251 = vpack.c.b16 %v3151, %v3147
        %v3252 = vpack.c.b16 %v3152, %v3148
        %v3253 = vpack.c.b16 %v3153, %v3149
        %v3254 = vpack.c.b16 %v3154, %v3150
        %v3255 = vpack.c.b16 %v3159, %v3155
        %v3256 = vpack.c.b16 %v3160, %v3156
        %v3257 = vpack.c.b16 %v3161, %v3157
        %v3258 = vpack.c.b16 %v3162, %v3158
        %v3259 = vpack.c.b16 %v3167, %v3163
        %v3260 = vpack.c.b16 %v3168, %v3164
        %v3261 = vpack.c.b16 %v3169, %v3165
        %v3262 = vpack.c.b16 %v3170, %v3166
        %v3263 = vpack.c.b16 %v3175, %v3171
        %v3264 = vpack.c.b16 %v3176, %v3172
        %v3265 = vpack.c.b16 %v3177, %v3173
        %v3266 = vpack.c.b16 %v3178, %v3174
        %v3267 = vpack.c.b16 %v3183, %v3179
        %v3268 = vpack.c.b16 %v3184, %v3180
        %v3269 = vpack.c.b16 %v3185, %v3181
        %v3270 = vpack.c.b16 %v3186, %v3182
        %v3271 = vpack.c.b16 %v3191, %v3187
        %v3272 = vpack.c.b16 %v3192, %v3188
        %v3273 = vpack.c.b16 %v3193, %v3189
        %v3274 = vpack.c.b16 %v3194, %v3190
        %v3275 = vpack.c.b16 %v3199, %v3195
        %v3276 = vpack.c.b16 %v3200, %v3196
        %v3277 = vpack.c.b16 %v3201, %v3197
        %v3278 = vpack.c.b16 %v3202, %v3198
        %v3279 = vpack.c.b16 %v3207, %v3203
        %v3280 = vpack.c.b16 %v3208, %v3204
        %v3281 = vpack.c.b16 %v3209, %v3205
        %v3282 = vpack.c.b16 %v3210, %v3206
        %v3283 = vpack.c.b16 %v3215, %v3211
        %v3284 = vpack.c.b16 %v3216, %v3212
        %v3285 = vpack.c.b16 %v3217, %v3213
        %v3286 = vpack.c.b16 %v3218, %v3214
        %v3287 = vpack.c.b16 %v3223, %v3219
        %v3288 = vpack.c.b16 %v3224, %v3220
        %v3289 = vpack.c.b16 %v3225, %v3221
        %v3290 = vpack.c.b16 %v3226, %v3222
        %3355 = vmatprep.subr.bf16.mxu0 %v3228
        %3356 = vmatpush1.bf16.msra.mxu0 %v3227
        %3357 = vmatprep.subr.bf16.mxu0 %v3232
        %3358 = vmatpush1.bf16.msra.mxu0 %v3231
        %3359 = vmatprep.subr.bf16.mxu0 %v3236
        %3360 = vmatpush1.bf16.msra.mxu0 %v3235
        %3361 = vmatprep.subr.bf16.mxu0 %v3240
        %3362 = vmatpush1.bf16.msra.mxu0 %v3239
        %3363 = vmatprep.subr.bf16.mxu0 %v3244
        %3364 = vmatpush1.bf16.msra.mxu0 %v3243
        %3365 = vmatprep.subr.bf16.mxu0 %v3248
        %3366 = vmatpush1.bf16.msra.mxu0 %v3247
        %3367 = vmatprep.subr.bf16.mxu0 %v3252
        %3368 = vmatpush1.bf16.msra.mxu0 %v3251
        %3369 = vmatprep.subr.bf16.mxu0 %v3256
        %3370 = vmatpush1.bf16.msra.mxu0 %v3255
        %3371 = vmatprep.subr.bf16.mxu0 %v3260
        %3372 = vmatpush1.bf16.msra.mxu0 %v3259
        %3373 = vmatprep.subr.bf16.mxu0 %v3264
        %3374 = vmatpush1.bf16.msra.mxu0 %v3263
        %3375 = vmatprep.subr.bf16.mxu0 %v3268
        %3376 = vmatpush1.bf16.msra.mxu0 %v3267
        %3377 = vmatprep.subr.bf16.mxu0 %v3272
        %3378 = vmatpush1.bf16.msra.mxu0 %v3271
        %3379 = vmatprep.subr.bf16.mxu0 %v3276
        %3380 = vmatpush1.bf16.msra.mxu0 %v3275
        %3381 = vmatprep.subr.bf16.mxu0 %v3280
        %3382 = vmatpush1.bf16.msra.mxu0 %v3279
        %3383 = vmatprep.subr.bf16.mxu0 %v3284
        %3384 = vmatpush1.bf16.msra.mxu0 %v3283
        %3385 = vmatprep.subr.bf16.mxu0 %v3288
        %3386 = vmatpush1.bf16.msra.mxu0 %v3287
        %3387 = vmatprep.mubr.bf16.mxu0 %v2886
        %3388 = vmatmul.mubr.bf16.gmra.mrb[0].mxu0 %v2885
        %v3389 = vpop.f32.mrb[0].mxu0
        %v3390 = vadd.f32 %v3018, %v3389
        %v3391 = vpop.f32.mrb[0].mxu0
        %v3392 = vadd.f32 %v3022, %v3391
        %v3393 = vpop.f32.mrb[0].mxu0
        %v3394 = vadd.f32 %v3018, %v3393
        %v3395 = vpop.f32.mrb[0].mxu0
        %v3396 = vadd.f32 %v3022, %v3395
        %3397 = vmatprep.mubr.bf16.mxu0 %v2888
        %3398 = vmatmul.mubr.bf16.gmra.mrb[0].mxu0 %v2887
        %v3399 = vpop.f32.mrb[0].mxu0
        %v3400 = vadd.f32 %v3018, %v3399
        %v3401 = vpop.f32.mrb[0].mxu0
        %v3402 = vadd.f32 %v3022, %v3401
        %v3403 = vpop.f32.mrb[0].mxu0
        %v3404 = vadd.f32 %v3018, %v3403
        %v3405 = vpop.f32.mrb[0].mxu0
        %v3406 = vadd.f32 %v3022, %v3405
        %3407 = vmatprep.mubr.bf16.mxu0 %v2890
        %3408 = vmatmul.mubr.bf16.gmra.mrb[0].mxu0 %v2889
        %v3409 = vpop.f32.mrb[0].mxu0
        %v3410 = vadd.f32 %v3018, %v3409
        %v3411 = vpop.f32.mrb[0].mxu0
        %v3412 = vadd.f32 %v3022, %v3411
        %v3413 = vpop.f32.mrb[0].mxu0
        %v3414 = vadd.f32 %v3018, %v3413
        %v3415 = vpop.f32.mrb[0].mxu0
        %v3416 = vadd.f32 %v3022, %v3415
        %3417 = vmatprep.mubr.bf16.mxu0 %v2892
        %3418 = vmatmul.mubr.bf16.gmra.mrb[0].mxu0 %v2891
        %v3419 = vpop.f32.mrb[0].mxu0
        %v3420 = vadd.f32 %v3018, %v3419
        %v3421 = vpop.f32.mrb[0].mxu0
        %v3422 = vadd.f32 %v3022, %v3421
        %v3423 = vpop.f32.mrb[0].mxu0
        %v3424 = vadd.f32 %v3018, %v3423
        %v3425 = vpop.f32.mrb[0].mxu0
        %v3426 = vadd.f32 %v3022, %v3425
        %3427 = vmatprep.mubr.bf16.mxu0 %v2894
        %3428 = vmatmul.mubr.bf16.gmra.mrb[0].mxu0 %v2893
        %v3429 = vpop.f32.mrb[0].mxu0
        %v3430 = vadd.f32 %v3018, %v3429
        %v3431 = vpop.f32.mrb[0].mxu0
        %v3432 = vadd.f32 %v3022, %v3431
        %v3433 = vpop.f32.mrb[0].mxu0
        %v3434 = vadd.f32 %v3018, %v3433
        %v3435 = vpop.f32.mrb[0].mxu0
        %v3436 = vadd.f32 %v3022, %v3435
        %3437 = vmatprep.mubr.bf16.mxu0 %v2896
        %3438 = vmatmul.mubr.bf16.gmra.mrb[0].mxu0 %v2895
        %v3439 = vpop.f32.mrb[0].mxu0
        %v3440 = vadd.f32 %v3018, %v3439
        %v3441 = vpop.f32.mrb[0].mxu0
        %v3442 = vadd.f32 %v3022, %v3441
        %v3443 = vpop.f32.mrb[0].mxu0
        %v3444 = vadd.f32 %v3018, %v3443
        %v3445 = vpop.f32.mrb[0].mxu0
        %v3446 = vadd.f32 %v3022, %v3445
        %3447 = vmatprep.mubr.bf16.mxu0 %v2898
        %3448 = vmatmul.mubr.bf16.gmra.mrb[0].mxu0 %v2897
        %v3449 = vpop.f32.mrb[0].mxu0
        %v3450 = vadd.f32 %v3018, %v3449
        %v3451 = vpop.f32.mrb[0].mxu0
        %v3452 = vadd.f32 %v3022, %v3451
        %v3453 = vpop.f32.mrb[0].mxu0
        %v3454 = vadd.f32 %v3018, %v3453
        %v3455 = vpop.f32.mrb[0].mxu0
        %v3456 = vadd.f32 %v3022, %v3455
        %3457 = vmatprep.mubr.bf16.mxu0 %v2900
        %3458 = vmatmul.mubr.bf16.gmra.mrb[0].mxu0 %v2899
        %v3459 = vpop.f32.mrb[0].mxu0
        %v3460 = vadd.f32 %v3018, %v3459
        %v3461 = vpop.f32.mrb[0].mxu0
        %v3462 = vadd.f32 %v3022, %v3461
        %v3463 = vpop.f32.mrb[0].mxu0
        %v3464 = vadd.f32 %v3018, %v3463
        %v3465 = vpop.f32.mrb[0].mxu0
        %v3466 = vadd.f32 %v3022, %v3465
        %3467 = vmatprep.mubr.bf16.mxu0 %v2902
        %3468 = vmatmul.mubr.bf16.gmra.mrb[0].mxu0 %v2901
        %v3469 = vpop.f32.mrb[0].mxu0
        %v3470 = vadd.f32 %v3018, %v3469
        %v3471 = vpop.f32.mrb[0].mxu0
        %v3472 = vadd.f32 %v3022, %v3471
        %v3473 = vpop.f32.mrb[0].mxu0
        %v3474 = vadd.f32 %v3018, %v3473
        %v3475 = vpop.f32.mrb[0].mxu0
        %v3476 = vadd.f32 %v3022, %v3475
        %3477 = vmatprep.mubr.bf16.mxu0 %v2904
        %3478 = vmatmul.mubr.bf16.gmra.mrb[0].mxu0 %v2903
        %v3479 = vpop.f32.mrb[0].mxu0
        %v3480 = vadd.f32 %v3018, %v3479
        %v3481 = vpop.f32.mrb[0].mxu0
        %v3482 = vadd.f32 %v3022, %v3481
        %v3483 = vpop.f32.mrb[0].mxu0
        %v3484 = vadd.f32 %v3018, %v3483
        %v3485 = vpop.f32.mrb[0].mxu0
        %v3486 = vadd.f32 %v3022, %v3485
        %3487 = vmatprep.mubr.bf16.mxu0 %v2906
        %3488 = vmatmul.mubr.bf16.gmra.mrb[0].mxu0 %v2905
        %v3489 = vpop.f32.mrb[0].mxu0
        %v3490 = vadd.f32 %v3018, %v3489
        %v3491 = vpop.f32.mrb[0].mxu0
        %v3492 = vadd.f32 %v3022, %v3491
        %v3493 = vpop.f32.mrb[0].mxu0
        %v3494 = vadd.f32 %v3018, %v3493
        %v3495 = vpop.f32.mrb[0].mxu0
        %v3496 = vadd.f32 %v3022, %v3495
        %3497 = vmatprep.mubr.bf16.mxu0 %v2908
        %3498 = vmatmul.mubr.bf16.gmra.mrb[0].mxu0 %v2907
        %v3499 = vpop.f32.mrb[0].mxu0
        %v3500 = vadd.f32 %v3018, %v3499
        %v3501 = vpop.f32.mrb[0].mxu0
        %v3502 = vadd.f32 %v3022, %v3501
        %v3503 = vpop.f32.mrb[0].mxu0
        %v3504 = vadd.f32 %v3018, %v3503
        %v3505 = vpop.f32.mrb[0].mxu0
        %v3506 = vadd.f32 %v3022, %v3505
        %3507 = vmatprep.mubr.bf16.mxu0 %v2910
        %3508 = vmatmul.mubr.bf16.gmra.mrb[0].mxu0 %v2909
        %v3509 = vpop.f32.mrb[0].mxu0
        %v3510 = vadd.f32 %v3018, %v3509
        %v3511 = vpop.f32.mrb[0].mxu0
        %v3512 = vadd.f32 %v3022, %v3511
        %v3513 = vpop.f32.mrb[0].mxu0
        %v3514 = vadd.f32 %v3018, %v3513
        %v3515 = vpop.f32.mrb[0].mxu0
        %v3516 = vadd.f32 %v3022, %v3515
        %3517 = vmatprep.mubr.bf16.mxu0 %v2912
        %3518 = vmatmul.mubr.bf16.gmra.mrb[0].mxu0 %v2911
        %v3519 = vpop.f32.mrb[0].mxu0
        %v3520 = vadd.f32 %v3018, %v3519
        %v3521 = vpop.f32.mrb[0].mxu0
        %v3522 = vadd.f32 %v3022, %v3521
        %v3523 = vpop.f32.mrb[0].mxu0
        %v3524 = vadd.f32 %v3018, %v3523
        %v3525 = vpop.f32.mrb[0].mxu0
        %v3526 = vadd.f32 %v3022, %v3525
        %3527 = vmatprep.mubr.bf16.mxu0 %v2914
        %3528 = vmatmul.mubr.bf16.gmra.mrb[0].mxu0 %v2913
        %v3529 = vpop.f32.mrb[0].mxu0
        %v3530 = vadd.f32 %v3018, %v3529
        %v3531 = vpop.f32.mrb[0].mxu0
        %v3532 = vadd.f32 %v3022, %v3531
        %v3533 = vpop.f32.mrb[0].mxu0
        %v3534 = vadd.f32 %v3018, %v3533
        %v3535 = vpop.f32.mrb[0].mxu0
        %v3536 = vadd.f32 %v3022, %v3535
        %3537 = vmatprep.mubr.bf16.mxu0 %v2916
        %3538 = vmatmul.mubr.bf16.gmra.mrb[0].mxu0 %v2915
        %v3539 = vpop.f32.mrb[0].mxu0
        %v3540 = vadd.f32 %v3018, %v3539
        %v3541 = vpop.f32.mrb[0].mxu0
        %v3542 = vadd.f32 %v3022, %v3541
        %v3543 = vpop.f32.mrb[0].mxu0
        %v3544 = vadd.f32 %v3018, %v3543
        %v3545 = vpop.f32.mrb[0].mxu0
        %v3546 = vadd.f32 %v3022, %v3545
        %3547 = vmatprep.mubr.bf16.mxu0 %v2918
        %3548 = vmatmul.mubr.bf16.gmra.mrb[0].mxu0 %v2917
        %v3549 = vpop.f32.mrb[0].mxu0
        %v3550 = vadd.f32 %v3018, %v3549
        %v3551 = vpop.f32.mrb[0].mxu0
        %v3552 = vadd.f32 %v3022, %v3551
        %v3553 = vpop.f32.mrb[0].mxu0
        %v3554 = vadd.f32 %v3018, %v3553
        %v3555 = vpop.f32.mrb[0].mxu0
        %v3556 = vadd.f32 %v3022, %v3555
        %3557 = vmatprep.mubr.bf16.mxu0 %v2920
        %3558 = vmatmul.mubr.bf16.gmra.mrb[0].mxu0 %v2919
        %v3559 = vpop.f32.mrb[0].mxu0
        %v3560 = vadd.f32 %v3018, %v3559
        %v3561 = vpop.f32.mrb[0].mxu0
        %v3562 = vadd.f32 %v3022, %v3561
        %v3563 = vpop.f32.mrb[0].mxu0
        %v3564 = vadd.f32 %v3018, %v3563
        %v3565 = vpop.f32.mrb[0].mxu0
        %v3566 = vadd.f32 %v3022, %v3565
        %3567 = vmatprep.mubr.bf16.mxu0 %v2922
        %3568 = vmatmul.mubr.bf16.gmra.mrb[0].mxu0 %v2921
        %v3569 = vpop.f32.mrb[0].mxu0
        %v3570 = vadd.f32 %v3018, %v3569
        %v3571 = vpop.f32.mrb[0].mxu0
        %v3572 = vadd.f32 %v3022, %v3571
        %v3573 = vpop.f32.mrb[0].mxu0
        %v3574 = vadd.f32 %v3018, %v3573
        %v3575 = vpop.f32.mrb[0].mxu0
        %v3576 = vadd.f32 %v3022, %v3575
        %3577 = vmatprep.mubr.bf16.mxu0 %v2924
        %3578 = vmatmul.mubr.bf16.gmra.mrb[0].mxu0 %v2923
        %v3579 = vpop.f32.mrb[0].mxu0
        %v3580 = vadd.f32 %v3018, %v3579
        %v3581 = vpop.f32.mrb[0].mxu0
        %v3582 = vadd.f32 %v3022, %v3581
        %v3583 = vpop.f32.mrb[0].mxu0
        %v3584 = vadd.f32 %v3018, %v3583
        %v3585 = vpop.f32.mrb[0].mxu0
        %v3586 = vadd.f32 %v3022, %v3585
        %3587 = vmatprep.mubr.bf16.mxu0 %v2926
        %3588 = vmatmul.mubr.bf16.gmra.mrb[0].mxu0 %v2925
        %v3589 = vpop.f32.mrb[0].mxu0
        %v3590 = vadd.f32 %v3018, %v3589
        %v3591 = vpop.f32.mrb[0].mxu0
        %v3592 = vadd.f32 %v3022, %v3591
        %v3593 = vpop.f32.mrb[0].mxu0
        %v3594 = vadd.f32 %v3018, %v3593
        %v3595 = vpop.f32.mrb[0].mxu0
        %v3596 = vadd.f32 %v3022, %v3595
        %3597 = vmatprep.mubr.bf16.mxu0 %v2928
        %3598 = vmatmul.mubr.bf16.gmra.mrb[0].mxu0 %v2927
        %v3599 = vpop.f32.mrb[0].mxu0
        %v3600 = vadd.f32 %v3018, %v3599
        %v3601 = vpop.f32.mrb[0].mxu0
        %v3602 = vadd.f32 %v3022, %v3601
        %v3603 = vpop.f32.mrb[0].mxu0
        %v3604 = vadd.f32 %v3018, %v3603
        %v3605 = vpop.f32.mrb[0].mxu0
        %v3606 = vadd.f32 %v3022, %v3605
        %3607 = vmatprep.mubr.bf16.mxu0 %v2930
        %3608 = vmatmul.mubr.bf16.gmra.mrb[0].mxu0 %v2929
        %v3609 = vpop.f32.mrb[0].mxu0
        %v3610 = vadd.f32 %v3018, %v3609
        %v3611 = vpop.f32.mrb[0].mxu0
        %v3612 = vadd.f32 %v3022, %v3611
        %v3613 = vpop.f32.mrb[0].mxu0
        %v3614 = vadd.f32 %v3018, %v3613
        %v3615 = vpop.f32.mrb[0].mxu0
        %v3616 = vadd.f32 %v3022, %v3615
        %3617 = vmatprep.mubr.bf16.mxu0 %v2932
        %3618 = vmatmul.mubr.bf16.gmra.mrb[0].mxu0 %v2931
        %v3619 = vpop.f32.mrb[0].mxu0
        %v3620 = vadd.f32 %v3018, %v3619
        %v3621 = vpop.f32.mrb[0].mxu0
        %v3622 = vadd.f32 %v3022, %v3621
        %v3623 = vpop.f32.mrb[0].mxu0
        %v3624 = vadd.f32 %v3018, %v3623
        %v3625 = vpop.f32.mrb[0].mxu0
        %v3626 = vadd.f32 %v3022, %v3625
        %3627 = vmatprep.mubr.bf16.mxu0 %v2934
        %3628 = vmatmul.mubr.bf16.gmra.mrb[0].mxu0 %v2933
        %v3629 = vpop.f32.mrb[0].mxu0
        %v3630 = vadd.f32 %v3018, %v3629
        %v3631 = vpop.f32.mrb[0].mxu0
        %v3632 = vadd.f32 %v3022, %v3631
        %v3633 = vpop.f32.mrb[0].mxu0
        %v3634 = vadd.f32 %v3018, %v3633
        %v3635 = vpop.f32.mrb[0].mxu0
        %v3636 = vadd.f32 %v3022, %v3635
        %3637 = vmatprep.mubr.bf16.mxu0 %v2936
        %3638 = vmatmul.mubr.bf16.gmra.mrb[0].mxu0 %v2935
        %v3639 = vpop.f32.mrb[0].mxu0
        %v3640 = vadd.f32 %v3018, %v3639
        %v3641 = vpop.f32.mrb[0].mxu0
        %v3642 = vadd.f32 %v3022, %v3641
        %v3643 = vpop.f32.mrb[0].mxu0
        %v3644 = vadd.f32 %v3018, %v3643
        %v3645 = vpop.f32.mrb[0].mxu0
        %v3646 = vadd.f32 %v3022, %v3645
        %3647 = vmatprep.mubr.bf16.mxu0 %v2938
        %3648 = vmatmul.mubr.bf16.gmra.mrb[0].mxu0 %v2937
        %v3649 = vpop.f32.mrb[0].mxu0
        %v3650 = vadd.f32 %v3018, %v3649
        %v3651 = vpop.f32.mrb[0].mxu0
        %v3652 = vadd.f32 %v3022, %v3651
        %v3653 = vpop.f32.mrb[0].mxu0
        %v3654 = vadd.f32 %v3018, %v3653
        %v3655 = vpop.f32.mrb[0].mxu0
        %v3656 = vadd.f32 %v3022, %v3655
        %3657 = vmatprep.mubr.bf16.mxu0 %v2940
        %3658 = vmatmul.mubr.bf16.gmra.mrb[0].mxu0 %v2939
        %v3659 = vpop.f32.mrb[0].mxu0
        %v3660 = vadd.f32 %v3018, %v3659
        %v3661 = vpop.f32.mrb[0].mxu0
        %v3662 = vadd.f32 %v3022, %v3661
        %v3663 = vpop.f32.mrb[0].mxu0
        %v3664 = vadd.f32 %v3018, %v3663
        %v3665 = vpop.f32.mrb[0].mxu0
        %v3666 = vadd.f32 %v3022, %v3665
        %3667 = vmatprep.mubr.bf16.mxu0 %v2942
        %3668 = vmatmul.mubr.bf16.gmra.mrb[0].mxu0 %v2941
        %v3669 = vpop.f32.mrb[0].mxu0
        %v3670 = vadd.f32 %v3018, %v3669
        %v3671 = vpop.f32.mrb[0].mxu0
        %v3672 = vadd.f32 %v3022, %v3671
        %v3673 = vpop.f32.mrb[0].mxu0
        %v3674 = vadd.f32 %v3018, %v3673
        %v3675 = vpop.f32.mrb[0].mxu0
        %v3676 = vadd.f32 %v3022, %v3675
        %3677 = vmatprep.mubr.bf16.mxu0 %v2944
        %3678 = vmatmul.mubr.bf16.gmra.mrb[0].mxu0 %v2943
        %v3679 = vpop.f32.mrb[0].mxu0
        %v3680 = vadd.f32 %v3018, %v3679
        %v3681 = vpop.f32.mrb[0].mxu0
        %v3682 = vadd.f32 %v3022, %v3681
        %v3683 = vpop.f32.mrb[0].mxu0
        %v3684 = vadd.f32 %v3018, %v3683
        %v3685 = vpop.f32.mrb[0].mxu0
        %v3686 = vadd.f32 %v3022, %v3685
        %3687 = vmatprep.mubr.bf16.mxu0 %v2946
        %3688 = vmatmul.mubr.bf16.gmra.mrb[0].mxu0 %v2945
        %v3689 = vpop.f32.mrb[0].mxu0
        %v3690 = vadd.f32 %v3018, %v3689
        %v3691 = vpop.f32.mrb[0].mxu0
        %v3692 = vadd.f32 %v3022, %v3691
        %v3693 = vpop.f32.mrb[0].mxu0
        %v3694 = vadd.f32 %v3018, %v3693
        %v3695 = vpop.f32.mrb[0].mxu0
        %v3696 = vadd.f32 %v3022, %v3695
        %3697 = vmatprep.mubr.bf16.mxu0 %v2948
        %3698 = vmatmul.mubr.bf16.gmra.mrb[0].mxu0 %v2947
        %v3699 = vpop.f32.mrb[0].mxu0
        %v3700 = vadd.f32 %v3018, %v3699
        %v3701 = vpop.f32.mrb[0].mxu0
        %v3702 = vadd.f32 %v3022, %v3701
        %v3703 = vpop.f32.mrb[0].mxu0
        %v3704 = vadd.f32 %v3018, %v3703
        %v3705 = vpop.f32.mrb[0].mxu0
        %v3706 = vadd.f32 %v3022, %v3705
        %3707 = vdwg.mxu0
        %3708 = vmatprep.subr.bf16.mxu0 %v3230
        %3709 = vmatpush1.bf16.msra.mxu0 %v3229
        %3710 = vmatprep.subr.bf16.mxu0 %v3234
        %3711 = vmatpush1.bf16.msra.mxu0 %v3233
        %3712 = vmatprep.subr.bf16.mxu0 %v3238
        %3713 = vmatpush1.bf16.msra.mxu0 %v3237
        %3714 = vmatprep.subr.bf16.mxu0 %v3242
        %3715 = vmatpush1.bf16.msra.mxu0 %v3241
        %3716 = vmatprep.subr.bf16.mxu0 %v3246
        %3717 = vmatpush1.bf16.msra.mxu0 %v3245
        %3718 = vmatprep.subr.bf16.mxu0 %v3250
        %3719 = vmatpush1.bf16.msra.mxu0 %v3249
        %3720 = vmatprep.subr.bf16.mxu0 %v3254
        %3721 = vmatpush1.bf16.msra.mxu0 %v3253
        %3722 = vmatprep.subr.bf16.mxu0 %v3258
        %3723 = vmatpush1.bf16.msra.mxu0 %v3257
        %3724 = vmatprep.subr.bf16.mxu0 %v3262
        %3725 = vmatpush1.bf16.msra.mxu0 %v3261
        %3726 = vmatprep.subr.bf16.mxu0 %v3266
        %3727 = vmatpush1.bf16.msra.mxu0 %v3265
        %3728 = vmatprep.subr.bf16.mxu0 %v3270
        %3729 = vmatpush1.bf16.msra.mxu0 %v3269
        %3730 = vmatprep.subr.bf16.mxu0 %v3274
        %3731 = vmatpush1.bf16.msra.mxu0 %v3273
        %3732 = vmatprep.subr.bf16.mxu0 %v3278
        %3733 = vmatpush1.bf16.msra.mxu0 %v3277
        %3734 = vmatprep.subr.bf16.mxu0 %v3282
        %3735 = vmatpush1.bf16.msra.mxu0 %v3281
        %3736 = vmatprep.subr.bf16.mxu0 %v3286
        %3737 = vmatpush1.bf16.msra.mxu0 %v3285
        %3738 = vmatprep.subr.bf16.mxu0 %v3290
        %3739 = vmatpush1.bf16.msra.mxu0 %v3289
        %3740 = vmatprep.mubr.bf16.mxu0 %v2886
        %3741 = vmatmul.mubr.bf16.gmra.mrb[0].mxu0 %v2885
        %v3742 = vpop.f32.mrb[0].mxu0
        %v3743 = vadd.f32 %v3026, %v3742
        %v3744 = vpop.f32.mrb[0].mxu0
        %v3745 = vadd.f32 %v3030, %v3744
        %v3746 = vpop.f32.mrb[0].mxu0
        %v3747 = vadd.f32 %v3026, %v3746
        %v3748 = vpop.f32.mrb[0].mxu0
        %v3749 = vadd.f32 %v3030, %v3748
        %3750 = vmatprep.mubr.bf16.mxu0 %v2888
        %3751 = vmatmul.mubr.bf16.gmra.mrb[0].mxu0 %v2887
        %v3752 = vpop.f32.mrb[0].mxu0
        %v3753 = vadd.f32 %v3026, %v3752
        %v3754 = vpop.f32.mrb[0].mxu0
        %v3755 = vadd.f32 %v3030, %v3754
        %v3756 = vpop.f32.mrb[0].mxu0
        %v3757 = vadd.f32 %v3026, %v3756
        %v3758 = vpop.f32.mrb[0].mxu0
        %v3759 = vadd.f32 %v3030, %v3758
        %3760 = vmatprep.mubr.bf16.mxu0 %v2890
        %3761 = vmatmul.mubr.bf16.gmra.mrb[0].mxu0 %v2889
        %v3762 = vpop.f32.mrb[0].mxu0
        %v3763 = vadd.f32 %v3026, %v3762
        %v3764 = vpop.f32.mrb[0].mxu0
        %v3765 = vadd.f32 %v3030, %v3764
        %v3766 = vpop.f32.mrb[0].mxu0
        %v3767 = vadd.f32 %v3026, %v3766
        %v3768 = vpop.f32.mrb[0].mxu0
        %v3769 = vadd.f32 %v3030, %v3768
        %3770 = vmatprep.mubr.bf16.mxu0 %v2892
        %3771 = vmatmul.mubr.bf16.gmra.mrb[0].mxu0 %v2891
        %v3772 = vpop.f32.mrb[0].mxu0
        %v3773 = vadd.f32 %v3026, %v3772
        %v3774 = vpop.f32.mrb[0].mxu0
        %v3775 = vadd.f32 %v3030, %v3774
        %v3776 = vpop.f32.mrb[0].mxu0
        %v3777 = vadd.f32 %v3026, %v3776
        %v3778 = vpop.f32.mrb[0].mxu0
        %v3779 = vadd.f32 %v3030, %v3778
        %3780 = vmatprep.mubr.bf16.mxu0 %v2894
        %3781 = vmatmul.mubr.bf16.gmra.mrb[0].mxu0 %v2893
        %v3782 = vpop.f32.mrb[0].mxu0
        %v3783 = vadd.f32 %v3026, %v3782
        %v3784 = vpop.f32.mrb[0].mxu0
        %v3785 = vadd.f32 %v3030, %v3784
        %v3786 = vpop.f32.mrb[0].mxu0
        %v3787 = vadd.f32 %v3026, %v3786
        %v3788 = vpop.f32.mrb[0].mxu0
        %v3789 = vadd.f32 %v3030, %v3788
        %3790 = vmatprep.mubr.bf16.mxu0 %v2896
        %3791 = vmatmul.mubr.bf16.gmra.mrb[0].mxu0 %v2895
        %v3792 = vpop.f32.mrb[0].mxu0
        %v3793 = vadd.f32 %v3026, %v3792
        %v3794 = vpop.f32.mrb[0].mxu0
        %v3795 = vadd.f32 %v3030, %v3794
        %v3796 = vpop.f32.mrb[0].mxu0
        %v3797 = vadd.f32 %v3026, %v3796
        %v3798 = vpop.f32.mrb[0].mxu0
        %v3799 = vadd.f32 %v3030, %v3798
        %3800 = vmatprep.mubr.bf16.mxu0 %v2898
        %3801 = vmatmul.mubr.bf16.gmra.mrb[0].mxu0 %v2897
        %v3802 = vpop.f32.mrb[0].mxu0
        %v3803 = vadd.f32 %v3026, %v3802
        %v3804 = vpop.f32.mrb[0].mxu0
        %v3805 = vadd.f32 %v3030, %v3804
        %v3806 = vpop.f32.mrb[0].mxu0
        %v3807 = vadd.f32 %v3026, %v3806
        %v3808 = vpop.f32.mrb[0].mxu0
        %v3809 = vadd.f32 %v3030, %v3808
        %3810 = vmatprep.mubr.bf16.mxu0 %v2900
        %3811 = vmatmul.mubr.bf16.gmra.mrb[0].mxu0 %v2899
        %v3812 = vpop.f32.mrb[0].mxu0
        %v3813 = vadd.f32 %v3026, %v3812
        %v3814 = vpop.f32.mrb[0].mxu0
        %v3815 = vadd.f32 %v3030, %v3814
        %v3816 = vpop.f32.mrb[0].mxu0
        %v3817 = vadd.f32 %v3026, %v3816
        %v3818 = vpop.f32.mrb[0].mxu0
        %v3819 = vadd.f32 %v3030, %v3818
        %3820 = vmatprep.mubr.bf16.mxu0 %v2902
        %3821 = vmatmul.mubr.bf16.gmra.mrb[0].mxu0 %v2901
        %v3822 = vpop.f32.mrb[0].mxu0
        %v3823 = vadd.f32 %v3026, %v3822
        %v3824 = vpop.f32.mrb[0].mxu0
        %v3825 = vadd.f32 %v3030, %v3824
        %v3826 = vpop.f32.mrb[0].mxu0
        %v3827 = vadd.f32 %v3026, %v3826
        %v3828 = vpop.f32.mrb[0].mxu0
        %v3829 = vadd.f32 %v3030, %v3828
        %3830 = vmatprep.mubr.bf16.mxu0 %v2904
        %3831 = vmatmul.mubr.bf16.gmra.mrb[0].mxu0 %v2903
        %v3832 = vpop.f32.mrb[0].mxu0
        %v3833 = vadd.f32 %v3026, %v3832
        %v3834 = vpop.f32.mrb[0].mxu0
        %v3835 = vadd.f32 %v3030, %v3834
        %v3836 = vpop.f32.mrb[0].mxu0
        %v3837 = vadd.f32 %v3026, %v3836
        %v3838 = vpop.f32.mrb[0].mxu0
        %v3839 = vadd.f32 %v3030, %v3838
        %3840 = vmatprep.mubr.bf16.mxu0 %v2906
        %3841 = vmatmul.mubr.bf16.gmra.mrb[0].mxu0 %v2905
        %v3842 = vpop.f32.mrb[0].mxu0
        %v3843 = vadd.f32 %v3026, %v3842
        %v3844 = vpop.f32.mrb[0].mxu0
        %v3845 = vadd.f32 %v3030, %v3844
        %v3846 = vpop.f32.mrb[0].mxu0
        %v3847 = vadd.f32 %v3026, %v3846
        %v3848 = vpop.f32.mrb[0].mxu0
        %v3849 = vadd.f32 %v3030, %v3848
        %3850 = vmatprep.mubr.bf16.mxu0 %v2908
        %3851 = vmatmul.mubr.bf16.gmra.mrb[0].mxu0 %v2907
        %v3852 = vpop.f32.mrb[0].mxu0
        %v3853 = vadd.f32 %v3026, %v3852
        %v3854 = vpop.f32.mrb[0].mxu0
        %v3855 = vadd.f32 %v3030, %v3854
        %v3856 = vpop.f32.mrb[0].mxu0
        %v3857 = vadd.f32 %v3026, %v3856
        %v3858 = vpop.f32.mrb[0].mxu0
        %v3859 = vadd.f32 %v3030, %v3858
        %3860 = vmatprep.mubr.bf16.mxu0 %v2910
        %3861 = vmatmul.mubr.bf16.gmra.mrb[0].mxu0 %v2909
        %v3862 = vpop.f32.mrb[0].mxu0
        %v3863 = vadd.f32 %v3026, %v3862
        %v3864 = vpop.f32.mrb[0].mxu0
        %v3865 = vadd.f32 %v3030, %v3864
        %v3866 = vpop.f32.mrb[0].mxu0
        %v3867 = vadd.f32 %v3026, %v3866
        %v3868 = vpop.f32.mrb[0].mxu0
        %v3869 = vadd.f32 %v3030, %v3868
        %3870 = vmatprep.mubr.bf16.mxu0 %v2912
        %3871 = vmatmul.mubr.bf16.gmra.mrb[0].mxu0 %v2911
        %v3872 = vpop.f32.mrb[0].mxu0
        %v3873 = vadd.f32 %v3026, %v3872
        %v3874 = vpop.f32.mrb[0].mxu0
        %v3875 = vadd.f32 %v3030, %v3874
        %v3876 = vpop.f32.mrb[0].mxu0
        %v3877 = vadd.f32 %v3026, %v3876
        %v3878 = vpop.f32.mrb[0].mxu0
        %v3879 = vadd.f32 %v3030, %v3878
        %3880 = vmatprep.mubr.bf16.mxu0 %v2914
        %3881 = vmatmul.mubr.bf16.gmra.mrb[0].mxu0 %v2913
        %v3882 = vpop.f32.mrb[0].mxu0
        %v3883 = vadd.f32 %v3026, %v3882
        %v3884 = vpop.f32.mrb[0].mxu0
        %v3885 = vadd.f32 %v3030, %v3884
        %v3886 = vpop.f32.mrb[0].mxu0
        %v3887 = vadd.f32 %v3026, %v3886
        %v3888 = vpop.f32.mrb[0].mxu0
        %v3889 = vadd.f32 %v3030, %v3888
        %3890 = vmatprep.mubr.bf16.mxu0 %v2916
        %3891 = vmatmul.mubr.bf16.gmra.mrb[0].mxu0 %v2915
        %v3892 = vpop.f32.mrb[0].mxu0
        %v3893 = vadd.f32 %v3026, %v3892
        %v3894 = vpop.f32.mrb[0].mxu0
        %v3895 = vadd.f32 %v3030, %v3894
        %v3896 = vpop.f32.mrb[0].mxu0
        %v3897 = vadd.f32 %v3026, %v3896
        %v3898 = vpop.f32.mrb[0].mxu0
        %v3899 = vadd.f32 %v3030, %v3898
        %3900 = vmatprep.mubr.bf16.mxu0 %v2918
        %3901 = vmatmul.mubr.bf16.gmra.mrb[0].mxu0 %v2917
        %v3902 = vpop.f32.mrb[0].mxu0
        %v3903 = vadd.f32 %v3026, %v3902
        %v3904 = vpop.f32.mrb[0].mxu0
        %v3905 = vadd.f32 %v3030, %v3904
        %v3906 = vpop.f32.mrb[0].mxu0
        %v3907 = vadd.f32 %v3026, %v3906
        %v3908 = vpop.f32.mrb[0].mxu0
        %v3909 = vadd.f32 %v3030, %v3908
        %3910 = vmatprep.mubr.bf16.mxu0 %v2920
        %3911 = vmatmul.mubr.bf16.gmra.mrb[0].mxu0 %v2919
        %v3912 = vpop.f32.mrb[0].mxu0
        %v3913 = vadd.f32 %v3026, %v3912
        %v3914 = vpop.f32.mrb[0].mxu0
        %v3915 = vadd.f32 %v3030, %v3914
        %v3916 = vpop.f32.mrb[0].mxu0
        %v3917 = vadd.f32 %v3026, %v3916
        %v3918 = vpop.f32.mrb[0].mxu0
        %v3919 = vadd.f32 %v3030, %v3918
        %3920 = vmatprep.mubr.bf16.mxu0 %v2922
        %3921 = vmatmul.mubr.bf16.gmra.mrb[0].mxu0 %v2921
        %v3922 = vpop.f32.mrb[0].mxu0
        %v3923 = vadd.f32 %v3026, %v3922
        %v3924 = vpop.f32.mrb[0].mxu0
        %v3925 = vadd.f32 %v3030, %v3924
        %v3926 = vpop.f32.mrb[0].mxu0
        %v3927 = vadd.f32 %v3026, %v3926
        %v3928 = vpop.f32.mrb[0].mxu0
        %v3929 = vadd.f32 %v3030, %v3928
        %3930 = vmatprep.mubr.bf16.mxu0 %v2924
        %3931 = vmatmul.mubr.bf16.gmra.mrb[0].mxu0 %v2923
        %v3932 = vpop.f32.mrb[0].mxu0
        %v3933 = vadd.f32 %v3026, %v3932
        %v3934 = vpop.f32.mrb[0].mxu0
        %v3935 = vadd.f32 %v3030, %v3934
        %v3936 = vpop.f32.mrb[0].mxu0
        %v3937 = vadd.f32 %v3026, %v3936
        %v3938 = vpop.f32.mrb[0].mxu0
        %v3939 = vadd.f32 %v3030, %v3938
        %3940 = vmatprep.mubr.bf16.mxu0 %v2926
        %3941 = vmatmul.mubr.bf16.gmra.mrb[0].mxu0 %v2925
        %v3942 = vpop.f32.mrb[0].mxu0
        %v3943 = vadd.f32 %v3026, %v3942
        %v3944 = vpop.f32.mrb[0].mxu0
        %v3945 = vadd.f32 %v3030, %v3944
        %v3946 = vpop.f32.mrb[0].mxu0
        %v3947 = vadd.f32 %v3026, %v3946
        %v3948 = vpop.f32.mrb[0].mxu0
        %v3949 = vadd.f32 %v3030, %v3948
        %3950 = vmatprep.mubr.bf16.mxu0 %v2928
        %3951 = vmatmul.mubr.bf16.gmra.mrb[0].mxu0 %v2927
        %v3952 = vpop.f32.mrb[0].mxu0
        %v3953 = vadd.f32 %v3026, %v3952
        %v3954 = vpop.f32.mrb[0].mxu0
        %v3955 = vadd.f32 %v3030, %v3954
        %v3956 = vpop.f32.mrb[0].mxu0
        %v3957 = vadd.f32 %v3026, %v3956
        %v3958 = vpop.f32.mrb[0].mxu0
        %v3959 = vadd.f32 %v3030, %v3958
        %3960 = vmatprep.mubr.bf16.mxu0 %v2930
        %3961 = vmatmul.mubr.bf16.gmra.mrb[0].mxu0 %v2929
        %v3962 = vpop.f32.mrb[0].mxu0
        %v3963 = vadd.f32 %v3026, %v3962
        %v3964 = vpop.f32.mrb[0].mxu0
        %v3965 = vadd.f32 %v3030, %v3964
        %v3966 = vpop.f32.mrb[0].mxu0
        %v3967 = vadd.f32 %v3026, %v3966
        %v3968 = vpop.f32.mrb[0].mxu0
        %v3969 = vadd.f32 %v3030, %v3968
        %3970 = vmatprep.mubr.bf16.mxu0 %v2932
        %3971 = vmatmul.mubr.bf16.gmra.mrb[0].mxu0 %v2931
        %v3972 = vpop.f32.mrb[0].mxu0
        %v3973 = vadd.f32 %v3026, %v3972
        %v3974 = vpop.f32.mrb[0].mxu0
        %v3975 = vadd.f32 %v3030, %v3974
        %v3976 = vpop.f32.mrb[0].mxu0
        %v3977 = vadd.f32 %v3026, %v3976
        %v3978 = vpop.f32.mrb[0].mxu0
        %v3979 = vadd.f32 %v3030, %v3978
        %3980 = vmatprep.mubr.bf16.mxu0 %v2934
        %3981 = vmatmul.mubr.bf16.gmra.mrb[0].mxu0 %v2933
        %v3982 = vpop.f32.mrb[0].mxu0
        %v3983 = vadd.f32 %v3026, %v3982
        %v3984 = vpop.f32.mrb[0].mxu0
        %v3985 = vadd.f32 %v3030, %v3984
        %v3986 = vpop.f32.mrb[0].mxu0
        %v3987 = vadd.f32 %v3026, %v3986
        %v3988 = vpop.f32.mrb[0].mxu0
        %v3989 = vadd.f32 %v3030, %v3988
        %3990 = vmatprep.mubr.bf16.mxu0 %v2936
        %3991 = vmatmul.mubr.bf16.gmra.mrb[0].mxu0 %v2935
        %v3992 = vpop.f32.mrb[0].mxu0
        %v3993 = vadd.f32 %v3026, %v3992
        %v3994 = vpop.f32.mrb[0].mxu0
        %v3995 = vadd.f32 %v3030, %v3994
        %v3996 = vpop.f32.mrb[0].mxu0
        %v3997 = vadd.f32 %v3026, %v3996
        %v3998 = vpop.f32.mrb[0].mxu0
        %v3999 = vadd.f32 %v3030, %v3998
        %4000 = vmatprep.mubr.bf16.mxu0 %v2938
        %4001 = vmatmul.mubr.bf16.gmra.mrb[0].mxu0 %v2937
        %v4002 = vpop.f32.mrb[0].mxu0
        %v4003 = vadd.f32 %v3026, %v4002
        %v4004 = vpop.f32.mrb[0].mxu0
        %v4005 = vadd.f32 %v3030, %v4004
        %v4006 = vpop.f32.mrb[0].mxu0
        %v4007 = vadd.f32 %v3026, %v4006
        %v4008 = vpop.f32.mrb[0].mxu0
        %v4009 = vadd.f32 %v3030, %v4008
        %4010 = vmatprep.mubr.bf16.mxu0 %v2940
        %4011 = vmatmul.mubr.bf16.gmra.mrb[0].mxu0 %v2939
        %v4012 = vpop.f32.mrb[0].mxu0
        %v4013 = vadd.f32 %v3026, %v4012
        %v4014 = vpop.f32.mrb[0].mxu0
        %v4015 = vadd.f32 %v3030, %v4014
        %v4016 = vpop.f32.mrb[0].mxu0
        %v4017 = vadd.f32 %v3026, %v4016
        %v4018 = vpop.f32.mrb[0].mxu0
        %v4019 = vadd.f32 %v3030, %v4018
        %4020 = vmatprep.mubr.bf16.mxu0 %v2942
        %4021 = vmatmul.mubr.bf16.gmra.mrb[0].mxu0 %v2941
        %v4022 = vpop.f32.mrb[0].mxu0
        %v4023 = vadd.f32 %v3026, %v4022
        %v4024 = vpop.f32.mrb[0].mxu0
        %v4025 = vadd.f32 %v3030, %v4024
        %v4026 = vpop.f32.mrb[0].mxu0
        %v4027 = vadd.f32 %v3026, %v4026
        %v4028 = vpop.f32.mrb[0].mxu0
        %v4029 = vadd.f32 %v3030, %v4028
        %4030 = vmatprep.mubr.bf16.mxu0 %v2944
        %4031 = vmatmul.mubr.bf16.gmra.mrb[0].mxu0 %v2943
        %v4032 = vpop.f32.mrb[0].mxu0
        %v4033 = vadd.f32 %v3026, %v4032
        %v4034 = vpop.f32.mrb[0].mxu0
        %v4035 = vadd.f32 %v3030, %v4034
        %v4036 = vpop.f32.mrb[0].mxu0
        %v4037 = vadd.f32 %v3026, %v4036
        %v4038 = vpop.f32.mrb[0].mxu0
        %v4039 = vadd.f32 %v3030, %v4038
        %4040 = vmatprep.mubr.bf16.mxu0 %v2946
        %4041 = vmatmul.mubr.bf16.gmra.mrb[0].mxu0 %v2945
        %v4042 = vpop.f32.mrb[0].mxu0
        %v4043 = vadd.f32 %v3026, %v4042
        %v4044 = vpop.f32.mrb[0].mxu0
        %v4045 = vadd.f32 %v3030, %v4044
        %v4046 = vpop.f32.mrb[0].mxu0
        %v4047 = vadd.f32 %v3026, %v4046
        %v4048 = vpop.f32.mrb[0].mxu0
        %v4049 = vadd.f32 %v3030, %v4048
        %4050 = vmatprep.mubr.bf16.mxu0 %v2948
        %4051 = vmatmul.mubr.bf16.gmra.mrb[0].mxu0 %v2947
        %v4052 = vpop.f32.mrb[0].mxu0
        %v4053 = vadd.f32 %v3026, %v4052
        %v4054 = vpop.f32.mrb[0].mxu0
        %v4055 = vadd.f32 %v3030, %v4054
        %v4056 = vpop.f32.mrb[0].mxu0
        %v4057 = vadd.f32 %v3026, %v4056
        %v4058 = vpop.f32.mrb[0].mxu0
        %v4059 = vadd.f32 %v3030, %v4058
        %4060 = vdwg.mxu0
        %v4061 = vmul.f32 %v3390, 0.5
        %v4062 = vmul.f32 %v3392, 0.5
        %v4063 = vmul.f32 %v3743, 0.5
        %v4064 = vmul.f32 %v3745, 0.5
        %v4065 = vmul.f32 %v3394, 0.5
        %v4066 = vmul.f32 %v3396, 0.5
        %v4067 = vmul.f32 %v3747, 0.5
        %v4068 = vmul.f32 %v3749, 0.5
        %v4069 = vmul.f32 %v3400, 0.5
        %v4070 = vmul.f32 %v3402, 0.5
        %v4071 = vmul.f32 %v3753, 0.5
        %v4072 = vmul.f32 %v3755, 0.5
        %v4073 = vmul.f32 %v3404, 0.5
        %v4074 = vmul.f32 %v3406, 0.5
        %v4075 = vmul.f32 %v3757, 0.5
        %v4076 = vmul.f32 %v3759, 0.5
        %v4077 = vmul.f32 %v3410, 0.5
        %v4078 = vmul.f32 %v3412, 0.5
        %v4079 = vmul.f32 %v3763, 0.5
        %v4080 = vmul.f32 %v3765, 0.5
        %v4081 = vmul.f32 %v3414, 0.5
        %v4082 = vmul.f32 %v3416, 0.5
        %v4083 = vmul.f32 %v3767, 0.5
        %v4084 = vmul.f32 %v3769, 0.5
        %v4085 = vmul.f32 %v3420, 0.5
        %v4086 = vmul.f32 %v3422, 0.5
        %v4087 = vmul.f32 %v3773, 0.5
        %v4088 = vmul.f32 %v3775, 0.5
        %v4089 = vmul.f32 %v3424, 0.5
        %v4090 = vmul.f32 %v3426, 0.5
        %v4091 = vmul.f32 %v3777, 0.5
        %v4092 = vmul.f32 %v3779, 0.5
        %v4093 = vmul.f32 %v3430, 0.5
        %v4094 = vmul.f32 %v3432, 0.5
        %v4095 = vmul.f32 %v3783, 0.5
        %v4096 = vmul.f32 %v3785, 0.5
        %v4097 = vmul.f32 %v3434, 0.5
        %v4098 = vmul.f32 %v3436, 0.5
        %v4099 = vmul.f32 %v3787, 0.5
        %v4100 = vmul.f32 %v3789, 0.5
        %v4101 = vmul.f32 %v3440, 0.5
        %v4102 = vmul.f32 %v3442, 0.5
        %v4103 = vmul.f32 %v3793, 0.5
        %v4104 = vmul.f32 %v3795, 0.5
        %v4105 = vmul.f32 %v3444, 0.5
        %v4106 = vmul.f32 %v3446, 0.5
        %v4107 = vmul.f32 %v3797, 0.5
        %v4108 = vmul.f32 %v3799, 0.5
        %v4109 = vmul.f32 %v3450, 0.5
        %v4110 = vmul.f32 %v3452, 0.5
        %v4111 = vmul.f32 %v3803, 0.5
        %v4112 = vmul.f32 %v3805, 0.5
        %v4113 = vmul.f32 %v3454, 0.5
        %v4114 = vmul.f32 %v3456, 0.5
        %v4115 = vmul.f32 %v3807, 0.5
        %v4116 = vmul.f32 %v3809, 0.5
        %v4117 = vmul.f32 %v3460, 0.5
        %v4118 = vmul.f32 %v3462, 0.5
        %v4119 = vmul.f32 %v3813, 0.5
        %v4120 = vmul.f32 %v3815, 0.5
        %v4121 = vmul.f32 %v3464, 0.5
        %v4122 = vmul.f32 %v3466, 0.5
        %v4123 = vmul.f32 %v3817, 0.5
        %v4124 = vmul.f32 %v3819, 0.5
        %v4125 = vmul.f32 %v3470, 0.5
        %v4126 = vmul.f32 %v3472, 0.5
        %v4127 = vmul.f32 %v3823, 0.5
        %v4128 = vmul.f32 %v3825, 0.5
        %v4129 = vmul.f32 %v3474, 0.5
        %v4130 = vmul.f32 %v3476, 0.5
        %v4131 = vmul.f32 %v3827, 0.5
        %v4132 = vmul.f32 %v3829, 0.5
        %v4133 = vmul.f32 %v3480, 0.5
        %v4134 = vmul.f32 %v3482, 0.5
        %v4135 = vmul.f32 %v3833, 0.5
        %v4136 = vmul.f32 %v3835, 0.5
        %v4137 = vmul.f32 %v3484, 0.5
        %v4138 = vmul.f32 %v3486, 0.5
        %v4139 = vmul.f32 %v3837, 0.5
        %v4140 = vmul.f32 %v3839, 0.5
        %v4141 = vmul.f32 %v3490, 0.5
        %v4142 = vmul.f32 %v3492, 0.5
        %v4143 = vmul.f32 %v3843, 0.5
        %v4144 = vmul.f32 %v3845, 0.5
        %v4145 = vmul.f32 %v3494, 0.5
        %v4146 = vmul.f32 %v3496, 0.5
        %v4147 = vmul.f32 %v3847, 0.5
        %v4148 = vmul.f32 %v3849, 0.5
        %v4149 = vmul.f32 %v3500, 0.5
        %v4150 = vmul.f32 %v3502, 0.5
        %v4151 = vmul.f32 %v3853, 0.5
        %v4152 = vmul.f32 %v3855, 0.5
        %v4153 = vmul.f32 %v3504, 0.5
        %v4154 = vmul.f32 %v3506, 0.5
        %v4155 = vmul.f32 %v3857, 0.5
        %v4156 = vmul.f32 %v3859, 0.5
        %v4157 = vmul.f32 %v3510, 0.5
        %v4158 = vmul.f32 %v3512, 0.5
        %v4159 = vmul.f32 %v3863, 0.5
        %v4160 = vmul.f32 %v3865, 0.5
        %v4161 = vmul.f32 %v3514, 0.5
        %v4162 = vmul.f32 %v3516, 0.5
        %v4163 = vmul.f32 %v3867, 0.5
        %v4164 = vmul.f32 %v3869, 0.5
        %v4165 = vmul.f32 %v3520, 0.5
        %v4166 = vmul.f32 %v3522, 0.5
        %v4167 = vmul.f32 %v3873, 0.5
        %v4168 = vmul.f32 %v3875, 0.5
        %v4169 = vmul.f32 %v3524, 0.5
        %v4170 = vmul.f32 %v3526, 0.5
        %v4171 = vmul.f32 %v3877, 0.5
        %v4172 = vmul.f32 %v3879, 0.5
        %v4173 = vmul.f32 %v3530, 0.5
        %v4174 = vmul.f32 %v3532, 0.5
        %v4175 = vmul.f32 %v3883, 0.5
        %v4176 = vmul.f32 %v3885, 0.5
        %v4177 = vmul.f32 %v3534, 0.5
        %v4178 = vmul.f32 %v3536, 0.5
        %v4179 = vmul.f32 %v3887, 0.5
        %v4180 = vmul.f32 %v3889, 0.5
        %v4181 = vmul.f32 %v3540, 0.5
        %v4182 = vmul.f32 %v3542, 0.5
        %v4183 = vmul.f32 %v3893, 0.5
        %v4184 = vmul.f32 %v3895, 0.5
        %v4185 = vmul.f32 %v3544, 0.5
        %v4186 = vmul.f32 %v3546, 0.5
        %v4187 = vmul.f32 %v3897, 0.5
        %v4188 = vmul.f32 %v3899, 0.5
        %v4189 = vmul.f32 %v3550, 0.5
        %v4190 = vmul.f32 %v3552, 0.5
        %v4191 = vmul.f32 %v3903, 0.5
        %v4192 = vmul.f32 %v3905, 0.5
        %v4193 = vmul.f32 %v3554, 0.5
        %v4194 = vmul.f32 %v3556, 0.5
        %v4195 = vmul.f32 %v3907, 0.5
        %v4196 = vmul.f32 %v3909, 0.5
        %v4197 = vmul.f32 %v3560, 0.5
        %v4198 = vmul.f32 %v3562, 0.5
        %v4199 = vmul.f32 %v3913, 0.5
        %v4200 = vmul.f32 %v3915, 0.5
        %v4201 = vmul.f32 %v3564, 0.5
        %v4202 = vmul.f32 %v3566, 0.5
        %v4203 = vmul.f32 %v3917, 0.5
        %v4204 = vmul.f32 %v3919, 0.5
        %v4205 = vmul.f32 %v3570, 0.5
        %v4206 = vmul.f32 %v3572, 0.5
        %v4207 = vmul.f32 %v3923, 0.5
        %v4208 = vmul.f32 %v3925, 0.5
        %v4209 = vmul.f32 %v3574, 0.5
        %v4210 = vmul.f32 %v3576, 0.5
        %v4211 = vmul.f32 %v3927, 0.5
        %v4212 = vmul.f32 %v3929, 0.5
        %v4213 = vmul.f32 %v3580, 0.5
        %v4214 = vmul.f32 %v3582, 0.5
        %v4215 = vmul.f32 %v3933, 0.5
        %v4216 = vmul.f32 %v3935, 0.5
        %v4217 = vmul.f32 %v3584, 0.5
        %v4218 = vmul.f32 %v3586, 0.5
        %v4219 = vmul.f32 %v3937, 0.5
        %v4220 = vmul.f32 %v3939, 0.5
        %v4221 = vmul.f32 %v3590, 0.5
        %v4222 = vmul.f32 %v3592, 0.5
        %v4223 = vmul.f32 %v3943, 0.5
        %v4224 = vmul.f32 %v3945, 0.5
        %v4225 = vmul.f32 %v3594, 0.5
        %v4226 = vmul.f32 %v3596, 0.5
        %v4227 = vmul.f32 %v3947, 0.5
        %v4228 = vmul.f32 %v3949, 0.5
        %v4229 = vmul.f32 %v3600, 0.5
        %v4230 = vmul.f32 %v3602, 0.5
        %v4231 = vmul.f32 %v3953, 0.5
        %v4232 = vmul.f32 %v3955, 0.5
        %v4233 = vmul.f32 %v3604, 0.5
        %v4234 = vmul.f32 %v3606, 0.5
        %v4235 = vmul.f32 %v3957, 0.5
        %v4236 = vmul.f32 %v3959, 0.5
        %v4237 = vmul.f32 %v3610, 0.5
        %v4238 = vmul.f32 %v3612, 0.5
        %v4239 = vmul.f32 %v3963, 0.5
        %v4240 = vmul.f32 %v3965, 0.5
        %v4241 = vmul.f32 %v3614, 0.5
        %v4242 = vmul.f32 %v3616, 0.5
        %v4243 = vmul.f32 %v3967, 0.5
        %v4244 = vmul.f32 %v3969, 0.5
        %v4245 = vmul.f32 %v3620, 0.5
        %v4246 = vmul.f32 %v3622, 0.5
        %v4247 = vmul.f32 %v3973, 0.5
        %v4248 = vmul.f32 %v3975, 0.5
        %v4249 = vmul.f32 %v3624, 0.5
        %v4250 = vmul.f32 %v3626, 0.5
        %v4251 = vmul.f32 %v3977, 0.5
        %v4252 = vmul.f32 %v3979, 0.5
        %v4253 = vmul.f32 %v3630, 0.5
        %v4254 = vmul.f32 %v3632, 0.5
        %v4255 = vmul.f32 %v3983, 0.5
        %v4256 = vmul.f32 %v3985, 0.5
        %v4257 = vmul.f32 %v3634, 0.5
        %v4258 = vmul.f32 %v3636, 0.5
        %v4259 = vmul.f32 %v3987, 0.5
        %v4260 = vmul.f32 %v3989, 0.5
        %v4261 = vmul.f32 %v3640, 0.5
        %v4262 = vmul.f32 %v3642, 0.5
        %v4263 = vmul.f32 %v3993, 0.5
        %v4264 = vmul.f32 %v3995, 0.5
        %v4265 = vmul.f32 %v3644, 0.5
        %v4266 = vmul.f32 %v3646, 0.5
        %v4267 = vmul.f32 %v3997, 0.5
        %v4268 = vmul.f32 %v3999, 0.5
        %v4269 = vmul.f32 %v3650, 0.5
        %v4270 = vmul.f32 %v3652, 0.5
        %v4271 = vmul.f32 %v4003, 0.5
        %v4272 = vmul.f32 %v4005, 0.5
        %v4273 = vmul.f32 %v3654, 0.5
        %v4274 = vmul.f32 %v3656, 0.5
        %v4275 = vmul.f32 %v4007, 0.5
        %v4276 = vmul.f32 %v4009, 0.5
        %v4277 = vmul.f32 %v3660, 0.5
        %v4278 = vmul.f32 %v3662, 0.5
        %v4279 = vmul.f32 %v4013, 0.5
        %v4280 = vmul.f32 %v4015, 0.5
        %v4281 = vmul.f32 %v3664, 0.5
        %v4282 = vmul.f32 %v3666, 0.5
        %v4283 = vmul.f32 %v4017, 0.5
        %v4284 = vmul.f32 %v4019, 0.5
        %v4285 = vmul.f32 %v3670, 0.5
        %v4286 = vmul.f32 %v3672, 0.5
        %v4287 = vmul.f32 %v4023, 0.5
        %v4288 = vmul.f32 %v4025, 0.5
        %v4289 = vmul.f32 %v3674, 0.5
        %v4290 = vmul.f32 %v3676, 0.5
        %v4291 = vmul.f32 %v4027, 0.5
        %v4292 = vmul.f32 %v4029, 0.5
        %v4293 = vmul.f32 %v3680, 0.5
        %v4294 = vmul.f32 %v3682, 0.5
        %v4295 = vmul.f32 %v4033, 0.5
        %v4296 = vmul.f32 %v4035, 0.5
        %v4297 = vmul.f32 %v3684, 0.5
        %v4298 = vmul.f32 %v3686, 0.5
        %v4299 = vmul.f32 %v4037, 0.5
        %v4300 = vmul.f32 %v4039, 0.5
        %v4301 = vmul.f32 %v3690, 0.5
        %v4302 = vmul.f32 %v3692, 0.5
        %v4303 = vmul.f32 %v4043, 0.5
        %v4304 = vmul.f32 %v4045, 0.5
        %v4305 = vmul.f32 %v3694, 0.5
        %v4306 = vmul.f32 %v3696, 0.5
        %v4307 = vmul.f32 %v4047, 0.5
        %v4308 = vmul.f32 %v4049, 0.5
        %v4309 = vmul.f32 %v3700, 0.5
        %v4310 = vmul.f32 %v3702, 0.5
        %v4311 = vmul.f32 %v4053, 0.5
        %v4312 = vmul.f32 %v4055, 0.5
        %v4313 = vmul.f32 %v3704, 0.5
        %v4314 = vmul.f32 %v3706, 0.5
        %v4315 = vmul.f32 %v4057, 0.5
        %v4316 = vmul.f32 %v4059, 0.5
        %v4317 = vmul.f32 %v3390, 0.70710677
        %v4318 = vmul.f32 %v3392, 0.70710677
        %v4319 = vmul.f32 %v3743, 0.70710677
        %v4320 = vmul.f32 %v3745, 0.70710677
        %v4321 = vmul.f32 %v3394, 0.70710677
        %v4322 = vmul.f32 %v3396, 0.70710677
        %v4323 = vmul.f32 %v3747, 0.70710677
        %v4324 = vmul.f32 %v3749, 0.70710677
        %v4325 = vmul.f32 %v3400, 0.70710677
        %v4326 = vmul.f32 %v3402, 0.70710677
        %v4327 = vmul.f32 %v3753, 0.70710677
        %v4328 = vmul.f32 %v3755, 0.70710677
        %v4329 = vmul.f32 %v3404, 0.70710677
        %v4330 = vmul.f32 %v3406, 0.70710677
        %v4331 = vmul.f32 %v3757, 0.70710677
        %v4332 = vmul.f32 %v3759, 0.70710677
        %v4333 = vmul.f32 %v3410, 0.70710677
        %v4334 = vmul.f32 %v3412, 0.70710677
        %v4335 = vmul.f32 %v3763, 0.70710677
        %v4336 = vmul.f32 %v3765, 0.70710677
        %v4337 = vmul.f32 %v3414, 0.70710677
        %v4338 = vmul.f32 %v3416, 0.70710677
        %v4339 = vmul.f32 %v3767, 0.70710677
        %v4340 = vmul.f32 %v3769, 0.70710677
        %v4341 = vmul.f32 %v3420, 0.70710677
        %v4342 = vmul.f32 %v3422, 0.70710677
        %v4343 = vmul.f32 %v3773, 0.70710677
        %v4344 = vmul.f32 %v3775, 0.70710677
        %v4345 = vmul.f32 %v3424, 0.70710677
        %v4346 = vmul.f32 %v3426, 0.70710677
        %v4347 = vmul.f32 %v3777, 0.70710677
        %v4348 = vmul.f32 %v3779, 0.70710677
        %v4349 = vmul.f32 %v3430, 0.70710677
        %v4350 = vmul.f32 %v3432, 0.70710677
        %v4351 = vmul.f32 %v3783, 0.70710677
        %v4352 = vmul.f32 %v3785, 0.70710677
        %v4353 = vmul.f32 %v3434, 0.70710677
        %v4354 = vmul.f32 %v3436, 0.70710677
        %v4355 = vmul.f32 %v3787, 0.70710677
        %v4356 = vmul.f32 %v3789, 0.70710677
        %v4357 = vmul.f32 %v3440, 0.70710677
        %v4358 = vmul.f32 %v3442, 0.70710677
        %v4359 = vmul.f32 %v3793, 0.70710677
        %v4360 = vmul.f32 %v3795, 0.70710677
        %v4361 = vmul.f32 %v3444, 0.70710677
        %v4362 = vmul.f32 %v3446, 0.70710677
        %v4363 = vmul.f32 %v3797, 0.70710677
        %v4364 = vmul.f32 %v3799, 0.70710677
        %v4365 = vmul.f32 %v3450, 0.70710677
        %v4366 = vmul.f32 %v3452, 0.70710677
        %v4367 = vmul.f32 %v3803, 0.70710677
        %v4368 = vmul.f32 %v3805, 0.70710677
        %v4369 = vmul.f32 %v3454, 0.70710677
        %v4370 = vmul.f32 %v3456, 0.70710677
        %v4371 = vmul.f32 %v3807, 0.70710677
        %v4372 = vmul.f32 %v3809, 0.70710677
        %v4373 = vmul.f32 %v3460, 0.70710677
        %v4374 = vmul.f32 %v3462, 0.70710677
        %v4375 = vmul.f32 %v3813, 0.70710677
        %v4376 = vmul.f32 %v3815, 0.70710677
        %v4377 = vmul.f32 %v3464, 0.70710677
        %v4378 = vmul.f32 %v3466, 0.70710677
        %v4379 = vmul.f32 %v3817, 0.70710677
        %v4380 = vmul.f32 %v3819, 0.70710677
        %v4381 = vmul.f32 %v3470, 0.70710677
        %v4382 = vmul.f32 %v3472, 0.70710677
        %v4383 = vmul.f32 %v3823, 0.70710677
        %v4384 = vmul.f32 %v3825, 0.70710677
        %v4385 = vmul.f32 %v3474, 0.70710677
        %v4386 = vmul.f32 %v3476, 0.70710677
        %v4387 = vmul.f32 %v3827, 0.70710677
        %v4388 = vmul.f32 %v3829, 0.70710677
        %v4389 = vmul.f32 %v3480, 0.70710677
        %v4390 = vmul.f32 %v3482, 0.70710677
        %v4391 = vmul.f32 %v3833, 0.70710677
        %v4392 = vmul.f32 %v3835, 0.70710677
        %v4393 = vmul.f32 %v3484, 0.70710677
        %v4394 = vmul.f32 %v3486, 0.70710677
        %v4395 = vmul.f32 %v3837, 0.70710677
        %v4396 = vmul.f32 %v3839, 0.70710677
        %v4397 = vmul.f32 %v3490, 0.70710677
        %v4398 = vmul.f32 %v3492, 0.70710677
        %v4399 = vmul.f32 %v3843, 0.70710677
        %v4400 = vmul.f32 %v3845, 0.70710677
        %v4401 = vmul.f32 %v3494, 0.70710677
        %v4402 = vmul.f32 %v3496, 0.70710677
        %v4403 = vmul.f32 %v3847, 0.70710677
        %v4404 = vmul.f32 %v3849, 0.70710677
        %v4405 = vmul.f32 %v3500, 0.70710677
        %v4406 = vmul.f32 %v3502, 0.70710677
        %v4407 = vmul.f32 %v3853, 0.70710677
        %v4408 = vmul.f32 %v3855, 0.70710677
        %v4409 = vmul.f32 %v3504, 0.70710677
        %v4410 = vmul.f32 %v3506, 0.70710677
        %v4411 = vmul.f32 %v3857, 0.70710677
        %v4412 = vmul.f32 %v3859, 0.70710677
        %v4413 = vmul.f32 %v3510, 0.70710677
        %v4414 = vmul.f32 %v3512, 0.70710677
        %v4415 = vmul.f32 %v3863, 0.70710677
        %v4416 = vmul.f32 %v3865, 0.70710677
        %v4417 = vmul.f32 %v3514, 0.70710677
        %v4418 = vmul.f32 %v3516, 0.70710677
        %v4419 = vmul.f32 %v3867, 0.70710677
        %v4420 = vmul.f32 %v3869, 0.70710677
        %v4421 = vmul.f32 %v3520, 0.70710677
        %v4422 = vmul.f32 %v3522, 0.70710677
        %v4423 = vmul.f32 %v3873, 0.70710677
        %v4424 = vmul.f32 %v3875, 0.70710677
        %v4425 = vmul.f32 %v3524, 0.70710677
        %v4426 = vmul.f32 %v3526, 0.70710677
        %v4427 = vmul.f32 %v3877, 0.70710677
        %v4428 = vmul.f32 %v3879, 0.70710677
        %v4429 = vmul.f32 %v3530, 0.70710677
        %v4430 = vmul.f32 %v3532, 0.70710677
        %v4431 = vmul.f32 %v3883, 0.70710677
        %v4432 = vmul.f32 %v3885, 0.70710677
        %v4433 = vmul.f32 %v3534, 0.70710677
        %v4434 = vmul.f32 %v3536, 0.70710677
        %v4435 = vmul.f32 %v3887, 0.70710677
        %v4436 = vmul.f32 %v3889, 0.70710677
        %v4437 = vmul.f32 %v3540, 0.70710677
        %v4438 = vmul.f32 %v3542, 0.70710677
        %v4439 = vmul.f32 %v3893, 0.70710677
        %v4440 = vmul.f32 %v3895, 0.70710677
        %v4441 = vmul.f32 %v3544, 0.70710677
        %v4442 = vmul.f32 %v3546, 0.70710677
        %v4443 = vmul.f32 %v3897, 0.70710677
        %v4444 = vmul.f32 %v3899, 0.70710677
        %v4445 = vmul.f32 %v3550, 0.70710677
        %v4446 = vmul.f32 %v3552, 0.70710677
        %v4447 = vmul.f32 %v3903, 0.70710677
        %v4448 = vmul.f32 %v3905, 0.70710677
        %v4449 = vmul.f32 %v3554, 0.70710677
        %v4450 = vmul.f32 %v3556, 0.70710677
        %v4451 = vmul.f32 %v3907, 0.70710677
        %v4452 = vmul.f32 %v3909, 0.70710677
        %v4453 = vmul.f32 %v3560, 0.70710677
        %v4454 = vmul.f32 %v3562, 0.70710677
        %v4455 = vmul.f32 %v3913, 0.70710677
        %v4456 = vmul.f32 %v3915, 0.70710677
        %v4457 = vmul.f32 %v3564, 0.70710677
        %v4458 = vmul.f32 %v3566, 0.70710677
        %v4459 = vmul.f32 %v3917, 0.70710677
        %v4460 = vmul.f32 %v3919, 0.70710677
        %v4461 = vmul.f32 %v3570, 0.70710677
        %v4462 = vmul.f32 %v3572, 0.70710677
        %v4463 = vmul.f32 %v3923, 0.70710677
        %v4464 = vmul.f32 %v3925, 0.70710677
        %v4465 = vmul.f32 %v3574, 0.70710677
        %v4466 = vmul.f32 %v3576, 0.70710677
        %v4467 = vmul.f32 %v3927, 0.70710677
        %v4468 = vmul.f32 %v3929, 0.70710677
        %v4469 = vmul.f32 %v3580, 0.70710677
        %v4470 = vmul.f32 %v3582, 0.70710677
        %v4471 = vmul.f32 %v3933, 0.70710677
        %v4472 = vmul.f32 %v3935, 0.70710677
        %v4473 = vmul.f32 %v3584, 0.70710677
        %v4474 = vmul.f32 %v3586, 0.70710677
        %v4475 = vmul.f32 %v3937, 0.70710677
        %v4476 = vmul.f32 %v3939, 0.70710677
        %v4477 = vmul.f32 %v3590, 0.70710677
        %v4478 = vmul.f32 %v3592, 0.70710677
        %v4479 = vmul.f32 %v3943, 0.70710677
        %v4480 = vmul.f32 %v3945, 0.70710677
        %v4481 = vmul.f32 %v3594, 0.70710677
        %v4482 = vmul.f32 %v3596, 0.70710677
        %v4483 = vmul.f32 %v3947, 0.70710677
        %v4484 = vmul.f32 %v3949, 0.70710677
        %v4485 = vmul.f32 %v3600, 0.70710677
        %v4486 = vmul.f32 %v3602, 0.70710677
        %v4487 = vmul.f32 %v3953, 0.70710677
        %v4488 = vmul.f32 %v3955, 0.70710677
        %v4489 = vmul.f32 %v3604, 0.70710677
        %v4490 = vmul.f32 %v3606, 0.70710677
        %v4491 = vmul.f32 %v3957, 0.70710677
        %v4492 = vmul.f32 %v3959, 0.70710677
        %v4493 = vmul.f32 %v3610, 0.70710677
        %v4494 = vmul.f32 %v3612, 0.70710677
        %v4495 = vmul.f32 %v3963, 0.70710677
        %v4496 = vmul.f32 %v3965, 0.70710677
        %v4497 = vmul.f32 %v3614, 0.70710677
        %v4498 = vmul.f32 %v3616, 0.70710677
        %v4499 = vmul.f32 %v3967, 0.70710677
        %v4500 = vmul.f32 %v3969, 0.70710677
        %v4501 = vmul.f32 %v3620, 0.70710677
        %v4502 = vmul.f32 %v3622, 0.70710677
        %v4503 = vmul.f32 %v3973, 0.70710677
        %v4504 = vmul.f32 %v3975, 0.70710677
        %v4505 = vmul.f32 %v3624, 0.70710677
        %v4506 = vmul.f32 %v3626, 0.70710677
        %v4507 = vmul.f32 %v3977, 0.70710677
        %v4508 = vmul.f32 %v3979, 0.70710677
        %v4509 = vmul.f32 %v3630, 0.70710677
        %v4510 = vmul.f32 %v3632, 0.70710677
        %v4511 = vmul.f32 %v3983, 0.70710677
        %v4512 = vmul.f32 %v3985, 0.70710677
        %v4513 = vmul.f32 %v3634, 0.70710677
        %v4514 = vmul.f32 %v3636, 0.70710677
        %v4515 = vmul.f32 %v3987, 0.70710677
        %v4516 = vmul.f32 %v3989, 0.70710677
        %v4517 = vmul.f32 %v3640, 0.70710677
        %v4518 = vmul.f32 %v3642, 0.70710677
        %v4519 = vmul.f32 %v3993, 0.70710677
        %v4520 = vmul.f32 %v3995, 0.70710677
        %v4521 = vmul.f32 %v3644, 0.70710677
        %v4522 = vmul.f32 %v3646, 0.70710677
        %v4523 = vmul.f32 %v3997, 0.70710677
        %v4524 = vmul.f32 %v3999, 0.70710677
        %v4525 = vmul.f32 %v3650, 0.70710677
        %v4526 = vmul.f32 %v3652, 0.70710677
        %v4527 = vmul.f32 %v4003, 0.70710677
        %v4528 = vmul.f32 %v4005, 0.70710677
        %v4529 = vmul.f32 %v3654, 0.70710677
        %v4530 = vmul.f32 %v3656, 0.70710677
        %v4531 = vmul.f32 %v4007, 0.70710677
        %v4532 = vmul.f32 %v4009, 0.70710677
        %v4533 = vmul.f32 %v3660, 0.70710677
        %v4534 = vmul.f32 %v3662, 0.70710677
        %v4535 = vmul.f32 %v4013, 0.70710677
        %v4536 = vmul.f32 %v4015, 0.70710677
        %v4537 = vmul.f32 %v3664, 0.70710677
        %v4538 = vmul.f32 %v3666, 0.70710677
        %v4539 = vmul.f32 %v4017, 0.70710677
        %v4540 = vmul.f32 %v4019, 0.70710677
        %v4541 = vmul.f32 %v3670, 0.70710677
        %v4542 = vmul.f32 %v3672, 0.70710677
        %v4543 = vmul.f32 %v4023, 0.70710677
        %v4544 = vmul.f32 %v4025, 0.70710677
        %v4545 = vmul.f32 %v3674, 0.70710677
        %v4546 = vmul.f32 %v3676, 0.70710677
        %v4547 = vmul.f32 %v4027, 0.70710677
        %v4548 = vmul.f32 %v4029, 0.70710677
        %v4549 = vmul.f32 %v3680, 0.70710677
        %v4550 = vmul.f32 %v3682, 0.70710677
        %v4551 = vmul.f32 %v4033, 0.70710677
        %v4552 = vmul.f32 %v4035, 0.70710677
        %v4553 = vmul.f32 %v3684, 0.70710677
        %v4554 = vmul.f32 %v3686, 0.70710677
        %v4555 = vmul.f32 %v4037, 0.70710677
        %v4556 = vmul.f32 %v4039, 0.70710677
        %v4557 = vmul.f32 %v3690, 0.70710677
        %v4558 = vmul.f32 %v3692, 0.70710677
        %v4559 = vmul.f32 %v4043, 0.70710677
        %v4560 = vmul.f32 %v4045, 0.70710677
        %v4561 = vmul.f32 %v3694, 0.70710677
        %v4562 = vmul.f32 %v3696, 0.70710677
        %v4563 = vmul.f32 %v4047, 0.70710677
        %v4564 = vmul.f32 %v4049, 0.70710677
        %v4565 = vmul.f32 %v3700, 0.70710677
        %v4566 = vmul.f32 %v3702, 0.70710677
        %v4567 = vmul.f32 %v4053, 0.70710677
        %v4568 = vmul.f32 %v4055, 0.70710677
        %v4569 = vmul.f32 %v3704, 0.70710677
        %v4570 = vmul.f32 %v3706, 0.70710677
        %v4571 = vmul.f32 %v4057, 0.70710677
        %v4572 = vmul.f32 %v4059, 0.70710677
        %v4573 = verf.f32.pop %v4317
        %v4574 = verf.f32.pop %v4318
        %v4575 = verf.f32.pop %v4319
        %v4576 = verf.f32.pop %v4320
        %v4577 = verf.f32.pop %v4321
        %v4578 = verf.f32.pop %v4322
        %v4579 = verf.f32.pop %v4323
        %v4580 = verf.f32.pop %v4324
        %v4581 = verf.f32.pop %v4325
        %v4582 = verf.f32.pop %v4326
        %v4583 = verf.f32.pop %v4327
        %v4584 = verf.f32.pop %v4328
        %v4585 = verf.f32.pop %v4329
        %v4586 = verf.f32.pop %v4330
        %v4587 = verf.f32.pop %v4331
        %v4588 = verf.f32.pop %v4332
        %v4589 = verf.f32.pop %v4333
        %v4590 = verf.f32.pop %v4334
        %v4591 = verf.f32.pop %v4335
        %v4592 = verf.f32.pop %v4336
        %v4593 = verf.f32.pop %v4337
        %v4594 = verf.f32.pop %v4338
        %v4595 = verf.f32.pop %v4339
        %v4596 = verf.f32.pop %v4340
        %v4597 = verf.f32.pop %v4341
        %v4598 = verf.f32.pop %v4342
        %v4599 = verf.f32.pop %v4343
        %v4600 = verf.f32.pop %v4344
        %v4601 = verf.f32.pop %v4345
        %v4602 = verf.f32.pop %v4346
        %v4603 = verf.f32.pop %v4347
        %v4604 = verf.f32.pop %v4348
        %v4605 = verf.f32.pop %v4349
        %v4606 = verf.f32.pop %v4350
        %v4607 = verf.f32.pop %v4351
        %v4608 = verf.f32.pop %v4352
        %v4609 = verf.f32.pop %v4353
        %v4610 = verf.f32.pop %v4354
        %v4611 = verf.f32.pop %v4355
        %v4612 = verf.f32.pop %v4356
        %v4613 = verf.f32.pop %v4357
        %v4614 = verf.f32.pop %v4358
        %v4615 = verf.f32.pop %v4359
        %v4616 = verf.f32.pop %v4360
        %v4617 = verf.f32.pop %v4361
        %v4618 = verf.f32.pop %v4362
        %v4619 = verf.f32.pop %v4363
        %v4620 = verf.f32.pop %v4364
        %v4621 = verf.f32.pop %v4365
        %v4622 = verf.f32.pop %v4366
        %v4623 = verf.f32.pop %v4367
        %v4624 = verf.f32.pop %v4368
        %v4625 = verf.f32.pop %v4369
        %v4626 = verf.f32.pop %v4370
        %v4627 = verf.f32.pop %v4371
        %v4628 = verf.f32.pop %v4372
        %v4629 = verf.f32.pop %v4373
        %v4630 = verf.f32.pop %v4374
        %v4631 = verf.f32.pop %v4375
        %v4632 = verf.f32.pop %v4376
        %v4633 = verf.f32.pop %v4377
        %v4634 = verf.f32.pop %v4378
        %v4635 = verf.f32.pop %v4379
        %v4636 = verf.f32.pop %v4380
        %v4637 = verf.f32.pop %v4381
        %v4638 = verf.f32.pop %v4382
        %v4639 = verf.f32.pop %v4383
        %v4640 = verf.f32.pop %v4384
        %v4641 = verf.f32.pop %v4385
        %v4642 = verf.f32.pop %v4386
        %v4643 = verf.f32.pop %v4387
        %v4644 = verf.f32.pop %v4388
        %v4645 = verf.f32.pop %v4389
        %v4646 = verf.f32.pop %v4390
        %v4647 = verf.f32.pop %v4391
        %v4648 = verf.f32.pop %v4392
        %v4649 = verf.f32.pop %v4393
        %v4650 = verf.f32.pop %v4394
        %v4651 = verf.f32.pop %v4395
        %v4652 = verf.f32.pop %v4396
        %v4653 = verf.f32.pop %v4397
        %v4654 = verf.f32.pop %v4398
        %v4655 = verf.f32.pop %v4399
        %v4656 = verf.f32.pop %v4400
        %v4657 = verf.f32.pop %v4401
        %v4658 = verf.f32.pop %v4402
        %v4659 = verf.f32.pop %v4403
        %v4660 = verf.f32.pop %v4404
        %v4661 = verf.f32.pop %v4405
        %v4662 = verf.f32.pop %v4406
        %v4663 = verf.f32.pop %v4407
        %v4664 = verf.f32.pop %v4408
        %v4665 = verf.f32.pop %v4409
        %v4666 = verf.f32.pop %v4410
        %v4667 = verf.f32.pop %v4411
        %v4668 = verf.f32.pop %v4412
        %v4669 = verf.f32.pop %v4413
        %v4670 = verf.f32.pop %v4414
        %v4671 = verf.f32.pop %v4415
        %v4672 = verf.f32.pop %v4416
        %v4673 = verf.f32.pop %v4417
        %v4674 = verf.f32.pop %v4418
        %v4675 = verf.f32.pop %v4419
        %v4676 = verf.f32.pop %v4420
        %v4677 = verf.f32.pop %v4421
        %v4678 = verf.f32.pop %v4422
        %v4679 = verf.f32.pop %v4423
        %v4680 = verf.f32.pop %v4424
        %v4681 = verf.f32.pop %v4425
        %v4682 = verf.f32.pop %v4426
        %v4683 = verf.f32.pop %v4427
        %v4684 = verf.f32.pop %v4428
        %v4685 = verf.f32.pop %v4429
        %v4686 = verf.f32.pop %v4430
        %v4687 = verf.f32.pop %v4431
        %v4688 = verf.f32.pop %v4432
        %v4689 = verf.f32.pop %v4433
        %v4690 = verf.f32.pop %v4434
        %v4691 = verf.f32.pop %v4435
        %v4692 = verf.f32.pop %v4436
        %v4693 = verf.f32.pop %v4437
        %v4694 = verf.f32.pop %v4438
        %v4695 = verf.f32.pop %v4439
        %v4696 = verf.f32.pop %v4440
        %v4697 = verf.f32.pop %v4441
        %v4698 = verf.f32.pop %v4442
        %v4699 = verf.f32.pop %v4443
        %v4700 = verf.f32.pop %v4444
        %v4701 = verf.f32.pop %v4445
        %v4702 = verf.f32.pop %v4446
        %v4703 = verf.f32.pop %v4447
        %v4704 = verf.f32.pop %v4448
        %v4705 = verf.f32.pop %v4449
        %v4706 = verf.f32.pop %v4450
        %v4707 = verf.f32.pop %v4451
        %v4708 = verf.f32.pop %v4452
        %v4709 = verf.f32.pop %v4453
        %v4710 = verf.f32.pop %v4454
        %v4711 = verf.f32.pop %v4455
        %v4712 = verf.f32.pop %v4456
        %v4713 = verf.f32.pop %v4457
        %v4714 = verf.f32.pop %v4458
        %v4715 = verf.f32.pop %v4459
        %v4716 = verf.f32.pop %v4460
        %v4717 = verf.f32.pop %v4461
        %v4718 = verf.f32.pop %v4462
        %v4719 = verf.f32.pop %v4463
        %v4720 = verf.f32.pop %v4464
        %v4721 = verf.f32.pop %v4465
        %v4722 = verf.f32.pop %v4466
        %v4723 = verf.f32.pop %v4467
        %v4724 = verf.f32.pop %v4468
        %v4725 = verf.f32.pop %v4469
        %v4726 = verf.f32.pop %v4470
        %v4727 = verf.f32.pop %v4471
        %v4728 = verf.f32.pop %v4472
        %v4729 = verf.f32.pop %v4473
        %v4730 = verf.f32.pop %v4474
        %v4731 = verf.f32.pop %v4475
        %v4732 = verf.f32.pop %v4476
        %v4733 = verf.f32.pop %v4477
        %v4734 = verf.f32.pop %v4478
        %v4735 = verf.f32.pop %v4479
        %v4736 = verf.f32.pop %v4480
        %v4737 = verf.f32.pop %v4481
        %v4738 = verf.f32.pop %v4482
        %v4739 = verf.f32.pop %v4483
        %v4740 = verf.f32.pop %v4484
        %v4741 = verf.f32.pop %v4485
        %v4742 = verf.f32.pop %v4486
        %v4743 = verf.f32.pop %v4487
        %v4744 = verf.f32.pop %v4488
        %v4745 = verf.f32.pop %v4489
        %v4746 = verf.f32.pop %v4490
        %v4747 = verf.f32.pop %v4491
        %v4748 = verf.f32.pop %v4492
        %v4749 = verf.f32.pop %v4493
        %v4750 = verf.f32.pop %v4494
        %v4751 = verf.f32.pop %v4495
        %v4752 = verf.f32.pop %v4496
        %v4753 = verf.f32.pop %v4497
        %v4754 = verf.f32.pop %v4498
        %v4755 = verf.f32.pop %v4499
        %v4756 = verf.f32.pop %v4500
        %v4757 = verf.f32.pop %v4501
        %v4758 = verf.f32.pop %v4502
        %v4759 = verf.f32.pop %v4503
        %v4760 = verf.f32.pop %v4504
        %v4761 = verf.f32.pop %v4505
        %v4762 = verf.f32.pop %v4506
        %v4763 = verf.f32.pop %v4507
        %v4764 = verf.f32.pop %v4508
        %v4765 = verf.f32.pop %v4509
        %v4766 = verf.f32.pop %v4510
        %v4767 = verf.f32.pop %v4511
        %v4768 = verf.f32.pop %v4512
        %v4769 = verf.f32.pop %v4513
        %v4770 = verf.f32.pop %v4514
        %v4771 = verf.f32.pop %v4515
        %v4772 = verf.f32.pop %v4516
        %v4773 = verf.f32.pop %v4517
        %v4774 = verf.f32.pop %v4518
        %v4775 = verf.f32.pop %v4519
        %v4776 = verf.f32.pop %v4520
        %v4777 = verf.f32.pop %v4521
        %v4778 = verf.f32.pop %v4522
        %v4779 = verf.f32.pop %v4523
        %v4780 = verf.f32.pop %v4524
        %v4781 = verf.f32.pop %v4525
        %v4782 = verf.f32.pop %v4526
        %v4783 = verf.f32.pop %v4527
        %v4784 = verf.f32.pop %v4528
        %v4785 = verf.f32.pop %v4529
        %v4786 = verf.f32.pop %v4530
        %v4787 = verf.f32.pop %v4531
        %v4788 = verf.f32.pop %v4532
        %v4789 = verf.f32.pop %v4533
        %v4790 = verf.f32.pop %v4534
        %v4791 = verf.f32.pop %v4535
        %v4792 = verf.f32.pop %v4536
        %v4793 = verf.f32.pop %v4537
        %v4794 = verf.f32.pop %v4538
        %v4795 = verf.f32.pop %v4539
        %v4796 = verf.f32.pop %v4540
        %v4797 = verf.f32.pop %v4541
        %v4798 = verf.f32.pop %v4542
        %v4799 = verf.f32.pop %v4543
        %v4800 = verf.f32.pop %v4544
        %v4801 = verf.f32.pop %v4545
        %v4802 = verf.f32.pop %v4546
        %v4803 = verf.f32.pop %v4547
        %v4804 = verf.f32.pop %v4548
        %v4805 = verf.f32.pop %v4549
        %v4806 = verf.f32.pop %v4550
        %v4807 = verf.f32.pop %v4551
        %v4808 = verf.f32.pop %v4552
        %v4809 = verf.f32.pop %v4553
        %v4810 = verf.f32.pop %v4554
        %v4811 = verf.f32.pop %v4555
        %v4812 = verf.f32.pop %v4556
        %v4813 = verf.f32.pop %v4557
        %v4814 = verf.f32.pop %v4558
        %v4815 = verf.f32.pop %v4559
        %v4816 = verf.f32.pop %v4560
        %v4817 = verf.f32.pop %v4561
        %v4818 = verf.f32.pop %v4562
        %v4819 = verf.f32.pop %v4563
        %v4820 = verf.f32.pop %v4564
        %v4821 = verf.f32.pop %v4565
        %v4822 = verf.f32.pop %v4566
        %v4823 = verf.f32.pop %v4567
        %v4824 = verf.f32.pop %v4568
        %v4825 = verf.f32.pop %v4569
        %v4826 = verf.f32.pop %v4570
        %v4827 = verf.f32.pop %v4571
        %v4828 = verf.f32.pop %v4572
        %v4829 = vadd.f32 %v4573, 1.0
        %v4830 = vadd.f32 %v4574, 1.0
        %v4831 = vadd.f32 %v4575, 1.0
        %v4832 = vadd.f32 %v4576, 1.0
        %v4833 = vadd.f32 %v4577, 1.0
        %v4834 = vadd.f32 %v4578, 1.0
        %v4835 = vadd.f32 %v4579, 1.0
        %v4836 = vadd.f32 %v4580, 1.0
        %v4837 = vadd.f32 %v4581, 1.0
        %v4838 = vadd.f32 %v4582, 1.0
        %v4839 = vadd.f32 %v4583, 1.0
        %v4840 = vadd.f32 %v4584, 1.0
        %v4841 = vadd.f32 %v4585, 1.0
        %v4842 = vadd.f32 %v4586, 1.0
        %v4843 = vadd.f32 %v4587, 1.0
        %v4844 = vadd.f32 %v4588, 1.0
        %v4845 = vadd.f32 %v4589, 1.0
        %v4846 = vadd.f32 %v4590, 1.0
        %v4847 = vadd.f32 %v4591, 1.0
        %v4848 = vadd.f32 %v4592, 1.0
        %v4849 = vadd.f32 %v4593, 1.0
        %v4850 = vadd.f32 %v4594, 1.0
        %v4851 = vadd.f32 %v4595, 1.0
        %v4852 = vadd.f32 %v4596, 1.0
        %v4853 = vadd.f32 %v4597, 1.0
        %v4854 = vadd.f32 %v4598, 1.0
        %v4855 = vadd.f32 %v4599, 1.0
        %v4856 = vadd.f32 %v4600, 1.0
        %v4857 = vadd.f32 %v4601, 1.0
        %v4858 = vadd.f32 %v4602, 1.0
        %v4859 = vadd.f32 %v4603, 1.0
        %v4860 = vadd.f32 %v4604, 1.0
        %v4861 = vadd.f32 %v4605, 1.0
        %v4862 = vadd.f32 %v4606, 1.0
        %v4863 = vadd.f32 %v4607, 1.0
        %v4864 = vadd.f32 %v4608, 1.0
        %v4865 = vadd.f32 %v4609, 1.0
        %v4866 = vadd.f32 %v4610, 1.0
        %v4867 = vadd.f32 %v4611, 1.0
        %v4868 = vadd.f32 %v4612, 1.0
        %v4869 = vadd.f32 %v4613, 1.0
        %v4870 = vadd.f32 %v4614, 1.0
        %v4871 = vadd.f32 %v4615, 1.0
        %v4872 = vadd.f32 %v4616, 1.0
        %v4873 = vadd.f32 %v4617, 1.0
        %v4874 = vadd.f32 %v4618, 1.0
        %v4875 = vadd.f32 %v4619, 1.0
        %v4876 = vadd.f32 %v4620, 1.0
        %v4877 = vadd.f32 %v4621, 1.0
        %v4878 = vadd.f32 %v4622, 1.0
        %v4879 = vadd.f32 %v4623, 1.0
        %v4880 = vadd.f32 %v4624, 1.0
        %v4881 = vadd.f32 %v4625, 1.0
        %v4882 = vadd.f32 %v4626, 1.0
        %v4883 = vadd.f32 %v4627, 1.0
        %v4884 = vadd.f32 %v4628, 1.0
        %v4885 = vadd.f32 %v4629, 1.0
        %v4886 = vadd.f32 %v4630, 1.0
        %v4887 = vadd.f32 %v4631, 1.0
        %v4888 = vadd.f32 %v4632, 1.0
        %v4889 = vadd.f32 %v4633, 1.0
        %v4890 = vadd.f32 %v4634, 1.0
        %v4891 = vadd.f32 %v4635, 1.0
        %v4892 = vadd.f32 %v4636, 1.0
        %v4893 = vadd.f32 %v4637, 1.0
        %v4894 = vadd.f32 %v4638, 1.0
        %v4895 = vadd.f32 %v4639, 1.0
        %v4896 = vadd.f32 %v4640, 1.0
        %v4897 = vadd.f32 %v4641, 1.0
        %v4898 = vadd.f32 %v4642, 1.0
        %v4899 = vadd.f32 %v4643, 1.0
        %v4900 = vadd.f32 %v4644, 1.0
        %v4901 = vadd.f32 %v4645, 1.0
        %v4902 = vadd.f32 %v4646, 1.0
        %v4903 = vadd.f32 %v4647, 1.0
        %v4904 = vadd.f32 %v4648, 1.0
        %v4905 = vadd.f32 %v4649, 1.0
        %v4906 = vadd.f32 %v4650, 1.0
        %v4907 = vadd.f32 %v4651, 1.0
        %v4908 = vadd.f32 %v4652, 1.0
        %v4909 = vadd.f32 %v4653, 1.0
        %v4910 = vadd.f32 %v4654, 1.0
        %v4911 = vadd.f32 %v4655, 1.0
        %v4912 = vadd.f32 %v4656, 1.0
        %v4913 = vadd.f32 %v4657, 1.0
        %v4914 = vadd.f32 %v4658, 1.0
        %v4915 = vadd.f32 %v4659, 1.0
        %v4916 = vadd.f32 %v4660, 1.0
        %v4917 = vadd.f32 %v4661, 1.0
        %v4918 = vadd.f32 %v4662, 1.0
        %v4919 = vadd.f32 %v4663, 1.0
        %v4920 = vadd.f32 %v4664, 1.0
        %v4921 = vadd.f32 %v4665, 1.0
        %v4922 = vadd.f32 %v4666, 1.0
        %v4923 = vadd.f32 %v4667, 1.0
        %v4924 = vadd.f32 %v4668, 1.0
        %v4925 = vadd.f32 %v4669, 1.0
        %v4926 = vadd.f32 %v4670, 1.0
        %v4927 = vadd.f32 %v4671, 1.0
        %v4928 = vadd.f32 %v4672, 1.0
        %v4929 = vadd.f32 %v4673, 1.0
        %v4930 = vadd.f32 %v4674, 1.0
        %v4931 = vadd.f32 %v4675, 1.0
        %v4932 = vadd.f32 %v4676, 1.0
        %v4933 = vadd.f32 %v4677, 1.0
        %v4934 = vadd.f32 %v4678, 1.0
        %v4935 = vadd.f32 %v4679, 1.0
        %v4936 = vadd.f32 %v4680, 1.0
        %v4937 = vadd.f32 %v4681, 1.0
        %v4938 = vadd.f32 %v4682, 1.0
        %v4939 = vadd.f32 %v4683, 1.0
        %v4940 = vadd.f32 %v4684, 1.0
        %v4941 = vadd.f32 %v4685, 1.0
        %v4942 = vadd.f32 %v4686, 1.0
        %v4943 = vadd.f32 %v4687, 1.0
        %v4944 = vadd.f32 %v4688, 1.0
        %v4945 = vadd.f32 %v4689, 1.0
        %v4946 = vadd.f32 %v4690, 1.0
        %v4947 = vadd.f32 %v4691, 1.0
        %v4948 = vadd.f32 %v4692, 1.0
        %v4949 = vadd.f32 %v4693, 1.0
        %v4950 = vadd.f32 %v4694, 1.0
        %v4951 = vadd.f32 %v4695, 1.0
        %v4952 = vadd.f32 %v4696, 1.0
        %v4953 = vadd.f32 %v4697, 1.0
        %v4954 = vadd.f32 %v4698, 1.0
        %v4955 = vadd.f32 %v4699, 1.0
        %v4956 = vadd.f32 %v4700, 1.0
        %v4957 = vadd.f32 %v4701, 1.0
        %v4958 = vadd.f32 %v4702, 1.0
        %v4959 = vadd.f32 %v4703, 1.0
        %v4960 = vadd.f32 %v4704, 1.0
        %v4961 = vadd.f32 %v4705, 1.0
        %v4962 = vadd.f32 %v4706, 1.0
        %v4963 = vadd.f32 %v4707, 1.0
        %v4964 = vadd.f32 %v4708, 1.0
        %v4965 = vadd.f32 %v4709, 1.0
        %v4966 = vadd.f32 %v4710, 1.0
        %v4967 = vadd.f32 %v4711, 1.0
        %v4968 = vadd.f32 %v4712, 1.0
        %v4969 = vadd.f32 %v4713, 1.0
        %v4970 = vadd.f32 %v4714, 1.0
        %v4971 = vadd.f32 %v4715, 1.0
        %v4972 = vadd.f32 %v4716, 1.0
        %v4973 = vadd.f32 %v4717, 1.0
        %v4974 = vadd.f32 %v4718, 1.0
        %v4975 = vadd.f32 %v4719, 1.0
        %v4976 = vadd.f32 %v4720, 1.0
        %v4977 = vadd.f32 %v4721, 1.0
        %v4978 = vadd.f32 %v4722, 1.0
        %v4979 = vadd.f32 %v4723, 1.0
        %v4980 = vadd.f32 %v4724, 1.0
        %v4981 = vadd.f32 %v4725, 1.0
        %v4982 = vadd.f32 %v4726, 1.0
        %v4983 = vadd.f32 %v4727, 1.0
        %v4984 = vadd.f32 %v4728, 1.0
        %v4985 = vadd.f32 %v4729, 1.0
        %v4986 = vadd.f32 %v4730, 1.0
        %v4987 = vadd.f32 %v4731, 1.0
        %v4988 = vadd.f32 %v4732, 1.0
        %v4989 = vadd.f32 %v4733, 1.0
        %v4990 = vadd.f32 %v4734, 1.0
        %v4991 = vadd.f32 %v4735, 1.0
        %v4992 = vadd.f32 %v4736, 1.0
        %v4993 = vadd.f32 %v4737, 1.0
        %v4994 = vadd.f32 %v4738, 1.0
        %v4995 = vadd.f32 %v4739, 1.0
        %v4996 = vadd.f32 %v4740, 1.0
        %v4997 = vadd.f32 %v4741, 1.0
        %v4998 = vadd.f32 %v4742, 1.0
        %v4999 = vadd.f32 %v4743, 1.0
        %v5000 = vadd.f32 %v4744, 1.0
        %v5001 = vadd.f32 %v4745, 1.0
        %v5002 = vadd.f32 %v4746, 1.0
        %v5003 = vadd.f32 %v4747, 1.0
        %v5004 = vadd.f32 %v4748, 1.0
        %v5005 = vadd.f32 %v4749, 1.0
        %v5006 = vadd.f32 %v4750, 1.0
        %v5007 = vadd.f32 %v4751, 1.0
        %v5008 = vadd.f32 %v4752, 1.0
        %v5009 = vadd.f32 %v4753, 1.0
        %v5010 = vadd.f32 %v4754, 1.0
        %v5011 = vadd.f32 %v4755, 1.0
        %v5012 = vadd.f32 %v4756, 1.0
        %v5013 = vadd.f32 %v4757, 1.0
        %v5014 = vadd.f32 %v4758, 1.0
        %v5015 = vadd.f32 %v4759, 1.0
        %v5016 = vadd.f32 %v4760, 1.0
        %v5017 = vadd.f32 %v4761, 1.0
        %v5018 = vadd.f32 %v4762, 1.0
        %v5019 = vadd.f32 %v4763, 1.0
        %v5020 = vadd.f32 %v4764, 1.0
        %v5021 = vadd.f32 %v4765, 1.0
        %v5022 = vadd.f32 %v4766, 1.0
        %v5023 = vadd.f32 %v4767, 1.0
        %v5024 = vadd.f32 %v4768, 1.0
        %v5025 = vadd.f32 %v4769, 1.0
        %v5026 = vadd.f32 %v4770, 1.0
        %v5027 = vadd.f32 %v4771, 1.0
        %v5028 = vadd.f32 %v4772, 1.0
        %v5029 = vadd.f32 %v4773, 1.0
        %v5030 = vadd.f32 %v4774, 1.0
        %v5031 = vadd.f32 %v4775, 1.0
        %v5032 = vadd.f32 %v4776, 1.0
        %v5033 = vadd.f32 %v4777, 1.0
        %v5034 = vadd.f32 %v4778, 1.0
        %v5035 = vadd.f32 %v4779, 1.0
        %v5036 = vadd.f32 %v4780, 1.0
        %v5037 = vadd.f32 %v4781, 1.0
        %v5038 = vadd.f32 %v4782, 1.0
        %v5039 = vadd.f32 %v4783, 1.0
        %v5040 = vadd.f32 %v4784, 1.0
        %v5041 = vadd.f32 %v4785, 1.0
        %v5042 = vadd.f32 %v4786, 1.0
        %v5043 = vadd.f32 %v4787, 1.0
        %v5044 = vadd.f32 %v4788, 1.0
        %v5045 = vadd.f32 %v4789, 1.0
        %v5046 = vadd.f32 %v4790, 1.0
        %v5047 = vadd.f32 %v4791, 1.0
        %v5048 = vadd.f32 %v4792, 1.0
        %v5049 = vadd.f32 %v4793, 1.0
        %v5050 = vadd.f32 %v4794, 1.0
        %v5051 = vadd.f32 %v4795, 1.0
        %v5052 = vadd.f32 %v4796, 1.0
        %v5053 = vadd.f32 %v4797, 1.0
        %v5054 = vadd.f32 %v4798, 1.0
        %v5055 = vadd.f32 %v4799, 1.0
        %v5056 = vadd.f32 %v4800, 1.0
        %v5057 = vadd.f32 %v4801, 1.0
        %v5058 = vadd.f32 %v4802, 1.0
        %v5059 = vadd.f32 %v4803, 1.0
        %v5060 = vadd.f32 %v4804, 1.0
        %v5061 = vadd.f32 %v4805, 1.0
        %v5062 = vadd.f32 %v4806, 1.0
        %v5063 = vadd.f32 %v4807, 1.0
        %v5064 = vadd.f32 %v4808, 1.0
        %v5065 = vadd.f32 %v4809, 1.0
        %v5066 = vadd.f32 %v4810, 1.0
        %v5067 = vadd.f32 %v4811, 1.0
        %v5068 = vadd.f32 %v4812, 1.0
        %v5069 = vadd.f32 %v4813, 1.0
        %v5070 = vadd.f32 %v4814, 1.0
        %v5071 = vadd.f32 %v4815, 1.0
        %v5072 = vadd.f32 %v4816, 1.0
        %v5073 = vadd.f32 %v4817, 1.0
        %v5074 = vadd.f32 %v4818, 1.0
        %v5075 = vadd.f32 %v4819, 1.0
        %v5076 = vadd.f32 %v4820, 1.0
        %v5077 = vadd.f32 %v4821, 1.0
        %v5078 = vadd.f32 %v4822, 1.0
        %v5079 = vadd.f32 %v4823, 1.0
        %v5080 = vadd.f32 %v4824, 1.0
        %v5081 = vadd.f32 %v4825, 1.0
        %v5082 = vadd.f32 %v4826, 1.0
        %v5083 = vadd.f32 %v4827, 1.0
        %v5084 = vadd.f32 %v4828, 1.0
        %v5085 = vmul.f32 %v4061, %v4829
        %v5086 = vmul.f32 %v4062, %v4830
        %v5087 = vmul.f32 %v4063, %v4831
        %v5088 = vmul.f32 %v4064, %v4832
        %v5089 = vmul.f32 %v4065, %v4833
        %v5090 = vmul.f32 %v4066, %v4834
        %v5091 = vmul.f32 %v4067, %v4835
        %v5092 = vmul.f32 %v4068, %v4836
        %v5093 = vmul.f32 %v4069, %v4837
        %v5094 = vmul.f32 %v4070, %v4838
        %v5095 = vmul.f32 %v4071, %v4839
        %v5096 = vmul.f32 %v4072, %v4840
        %v5097 = vmul.f32 %v4073, %v4841
        %v5098 = vmul.f32 %v4074, %v4842
        %v5099 = vmul.f32 %v4075, %v4843
        %v5100 = vmul.f32 %v4076, %v4844
        %v5101 = vmul.f32 %v4077, %v4845
        %v5102 = vmul.f32 %v4078, %v4846
        %v5103 = vmul.f32 %v4079, %v4847
        %v5104 = vmul.f32 %v4080, %v4848
        %v5105 = vmul.f32 %v4081, %v4849
        %v5106 = vmul.f32 %v4082, %v4850
        %v5107 = vmul.f32 %v4083, %v4851
        %v5108 = vmul.f32 %v4084, %v4852
        %v5109 = vmul.f32 %v4085, %v4853
        %v5110 = vmul.f32 %v4086, %v4854
        %v5111 = vmul.f32 %v4087, %v4855
        %v5112 = vmul.f32 %v4088, %v4856
        %v5113 = vmul.f32 %v4089, %v4857
        %v5114 = vmul.f32 %v4090, %v4858
        %v5115 = vmul.f32 %v4091, %v4859
        %v5116 = vmul.f32 %v4092, %v4860
        %v5117 = vmul.f32 %v4093, %v4861
        %v5118 = vmul.f32 %v4094, %v4862
        %v5119 = vmul.f32 %v4095, %v4863
        %v5120 = vmul.f32 %v4096, %v4864
        %v5121 = vmul.f32 %v4097, %v4865
        %v5122 = vmul.f32 %v4098, %v4866
        %v5123 = vmul.f32 %v4099, %v4867
        %v5124 = vmul.f32 %v4100, %v4868
        %v5125 = vmul.f32 %v4101, %v4869
        %v5126 = vmul.f32 %v4102, %v4870
        %v5127 = vmul.f32 %v4103, %v4871
        %v5128 = vmul.f32 %v4104, %v4872
        %v5129 = vmul.f32 %v4105, %v4873
        %v5130 = vmul.f32 %v4106, %v4874
        %v5131 = vmul.f32 %v4107, %v4875
        %v5132 = vmul.f32 %v4108, %v4876
        %v5133 = vmul.f32 %v4109, %v4877
        %v5134 = vmul.f32 %v4110, %v4878
        %v5135 = vmul.f32 %v4111, %v4879
        %v5136 = vmul.f32 %v4112, %v4880
        %v5137 = vmul.f32 %v4113, %v4881
        %v5138 = vmul.f32 %v4114, %v4882
        %v5139 = vmul.f32 %v4115, %v4883
        %v5140 = vmul.f32 %v4116, %v4884
        %v5141 = vmul.f32 %v4117, %v4885
        %v5142 = vmul.f32 %v4118, %v4886
        %v5143 = vmul.f32 %v4119, %v4887
        %v5144 = vmul.f32 %v4120, %v4888
        %v5145 = vmul.f32 %v4121, %v4889
        %v5146 = vmul.f32 %v4122, %v4890
        %v5147 = vmul.f32 %v4123, %v4891
        %v5148 = vmul.f32 %v4124, %v4892
        %v5149 = vmul.f32 %v4125, %v4893
        %v5150 = vmul.f32 %v4126, %v4894
        %v5151 = vmul.f32 %v4127, %v4895
        %v5152 = vmul.f32 %v4128, %v4896
        %v5153 = vmul.f32 %v4129, %v4897
        %v5154 = vmul.f32 %v4130, %v4898
        %v5155 = vmul.f32 %v4131, %v4899
        %v5156 = vmul.f32 %v4132, %v4900
        %v5157 = vmul.f32 %v4133, %v4901
        %v5158 = vmul.f32 %v4134, %v4902
        %v5159 = vmul.f32 %v4135, %v4903
        %v5160 = vmul.f32 %v4136, %v4904
        %v5161 = vmul.f32 %v4137, %v4905
        %v5162 = vmul.f32 %v4138, %v4906
        %v5163 = vmul.f32 %v4139, %v4907
        %v5164 = vmul.f32 %v4140, %v4908
        %v5165 = vmul.f32 %v4141, %v4909
        %v5166 = vmul.f32 %v4142, %v4910
        %v5167 = vmul.f32 %v4143, %v4911
        %v5168 = vmul.f32 %v4144, %v4912
        %v5169 = vmul.f32 %v4145, %v4913
        %v5170 = vmul.f32 %v4146, %v4914
        %v5171 = vmul.f32 %v4147, %v4915
        %v5172 = vmul.f32 %v4148, %v4916
        %v5173 = vmul.f32 %v4149, %v4917
        %v5174 = vmul.f32 %v4150, %v4918
        %v5175 = vmul.f32 %v4151, %v4919
        %v5176 = vmul.f32 %v4152, %v4920
        %v5177 = vmul.f32 %v4153, %v4921
        %v5178 = vmul.f32 %v4154, %v4922
        %v5179 = vmul.f32 %v4155, %v4923
        %v5180 = vmul.f32 %v4156, %v4924
        %v5181 = vmul.f32 %v4157, %v4925
        %v5182 = vmul.f32 %v4158, %v4926
        %v5183 = vmul.f32 %v4159, %v4927
        %v5184 = vmul.f32 %v4160, %v4928
        %v5185 = vmul.f32 %v4161, %v4929
        %v5186 = vmul.f32 %v4162, %v4930
        %v5187 = vmul.f32 %v4163, %v4931
        %v5188 = vmul.f32 %v4164, %v4932
        %v5189 = vmul.f32 %v4165, %v4933
        %v5190 = vmul.f32 %v4166, %v4934
        %v5191 = vmul.f32 %v4167, %v4935
        %v5192 = vmul.f32 %v4168, %v4936
        %v5193 = vmul.f32 %v4169, %v4937
        %v5194 = vmul.f32 %v4170, %v4938
        %v5195 = vmul.f32 %v4171, %v4939
        %v5196 = vmul.f32 %v4172, %v4940
        %v5197 = vmul.f32 %v4173, %v4941
        %v5198 = vmul.f32 %v4174, %v4942
        %v5199 = vmul.f32 %v4175, %v4943
        %v5200 = vmul.f32 %v4176, %v4944
        %v5201 = vmul.f32 %v4177, %v4945
        %v5202 = vmul.f32 %v4178, %v4946
        %v5203 = vmul.f32 %v4179, %v4947
        %v5204 = vmul.f32 %v4180, %v4948
        %v5205 = vmul.f32 %v4181, %v4949
        %v5206 = vmul.f32 %v4182, %v4950
        %v5207 = vmul.f32 %v4183, %v4951
        %v5208 = vmul.f32 %v4184, %v4952
        %v5209 = vmul.f32 %v4185, %v4953
        %v5210 = vmul.f32 %v4186, %v4954
        %v5211 = vmul.f32 %v4187, %v4955
        %v5212 = vmul.f32 %v4188, %v4956
        %v5213 = vmul.f32 %v4189, %v4957
        %v5214 = vmul.f32 %v4190, %v4958
        %v5215 = vmul.f32 %v4191, %v4959
        %v5216 = vmul.f32 %v4192, %v4960
        %v5217 = vmul.f32 %v4193, %v4961
        %v5218 = vmul.f32 %v4194, %v4962
        %v5219 = vmul.f32 %v4195, %v4963
        %v5220 = vmul.f32 %v4196, %v4964
        %v5221 = vmul.f32 %v4197, %v4965
        %v5222 = vmul.f32 %v4198, %v4966
        %v5223 = vmul.f32 %v4199, %v4967
        %v5224 = vmul.f32 %v4200, %v4968
        %v5225 = vmul.f32 %v4201, %v4969
        %v5226 = vmul.f32 %v4202, %v4970
        %v5227 = vmul.f32 %v4203, %v4971
        %v5228 = vmul.f32 %v4204, %v4972
        %v5229 = vmul.f32 %v4205, %v4973
        %v5230 = vmul.f32 %v4206, %v4974
        %v5231 = vmul.f32 %v4207, %v4975
        %v5232 = vmul.f32 %v4208, %v4976
        %v5233 = vmul.f32 %v4209, %v4977
        %v5234 = vmul.f32 %v4210, %v4978
        %v5235 = vmul.f32 %v4211, %v4979
        %v5236 = vmul.f32 %v4212, %v4980
        %v5237 = vmul.f32 %v4213, %v4981
        %v5238 = vmul.f32 %v4214, %v4982
        %v5239 = vmul.f32 %v4215, %v4983
        %v5240 = vmul.f32 %v4216, %v4984
        %v5241 = vmul.f32 %v4217, %v4985
        %v5242 = vmul.f32 %v4218, %v4986
        %v5243 = vmul.f32 %v4219, %v4987
        %v5244 = vmul.f32 %v4220, %v4988
        %v5245 = vmul.f32 %v4221, %v4989
        %v5246 = vmul.f32 %v4222, %v4990
        %v5247 = vmul.f32 %v4223, %v4991
        %v5248 = vmul.f32 %v4224, %v4992
        %v5249 = vmul.f32 %v4225, %v4993
        %v5250 = vmul.f32 %v4226, %v4994
        %v5251 = vmul.f32 %v4227, %v4995
        %v5252 = vmul.f32 %v4228, %v4996
        %v5253 = vmul.f32 %v4229, %v4997
        %v5254 = vmul.f32 %v4230, %v4998
        %v5255 = vmul.f32 %v4231, %v4999
        %v5256 = vmul.f32 %v4232, %v5000
        %v5257 = vmul.f32 %v4233, %v5001
        %v5258 = vmul.f32 %v4234, %v5002
        %v5259 = vmul.f32 %v4235, %v5003
        %v5260 = vmul.f32 %v4236, %v5004
        %v5261 = vmul.f32 %v4237, %v5005
        %v5262 = vmul.f32 %v4238, %v5006
        %v5263 = vmul.f32 %v4239, %v5007
        %v5264 = vmul.f32 %v4240, %v5008
        %v5265 = vmul.f32 %v4241, %v5009
        %v5266 = vmul.f32 %v4242, %v5010
        %v5267 = vmul.f32 %v4243, %v5011
        %v5268 = vmul.f32 %v4244, %v5012
        %v5269 = vmul.f32 %v4245, %v5013
        %v5270 = vmul.f32 %v4246, %v5014
        %v5271 = vmul.f32 %v4247, %v5015
        %v5272 = vmul.f32 %v4248, %v5016
        %v5273 = vmul.f32 %v4249, %v5017
        %v5274 = vmul.f32 %v4250, %v5018
        %v5275 = vmul.f32 %v4251, %v5019
        %v5276 = vmul.f32 %v4252, %v5020
        %v5277 = vmul.f32 %v4253, %v5021
        %v5278 = vmul.f32 %v4254, %v5022
        %v5279 = vmul.f32 %v4255, %v5023
        %v5280 = vmul.f32 %v4256, %v5024
        %v5281 = vmul.f32 %v4257, %v5025
        %v5282 = vmul.f32 %v4258, %v5026
        %v5283 = vmul.f32 %v4259, %v5027
        %v5284 = vmul.f32 %v4260, %v5028
        %v5285 = vmul.f32 %v4261, %v5029
        %v5286 = vmul.f32 %v4262, %v5030
        %v5287 = vmul.f32 %v4263, %v5031
        %v5288 = vmul.f32 %v4264, %v5032
        %v5289 = vmul.f32 %v4265, %v5033
        %v5290 = vmul.f32 %v4266, %v5034
        %v5291 = vmul.f32 %v4267, %v5035
        %v5292 = vmul.f32 %v4268, %v5036
        %v5293 = vmul.f32 %v4269, %v5037
        %v5294 = vmul.f32 %v4270, %v5038
        %v5295 = vmul.f32 %v4271, %v5039
        %v5296 = vmul.f32 %v4272, %v5040
        %v5297 = vmul.f32 %v4273, %v5041
        %v5298 = vmul.f32 %v4274, %v5042
        %v5299 = vmul.f32 %v4275, %v5043
        %v5300 = vmul.f32 %v4276, %v5044
        %v5301 = vmul.f32 %v4277, %v5045
        %v5302 = vmul.f32 %v4278, %v5046
        %v5303 = vmul.f32 %v4279, %v5047
        %v5304 = vmul.f32 %v4280, %v5048
        %v5305 = vmul.f32 %v4281, %v5049
        %v5306 = vmul.f32 %v4282, %v5050
        %v5307 = vmul.f32 %v4283, %v5051
        %v5308 = vmul.f32 %v4284, %v5052
        %v5309 = vmul.f32 %v4285, %v5053
        %v5310 = vmul.f32 %v4286, %v5054
        %v5311 = vmul.f32 %v4287, %v5055
        %v5312 = vmul.f32 %v4288, %v5056
        %v5313 = vmul.f32 %v4289, %v5057
        %v5314 = vmul.f32 %v4290, %v5058
        %v5315 = vmul.f32 %v4291, %v5059
        %v5316 = vmul.f32 %v4292, %v5060
        %v5317 = vmul.f32 %v4293, %v5061
        %v5318 = vmul.f32 %v4294, %v5062
        %v5319 = vmul.f32 %v4295, %v5063
        %v5320 = vmul.f32 %v4296, %v5064
        %v5321 = vmul.f32 %v4297, %v5065
        %v5322 = vmul.f32 %v4298, %v5066
        %v5323 = vmul.f32 %v4299, %v5067
        %v5324 = vmul.f32 %v4300, %v5068
        %v5325 = vmul.f32 %v4301, %v5069
        %v5326 = vmul.f32 %v4302, %v5070
        %v5327 = vmul.f32 %v4303, %v5071
        %v5328 = vmul.f32 %v4304, %v5072
        %v5329 = vmul.f32 %v4305, %v5073
        %v5330 = vmul.f32 %v4306, %v5074
        %v5331 = vmul.f32 %v4307, %v5075
        %v5332 = vmul.f32 %v4308, %v5076
        %v5333 = vmul.f32 %v4309, %v5077
        %v5334 = vmul.f32 %v4310, %v5078
        %v5335 = vmul.f32 %v4311, %v5079
        %v5336 = vmul.f32 %v4312, %v5080
        %v5337 = vmul.f32 %v4313, %v5081
        %v5338 = vmul.f32 %v4314, %v5082
        %v5339 = vmul.f32 %v4315, %v5083
        %v5340 = vmul.f32 %v4316, %v5084
        %v5341 = vpack.c.bf16 %v5089, %v5085
        %v5342 = vpack.c.bf16 %v5090, %v5086
        %v5343 = vpack.c.bf16 %v5091, %v5087
        %v5344 = vpack.c.bf16 %v5092, %v5088
        %v5345 = vpack.c.bf16 %v5097, %v5093
        %v5346 = vpack.c.bf16 %v5098, %v5094
        %v5347 = vpack.c.bf16 %v5099, %v5095
        %v5348 = vpack.c.bf16 %v5100, %v5096
        %v5349 = vpack.c.bf16 %v5105, %v5101
        %v5350 = vpack.c.bf16 %v5106, %v5102
        %v5351 = vpack.c.bf16 %v5107, %v5103
        %v5352 = vpack.c.bf16 %v5108, %v5104
        %v5353 = vpack.c.bf16 %v5113, %v5109
        %v5354 = vpack.c.bf16 %v5114, %v5110
        %v5355 = vpack.c.bf16 %v5115, %v5111
        %v5356 = vpack.c.bf16 %v5116, %v5112
        %v5357 = vpack.c.bf16 %v5121, %v5117
        %v5358 = vpack.c.bf16 %v5122, %v5118
        %v5359 = vpack.c.bf16 %v5123, %v5119
        %v5360 = vpack.c.bf16 %v5124, %v5120
        %v5361 = vpack.c.bf16 %v5129, %v5125
        %v5362 = vpack.c.bf16 %v5130, %v5126
        %v5363 = vpack.c.bf16 %v5131, %v5127
        %v5364 = vpack.c.bf16 %v5132, %v5128
        %v5365 = vpack.c.bf16 %v5137, %v5133
        %v5366 = vpack.c.bf16 %v5138, %v5134
        %v5367 = vpack.c.bf16 %v5139, %v5135
        %v5368 = vpack.c.bf16 %v5140, %v5136
        %v5369 = vpack.c.bf16 %v5145, %v5141
        %v5370 = vpack.c.bf16 %v5146, %v5142
        %v5371 = vpack.c.bf16 %v5147, %v5143
        %v5372 = vpack.c.bf16 %v5148, %v5144
        %v5373 = vpack.c.bf16 %v5153, %v5149
        %v5374 = vpack.c.bf16 %v5154, %v5150
        %v5375 = vpack.c.bf16 %v5155, %v5151
        %v5376 = vpack.c.bf16 %v5156, %v5152
        %v5377 = vpack.c.bf16 %v5161, %v5157
        %v5378 = vpack.c.bf16 %v5162, %v5158
        %v5379 = vpack.c.bf16 %v5163, %v5159
        %v5380 = vpack.c.bf16 %v5164, %v5160
        %v5381 = vpack.c.bf16 %v5169, %v5165
        %v5382 = vpack.c.bf16 %v5170, %v5166
        %v5383 = vpack.c.bf16 %v5171, %v5167
        %v5384 = vpack.c.bf16 %v5172, %v5168
        %v5385 = vpack.c.bf16 %v5177, %v5173
        %v5386 = vpack.c.bf16 %v5178, %v5174
        %v5387 = vpack.c.bf16 %v5179, %v5175
        %v5388 = vpack.c.bf16 %v5180, %v5176
        %v5389 = vpack.c.bf16 %v5185, %v5181
        %v5390 = vpack.c.bf16 %v5186, %v5182
        %v5391 = vpack.c.bf16 %v5187, %v5183
        %v5392 = vpack.c.bf16 %v5188, %v5184
        %v5393 = vpack.c.bf16 %v5193, %v5189
        %v5394 = vpack.c.bf16 %v5194, %v5190
        %v5395 = vpack.c.bf16 %v5195, %v5191
        %v5396 = vpack.c.bf16 %v5196, %v5192
        %v5397 = vpack.c.bf16 %v5201, %v5197
        %v5398 = vpack.c.bf16 %v5202, %v5198
        %v5399 = vpack.c.bf16 %v5203, %v5199
        %v5400 = vpack.c.bf16 %v5204, %v5200
        %v5401 = vpack.c.bf16 %v5209, %v5205
        %v5402 = vpack.c.bf16 %v5210, %v5206
        %v5403 = vpack.c.bf16 %v5211, %v5207
        %v5404 = vpack.c.bf16 %v5212, %v5208
        %v5405 = vpack.c.bf16 %v5217, %v5213
        %v5406 = vpack.c.bf16 %v5218, %v5214
        %v5407 = vpack.c.bf16 %v5219, %v5215
        %v5408 = vpack.c.bf16 %v5220, %v5216
        %v5409 = vpack.c.bf16 %v5225, %v5221
        %v5410 = vpack.c.bf16 %v5226, %v5222
        %v5411 = vpack.c.bf16 %v5227, %v5223
        %v5412 = vpack.c.bf16 %v5228, %v5224
        %v5413 = vpack.c.bf16 %v5233, %v5229
        %v5414 = vpack.c.bf16 %v5234, %v5230
        %v5415 = vpack.c.bf16 %v5235, %v5231
        %v5416 = vpack.c.bf16 %v5236, %v5232
        %v5417 = vpack.c.bf16 %v5241, %v5237
        %v5418 = vpack.c.bf16 %v5242, %v5238
        %v5419 = vpack.c.bf16 %v5243, %v5239
        %v5420 = vpack.c.bf16 %v5244, %v5240
        %v5421 = vpack.c.bf16 %v5249, %v5245
        %v5422 = vpack.c.bf16 %v5250, %v5246
        %v5423 = vpack.c.bf16 %v5251, %v5247
        %v5424 = vpack.c.bf16 %v5252, %v5248
        %v5425 = vpack.c.bf16 %v5257, %v5253
        %v5426 = vpack.c.bf16 %v5258, %v5254
        %v5427 = vpack.c.bf16 %v5259, %v5255
        %v5428 = vpack.c.bf16 %v5260, %v5256
        %v5429 = vpack.c.bf16 %v5265, %v5261
        %v5430 = vpack.c.bf16 %v5266, %v5262
        %v5431 = vpack.c.bf16 %v5267, %v5263
        %v5432 = vpack.c.bf16 %v5268, %v5264
        %v5433 = vpack.c.bf16 %v5273, %v5269
        %v5434 = vpack.c.bf16 %v5274, %v5270
        %v5435 = vpack.c.bf16 %v5275, %v5271
        %v5436 = vpack.c.bf16 %v5276, %v5272
        %v5437 = vpack.c.bf16 %v5281, %v5277
        %v5438 = vpack.c.bf16 %v5282, %v5278
        %v5439 = vpack.c.bf16 %v5283, %v5279
        %v5440 = vpack.c.bf16 %v5284, %v5280
        %v5441 = vpack.c.bf16 %v5289, %v5285
        %v5442 = vpack.c.bf16 %v5290, %v5286
        %v5443 = vpack.c.bf16 %v5291, %v5287
        %v5444 = vpack.c.bf16 %v5292, %v5288
        %v5445 = vpack.c.bf16 %v5297, %v5293
        %v5446 = vpack.c.bf16 %v5298, %v5294
        %v5447 = vpack.c.bf16 %v5299, %v5295
        %v5448 = vpack.c.bf16 %v5300, %v5296
        %v5449 = vpack.c.bf16 %v5305, %v5301
        %v5450 = vpack.c.bf16 %v5306, %v5302
        %v5451 = vpack.c.bf16 %v5307, %v5303
        %v5452 = vpack.c.bf16 %v5308, %v5304
        %v5453 = vpack.c.bf16 %v5313, %v5309
        %v5454 = vpack.c.bf16 %v5314, %v5310
        %v5455 = vpack.c.bf16 %v5315, %v5311
        %v5456 = vpack.c.bf16 %v5316, %v5312
        %v5457 = vpack.c.bf16 %v5321, %v5317
        %v5458 = vpack.c.bf16 %v5322, %v5318
        %v5459 = vpack.c.bf16 %v5323, %v5319
        %v5460 = vpack.c.bf16 %v5324, %v5320
        %v5461 = vpack.c.bf16 %v5329, %v5325
        %v5462 = vpack.c.bf16 %v5330, %v5326
        %v5463 = vpack.c.bf16 %v5331, %v5327
        %v5464 = vpack.c.bf16 %v5332, %v5328
        %v5465 = vpack.c.bf16 %v5337, %v5333
        %v5466 = vpack.c.bf16 %v5338, %v5334
        %v5467 = vpack.c.bf16 %v5339, %v5335
        %v5468 = vpack.c.bf16 %v5340, %v5336
        %v5469 = vld [vmem:[%s8] sm:$0xf]
        %v5470 = vld [vmem:[%s8 + $0x4] sm:$0xf]
        %v5471 = vld [vmem:[%s8 + $0x8] sm:$0xf]
        %v5472 = vld [vmem:[%s8 + $0xc] sm:$0xf]
        %v5473 = vld [vmem:[%s8 + $0x10] sm:$0xf]
        %v5474 = vld [vmem:[%s8 + $0x14] sm:$0xf]
        %v5475 = vld [vmem:[%s8 + $0x18] sm:$0xf]
        %v5476 = vld [vmem:[%s8 + $0x1c] sm:$0xf]
        %v5477 = vld [vmem:[%s8 + $0x20] sm:$0xf]
        %v5478 = vld [vmem:[%s8 + $0x24] sm:$0xf]
        %v5479 = vld [vmem:[%s8 + $0x28] sm:$0xf]
        %v5480 = vld [vmem:[%s8 + $0x2c] sm:$0xf]
        %v5481 = vld [vmem:[%s8 + $0x30] sm:$0xf]
        %v5482 = vld [vmem:[%s8 + $0x34] sm:$0xf]
        %v5483 = vld [vmem:[%s8 + $0x38] sm:$0xf]
        %v5484 = vld [vmem:[%s8 + $0x3c] sm:$0xf]
        %v5485 = vld [vmem:[%s8 + $0x40] sm:$0xf]
        %v5486 = vld [vmem:[%s8 + $0x44] sm:$0xf]
        %v5487 = vld [vmem:[%s8 + $0x48] sm:$0xf]
        %v5488 = vld [vmem:[%s8 + $0x4c] sm:$0xf]
        %v5489 = vld [vmem:[%s8 + $0x50] sm:$0xf]
        %v5490 = vld [vmem:[%s8 + $0x54] sm:$0xf]
        %v5491 = vld [vmem:[%s8 + $0x58] sm:$0xf]
        %v5492 = vld [vmem:[%s8 + $0x5c] sm:$0xf]
        %v5493 = vld [vmem:[%s8 + $0x60] sm:$0xf]
        %v5494 = vld [vmem:[%s8 + $0x64] sm:$0xf]
        %v5495 = vld [vmem:[%s8 + $0x68] sm:$0xf]
        %v5496 = vld [vmem:[%s8 + $0x6c] sm:$0xf]
        %v5497 = vld [vmem:[%s8 + $0x70] sm:$0xf]
        %v5498 = vld [vmem:[%s8 + $0x74] sm:$0xf]
        %v5499 = vld [vmem:[%s8 + $0x78] sm:$0xf]
        %v5500 = vld [vmem:[%s8 + $0x7c] sm:$0xf]
        %v5501 = vld [vmem:[%s8 + $0x80] sm:$0xf]
        %v5502 = vld [vmem:[%s8 + $0x84] sm:$0xf]
        %v5503 = vld [vmem:[%s8 + $0x88] sm:$0xf]
        %v5504 = vld [vmem:[%s8 + $0x8c] sm:$0xf]
        %v5505 = vld [vmem:[%s8 + $0x90] sm:$0xf]
        %v5506 = vld [vmem:[%s8 + $0x94] sm:$0xf]
        %v5507 = vld [vmem:[%s8 + $0x98] sm:$0xf]
        %v5508 = vld [vmem:[%s8 + $0x9c] sm:$0xf]
        %v5509 = vld [vmem:[%s8 + $0xa0] sm:$0xf]
        %v5510 = vld [vmem:[%s8 + $0xa4] sm:$0xf]
        %v5511 = vld [vmem:[%s8 + $0xa8] sm:$0xf]
        %v5512 = vld [vmem:[%s8 + $0xac] sm:$0xf]
        %v5513 = vld [vmem:[%s8 + $0xb0] sm:$0xf]
        %v5514 = vld [vmem:[%s8 + $0xb4] sm:$0xf]
        %v5515 = vld [vmem:[%s8 + $0xb8] sm:$0xf]
        %v5516 = vld [vmem:[%s8 + $0xbc] sm:$0xf]
        %v5517 = vld [vmem:[%s8 + $0xc0] sm:$0xf]
        %v5518 = vld [vmem:[%s8 + $0xc4] sm:$0xf]
        %v5519 = vld [vmem:[%s8 + $0xc8] sm:$0xf]
        %v5520 = vld [vmem:[%s8 + $0xcc] sm:$0xf]
        %v5521 = vld [vmem:[%s8 + $0xd0] sm:$0xf]
        %v5522 = vld [vmem:[%s8 + $0xd4] sm:$0xf]
        %v5523 = vld [vmem:[%s8 + $0xd8] sm:$0xf]
        %v5524 = vld [vmem:[%s8 + $0xdc] sm:$0xf]
        %v5525 = vld [vmem:[%s8 + $0xe0] sm:$0xf]
        %v5526 = vld [vmem:[%s8 + $0xe4] sm:$0xf]
        %v5527 = vld [vmem:[%s8 + $0xe8] sm:$0xf]
        %v5528 = vld [vmem:[%s8 + $0xec] sm:$0xf]
        %v5529 = vld [vmem:[%s8 + $0xf0] sm:$0xf]
        %v5530 = vld [vmem:[%s8 + $0xf4] sm:$0xf]
        %v5531 = vld [vmem:[%s8 + $0xf8] sm:$0xf]
        %v5532 = vld [vmem:[%s8 + $0xfc] sm:$0xf]
        %v5533 = vld [vmem:[%s9] sm:$0x1]
        %v5535 = vlaneseq
        %v5536 = vshrl.u32 %v5535, 7
        %v5537 = vsub.s32 0, %v5536
        %v5538 = vrot.slane %v5533, %v5537
        %v5604 = vunpack.c.l.b16 %v5469
        %v5605 = vunpack.c.l.b16 %v5470
        %v5606 = vunpack.c.l.b16 %v5471
        %v5607 = vunpack.c.l.b16 %v5472
        %v5608 = vunpack.c.l.b16 %v5473
        %v5609 = vunpack.c.l.b16 %v5474
        %v5610 = vunpack.c.l.b16 %v5475
        %v5611 = vunpack.c.l.b16 %v5476
        %v5612 = vunpack.c.l.b16 %v5477
        %v5613 = vunpack.c.l.b16 %v5478
        %v5614 = vunpack.c.l.b16 %v5479
        %v5615 = vunpack.c.l.b16 %v5480
        %v5616 = vunpack.c.l.b16 %v5481
        %v5617 = vunpack.c.l.b16 %v5482
        %v5618 = vunpack.c.l.b16 %v5483
        %v5619 = vunpack.c.l.b16 %v5484
        %v5620 = vunpack.c.l.b16 %v5485
        %v5621 = vunpack.c.l.b16 %v5486
        %v5622 = vunpack.c.l.b16 %v5487
        %v5623 = vunpack.c.l.b16 %v5488
        %v5624 = vunpack.c.l.b16 %v5489
        %v5625 = vunpack.c.l.b16 %v5490
        %v5626 = vunpack.c.l.b16 %v5491
        %v5627 = vunpack.c.l.b16 %v5492
        %v5628 = vunpack.c.l.b16 %v5493
        %v5629 = vunpack.c.l.b16 %v5494
        %v5630 = vunpack.c.l.b16 %v5495
        %v5631 = vunpack.c.l.b16 %v5496
        %v5632 = vunpack.c.l.b16 %v5497
        %v5633 = vunpack.c.l.b16 %v5498
        %v5634 = vunpack.c.l.b16 %v5499
        %v5635 = vunpack.c.l.b16 %v5500
        %v5636 = vunpack.c.l.b16 %v5501
        %v5637 = vunpack.c.l.b16 %v5502
        %v5638 = vunpack.c.l.b16 %v5503
        %v5639 = vunpack.c.l.b16 %v5504
        %v5640 = vunpack.c.l.b16 %v5505
        %v5641 = vunpack.c.l.b16 %v5506
        %v5642 = vunpack.c.l.b16 %v5507
        %v5643 = vunpack.c.l.b16 %v5508
        %v5644 = vunpack.c.l.b16 %v5509
        %v5645 = vunpack.c.l.b16 %v5510
        %v5646 = vunpack.c.l.b16 %v5511
        %v5647 = vunpack.c.l.b16 %v5512
        %v5648 = vunpack.c.l.b16 %v5513
        %v5649 = vunpack.c.l.b16 %v5514
        %v5650 = vunpack.c.l.b16 %v5515
        %v5651 = vunpack.c.l.b16 %v5516
        %v5652 = vunpack.c.l.b16 %v5517
        %v5653 = vunpack.c.l.b16 %v5518
        %v5654 = vunpack.c.l.b16 %v5519
        %v5655 = vunpack.c.l.b16 %v5520
        %v5656 = vunpack.c.l.b16 %v5521
        %v5657 = vunpack.c.l.b16 %v5522
        %v5658 = vunpack.c.l.b16 %v5523
        %v5659 = vunpack.c.l.b16 %v5524
        %v5660 = vunpack.c.l.b16 %v5525
        %v5661 = vunpack.c.l.b16 %v5526
        %v5662 = vunpack.c.l.b16 %v5527
        %v5663 = vunpack.c.l.b16 %v5528
        %v5664 = vunpack.c.l.b16 %v5529
        %v5665 = vunpack.c.l.b16 %v5530
        %v5666 = vunpack.c.l.b16 %v5531
        %v5667 = vunpack.c.l.b16 %v5532
        %v5668 = vpack.c.b16 %v5605, %v5604
        %v5669 = vpack.c.b16 %v5607, %v5606
        %v5670 = vpack.c.b16 %v5609, %v5608
        %v5671 = vpack.c.b16 %v5611, %v5610
        %v5672 = vpack.c.b16 %v5613, %v5612
        %v5673 = vpack.c.b16 %v5615, %v5614
        %v5674 = vpack.c.b16 %v5617, %v5616
        %v5675 = vpack.c.b16 %v5619, %v5618
        %v5676 = vpack.c.b16 %v5621, %v5620
        %v5677 = vpack.c.b16 %v5623, %v5622
        %v5678 = vpack.c.b16 %v5625, %v5624
        %v5679 = vpack.c.b16 %v5627, %v5626
        %v5680 = vpack.c.b16 %v5629, %v5628
        %v5681 = vpack.c.b16 %v5631, %v5630
        %v5682 = vpack.c.b16 %v5633, %v5632
        %v5683 = vpack.c.b16 %v5635, %v5634
        %v5684 = vpack.c.b16 %v5637, %v5636
        %v5685 = vpack.c.b16 %v5639, %v5638
        %v5686 = vpack.c.b16 %v5641, %v5640
        %v5687 = vpack.c.b16 %v5643, %v5642
        %v5688 = vpack.c.b16 %v5645, %v5644
        %v5689 = vpack.c.b16 %v5647, %v5646
        %v5690 = vpack.c.b16 %v5649, %v5648
        %v5691 = vpack.c.b16 %v5651, %v5650
        %v5692 = vpack.c.b16 %v5653, %v5652
        %v5693 = vpack.c.b16 %v5655, %v5654
        %v5694 = vpack.c.b16 %v5657, %v5656
        %v5695 = vpack.c.b16 %v5659, %v5658
        %v5696 = vpack.c.b16 %v5661, %v5660
        %v5697 = vpack.c.b16 %v5663, %v5662
        %v5698 = vpack.c.b16 %v5665, %v5664
        %v5699 = vpack.c.b16 %v5667, %v5666
        %5732 = vmatprep.subr.bf16.mxu0 0
        %5733 = vmatpush1.bf16.msra.mxu0 %v5668
        %5734 = vmatprep.subr.bf16.mxu0 0
        %5735 = vmatpush1.bf16.msra.mxu0 %v5669
        %5736 = vmatprep.subr.bf16.mxu0 0
        %5737 = vmatpush1.bf16.msra.mxu0 %v5670
        %5738 = vmatprep.subr.bf16.mxu0 0
        %5739 = vmatpush1.bf16.msra.mxu0 %v5671
        %5740 = vmatprep.subr.bf16.mxu0 0
        %5741 = vmatpush1.bf16.msra.mxu0 %v5672
        %5742 = vmatprep.subr.bf16.mxu0 0
        %5743 = vmatpush1.bf16.msra.mxu0 %v5673
        %5744 = vmatprep.subr.bf16.mxu0 0
        %5745 = vmatpush1.bf16.msra.mxu0 %v5674
        %5746 = vmatprep.subr.bf16.mxu0 0
        %5747 = vmatpush1.bf16.msra.mxu0 %v5675
        %5748 = vmatprep.subr.bf16.mxu0 0
        %5749 = vmatpush1.bf16.msra.mxu0 %v5676
        %5750 = vmatprep.subr.bf16.mxu0 0
        %5751 = vmatpush1.bf16.msra.mxu0 %v5677
        %5752 = vmatprep.subr.bf16.mxu0 0
        %5753 = vmatpush1.bf16.msra.mxu0 %v5678
        %5754 = vmatprep.subr.bf16.mxu0 0
        %5755 = vmatpush1.bf16.msra.mxu0 %v5679
        %5756 = vmatprep.subr.bf16.mxu0 0
        %5757 = vmatpush1.bf16.msra.mxu0 %v5680
        %5758 = vmatprep.subr.bf16.mxu0 0
        %5759 = vmatpush1.bf16.msra.mxu0 %v5681
        %5760 = vmatprep.subr.bf16.mxu0 0
        %5761 = vmatpush1.bf16.msra.mxu0 %v5682
        %5762 = vmatprep.subr.bf16.mxu0 0
        %5763 = vmatpush1.bf16.msra.mxu0 %v5683
        %5764 = vmatprep.mubr.bf16.mxu0 %v5342
        %5765 = vmatmul.mubr.bf16.gmra.mrb[0].mxu0 %v5341
        %v5766 = vpop.f32.mrb[0].mxu0
        %v5767 = vadd.f32 %v5538, %v5766
        %v5768 = vpop.f32.mrb[0].mxu0
        %v5769 = vpop.f32.mrb[0].mxu0
        %v5770 = vadd.f32 %v5538, %v5769
        %v5771 = vpop.f32.mrb[0].mxu0
        %5772 = vmatprep.mubr.bf16.mxu0 %v5346
        %5773 = vmatmul.mubr.bf16.gmra.mrb[0].mxu0 %v5345
        %v5774 = vpop.f32.mrb[0].mxu0
        %v5775 = vadd.f32 %v5538, %v5774
        %v5776 = vpop.f32.mrb[0].mxu0
        %v5777 = vpop.f32.mrb[0].mxu0
        %v5778 = vadd.f32 %v5538, %v5777
        %v5779 = vpop.f32.mrb[0].mxu0
        %5780 = vmatprep.mubr.bf16.mxu0 %v5350
        %5781 = vmatmul.mubr.bf16.gmra.mrb[0].mxu0 %v5349
        %v5782 = vpop.f32.mrb[0].mxu0
        %v5783 = vadd.f32 %v5538, %v5782
        %v5784 = vpop.f32.mrb[0].mxu0
        %v5785 = vpop.f32.mrb[0].mxu0
        %v5786 = vadd.f32 %v5538, %v5785
        %v5787 = vpop.f32.mrb[0].mxu0
        %5788 = vmatprep.mubr.bf16.mxu0 %v5354
        %5789 = vmatmul.mubr.bf16.gmra.mrb[0].mxu0 %v5353
        %v5790 = vpop.f32.mrb[0].mxu0
        %v5791 = vadd.f32 %v5538, %v5790
        %v5792 = vpop.f32.mrb[0].mxu0
        %v5793 = vpop.f32.mrb[0].mxu0
        %v5794 = vadd.f32 %v5538, %v5793
        %v5795 = vpop.f32.mrb[0].mxu0
        %5796 = vmatprep.mubr.bf16.mxu0 %v5358
        %5797 = vmatmul.mubr.bf16.gmra.mrb[0].mxu0 %v5357
        %v5798 = vpop.f32.mrb[0].mxu0
        %v5799 = vadd.f32 %v5538, %v5798
        %v5800 = vpop.f32.mrb[0].mxu0
        %v5801 = vpop.f32.mrb[0].mxu0
        %v5802 = vadd.f32 %v5538, %v5801
        %v5803 = vpop.f32.mrb[0].mxu0
        %5804 = vmatprep.mubr.bf16.mxu0 %v5362
        %5805 = vmatmul.mubr.bf16.gmra.mrb[0].mxu0 %v5361
        %v5806 = vpop.f32.mrb[0].mxu0
        %v5807 = vadd.f32 %v5538, %v5806
        %v5808 = vpop.f32.mrb[0].mxu0
        %v5809 = vpop.f32.mrb[0].mxu0
        %v5810 = vadd.f32 %v5538, %v5809
        %v5811 = vpop.f32.mrb[0].mxu0
        %5812 = vmatprep.mubr.bf16.mxu0 %v5366
        %5813 = vmatmul.mubr.bf16.gmra.mrb[0].mxu0 %v5365
        %v5814 = vpop.f32.mrb[0].mxu0
        %v5815 = vadd.f32 %v5538, %v5814
        %v5816 = vpop.f32.mrb[0].mxu0
        %v5817 = vpop.f32.mrb[0].mxu0
        %v5818 = vadd.f32 %v5538, %v5817
        %v5819 = vpop.f32.mrb[0].mxu0
        %5820 = vmatprep.mubr.bf16.mxu0 %v5370
        %5821 = vmatmul.mubr.bf16.gmra.mrb[0].mxu0 %v5369
        %v5822 = vpop.f32.mrb[0].mxu0
        %v5823 = vadd.f32 %v5538, %v5822
        %v5824 = vpop.f32.mrb[0].mxu0
        %v5825 = vpop.f32.mrb[0].mxu0
        %v5826 = vadd.f32 %v5538, %v5825
        %v5827 = vpop.f32.mrb[0].mxu0
        %5828 = vmatprep.mubr.bf16.mxu0 %v5374
        %5829 = vmatmul.mubr.bf16.gmra.mrb[0].mxu0 %v5373
        %v5830 = vpop.f32.mrb[0].mxu0
        %v5831 = vadd.f32 %v5538, %v5830
        %v5832 = vpop.f32.mrb[0].mxu0
        %v5833 = vpop.f32.mrb[0].mxu0
        %v5834 = vadd.f32 %v5538, %v5833
        %v5835 = vpop.f32.mrb[0].mxu0
        %5836 = vmatprep.mubr.bf16.mxu0 %v5378
        %5837 = vmatmul.mubr.bf16.gmra.mrb[0].mxu0 %v5377
        %v5838 = vpop.f32.mrb[0].mxu0
        %v5839 = vadd.f32 %v5538, %v5838
        %v5840 = vpop.f32.mrb[0].mxu0
        %v5841 = vpop.f32.mrb[0].mxu0
        %v5842 = vadd.f32 %v5538, %v5841
        %v5843 = vpop.f32.mrb[0].mxu0
        %5844 = vmatprep.mubr.bf16.mxu0 %v5382
        %5845 = vmatmul.mubr.bf16.gmra.mrb[0].mxu0 %v5381
        %v5846 = vpop.f32.mrb[0].mxu0
        %v5847 = vadd.f32 %v5538, %v5846
        %v5848 = vpop.f32.mrb[0].mxu0
        %v5849 = vpop.f32.mrb[0].mxu0
        %v5850 = vadd.f32 %v5538, %v5849
        %v5851 = vpop.f32.mrb[0].mxu0
        %5852 = vmatprep.mubr.bf16.mxu0 %v5386
        %5853 = vmatmul.mubr.bf16.gmra.mrb[0].mxu0 %v5385
        %v5854 = vpop.f32.mrb[0].mxu0
        %v5855 = vadd.f32 %v5538, %v5854
        %v5856 = vpop.f32.mrb[0].mxu0
        %v5857 = vpop.f32.mrb[0].mxu0
        %v5858 = vadd.f32 %v5538, %v5857
        %v5859 = vpop.f32.mrb[0].mxu0
        %5860 = vmatprep.mubr.bf16.mxu0 %v5390
        %5861 = vmatmul.mubr.bf16.gmra.mrb[0].mxu0 %v5389
        %v5862 = vpop.f32.mrb[0].mxu0
        %v5863 = vadd.f32 %v5538, %v5862
        %v5864 = vpop.f32.mrb[0].mxu0
        %v5865 = vpop.f32.mrb[0].mxu0
        %v5866 = vadd.f32 %v5538, %v5865
        %v5867 = vpop.f32.mrb[0].mxu0
        %5868 = vmatprep.mubr.bf16.mxu0 %v5394
        %5869 = vmatmul.mubr.bf16.gmra.mrb[0].mxu0 %v5393
        %v5870 = vpop.f32.mrb[0].mxu0
        %v5871 = vadd.f32 %v5538, %v5870
        %v5872 = vpop.f32.mrb[0].mxu0
        %v5873 = vpop.f32.mrb[0].mxu0
        %v5874 = vadd.f32 %v5538, %v5873
        %v5875 = vpop.f32.mrb[0].mxu0
        %5876 = vmatprep.mubr.bf16.mxu0 %v5398
        %5877 = vmatmul.mubr.bf16.gmra.mrb[0].mxu0 %v5397
        %v5878 = vpop.f32.mrb[0].mxu0
        %v5879 = vadd.f32 %v5538, %v5878
        %v5880 = vpop.f32.mrb[0].mxu0
        %v5881 = vpop.f32.mrb[0].mxu0
        %v5882 = vadd.f32 %v5538, %v5881
        %v5883 = vpop.f32.mrb[0].mxu0
        %5884 = vmatprep.mubr.bf16.mxu0 %v5402
        %5885 = vmatmul.mubr.bf16.gmra.mrb[0].mxu0 %v5401
        %v5886 = vpop.f32.mrb[0].mxu0
        %v5887 = vadd.f32 %v5538, %v5886
        %v5888 = vpop.f32.mrb[0].mxu0
        %v5889 = vpop.f32.mrb[0].mxu0
        %v5890 = vadd.f32 %v5538, %v5889
        %v5891 = vpop.f32.mrb[0].mxu0
        %5892 = vmatprep.mubr.bf16.mxu0 %v5406
        %5893 = vmatmul.mubr.bf16.gmra.mrb[0].mxu0 %v5405
        %v5894 = vpop.f32.mrb[0].mxu0
        %v5895 = vadd.f32 %v5538, %v5894
        %v5896 = vpop.f32.mrb[0].mxu0
        %v5897 = vpop.f32.mrb[0].mxu0
        %v5898 = vadd.f32 %v5538, %v5897
        %v5899 = vpop.f32.mrb[0].mxu0
        %5900 = vmatprep.mubr.bf16.mxu0 %v5410
        %5901 = vmatmul.mubr.bf16.gmra.mrb[0].mxu0 %v5409
        %v5902 = vpop.f32.mrb[0].mxu0
        %v5903 = vadd.f32 %v5538, %v5902
        %v5904 = vpop.f32.mrb[0].mxu0
        %v5905 = vpop.f32.mrb[0].mxu0
        %v5906 = vadd.f32 %v5538, %v5905
        %v5907 = vpop.f32.mrb[0].mxu0
        %5908 = vmatprep.mubr.bf16.mxu0 %v5414
        %5909 = vmatmul.mubr.bf16.gmra.mrb[0].mxu0 %v5413
        %v5910 = vpop.f32.mrb[0].mxu0
        %v5911 = vadd.f32 %v5538, %v5910
        %v5912 = vpop.f32.mrb[0].mxu0
        %v5913 = vpop.f32.mrb[0].mxu0
        %v5914 = vadd.f32 %v5538, %v5913
        %v5915 = vpop.f32.mrb[0].mxu0
        %5916 = vmatprep.mubr.bf16.mxu0 %v5418
        %5917 = vmatmul.mubr.bf16.gmra.mrb[0].mxu0 %v5417
        %v5918 = vpop.f32.mrb[0].mxu0
        %v5919 = vadd.f32 %v5538, %v5918
        %v5920 = vpop.f32.mrb[0].mxu0
        %v5921 = vpop.f32.mrb[0].mxu0
        %v5922 = vadd.f32 %v5538, %v5921
        %v5923 = vpop.f32.mrb[0].mxu0
        %5924 = vmatprep.mubr.bf16.mxu0 %v5422
        %5925 = vmatmul.mubr.bf16.gmra.mrb[0].mxu0 %v5421
        %v5926 = vpop.f32.mrb[0].mxu0
        %v5927 = vadd.f32 %v5538, %v5926
        %v5928 = vpop.f32.mrb[0].mxu0
        %v5929 = vpop.f32.mrb[0].mxu0
        %v5930 = vadd.f32 %v5538, %v5929
        %v5931 = vpop.f32.mrb[0].mxu0
        %5932 = vmatprep.mubr.bf16.mxu0 %v5426
        %5933 = vmatmul.mubr.bf16.gmra.mrb[0].mxu0 %v5425
        %v5934 = vpop.f32.mrb[0].mxu0
        %v5935 = vadd.f32 %v5538, %v5934
        %v5936 = vpop.f32.mrb[0].mxu0
        %v5937 = vpop.f32.mrb[0].mxu0
        %v5938 = vadd.f32 %v5538, %v5937
        %v5939 = vpop.f32.mrb[0].mxu0
        %5940 = vmatprep.mubr.bf16.mxu0 %v5430
        %5941 = vmatmul.mubr.bf16.gmra.mrb[0].mxu0 %v5429
        %v5942 = vpop.f32.mrb[0].mxu0
        %v5943 = vadd.f32 %v5538, %v5942
        %v5944 = vpop.f32.mrb[0].mxu0
        %v5945 = vpop.f32.mrb[0].mxu0
        %v5946 = vadd.f32 %v5538, %v5945
        %v5947 = vpop.f32.mrb[0].mxu0
        %5948 = vmatprep.mubr.bf16.mxu0 %v5434
        %5949 = vmatmul.mubr.bf16.gmra.mrb[0].mxu0 %v5433
        %v5950 = vpop.f32.mrb[0].mxu0
        %v5951 = vadd.f32 %v5538, %v5950
        %v5952 = vpop.f32.mrb[0].mxu0
        %v5953 = vpop.f32.mrb[0].mxu0
        %v5954 = vadd.f32 %v5538, %v5953
        %v5955 = vpop.f32.mrb[0].mxu0
        %5956 = vmatprep.mubr.bf16.mxu0 %v5438
        %5957 = vmatmul.mubr.bf16.gmra.mrb[0].mxu0 %v5437
        %v5958 = vpop.f32.mrb[0].mxu0
        %v5959 = vadd.f32 %v5538, %v5958
        %v5960 = vpop.f32.mrb[0].mxu0
        %v5961 = vpop.f32.mrb[0].mxu0
        %v5962 = vadd.f32 %v5538, %v5961
        %v5963 = vpop.f32.mrb[0].mxu0
        %5964 = vmatprep.mubr.bf16.mxu0 %v5442
        %5965 = vmatmul.mubr.bf16.gmra.mrb[0].mxu0 %v5441
        %v5966 = vpop.f32.mrb[0].mxu0
        %v5967 = vadd.f32 %v5538, %v5966
        %v5968 = vpop.f32.mrb[0].mxu0
        %v5969 = vpop.f32.mrb[0].mxu0
        %v5970 = vadd.f32 %v5538, %v5969
        %v5971 = vpop.f32.mrb[0].mxu0
        %5972 = vmatprep.mubr.bf16.mxu0 %v5446
        %5973 = vmatmul.mubr.bf16.gmra.mrb[0].mxu0 %v5445
        %v5974 = vpop.f32.mrb[0].mxu0
        %v5975 = vadd.f32 %v5538, %v5974
        %v5976 = vpop.f32.mrb[0].mxu0
        %v5977 = vpop.f32.mrb[0].mxu0
        %v5978 = vadd.f32 %v5538, %v5977
        %v5979 = vpop.f32.mrb[0].mxu0
        %5980 = vmatprep.mubr.bf16.mxu0 %v5450
        %5981 = vmatmul.mubr.bf16.gmra.mrb[0].mxu0 %v5449
        %v5982 = vpop.f32.mrb[0].mxu0
        %v5983 = vadd.f32 %v5538, %v5982
        %v5984 = vpop.f32.mrb[0].mxu0
        %v5985 = vpop.f32.mrb[0].mxu0
        %v5986 = vadd.f32 %v5538, %v5985
        %v5987 = vpop.f32.mrb[0].mxu0
        %5988 = vmatprep.mubr.bf16.mxu0 %v5454
        %5989 = vmatmul.mubr.bf16.gmra.mrb[0].mxu0 %v5453
        %v5990 = vpop.f32.mrb[0].mxu0
        %v5991 = vadd.f32 %v5538, %v5990
        %v5992 = vpop.f32.mrb[0].mxu0
        %v5993 = vpop.f32.mrb[0].mxu0
        %v5994 = vadd.f32 %v5538, %v5993
        %v5995 = vpop.f32.mrb[0].mxu0
        %5996 = vmatprep.mubr.bf16.mxu0 %v5458
        %5997 = vmatmul.mubr.bf16.gmra.mrb[0].mxu0 %v5457
        %v5998 = vpop.f32.mrb[0].mxu0
        %v5999 = vadd.f32 %v5538, %v5998
        %v6000 = vpop.f32.mrb[0].mxu0
        %v6001 = vpop.f32.mrb[0].mxu0
        %v6002 = vadd.f32 %v5538, %v6001
        %v6003 = vpop.f32.mrb[0].mxu0
        %6004 = vmatprep.mubr.bf16.mxu0 %v5462
        %6005 = vmatmul.mubr.bf16.gmra.mrb[0].mxu0 %v5461
        %v6006 = vpop.f32.mrb[0].mxu0
        %v6007 = vadd.f32 %v5538, %v6006
        %v6008 = vpop.f32.mrb[0].mxu0
        %v6009 = vpop.f32.mrb[0].mxu0
        %v6010 = vadd.f32 %v5538, %v6009
        %v6011 = vpop.f32.mrb[0].mxu0
        %6012 = vmatprep.mubr.bf16.mxu0 %v5466
        %6013 = vmatmul.mubr.bf16.gmra.mrb[0].mxu0 %v5465
        %v6014 = vpop.f32.mrb[0].mxu0
        %v6015 = vadd.f32 %v5538, %v6014
        %v6016 = vpop.f32.mrb[0].mxu0
        %v6017 = vpop.f32.mrb[0].mxu0
        %v6018 = vadd.f32 %v5538, %v6017
        %v6019 = vpop.f32.mrb[0].mxu0
        %6020 = vdwg.mxu0
        %6021 = vmatprep.subr.bf16.mxu0 0
        %6022 = vmatpush1.bf16.msra.mxu0 %v5684
        %6023 = vmatprep.subr.bf16.mxu0 0
        %6024 = vmatpush1.bf16.msra.mxu0 %v5685
        %6025 = vmatprep.subr.bf16.mxu0 0
        %6026 = vmatpush1.bf16.msra.mxu0 %v5686
        %6027 = vmatprep.subr.bf16.mxu0 0
        %6028 = vmatpush1.bf16.msra.mxu0 %v5687
        %6029 = vmatprep.subr.bf16.mxu0 0
        %6030 = vmatpush1.bf16.msra.mxu0 %v5688
        %6031 = vmatprep.subr.bf16.mxu0 0
        %6032 = vmatpush1.bf16.msra.mxu0 %v5689
        %6033 = vmatprep.subr.bf16.mxu0 0
        %6034 = vmatpush1.bf16.msra.mxu0 %v5690
        %6035 = vmatprep.subr.bf16.mxu0 0
        %6036 = vmatpush1.bf16.msra.mxu0 %v5691
        %6037 = vmatprep.subr.bf16.mxu0 0
        %6038 = vmatpush1.bf16.msra.mxu0 %v5692
        %6039 = vmatprep.subr.bf16.mxu0 0
        %6040 = vmatpush1.bf16.msra.mxu0 %v5693
        %6041 = vmatprep.subr.bf16.mxu0 0
        %6042 = vmatpush1.bf16.msra.mxu0 %v5694
        %6043 = vmatprep.subr.bf16.mxu0 0
        %6044 = vmatpush1.bf16.msra.mxu0 %v5695
        %6045 = vmatprep.subr.bf16.mxu0 0
        %6046 = vmatpush1.bf16.msra.mxu0 %v5696
        %6047 = vmatprep.subr.bf16.mxu0 0
        %6048 = vmatpush1.bf16.msra.mxu0 %v5697
        %6049 = vmatprep.subr.bf16.mxu0 0
        %6050 = vmatpush1.bf16.msra.mxu0 %v5698
        %6051 = vmatprep.subr.bf16.mxu0 0
        %6052 = vmatpush1.bf16.msra.mxu0 %v5699
        %6053 = vmatprep.mubr.bf16.mxu0 %v5344
        %6054 = vmatmul.mubr.bf16.gmra.mrb[0].mxu0 %v5343
        %v6055 = vpop.f32.mrb[0].mxu0
        %v6056 = vadd.f32 %v5767, %v6055
        %v6057 = vpop.f32.mrb[0].mxu0
        %v6058 = vpop.f32.mrb[0].mxu0
        %v6059 = vadd.f32 %v5770, %v6058
        %v6060 = vpop.f32.mrb[0].mxu0
        %6061 = vmatprep.mubr.bf16.mxu0 %v5348
        %6062 = vmatmul.mubr.bf16.gmra.mrb[0].mxu0 %v5347
        %v6063 = vpop.f32.mrb[0].mxu0
        %v6064 = vadd.f32 %v5775, %v6063
        %v6065 = vpop.f32.mrb[0].mxu0
        %v6066 = vpop.f32.mrb[0].mxu0
        %v6067 = vadd.f32 %v5778, %v6066
        %v6068 = vpop.f32.mrb[0].mxu0
        %6069 = vmatprep.mubr.bf16.mxu0 %v5352
        %6070 = vmatmul.mubr.bf16.gmra.mrb[0].mxu0 %v5351
        %v6071 = vpop.f32.mrb[0].mxu0
        %v6072 = vadd.f32 %v5783, %v6071
        %v6073 = vpop.f32.mrb[0].mxu0
        %v6074 = vpop.f32.mrb[0].mxu0
        %v6075 = vadd.f32 %v5786, %v6074
        %v6076 = vpop.f32.mrb[0].mxu0
        %6077 = vmatprep.mubr.bf16.mxu0 %v5356
        %6078 = vmatmul.mubr.bf16.gmra.mrb[0].mxu0 %v5355
        %v6079 = vpop.f32.mrb[0].mxu0
        %v6080 = vadd.f32 %v5791, %v6079
        %v6081 = vpop.f32.mrb[0].mxu0
        %v6082 = vpop.f32.mrb[0].mxu0
        %v6083 = vadd.f32 %v5794, %v6082
        %v6084 = vpop.f32.mrb[0].mxu0
        %6085 = vmatprep.mubr.bf16.mxu0 %v5360
        %6086 = vmatmul.mubr.bf16.gmra.mrb[0].mxu0 %v5359
        %v6087 = vpop.f32.mrb[0].mxu0
        %v6088 = vadd.f32 %v5799, %v6087
        %v6089 = vpop.f32.mrb[0].mxu0
        %v6090 = vpop.f32.mrb[0].mxu0
        %v6091 = vadd.f32 %v5802, %v6090
        %v6092 = vpop.f32.mrb[0].mxu0
        %6093 = vmatprep.mubr.bf16.mxu0 %v5364
        %6094 = vmatmul.mubr.bf16.gmra.mrb[0].mxu0 %v5363
        %v6095 = vpop.f32.mrb[0].mxu0
        %v6096 = vadd.f32 %v5807, %v6095
        %v6097 = vpop.f32.mrb[0].mxu0
        %v6098 = vpop.f32.mrb[0].mxu0
        %v6099 = vadd.f32 %v5810, %v6098
        %v6100 = vpop.f32.mrb[0].mxu0
        %6101 = vmatprep.mubr.bf16.mxu0 %v5368
        %6102 = vmatmul.mubr.bf16.gmra.mrb[0].mxu0 %v5367
        %v6103 = vpop.f32.mrb[0].mxu0
        %v6104 = vadd.f32 %v5815, %v6103
        %v6105 = vpop.f32.mrb[0].mxu0
        %v6106 = vpop.f32.mrb[0].mxu0
        %v6107 = vadd.f32 %v5818, %v6106
        %v6108 = vpop.f32.mrb[0].mxu0
        %6109 = vmatprep.mubr.bf16.mxu0 %v5372
        %6110 = vmatmul.mubr.bf16.gmra.mrb[0].mxu0 %v5371
        %v6111 = vpop.f32.mrb[0].mxu0
        %v6112 = vadd.f32 %v5823, %v6111
        %v6113 = vpop.f32.mrb[0].mxu0
        %v6114 = vpop.f32.mrb[0].mxu0
        %v6115 = vadd.f32 %v5826, %v6114
        %v6116 = vpop.f32.mrb[0].mxu0
        %6117 = vmatprep.mubr.bf16.mxu0 %v5376
        %6118 = vmatmul.mubr.bf16.gmra.mrb[0].mxu0 %v5375
        %v6119 = vpop.f32.mrb[0].mxu0
        %v6120 = vadd.f32 %v5831, %v6119
        %v6121 = vpop.f32.mrb[0].mxu0
        %v6122 = vpop.f32.mrb[0].mxu0
        %v6123 = vadd.f32 %v5834, %v6122
        %v6124 = vpop.f32.mrb[0].mxu0
        %6125 = vmatprep.mubr.bf16.mxu0 %v5380
        %6126 = vmatmul.mubr.bf16.gmra.mrb[0].mxu0 %v5379
        %v6127 = vpop.f32.mrb[0].mxu0
        %v6128 = vadd.f32 %v5839, %v6127
        %v6129 = vpop.f32.mrb[0].mxu0
        %v6130 = vpop.f32.mrb[0].mxu0
        %v6131 = vadd.f32 %v5842, %v6130
        %v6132 = vpop.f32.mrb[0].mxu0
        %6133 = vmatprep.mubr.bf16.mxu0 %v5384
        %6134 = vmatmul.mubr.bf16.gmra.mrb[0].mxu0 %v5383
        %v6135 = vpop.f32.mrb[0].mxu0
        %v6136 = vadd.f32 %v5847, %v6135
        %v6137 = vpop.f32.mrb[0].mxu0
        %v6138 = vpop.f32.mrb[0].mxu0
        %v6139 = vadd.f32 %v5850, %v6138
        %v6140 = vpop.f32.mrb[0].mxu0
        %6141 = vmatprep.mubr.bf16.mxu0 %v5388
        %6142 = vmatmul.mubr.bf16.gmra.mrb[0].mxu0 %v5387
        %v6143 = vpop.f32.mrb[0].mxu0
        %v6144 = vadd.f32 %v5855, %v6143
        %v6145 = vpop.f32.mrb[0].mxu0
        %v6146 = vpop.f32.mrb[0].mxu0
        %v6147 = vadd.f32 %v5858, %v6146
        %v6148 = vpop.f32.mrb[0].mxu0
        %6149 = vmatprep.mubr.bf16.mxu0 %v5392
        %6150 = vmatmul.mubr.bf16.gmra.mrb[0].mxu0 %v5391
        %v6151 = vpop.f32.mrb[0].mxu0
        %v6152 = vadd.f32 %v5863, %v6151
        %v6153 = vpop.f32.mrb[0].mxu0
        %v6154 = vpop.f32.mrb[0].mxu0
        %v6155 = vadd.f32 %v5866, %v6154
        %v6156 = vpop.f32.mrb[0].mxu0
        %6157 = vmatprep.mubr.bf16.mxu0 %v5396
        %6158 = vmatmul.mubr.bf16.gmra.mrb[0].mxu0 %v5395
        %v6159 = vpop.f32.mrb[0].mxu0
        %v6160 = vadd.f32 %v5871, %v6159
        %v6161 = vpop.f32.mrb[0].mxu0
        %v6162 = vpop.f32.mrb[0].mxu0
        %v6163 = vadd.f32 %v5874, %v6162
        %v6164 = vpop.f32.mrb[0].mxu0
        %6165 = vmatprep.mubr.bf16.mxu0 %v5400
        %6166 = vmatmul.mubr.bf16.gmra.mrb[0].mxu0 %v5399
        %v6167 = vpop.f32.mrb[0].mxu0
        %v6168 = vadd.f32 %v5879, %v6167
        %v6169 = vpop.f32.mrb[0].mxu0
        %v6170 = vpop.f32.mrb[0].mxu0
        %v6171 = vadd.f32 %v5882, %v6170
        %v6172 = vpop.f32.mrb[0].mxu0
        %6173 = vmatprep.mubr.bf16.mxu0 %v5404
        %6174 = vmatmul.mubr.bf16.gmra.mrb[0].mxu0 %v5403
        %v6175 = vpop.f32.mrb[0].mxu0
        %v6176 = vadd.f32 %v5887, %v6175
        %v6177 = vpop.f32.mrb[0].mxu0
        %v6178 = vpop.f32.mrb[0].mxu0
        %v6179 = vadd.f32 %v5890, %v6178
        %v6180 = vpop.f32.mrb[0].mxu0
        %6181 = vmatprep.mubr.bf16.mxu0 %v5408
        %6182 = vmatmul.mubr.bf16.gmra.mrb[0].mxu0 %v5407
        %v6183 = vpop.f32.mrb[0].mxu0
        %v6184 = vadd.f32 %v5895, %v6183
        %v6185 = vpop.f32.mrb[0].mxu0
        %v6186 = vpop.f32.mrb[0].mxu0
        %v6187 = vadd.f32 %v5898, %v6186
        %v6188 = vpop.f32.mrb[0].mxu0
        %6189 = vmatprep.mubr.bf16.mxu0 %v5412
        %6190 = vmatmul.mubr.bf16.gmra.mrb[0].mxu0 %v5411
        %v6191 = vpop.f32.mrb[0].mxu0
        %v6192 = vadd.f32 %v5903, %v6191
        %v6193 = vpop.f32.mrb[0].mxu0
        %v6194 = vpop.f32.mrb[0].mxu0
        %v6195 = vadd.f32 %v5906, %v6194
        %v6196 = vpop.f32.mrb[0].mxu0
        %6197 = vmatprep.mubr.bf16.mxu0 %v5416
        %6198 = vmatmul.mubr.bf16.gmra.mrb[0].mxu0 %v5415
        %v6199 = vpop.f32.mrb[0].mxu0
        %v6200 = vadd.f32 %v5911, %v6199
        %v6201 = vpop.f32.mrb[0].mxu0
        %v6202 = vpop.f32.mrb[0].mxu0
        %v6203 = vadd.f32 %v5914, %v6202
        %v6204 = vpop.f32.mrb[0].mxu0
        %6205 = vmatprep.mubr.bf16.mxu0 %v5420
        %6206 = vmatmul.mubr.bf16.gmra.mrb[0].mxu0 %v5419
        %v6207 = vpop.f32.mrb[0].mxu0
        %v6208 = vadd.f32 %v5919, %v6207
        %v6209 = vpop.f32.mrb[0].mxu0
        %v6210 = vpop.f32.mrb[0].mxu0
        %v6211 = vadd.f32 %v5922, %v6210
        %v6212 = vpop.f32.mrb[0].mxu0
        %6213 = vmatprep.mubr.bf16.mxu0 %v5424
        %6214 = vmatmul.mubr.bf16.gmra.mrb[0].mxu0 %v5423
        %v6215 = vpop.f32.mrb[0].mxu0
        %v6216 = vadd.f32 %v5927, %v6215
        %v6217 = vpop.f32.mrb[0].mxu0
        %v6218 = vpop.f32.mrb[0].mxu0
        %v6219 = vadd.f32 %v5930, %v6218
        %v6220 = vpop.f32.mrb[0].mxu0
        %6221 = vmatprep.mubr.bf16.mxu0 %v5428
        %6222 = vmatmul.mubr.bf16.gmra.mrb[0].mxu0 %v5427
        %v6223 = vpop.f32.mrb[0].mxu0
        %v6224 = vadd.f32 %v5935, %v6223
        %v6225 = vpop.f32.mrb[0].mxu0
        %v6226 = vpop.f32.mrb[0].mxu0
        %v6227 = vadd.f32 %v5938, %v6226
        %v6228 = vpop.f32.mrb[0].mxu0
        %6229 = vmatprep.mubr.bf16.mxu0 %v5432
        %6230 = vmatmul.mubr.bf16.gmra.mrb[0].mxu0 %v5431
        %v6231 = vpop.f32.mrb[0].mxu0
        %v6232 = vadd.f32 %v5943, %v6231
        %v6233 = vpop.f32.mrb[0].mxu0
        %v6234 = vpop.f32.mrb[0].mxu0
        %v6235 = vadd.f32 %v5946, %v6234
        %v6236 = vpop.f32.mrb[0].mxu0
        %6237 = vmatprep.mubr.bf16.mxu0 %v5436
        %6238 = vmatmul.mubr.bf16.gmra.mrb[0].mxu0 %v5435
        %v6239 = vpop.f32.mrb[0].mxu0
        %v6240 = vadd.f32 %v5951, %v6239
        %v6241 = vpop.f32.mrb[0].mxu0
        %v6242 = vpop.f32.mrb[0].mxu0
        %v6243 = vadd.f32 %v5954, %v6242
        %v6244 = vpop.f32.mrb[0].mxu0
        %6245 = vmatprep.mubr.bf16.mxu0 %v5440
        %6246 = vmatmul.mubr.bf16.gmra.mrb[0].mxu0 %v5439
        %v6247 = vpop.f32.mrb[0].mxu0
        %v6248 = vadd.f32 %v5959, %v6247
        %v6249 = vpop.f32.mrb[0].mxu0
        %v6250 = vpop.f32.mrb[0].mxu0
        %v6251 = vadd.f32 %v5962, %v6250
        %v6252 = vpop.f32.mrb[0].mxu0
        %6253 = vmatprep.mubr.bf16.mxu0 %v5444
        %6254 = vmatmul.mubr.bf16.gmra.mrb[0].mxu0 %v5443
        %v6255 = vpop.f32.mrb[0].mxu0
        %v6256 = vadd.f32 %v5967, %v6255
        %v6257 = vpop.f32.mrb[0].mxu0
        %v6258 = vpop.f32.mrb[0].mxu0
        %v6259 = vadd.f32 %v5970, %v6258
        %v6260 = vpop.f32.mrb[0].mxu0
        %6261 = vmatprep.mubr.bf16.mxu0 %v5448
        %6262 = vmatmul.mubr.bf16.gmra.mrb[0].mxu0 %v5447
        %v6263 = vpop.f32.mrb[0].mxu0
        %v6264 = vadd.f32 %v5975, %v6263
        %v6265 = vpop.f32.mrb[0].mxu0
        %v6266 = vpop.f32.mrb[0].mxu0
        %v6267 = vadd.f32 %v5978, %v6266
        %v6268 = vpop.f32.mrb[0].mxu0
        %6269 = vmatprep.mubr.bf16.mxu0 %v5452
        %6270 = vmatmul.mubr.bf16.gmra.mrb[0].mxu0 %v5451
        %v6271 = vpop.f32.mrb[0].mxu0
        %v6272 = vadd.f32 %v5983, %v6271
        %v6273 = vpop.f32.mrb[0].mxu0
        %v6274 = vpop.f32.mrb[0].mxu0
        %v6275 = vadd.f32 %v5986, %v6274
        %v6276 = vpop.f32.mrb[0].mxu0
        %6277 = vmatprep.mubr.bf16.mxu0 %v5456
        %6278 = vmatmul.mubr.bf16.gmra.mrb[0].mxu0 %v5455
        %v6279 = vpop.f32.mrb[0].mxu0
        %v6280 = vadd.f32 %v5991, %v6279
        %v6281 = vpop.f32.mrb[0].mxu0
        %v6282 = vpop.f32.mrb[0].mxu0
        %v6283 = vadd.f32 %v5994, %v6282
        %v6284 = vpop.f32.mrb[0].mxu0
        %6285 = vmatprep.mubr.bf16.mxu0 %v5460
        %6286 = vmatmul.mubr.bf16.gmra.mrb[0].mxu0 %v5459
        %v6287 = vpop.f32.mrb[0].mxu0
        %v6288 = vadd.f32 %v5999, %v6287
        %v6289 = vpop.f32.mrb[0].mxu0
        %v6290 = vpop.f32.mrb[0].mxu0
        %v6291 = vadd.f32 %v6002, %v6290
        %v6292 = vpop.f32.mrb[0].mxu0
        %6293 = vmatprep.mubr.bf16.mxu0 %v5464
        %6294 = vmatmul.mubr.bf16.gmra.mrb[0].mxu0 %v5463
        %v6295 = vpop.f32.mrb[0].mxu0
        %v6296 = vadd.f32 %v6007, %v6295
        %v6297 = vpop.f32.mrb[0].mxu0
        %v6298 = vpop.f32.mrb[0].mxu0
        %v6299 = vadd.f32 %v6010, %v6298
        %v6300 = vpop.f32.mrb[0].mxu0
        %6301 = vmatprep.mubr.bf16.mxu0 %v5468
        %6302 = vmatmul.mubr.bf16.gmra.mrb[0].mxu0 %v5467
        %v6303 = vpop.f32.mrb[0].mxu0
        %v6304 = vadd.f32 %v6015, %v6303
        %v6305 = vpop.f32.mrb[0].mxu0
        %v6306 = vpop.f32.mrb[0].mxu0
        %v6307 = vadd.f32 %v6018, %v6306
        %v6308 = vpop.f32.mrb[0].mxu0
        %6309 = vdwg.mxu0
        %v6310 = vld [vmem:[%s501] sm:$0xff]
        %v6311 = vld [vmem:[%s501 + $0x8] sm:$0xff]
        %v6312 = vld [vmem:[%s501 + $0x10] sm:$0xff]
        %v6313 = vld [vmem:[%s501 + $0x18] sm:$0xff]
        %v6314 = vld [vmem:[%s501 + $0x20] sm:$0xff]
        %v6315 = vld [vmem:[%s501 + $0x28] sm:$0xff]
        %v6316 = vld [vmem:[%s501 + $0x30] sm:$0xff]
        %v6317 = vld [vmem:[%s501 + $0x38] sm:$0xff]
        %v6318 = vld [vmem:[%s501 + $0x40] sm:$0xff]
        %v6319 = vld [vmem:[%s501 + $0x48] sm:$0xff]
        %v6320 = vld [vmem:[%s501 + $0x50] sm:$0xff]
        %v6321 = vld [vmem:[%s501 + $0x58] sm:$0xff]
        %v6322 = vld [vmem:[%s501 + $0x60] sm:$0xff]
        %v6323 = vld [vmem:[%s501 + $0x68] sm:$0xff]
        %v6324 = vld [vmem:[%s501 + $0x70] sm:$0xff]
        %v6325 = vld [vmem:[%s501 + $0x78] sm:$0xff]
        %v6326 = vld [vmem:[%s501 + $0x80] sm:$0xff]
        %v6327 = vld [vmem:[%s501 + $0x88] sm:$0xff]
        %v6328 = vld [vmem:[%s501 + $0x90] sm:$0xff]
        %v6329 = vld [vmem:[%s501 + $0x98] sm:$0xff]
        %v6330 = vld [vmem:[%s501 + $0xa0] sm:$0xff]
        %v6331 = vld [vmem:[%s501 + $0xa8] sm:$0xff]
        %v6332 = vld [vmem:[%s501 + $0xb0] sm:$0xff]
        %v6333 = vld [vmem:[%s501 + $0xb8] sm:$0xff]
        %v6334 = vld [vmem:[%s501 + $0xc0] sm:$0xff]
        %v6335 = vld [vmem:[%s501 + $0xc8] sm:$0xff]
        %v6336 = vld [vmem:[%s501 + $0xd0] sm:$0xff]
        %v6337 = vld [vmem:[%s501 + $0xd8] sm:$0xff]
        %v6338 = vld [vmem:[%s501 + $0xe0] sm:$0xff]
        %v6339 = vld [vmem:[%s501 + $0xe8] sm:$0xff]
        %v6340 = vld [vmem:[%s501 + $0xf0] sm:$0xff]
        %v6341 = vld [vmem:[%s501 + $0xf8] sm:$0xff]
        %v6342 = vld [vmem:[%s501 + $0x100] sm:$0xff]
        %v6343 = vld [vmem:[%s501 + $0x108] sm:$0xff]
        %v6344 = vld [vmem:[%s501 + $0x110] sm:$0xff]
        %v6345 = vld [vmem:[%s501 + $0x118] sm:$0xff]
        %v6346 = vld [vmem:[%s501 + $0x120] sm:$0xff]
        %v6347 = vld [vmem:[%s501 + $0x128] sm:$0xff]
        %v6348 = vld [vmem:[%s501 + $0x130] sm:$0xff]
        %v6349 = vld [vmem:[%s501 + $0x138] sm:$0xff]
        %v6350 = vld [vmem:[%s501 + $0x140] sm:$0xff]
        %v6351 = vld [vmem:[%s501 + $0x148] sm:$0xff]
        %v6352 = vld [vmem:[%s501 + $0x150] sm:$0xff]
        %v6353 = vld [vmem:[%s501 + $0x158] sm:$0xff]
        %v6354 = vld [vmem:[%s501 + $0x160] sm:$0xff]
        %v6355 = vld [vmem:[%s501 + $0x168] sm:$0xff]
        %v6356 = vld [vmem:[%s501 + $0x170] sm:$0xff]
        %v6357 = vld [vmem:[%s501 + $0x178] sm:$0xff]
        %v6358 = vld [vmem:[%s501 + $0x180] sm:$0xff]
        %v6359 = vld [vmem:[%s501 + $0x188] sm:$0xff]
        %v6360 = vld [vmem:[%s501 + $0x190] sm:$0xff]
        %v6361 = vld [vmem:[%s501 + $0x198] sm:$0xff]
        %v6362 = vld [vmem:[%s501 + $0x1a0] sm:$0xff]
        %v6363 = vld [vmem:[%s501 + $0x1a8] sm:$0xff]
        %v6364 = vld [vmem:[%s501 + $0x1b0] sm:$0xff]
        %v6365 = vld [vmem:[%s501 + $0x1b8] sm:$0xff]
        %v6366 = vld [vmem:[%s501 + $0x1c0] sm:$0xff]
        %v6367 = vld [vmem:[%s501 + $0x1c8] sm:$0xff]
        %v6368 = vld [vmem:[%s501 + $0x1d0] sm:$0xff]
        %v6369 = vld [vmem:[%s501 + $0x1d8] sm:$0xff]
        %v6370 = vld [vmem:[%s501 + $0x1e0] sm:$0xff]
        %v6371 = vld [vmem:[%s501 + $0x1e8] sm:$0xff]
        %v6372 = vld [vmem:[%s501 + $0x1f0] sm:$0xff]
        %v6373 = vld [vmem:[%s501 + $0x1f8] sm:$0xff]
        %6375 = vset.pattern.permute.xlu0 0
        %6376 = vperm.xlu0 %6375, %v6310
        %v6377 = vpop.permute.xlu0 %6376
        %6380 = vset.pattern.permute.xlu0 0
        %6381 = vperm.xlu0 %6380, %v6311
        %v6382 = vpop.permute.xlu0 %6381
        %6385 = vset.pattern.permute.xlu0 0
        %6386 = vperm.xlu0 %6385, %v6312
        %v6387 = vpop.permute.xlu0 %6386
        %6390 = vset.pattern.permute.xlu0 0
        %6391 = vperm.xlu0 %6390, %v6313
        %v6392 = vpop.permute.xlu0 %6391
        %6395 = vset.pattern.permute.xlu0 0
        %6396 = vperm.xlu0 %6395, %v6314
        %v6397 = vpop.permute.xlu0 %6396
        %6400 = vset.pattern.permute.xlu0 0
        %6401 = vperm.xlu0 %6400, %v6315
        %v6402 = vpop.permute.xlu0 %6401
        %6405 = vset.pattern.permute.xlu0 0
        %6406 = vperm.xlu0 %6405, %v6316
        %v6407 = vpop.permute.xlu0 %6406
        %6410 = vset.pattern.permute.xlu0 0
        %6411 = vperm.xlu0 %6410, %v6317
        %v6412 = vpop.permute.xlu0 %6411
        %6415 = vset.pattern.permute.xlu0 0
        %6416 = vperm.xlu0 %6415, %v6318
        %v6417 = vpop.permute.xlu0 %6416
        %6420 = vset.pattern.permute.xlu0 0
        %6421 = vperm.xlu0 %6420, %v6319
        %v6422 = vpop.permute.xlu0 %6421
        %6425 = vset.pattern.permute.xlu0 0
        %6426 = vperm.xlu0 %6425, %v6320
        %v6427 = vpop.permute.xlu0 %6426
        %6430 = vset.pattern.permute.xlu0 0
        %6431 = vperm.xlu0 %6430, %v6321
        %v6432 = vpop.permute.xlu0 %6431
        %6435 = vset.pattern.permute.xlu0 0
        %6436 = vperm.xlu0 %6435, %v6322
        %v6437 = vpop.permute.xlu0 %6436
        %6440 = vset.pattern.permute.xlu0 0
        %6441 = vperm.xlu0 %6440, %v6323
        %v6442 = vpop.permute.xlu0 %6441
        %6445 = vset.pattern.permute.xlu0 0
        %6446 = vperm.xlu0 %6445, %v6324
        %v6447 = vpop.permute.xlu0 %6446
        %6450 = vset.pattern.permute.xlu0 0
        %6451 = vperm.xlu0 %6450, %v6325
        %v6452 = vpop.permute.xlu0 %6451
        %6455 = vset.pattern.permute.xlu0 0
        %6456 = vperm.xlu0 %6455, %v6326
        %v6457 = vpop.permute.xlu0 %6456
        %6460 = vset.pattern.permute.xlu0 0
        %6461 = vperm.xlu0 %6460, %v6327
        %v6462 = vpop.permute.xlu0 %6461
        %6465 = vset.pattern.permute.xlu0 0
        %6466 = vperm.xlu0 %6465, %v6328
        %v6467 = vpop.permute.xlu0 %6466
        %6470 = vset.pattern.permute.xlu0 0
        %6471 = vperm.xlu0 %6470, %v6329
        %v6472 = vpop.permute.xlu0 %6471
        %6475 = vset.pattern.permute.xlu0 0
        %6476 = vperm.xlu0 %6475, %v6330
        %v6477 = vpop.permute.xlu0 %6476
        %6480 = vset.pattern.permute.xlu0 0
        %6481 = vperm.xlu0 %6480, %v6331
        %v6482 = vpop.permute.xlu0 %6481
        %6485 = vset.pattern.permute.xlu0 0
        %6486 = vperm.xlu0 %6485, %v6332
        %v6487 = vpop.permute.xlu0 %6486
        %6490 = vset.pattern.permute.xlu0 0
        %6491 = vperm.xlu0 %6490, %v6333
        %v6492 = vpop.permute.xlu0 %6491
        %6495 = vset.pattern.permute.xlu0 0
        %6496 = vperm.xlu0 %6495, %v6334
        %v6497 = vpop.permute.xlu0 %6496
        %6500 = vset.pattern.permute.xlu0 0
        %6501 = vperm.xlu0 %6500, %v6335
        %v6502 = vpop.permute.xlu0 %6501
        %6505 = vset.pattern.permute.xlu0 0
        %6506 = vperm.xlu0 %6505, %v6336
        %v6507 = vpop.permute.xlu0 %6506
        %6510 = vset.pattern.permute.xlu0 0
        %6511 = vperm.xlu0 %6510, %v6337
        %v6512 = vpop.permute.xlu0 %6511
        %6515 = vset.pattern.permute.xlu0 0
        %6516 = vperm.xlu0 %6515, %v6338
        %v6517 = vpop.permute.xlu0 %6516
        %6520 = vset.pattern.permute.xlu0 0
        %6521 = vperm.xlu0 %6520, %v6339
        %v6522 = vpop.permute.xlu0 %6521
        %6525 = vset.pattern.permute.xlu0 0
        %6526 = vperm.xlu0 %6525, %v6340
        %v6527 = vpop.permute.xlu0 %6526
        %6530 = vset.pattern.permute.xlu0 0
        %6531 = vperm.xlu0 %6530, %v6341
        %v6532 = vpop.permute.xlu0 %6531
        %6535 = vset.pattern.permute.xlu0 0
        %6536 = vperm.xlu0 %6535, %v6342
        %v6537 = vpop.permute.xlu0 %6536
        %6540 = vset.pattern.permute.xlu0 0
        %6541 = vperm.xlu0 %6540, %v6343
        %v6542 = vpop.permute.xlu0 %6541
        %6545 = vset.pattern.permute.xlu0 0
        %6546 = vperm.xlu0 %6545, %v6344
        %v6547 = vpop.permute.xlu0 %6546
        %6550 = vset.pattern.permute.xlu0 0
        %6551 = vperm.xlu0 %6550, %v6345
        %v6552 = vpop.permute.xlu0 %6551
        %6555 = vset.pattern.permute.xlu0 0
        %6556 = vperm.xlu0 %6555, %v6346
        %v6557 = vpop.permute.xlu0 %6556
        %6560 = vset.pattern.permute.xlu0 0
        %6561 = vperm.xlu0 %6560, %v6347
        %v6562 = vpop.permute.xlu0 %6561
        %6565 = vset.pattern.permute.xlu0 0
        %6566 = vperm.xlu0 %6565, %v6348
        %v6567 = vpop.permute.xlu0 %6566
        %6570 = vset.pattern.permute.xlu0 0
        %6571 = vperm.xlu0 %6570, %v6349
        %v6572 = vpop.permute.xlu0 %6571
        %6575 = vset.pattern.permute.xlu0 0
        %6576 = vperm.xlu0 %6575, %v6350
        %v6577 = vpop.permute.xlu0 %6576
        %6580 = vset.pattern.permute.xlu0 0
        %6581 = vperm.xlu0 %6580, %v6351
        %v6582 = vpop.permute.xlu0 %6581
        %6585 = vset.pattern.permute.xlu0 0
        %6586 = vperm.xlu0 %6585, %v6352
        %v6587 = vpop.permute.xlu0 %6586
        %6590 = vset.pattern.permute.xlu0 0
        %6591 = vperm.xlu0 %6590, %v6353
        %v6592 = vpop.permute.xlu0 %6591
        %6595 = vset.pattern.permute.xlu0 0
        %6596 = vperm.xlu0 %6595, %v6354
        %v6597 = vpop.permute.xlu0 %6596
        %6600 = vset.pattern.permute.xlu0 0
        %6601 = vperm.xlu0 %6600, %v6355
        %v6602 = vpop.permute.xlu0 %6601
        %6605 = vset.pattern.permute.xlu0 0
        %6606 = vperm.xlu0 %6605, %v6356
        %v6607 = vpop.permute.xlu0 %6606
        %6610 = vset.pattern.permute.xlu0 0
        %6611 = vperm.xlu0 %6610, %v6357
        %v6612 = vpop.permute.xlu0 %6611
        %6615 = vset.pattern.permute.xlu0 0
        %6616 = vperm.xlu0 %6615, %v6358
        %v6617 = vpop.permute.xlu0 %6616
        %6620 = vset.pattern.permute.xlu0 0
        %6621 = vperm.xlu0 %6620, %v6359
        %v6622 = vpop.permute.xlu0 %6621
        %6625 = vset.pattern.permute.xlu0 0
        %6626 = vperm.xlu0 %6625, %v6360
        %v6627 = vpop.permute.xlu0 %6626
        %6630 = vset.pattern.permute.xlu0 0
        %6631 = vperm.xlu0 %6630, %v6361
        %v6632 = vpop.permute.xlu0 %6631
        %6635 = vset.pattern.permute.xlu0 0
        %6636 = vperm.xlu0 %6635, %v6362
        %v6637 = vpop.permute.xlu0 %6636
        %6640 = vset.pattern.permute.xlu0 0
        %6641 = vperm.xlu0 %6640, %v6363
        %v6642 = vpop.permute.xlu0 %6641
        %6645 = vset.pattern.permute.xlu0 0
        %6646 = vperm.xlu0 %6645, %v6364
        %v6647 = vpop.permute.xlu0 %6646
        %6650 = vset.pattern.permute.xlu0 0
        %6651 = vperm.xlu0 %6650, %v6365
        %v6652 = vpop.permute.xlu0 %6651
        %6655 = vset.pattern.permute.xlu0 0
        %6656 = vperm.xlu0 %6655, %v6366
        %v6657 = vpop.permute.xlu0 %6656
        %6660 = vset.pattern.permute.xlu0 0
        %6661 = vperm.xlu0 %6660, %v6367
        %v6662 = vpop.permute.xlu0 %6661
        %6665 = vset.pattern.permute.xlu0 0
        %6666 = vperm.xlu0 %6665, %v6368
        %v6667 = vpop.permute.xlu0 %6666
        %6670 = vset.pattern.permute.xlu0 0
        %6671 = vperm.xlu0 %6670, %v6369
        %v6672 = vpop.permute.xlu0 %6671
        %6675 = vset.pattern.permute.xlu0 0
        %6676 = vperm.xlu0 %6675, %v6370
        %v6677 = vpop.permute.xlu0 %6676
        %6680 = vset.pattern.permute.xlu0 0
        %6681 = vperm.xlu0 %6680, %v6371
        %v6682 = vpop.permute.xlu0 %6681
        %6685 = vset.pattern.permute.xlu0 0
        %6686 = vperm.xlu0 %6685, %v6372
        %v6687 = vpop.permute.xlu0 %6686
        %6690 = vset.pattern.permute.xlu0 0
        %6691 = vperm.xlu0 %6690, %v6373
        %v6692 = vpop.permute.xlu0 %6691
        %v6694 = vmul.f32 %v6056, %v6377
        %v6695 = vmul.f32 %v6059, %v6382
        %v6696 = vmul.f32 %v6064, %v6387
        %v6697 = vmul.f32 %v6067, %v6392
        %v6698 = vmul.f32 %v6072, %v6397
        %v6699 = vmul.f32 %v6075, %v6402
        %v6700 = vmul.f32 %v6080, %v6407
        %v6701 = vmul.f32 %v6083, %v6412
        %v6702 = vmul.f32 %v6088, %v6417
        %v6703 = vmul.f32 %v6091, %v6422
        %v6704 = vmul.f32 %v6096, %v6427
        %v6705 = vmul.f32 %v6099, %v6432
        %v6706 = vmul.f32 %v6104, %v6437
        %v6707 = vmul.f32 %v6107, %v6442
        %v6708 = vmul.f32 %v6112, %v6447
        %v6709 = vmul.f32 %v6115, %v6452
        %v6710 = vmul.f32 %v6120, %v6457
        %v6711 = vmul.f32 %v6123, %v6462
        %v6712 = vmul.f32 %v6128, %v6467
        %v6713 = vmul.f32 %v6131, %v6472
        %v6714 = vmul.f32 %v6136, %v6477
        %v6715 = vmul.f32 %v6139, %v6482
        %v6716 = vmul.f32 %v6144, %v6487
        %v6717 = vmul.f32 %v6147, %v6492
        %v6718 = vmul.f32 %v6152, %v6497
        %v6719 = vmul.f32 %v6155, %v6502
        %v6720 = vmul.f32 %v6160, %v6507
        %v6721 = vmul.f32 %v6163, %v6512
        %v6722 = vmul.f32 %v6168, %v6517
        %v6723 = vmul.f32 %v6171, %v6522
        %v6724 = vmul.f32 %v6176, %v6527
        %v6725 = vmul.f32 %v6179, %v6532
        %v6726 = vmul.f32 %v6184, %v6537
        %v6727 = vmul.f32 %v6187, %v6542
        %v6728 = vmul.f32 %v6192, %v6547
        %v6729 = vmul.f32 %v6195, %v6552
        %v6730 = vmul.f32 %v6200, %v6557
        %v6731 = vmul.f32 %v6203, %v6562
        %v6732 = vmul.f32 %v6208, %v6567
        %v6733 = vmul.f32 %v6211, %v6572
        %v6734 = vmul.f32 %v6216, %v6577
        %v6735 = vmul.f32 %v6219, %v6582
        %v6736 = vmul.f32 %v6224, %v6587
        %v6737 = vmul.f32 %v6227, %v6592
        %v6738 = vmul.f32 %v6232, %v6597
        %v6739 = vmul.f32 %v6235, %v6602
        %v6740 = vmul.f32 %v6240, %v6607
        %v6741 = vmul.f32 %v6243, %v6612
        %v6742 = vmul.f32 %v6248, %v6617
        %v6743 = vmul.f32 %v6251, %v6622
        %v6744 = vmul.f32 %v6256, %v6627
        %v6745 = vmul.f32 %v6259, %v6632
        %v6746 = vmul.f32 %v6264, %v6637
        %v6747 = vmul.f32 %v6267, %v6642
        %v6748 = vmul.f32 %v6272, %v6647
        %v6749 = vmul.f32 %v6275, %v6652
        %v6750 = vmul.f32 %v6280, %v6657
        %v6751 = vmul.f32 %v6283, %v6662
        %v6752 = vmul.f32 %v6288, %v6667
        %v6753 = vmul.f32 %v6291, %v6672
        %v6754 = vmul.f32 %v6296, %v6677
        %v6755 = vmul.f32 %v6299, %v6682
        %v6756 = vmul.f32 %v6304, %v6687
        %v6757 = vmul.f32 %v6307, %v6692
        %6758 = vset.pattern.permute.xlu0 1
        %6759 = vperm.xlu0 %6758, %v6310
        %v6760 = vpop.permute.xlu0 %6759
        %6762 = vset.pattern.permute.xlu0 1
        %6763 = vperm.xlu0 %6762, %v6311
        %v6764 = vpop.permute.xlu0 %6763
        %6766 = vset.pattern.permute.xlu0 1
        %6767 = vperm.xlu0 %6766, %v6312
        %v6768 = vpop.permute.xlu0 %6767
        %6770 = vset.pattern.permute.xlu0 1
        %6771 = vperm.xlu0 %6770, %v6313
        %v6772 = vpop.permute.xlu0 %6771
        %6774 = vset.pattern.permute.xlu0 1
        %6775 = vperm.xlu0 %6774, %v6314
        %v6776 = vpop.permute.xlu0 %6775
        %6778 = vset.pattern.permute.xlu0 1
        %6779 = vperm.xlu0 %6778, %v6315
        %v6780 = vpop.permute.xlu0 %6779
        %6782 = vset.pattern.permute.xlu0 1
        %6783 = vperm.xlu0 %6782, %v6316
        %v6784 = vpop.permute.xlu0 %6783
        %6786 = vset.pattern.permute.xlu0 1
        %6787 = vperm.xlu0 %6786, %v6317
        %v6788 = vpop.permute.xlu0 %6787
        %6790 = vset.pattern.permute.xlu0 1
        %6791 = vperm.xlu0 %6790, %v6318
        %v6792 = vpop.permute.xlu0 %6791
        %6794 = vset.pattern.permute.xlu0 1
        %6795 = vperm.xlu0 %6794, %v6319
        %v6796 = vpop.permute.xlu0 %6795
        %6798 = vset.pattern.permute.xlu0 1
        %6799 = vperm.xlu0 %6798, %v6320
        %v6800 = vpop.permute.xlu0 %6799
        %6802 = vset.pattern.permute.xlu0 1
        %6803 = vperm.xlu0 %6802, %v6321
        %v6804 = vpop.permute.xlu0 %6803
        %6806 = vset.pattern.permute.xlu0 1
        %6807 = vperm.xlu0 %6806, %v6322
        %v6808 = vpop.permute.xlu0 %6807
        %6810 = vset.pattern.permute.xlu0 1
        %6811 = vperm.xlu0 %6810, %v6323
        %v6812 = vpop.permute.xlu0 %6811
        %6814 = vset.pattern.permute.xlu0 1
        %6815 = vperm.xlu0 %6814, %v6324
        %v6816 = vpop.permute.xlu0 %6815
        %6818 = vset.pattern.permute.xlu0 1
        %6819 = vperm.xlu0 %6818, %v6325
        %v6820 = vpop.permute.xlu0 %6819
        %6822 = vset.pattern.permute.xlu0 1
        %6823 = vperm.xlu0 %6822, %v6326
        %v6824 = vpop.permute.xlu0 %6823
        %6826 = vset.pattern.permute.xlu0 1
        %6827 = vperm.xlu0 %6826, %v6327
        %v6828 = vpop.permute.xlu0 %6827
        %6830 = vset.pattern.permute.xlu0 1
        %6831 = vperm.xlu0 %6830, %v6328
        %v6832 = vpop.permute.xlu0 %6831
        %6834 = vset.pattern.permute.xlu0 1
        %6835 = vperm.xlu0 %6834, %v6329
        %v6836 = vpop.permute.xlu0 %6835
        %6838 = vset.pattern.permute.xlu0 1
        %6839 = vperm.xlu0 %6838, %v6330
        %v6840 = vpop.permute.xlu0 %6839
        %6842 = vset.pattern.permute.xlu0 1
        %6843 = vperm.xlu0 %6842, %v6331
        %v6844 = vpop.permute.xlu0 %6843
        %6846 = vset.pattern.permute.xlu0 1
        %6847 = vperm.xlu0 %6846, %v6332
        %v6848 = vpop.permute.xlu0 %6847
        %6850 = vset.pattern.permute.xlu0 1
        %6851 = vperm.xlu0 %6850, %v6333
        %v6852 = vpop.permute.xlu0 %6851
        %6854 = vset.pattern.permute.xlu0 1
        %6855 = vperm.xlu0 %6854, %v6334
        %v6856 = vpop.permute.xlu0 %6855
        %6858 = vset.pattern.permute.xlu0 1
        %6859 = vperm.xlu0 %6858, %v6335
        %v6860 = vpop.permute.xlu0 %6859
        %6862 = vset.pattern.permute.xlu0 1
        %6863 = vperm.xlu0 %6862, %v6336
        %v6864 = vpop.permute.xlu0 %6863
        %6866 = vset.pattern.permute.xlu0 1
        %6867 = vperm.xlu0 %6866, %v6337
        %v6868 = vpop.permute.xlu0 %6867
        %6870 = vset.pattern.permute.xlu0 1
        %6871 = vperm.xlu0 %6870, %v6338
        %v6872 = vpop.permute.xlu0 %6871
        %6874 = vset.pattern.permute.xlu0 1
        %6875 = vperm.xlu0 %6874, %v6339
        %v6876 = vpop.permute.xlu0 %6875
        %6878 = vset.pattern.permute.xlu0 1
        %6879 = vperm.xlu0 %6878, %v6340
        %v6880 = vpop.permute.xlu0 %6879
        %6882 = vset.pattern.permute.xlu0 1
        %6883 = vperm.xlu0 %6882, %v6341
        %v6884 = vpop.permute.xlu0 %6883
        %6886 = vset.pattern.permute.xlu0 1
        %6887 = vperm.xlu0 %6886, %v6342
        %v6888 = vpop.permute.xlu0 %6887
        %6890 = vset.pattern.permute.xlu0 1
        %6891 = vperm.xlu0 %6890, %v6343
        %v6892 = vpop.permute.xlu0 %6891
        %6894 = vset.pattern.permute.xlu0 1
        %6895 = vperm.xlu0 %6894, %v6344
        %v6896 = vpop.permute.xlu0 %6895
        %6898 = vset.pattern.permute.xlu0 1
        %6899 = vperm.xlu0 %6898, %v6345
        %v6900 = vpop.permute.xlu0 %6899
        %6902 = vset.pattern.permute.xlu0 1
        %6903 = vperm.xlu0 %6902, %v6346
        %v6904 = vpop.permute.xlu0 %6903
        %6906 = vset.pattern.permute.xlu0 1
        %6907 = vperm.xlu0 %6906, %v6347
        %v6908 = vpop.permute.xlu0 %6907
        %6910 = vset.pattern.permute.xlu0 1
        %6911 = vperm.xlu0 %6910, %v6348
        %v6912 = vpop.permute.xlu0 %6911
        %6914 = vset.pattern.permute.xlu0 1
        %6915 = vperm.xlu0 %6914, %v6349
        %v6916 = vpop.permute.xlu0 %6915
        %6918 = vset.pattern.permute.xlu0 1
        %6919 = vperm.xlu0 %6918, %v6350
        %v6920 = vpop.permute.xlu0 %6919
        %6922 = vset.pattern.permute.xlu0 1
        %6923 = vperm.xlu0 %6922, %v6351
        %v6924 = vpop.permute.xlu0 %6923
        %6926 = vset.pattern.permute.xlu0 1
        %6927 = vperm.xlu0 %6926, %v6352
        %v6928 = vpop.permute.xlu0 %6927
        %6930 = vset.pattern.permute.xlu0 1
        %6931 = vperm.xlu0 %6930, %v6353
        %v6932 = vpop.permute.xlu0 %6931
        %6934 = vset.pattern.permute.xlu0 1
        %6935 = vperm.xlu0 %6934, %v6354
        %v6936 = vpop.permute.xlu0 %6935
        %6938 = vset.pattern.permute.xlu0 1
        %6939 = vperm.xlu0 %6938, %v6355
        %v6940 = vpop.permute.xlu0 %6939
        %6942 = vset.pattern.permute.xlu0 1
        %6943 = vperm.xlu0 %6942, %v6356
        %v6944 = vpop.permute.xlu0 %6943
        %6946 = vset.pattern.permute.xlu0 1
        %6947 = vperm.xlu0 %6946, %v6357
        %v6948 = vpop.permute.xlu0 %6947
        %6950 = vset.pattern.permute.xlu0 1
        %6951 = vperm.xlu0 %6950, %v6358
        %v6952 = vpop.permute.xlu0 %6951
        %6954 = vset.pattern.permute.xlu0 1
        %6955 = vperm.xlu0 %6954, %v6359
        %v6956 = vpop.permute.xlu0 %6955
        %6958 = vset.pattern.permute.xlu0 1
        %6959 = vperm.xlu0 %6958, %v6360
        %v6960 = vpop.permute.xlu0 %6959
        %6962 = vset.pattern.permute.xlu0 1
        %6963 = vperm.xlu0 %6962, %v6361
        %v6964 = vpop.permute.xlu0 %6963
        %6966 = vset.pattern.permute.xlu0 1
        %6967 = vperm.xlu0 %6966, %v6362
        %v6968 = vpop.permute.xlu0 %6967
        %6970 = vset.pattern.permute.xlu0 1
        %6971 = vperm.xlu0 %6970, %v6363
        %v6972 = vpop.permute.xlu0 %6971
        %6974 = vset.pattern.permute.xlu0 1
        %6975 = vperm.xlu0 %6974, %v6364
        %v6976 = vpop.permute.xlu0 %6975
        %6978 = vset.pattern.permute.xlu0 1
        %6979 = vperm.xlu0 %6978, %v6365
        %v6980 = vpop.permute.xlu0 %6979
        %6982 = vset.pattern.permute.xlu0 1
        %6983 = vperm.xlu0 %6982, %v6366
        %v6984 = vpop.permute.xlu0 %6983
        %6986 = vset.pattern.permute.xlu0 1
        %6987 = vperm.xlu0 %6986, %v6367
        %v6988 = vpop.permute.xlu0 %6987
        %6990 = vset.pattern.permute.xlu0 1
        %6991 = vperm.xlu0 %6990, %v6368
        %v6992 = vpop.permute.xlu0 %6991
        %6994 = vset.pattern.permute.xlu0 1
        %6995 = vperm.xlu0 %6994, %v6369
        %v6996 = vpop.permute.xlu0 %6995
        %6998 = vset.pattern.permute.xlu0 1
        %6999 = vperm.xlu0 %6998, %v6370
        %v7000 = vpop.permute.xlu0 %6999
        %7002 = vset.pattern.permute.xlu0 1
        %7003 = vperm.xlu0 %7002, %v6371
        %v7004 = vpop.permute.xlu0 %7003
        %7006 = vset.pattern.permute.xlu0 1
        %7007 = vperm.xlu0 %7006, %v6372
        %v7008 = vpop.permute.xlu0 %7007
        %7010 = vset.pattern.permute.xlu0 1
        %7011 = vperm.xlu0 %7010, %v6373
        %v7012 = vpop.permute.xlu0 %7011
        %v7014 = vmul.f32 %v6056, %v6760
        %v7015 = vmul.f32 %v6059, %v6764
        %v7016 = vmul.f32 %v6064, %v6768
        %v7017 = vmul.f32 %v6067, %v6772
        %v7018 = vmul.f32 %v6072, %v6776
        %v7019 = vmul.f32 %v6075, %v6780
        %v7020 = vmul.f32 %v6080, %v6784
        %v7021 = vmul.f32 %v6083, %v6788
        %v7022 = vmul.f32 %v6088, %v6792
        %v7023 = vmul.f32 %v6091, %v6796
        %v7024 = vmul.f32 %v6096, %v6800
        %v7025 = vmul.f32 %v6099, %v6804
        %v7026 = vmul.f32 %v6104, %v6808
        %v7027 = vmul.f32 %v6107, %v6812
        %v7028 = vmul.f32 %v6112, %v6816
        %v7029 = vmul.f32 %v6115, %v6820
        %v7030 = vmul.f32 %v6120, %v6824
        %v7031 = vmul.f32 %v6123, %v6828
        %v7032 = vmul.f32 %v6128, %v6832
        %v7033 = vmul.f32 %v6131, %v6836
        %v7034 = vmul.f32 %v6136, %v6840
        %v7035 = vmul.f32 %v6139, %v6844
        %v7036 = vmul.f32 %v6144, %v6848
        %v7037 = vmul.f32 %v6147, %v6852
        %v7038 = vmul.f32 %v6152, %v6856
        %v7039 = vmul.f32 %v6155, %v6860
        %v7040 = vmul.f32 %v6160, %v6864
        %v7041 = vmul.f32 %v6163, %v6868
        %v7042 = vmul.f32 %v6168, %v6872
        %v7043 = vmul.f32 %v6171, %v6876
        %v7044 = vmul.f32 %v6176, %v6880
        %v7045 = vmul.f32 %v6179, %v6884
        %v7046 = vmul.f32 %v6184, %v6888
        %v7047 = vmul.f32 %v6187, %v6892
        %v7048 = vmul.f32 %v6192, %v6896
        %v7049 = vmul.f32 %v6195, %v6900
        %v7050 = vmul.f32 %v6200, %v6904
        %v7051 = vmul.f32 %v6203, %v6908
        %v7052 = vmul.f32 %v6208, %v6912
        %v7053 = vmul.f32 %v6211, %v6916
        %v7054 = vmul.f32 %v6216, %v6920
        %v7055 = vmul.f32 %v6219, %v6924
        %v7056 = vmul.f32 %v6224, %v6928
        %v7057 = vmul.f32 %v6227, %v6932
        %v7058 = vmul.f32 %v6232, %v6936
        %v7059 = vmul.f32 %v6235, %v6940
        %v7060 = vmul.f32 %v6240, %v6944
        %v7061 = vmul.f32 %v6243, %v6948
        %v7062 = vmul.f32 %v6248, %v6952
        %v7063 = vmul.f32 %v6251, %v6956
        %v7064 = vmul.f32 %v6256, %v6960
        %v7065 = vmul.f32 %v6259, %v6964
        %v7066 = vmul.f32 %v6264, %v6968
        %v7067 = vmul.f32 %v6267, %v6972
        %v7068 = vmul.f32 %v6272, %v6976
        %v7069 = vmul.f32 %v6275, %v6980
        %v7070 = vmul.f32 %v6280, %v6984
        %v7071 = vmul.f32 %v6283, %v6988
        %v7072 = vmul.f32 %v6288, %v6992
        %v7073 = vmul.f32 %v6291, %v6996
        %v7074 = vmul.f32 %v6296, %v7000
        %v7075 = vmul.f32 %v6299, %v7004
        %v7076 = vmul.f32 %v6304, %v7008
        %v7077 = vmul.f32 %v6307, %v7012
        %7142 = vrot.lane.b32.xlu0 %v7014, 124
        %v7143 = vpop.permute.xlu0 %7142
        %7144 = vrot.lane.b32.xlu0 %v7015, 124
        %v7145 = vpop.permute.xlu0 %7144
        %7146 = vrot.lane.b32.xlu0 %v7016, 124
        %v7147 = vpop.permute.xlu0 %7146
        %7148 = vrot.lane.b32.xlu0 %v7017, 124
        %v7149 = vpop.permute.xlu0 %7148
        %7150 = vrot.lane.b32.xlu0 %v7018, 124
        %v7151 = vpop.permute.xlu0 %7150
        %7152 = vrot.lane.b32.xlu0 %v7019, 124
        %v7153 = vpop.permute.xlu0 %7152
        %7154 = vrot.lane.b32.xlu0 %v7020, 124
        %v7155 = vpop.permute.xlu0 %7154
        %7156 = vrot.lane.b32.xlu0 %v7021, 124
        %v7157 = vpop.permute.xlu0 %7156
        %7158 = vrot.lane.b32.xlu0 %v7022, 124
        %v7159 = vpop.permute.xlu0 %7158
        %7160 = vrot.lane.b32.xlu0 %v7023, 124
        %v7161 = vpop.permute.xlu0 %7160
        %7162 = vrot.lane.b32.xlu0 %v7024, 124
        %v7163 = vpop.permute.xlu0 %7162
        %7164 = vrot.lane.b32.xlu0 %v7025, 124
        %v7165 = vpop.permute.xlu0 %7164
        %7166 = vrot.lane.b32.xlu0 %v7026, 124
        %v7167 = vpop.permute.xlu0 %7166
        %7168 = vrot.lane.b32.xlu0 %v7027, 124
        %v7169 = vpop.permute.xlu0 %7168
        %7170 = vrot.lane.b32.xlu0 %v7028, 124
        %v7171 = vpop.permute.xlu0 %7170
        %7172 = vrot.lane.b32.xlu0 %v7029, 124
        %v7173 = vpop.permute.xlu0 %7172
        %7174 = vrot.lane.b32.xlu0 %v7030, 124
        %v7175 = vpop.permute.xlu0 %7174
        %7176 = vrot.lane.b32.xlu0 %v7031, 124
        %v7177 = vpop.permute.xlu0 %7176
        %7178 = vrot.lane.b32.xlu0 %v7032, 124
        %v7179 = vpop.permute.xlu0 %7178
        %7180 = vrot.lane.b32.xlu0 %v7033, 124
        %v7181 = vpop.permute.xlu0 %7180
        %7182 = vrot.lane.b32.xlu0 %v7034, 124
        %v7183 = vpop.permute.xlu0 %7182
        %7184 = vrot.lane.b32.xlu0 %v7035, 124
        %v7185 = vpop.permute.xlu0 %7184
        %7186 = vrot.lane.b32.xlu0 %v7036, 124
        %v7187 = vpop.permute.xlu0 %7186
        %7188 = vrot.lane.b32.xlu0 %v7037, 124
        %v7189 = vpop.permute.xlu0 %7188
        %7190 = vrot.lane.b32.xlu0 %v7038, 124
        %v7191 = vpop.permute.xlu0 %7190
        %7192 = vrot.lane.b32.xlu0 %v7039, 124
        %v7193 = vpop.permute.xlu0 %7192
        %7194 = vrot.lane.b32.xlu0 %v7040, 124
        %v7195 = vpop.permute.xlu0 %7194
        %7196 = vrot.lane.b32.xlu0 %v7041, 124
        %v7197 = vpop.permute.xlu0 %7196
        %7198 = vrot.lane.b32.xlu0 %v7042, 124
        %v7199 = vpop.permute.xlu0 %7198
        %7200 = vrot.lane.b32.xlu0 %v7043, 124
        %v7201 = vpop.permute.xlu0 %7200
        %7202 = vrot.lane.b32.xlu0 %v7044, 124
        %v7203 = vpop.permute.xlu0 %7202
        %7204 = vrot.lane.b32.xlu0 %v7045, 124
        %v7205 = vpop.permute.xlu0 %7204
        %7206 = vrot.lane.b32.xlu0 %v7046, 124
        %v7207 = vpop.permute.xlu0 %7206
        %7208 = vrot.lane.b32.xlu0 %v7047, 124
        %v7209 = vpop.permute.xlu0 %7208
        %7210 = vrot.lane.b32.xlu0 %v7048, 124
        %v7211 = vpop.permute.xlu0 %7210
        %7212 = vrot.lane.b32.xlu0 %v7049, 124
        %v7213 = vpop.permute.xlu0 %7212
        %7214 = vrot.lane.b32.xlu0 %v7050, 124
        %v7215 = vpop.permute.xlu0 %7214
        %7216 = vrot.lane.b32.xlu0 %v7051, 124
        %v7217 = vpop.permute.xlu0 %7216
        %7218 = vrot.lane.b32.xlu0 %v7052, 124
        %v7219 = vpop.permute.xlu0 %7218
        %7220 = vrot.lane.b32.xlu0 %v7053, 124
        %v7221 = vpop.permute.xlu0 %7220
        %7222 = vrot.lane.b32.xlu0 %v7054, 124
        %v7223 = vpop.permute.xlu0 %7222
        %7224 = vrot.lane.b32.xlu0 %v7055, 124
        %v7225 = vpop.permute.xlu0 %7224
        %7226 = vrot.lane.b32.xlu0 %v7056, 124
        %v7227 = vpop.permute.xlu0 %7226
        %7228 = vrot.lane.b32.xlu0 %v7057, 124
        %v7229 = vpop.permute.xlu0 %7228
        %7230 = vrot.lane.b32.xlu0 %v7058, 124
        %v7231 = vpop.permute.xlu0 %7230
        %7232 = vrot.lane.b32.xlu0 %v7059, 124
        %v7233 = vpop.permute.xlu0 %7232
        %7234 = vrot.lane.b32.xlu0 %v7060, 124
        %v7235 = vpop.permute.xlu0 %7234
        %7236 = vrot.lane.b32.xlu0 %v7061, 124
        %v7237 = vpop.permute.xlu0 %7236
        %7238 = vrot.lane.b32.xlu0 %v7062, 124
        %v7239 = vpop.permute.xlu0 %7238
        %7240 = vrot.lane.b32.xlu0 %v7063, 124
        %v7241 = vpop.permute.xlu0 %7240
        %7242 = vrot.lane.b32.xlu0 %v7064, 124
        %v7243 = vpop.permute.xlu0 %7242
        %7244 = vrot.lane.b32.xlu0 %v7065, 124
        %v7245 = vpop.permute.xlu0 %7244
        %7246 = vrot.lane.b32.xlu0 %v7066, 124
        %v7247 = vpop.permute.xlu0 %7246
        %7248 = vrot.lane.b32.xlu0 %v7067, 124
        %v7249 = vpop.permute.xlu0 %7248
        %7250 = vrot.lane.b32.xlu0 %v7068, 124
        %v7251 = vpop.permute.xlu0 %7250
        %7252 = vrot.lane.b32.xlu0 %v7069, 124
        %v7253 = vpop.permute.xlu0 %7252
        %7254 = vrot.lane.b32.xlu0 %v7070, 124
        %v7255 = vpop.permute.xlu0 %7254
        %7256 = vrot.lane.b32.xlu0 %v7071, 124
        %v7257 = vpop.permute.xlu0 %7256
        %7258 = vrot.lane.b32.xlu0 %v7072, 124
        %v7259 = vpop.permute.xlu0 %7258
        %7260 = vrot.lane.b32.xlu0 %v7073, 124
        %v7261 = vpop.permute.xlu0 %7260
        %7262 = vrot.lane.b32.xlu0 %v7074, 124
        %v7263 = vpop.permute.xlu0 %7262
        %7264 = vrot.lane.b32.xlu0 %v7075, 124
        %v7265 = vpop.permute.xlu0 %7264
        %7266 = vrot.lane.b32.xlu0 %v7076, 124
        %v7267 = vpop.permute.xlu0 %7266
        %7268 = vrot.lane.b32.xlu0 %v7077, 124
        %v7269 = vpop.permute.xlu0 %7268
        %v7334 = vadd.f32 %v6694, %v7143
        %v7335 = vadd.f32 %v6695, %v7145
        %v7336 = vadd.f32 %v6696, %v7147
        %v7337 = vadd.f32 %v6697, %v7149
        %v7338 = vadd.f32 %v6698, %v7151
        %v7339 = vadd.f32 %v6699, %v7153
        %v7340 = vadd.f32 %v6700, %v7155
        %v7341 = vadd.f32 %v6701, %v7157
        %v7342 = vadd.f32 %v6702, %v7159
        %v7343 = vadd.f32 %v6703, %v7161
        %v7344 = vadd.f32 %v6704, %v7163
        %v7345 = vadd.f32 %v6705, %v7165
        %v7346 = vadd.f32 %v6706, %v7167
        %v7347 = vadd.f32 %v6707, %v7169
        %v7348 = vadd.f32 %v6708, %v7171
        %v7349 = vadd.f32 %v6709, %v7173
        %v7350 = vadd.f32 %v6710, %v7175
        %v7351 = vadd.f32 %v6711, %v7177
        %v7352 = vadd.f32 %v6712, %v7179
        %v7353 = vadd.f32 %v6713, %v7181
        %v7354 = vadd.f32 %v6714, %v7183
        %v7355 = vadd.f32 %v6715, %v7185
        %v7356 = vadd.f32 %v6716, %v7187
        %v7357 = vadd.f32 %v6717, %v7189
        %v7358 = vadd.f32 %v6718, %v7191
        %v7359 = vadd.f32 %v6719, %v7193
        %v7360 = vadd.f32 %v6720, %v7195
        %v7361 = vadd.f32 %v6721, %v7197
        %v7362 = vadd.f32 %v6722, %v7199
        %v7363 = vadd.f32 %v6723, %v7201
        %v7364 = vadd.f32 %v6724, %v7203
        %v7365 = vadd.f32 %v6725, %v7205
        %v7366 = vadd.f32 %v6726, %v7207
        %v7367 = vadd.f32 %v6727, %v7209
        %v7368 = vadd.f32 %v6728, %v7211
        %v7369 = vadd.f32 %v6729, %v7213
        %v7370 = vadd.f32 %v6730, %v7215
        %v7371 = vadd.f32 %v6731, %v7217
        %v7372 = vadd.f32 %v6732, %v7219
        %v7373 = vadd.f32 %v6733, %v7221
        %v7374 = vadd.f32 %v6734, %v7223
        %v7375 = vadd.f32 %v6735, %v7225
        %v7376 = vadd.f32 %v6736, %v7227
        %v7377 = vadd.f32 %v6737, %v7229
        %v7378 = vadd.f32 %v6738, %v7231
        %v7379 = vadd.f32 %v6739, %v7233
        %v7380 = vadd.f32 %v6740, %v7235
        %v7381 = vadd.f32 %v6741, %v7237
        %v7382 = vadd.f32 %v6742, %v7239
        %v7383 = vadd.f32 %v6743, %v7241
        %v7384 = vadd.f32 %v6744, %v7243
        %v7385 = vadd.f32 %v6745, %v7245
        %v7386 = vadd.f32 %v6746, %v7247
        %v7387 = vadd.f32 %v6747, %v7249
        %v7388 = vadd.f32 %v6748, %v7251
        %v7389 = vadd.f32 %v6749, %v7253
        %v7390 = vadd.f32 %v6750, %v7255
        %v7391 = vadd.f32 %v6751, %v7257
        %v7392 = vadd.f32 %v6752, %v7259
        %v7393 = vadd.f32 %v6753, %v7261
        %v7394 = vadd.f32 %v6754, %v7263
        %v7395 = vadd.f32 %v6755, %v7265
        %v7396 = vadd.f32 %v6756, %v7267
        %v7397 = vadd.f32 %v6757, %v7269
        %7398 = vset.pattern.permute.xlu0 2
        %7399 = vperm.xlu0 %7398, %v6310
        %v7400 = vpop.permute.xlu0 %7399
        %7402 = vset.pattern.permute.xlu0 2
        %7403 = vperm.xlu0 %7402, %v6311
        %v7404 = vpop.permute.xlu0 %7403
        %7406 = vset.pattern.permute.xlu0 2
        %7407 = vperm.xlu0 %7406, %v6312
        %v7408 = vpop.permute.xlu0 %7407
        %7410 = vset.pattern.permute.xlu0 2
        %7411 = vperm.xlu0 %7410, %v6313
        %v7412 = vpop.permute.xlu0 %7411
        %7414 = vset.pattern.permute.xlu0 2
        %7415 = vperm.xlu0 %7414, %v6314
        %v7416 = vpop.permute.xlu0 %7415
        %7418 = vset.pattern.permute.xlu0 2
        %7419 = vperm.xlu0 %7418, %v6315
        %v7420 = vpop.permute.xlu0 %7419
        %7422 = vset.pattern.permute.xlu0 2
        %7423 = vperm.xlu0 %7422, %v6316
        %v7424 = vpop.permute.xlu0 %7423
        %7426 = vset.pattern.permute.xlu0 2
        %7427 = vperm.xlu0 %7426, %v6317
        %v7428 = vpop.permute.xlu0 %7427
        %7430 = vset.pattern.permute.xlu0 2
        %7431 = vperm.xlu0 %7430, %v6318
        %v7432 = vpop.permute.xlu0 %7431
        %7434 = vset.pattern.permute.xlu0 2
        %7435 = vperm.xlu0 %7434, %v6319
        %v7436 = vpop.permute.xlu0 %7435
        %7438 = vset.pattern.permute.xlu0 2
        %7439 = vperm.xlu0 %7438, %v6320
        %v7440 = vpop.permute.xlu0 %7439
        %7442 = vset.pattern.permute.xlu0 2
        %7443 = vperm.xlu0 %7442, %v6321
        %v7444 = vpop.permute.xlu0 %7443
        %7446 = vset.pattern.permute.xlu0 2
        %7447 = vperm.xlu0 %7446, %v6322
        %v7448 = vpop.permute.xlu0 %7447
        %7450 = vset.pattern.permute.xlu0 2
        %7451 = vperm.xlu0 %7450, %v6323
        %v7452 = vpop.permute.xlu0 %7451
        %7454 = vset.pattern.permute.xlu0 2
        %7455 = vperm.xlu0 %7454, %v6324
        %v7456 = vpop.permute.xlu0 %7455
        %7458 = vset.pattern.permute.xlu0 2
        %7459 = vperm.xlu0 %7458, %v6325
        %v7460 = vpop.permute.xlu0 %7459
        %7462 = vset.pattern.permute.xlu0 2
        %7463 = vperm.xlu0 %7462, %v6326
        %v7464 = vpop.permute.xlu0 %7463
        %7466 = vset.pattern.permute.xlu0 2
        %7467 = vperm.xlu0 %7466, %v6327
        %v7468 = vpop.permute.xlu0 %7467
        %7470 = vset.pattern.permute.xlu0 2
        %7471 = vperm.xlu0 %7470, %v6328
        %v7472 = vpop.permute.xlu0 %7471
        %7474 = vset.pattern.permute.xlu0 2
        %7475 = vperm.xlu0 %7474, %v6329
        %v7476 = vpop.permute.xlu0 %7475
        %7478 = vset.pattern.permute.xlu0 2
        %7479 = vperm.xlu0 %7478, %v6330
        %v7480 = vpop.permute.xlu0 %7479
        %7482 = vset.pattern.permute.xlu0 2
        %7483 = vperm.xlu0 %7482, %v6331
        %v7484 = vpop.permute.xlu0 %7483
        %7486 = vset.pattern.permute.xlu0 2
        %7487 = vperm.xlu0 %7486, %v6332
        %v7488 = vpop.permute.xlu0 %7487
        %7490 = vset.pattern.permute.xlu0 2
        %7491 = vperm.xlu0 %7490, %v6333
        %v7492 = vpop.permute.xlu0 %7491
        %7494 = vset.pattern.permute.xlu0 2
        %7495 = vperm.xlu0 %7494, %v6334
        %v7496 = vpop.permute.xlu0 %7495
        %7498 = vset.pattern.permute.xlu0 2
        %7499 = vperm.xlu0 %7498, %v6335
        %v7500 = vpop.permute.xlu0 %7499
        %7502 = vset.pattern.permute.xlu0 2
        %7503 = vperm.xlu0 %7502, %v6336
        %v7504 = vpop.permute.xlu0 %7503
        %7506 = vset.pattern.permute.xlu0 2
        %7507 = vperm.xlu0 %7506, %v6337
        %v7508 = vpop.permute.xlu0 %7507
        %7510 = vset.pattern.permute.xlu0 2
        %7511 = vperm.xlu0 %7510, %v6338
        %v7512 = vpop.permute.xlu0 %7511
        %7514 = vset.pattern.permute.xlu0 2
        %7515 = vperm.xlu0 %7514, %v6339
        %v7516 = vpop.permute.xlu0 %7515
        %7518 = vset.pattern.permute.xlu0 2
        %7519 = vperm.xlu0 %7518, %v6340
        %v7520 = vpop.permute.xlu0 %7519
        %7522 = vset.pattern.permute.xlu0 2
        %7523 = vperm.xlu0 %7522, %v6341
        %v7524 = vpop.permute.xlu0 %7523
        %7526 = vset.pattern.permute.xlu0 2
        %7527 = vperm.xlu0 %7526, %v6342
        %v7528 = vpop.permute.xlu0 %7527
        %7530 = vset.pattern.permute.xlu0 2
        %7531 = vperm.xlu0 %7530, %v6343
        %v7532 = vpop.permute.xlu0 %7531
        %7534 = vset.pattern.permute.xlu0 2
        %7535 = vperm.xlu0 %7534, %v6344
        %v7536 = vpop.permute.xlu0 %7535
        %7538 = vset.pattern.permute.xlu0 2
        %7539 = vperm.xlu0 %7538, %v6345
        %v7540 = vpop.permute.xlu0 %7539
        %7542 = vset.pattern.permute.xlu0 2
        %7543 = vperm.xlu0 %7542, %v6346
        %v7544 = vpop.permute.xlu0 %7543
        %7546 = vset.pattern.permute.xlu0 2
        %7547 = vperm.xlu0 %7546, %v6347
        %v7548 = vpop.permute.xlu0 %7547
        %7550 = vset.pattern.permute.xlu0 2
        %7551 = vperm.xlu0 %7550, %v6348
        %v7552 = vpop.permute.xlu0 %7551
        %7554 = vset.pattern.permute.xlu0 2
        %7555 = vperm.xlu0 %7554, %v6349
        %v7556 = vpop.permute.xlu0 %7555
        %7558 = vset.pattern.permute.xlu0 2
        %7559 = vperm.xlu0 %7558, %v6350
        %v7560 = vpop.permute.xlu0 %7559
        %7562 = vset.pattern.permute.xlu0 2
        %7563 = vperm.xlu0 %7562, %v6351
        %v7564 = vpop.permute.xlu0 %7563
        %7566 = vset.pattern.permute.xlu0 2
        %7567 = vperm.xlu0 %7566, %v6352
        %v7568 = vpop.permute.xlu0 %7567
        %7570 = vset.pattern.permute.xlu0 2
        %7571 = vperm.xlu0 %7570, %v6353
        %v7572 = vpop.permute.xlu0 %7571
        %7574 = vset.pattern.permute.xlu0 2
        %7575 = vperm.xlu0 %7574, %v6354
        %v7576 = vpop.permute.xlu0 %7575
        %7578 = vset.pattern.permute.xlu0 2
        %7579 = vperm.xlu0 %7578, %v6355
        %v7580 = vpop.permute.xlu0 %7579
        %7582 = vset.pattern.permute.xlu0 2
        %7583 = vperm.xlu0 %7582, %v6356
        %v7584 = vpop.permute.xlu0 %7583
        %7586 = vset.pattern.permute.xlu0 2
        %7587 = vperm.xlu0 %7586, %v6357
        %v7588 = vpop.permute.xlu0 %7587
        %7590 = vset.pattern.permute.xlu0 2
        %7591 = vperm.xlu0 %7590, %v6358
        %v7592 = vpop.permute.xlu0 %7591
        %7594 = vset.pattern.permute.xlu0 2
        %7595 = vperm.xlu0 %7594, %v6359
        %v7596 = vpop.permute.xlu0 %7595
        %7598 = vset.pattern.permute.xlu0 2
        %7599 = vperm.xlu0 %7598, %v6360
        %v7600 = vpop.permute.xlu0 %7599
        %7602 = vset.pattern.permute.xlu0 2
        %7603 = vperm.xlu0 %7602, %v6361
        %v7604 = vpop.permute.xlu0 %7603
        %7606 = vset.pattern.permute.xlu0 2
        %7607 = vperm.xlu0 %7606, %v6362
        %v7608 = vpop.permute.xlu0 %7607
        %7610 = vset.pattern.permute.xlu0 2
        %7611 = vperm.xlu0 %7610, %v6363
        %v7612 = vpop.permute.xlu0 %7611
        %7614 = vset.pattern.permute.xlu0 2
        %7615 = vperm.xlu0 %7614, %v6364
        %v7616 = vpop.permute.xlu0 %7615
        %7618 = vset.pattern.permute.xlu0 2
        %7619 = vperm.xlu0 %7618, %v6365
        %v7620 = vpop.permute.xlu0 %7619
        %7622 = vset.pattern.permute.xlu0 2
        %7623 = vperm.xlu0 %7622, %v6366
        %v7624 = vpop.permute.xlu0 %7623
        %7626 = vset.pattern.permute.xlu0 2
        %7627 = vperm.xlu0 %7626, %v6367
        %v7628 = vpop.permute.xlu0 %7627
        %7630 = vset.pattern.permute.xlu0 2
        %7631 = vperm.xlu0 %7630, %v6368
        %v7632 = vpop.permute.xlu0 %7631
        %7634 = vset.pattern.permute.xlu0 2
        %7635 = vperm.xlu0 %7634, %v6369
        %v7636 = vpop.permute.xlu0 %7635
        %7638 = vset.pattern.permute.xlu0 2
        %7639 = vperm.xlu0 %7638, %v6370
        %v7640 = vpop.permute.xlu0 %7639
        %7642 = vset.pattern.permute.xlu0 2
        %7643 = vperm.xlu0 %7642, %v6371
        %v7644 = vpop.permute.xlu0 %7643
        %7646 = vset.pattern.permute.xlu0 2
        %7647 = vperm.xlu0 %7646, %v6372
        %v7648 = vpop.permute.xlu0 %7647
        %7650 = vset.pattern.permute.xlu0 2
        %7651 = vperm.xlu0 %7650, %v6373
        %v7652 = vpop.permute.xlu0 %7651
        %v7654 = vmul.f32 %v6056, %v7400
        %v7655 = vmul.f32 %v6059, %v7404
        %v7656 = vmul.f32 %v6064, %v7408
        %v7657 = vmul.f32 %v6067, %v7412
        %v7658 = vmul.f32 %v6072, %v7416
        %v7659 = vmul.f32 %v6075, %v7420
        %v7660 = vmul.f32 %v6080, %v7424
        %v7661 = vmul.f32 %v6083, %v7428
        %v7662 = vmul.f32 %v6088, %v7432
        %v7663 = vmul.f32 %v6091, %v7436
        %v7664 = vmul.f32 %v6096, %v7440
        %v7665 = vmul.f32 %v6099, %v7444
        %v7666 = vmul.f32 %v6104, %v7448
        %v7667 = vmul.f32 %v6107, %v7452
        %v7668 = vmul.f32 %v6112, %v7456
        %v7669 = vmul.f32 %v6115, %v7460
        %v7670 = vmul.f32 %v6120, %v7464
        %v7671 = vmul.f32 %v6123, %v7468
        %v7672 = vmul.f32 %v6128, %v7472
        %v7673 = vmul.f32 %v6131, %v7476
        %v7674 = vmul.f32 %v6136, %v7480
        %v7675 = vmul.f32 %v6139, %v7484
        %v7676 = vmul.f32 %v6144, %v7488
        %v7677 = vmul.f32 %v6147, %v7492
        %v7678 = vmul.f32 %v6152, %v7496
        %v7679 = vmul.f32 %v6155, %v7500
        %v7680 = vmul.f32 %v6160, %v7504
        %v7681 = vmul.f32 %v6163, %v7508
        %v7682 = vmul.f32 %v6168, %v7512
        %v7683 = vmul.f32 %v6171, %v7516
        %v7684 = vmul.f32 %v6176, %v7520
        %v7685 = vmul.f32 %v6179, %v7524
        %v7686 = vmul.f32 %v6184, %v7528
        %v7687 = vmul.f32 %v6187, %v7532
        %v7688 = vmul.f32 %v6192, %v7536
        %v7689 = vmul.f32 %v6195, %v7540
        %v7690 = vmul.f32 %v6200, %v7544
        %v7691 = vmul.f32 %v6203, %v7548
        %v7692 = vmul.f32 %v6208, %v7552
        %v7693 = vmul.f32 %v6211, %v7556
        %v7694 = vmul.f32 %v6216, %v7560
        %v7695 = vmul.f32 %v6219, %v7564
        %v7696 = vmul.f32 %v6224, %v7568
        %v7697 = vmul.f32 %v6227, %v7572
        %v7698 = vmul.f32 %v6232, %v7576
        %v7699 = vmul.f32 %v6235, %v7580
        %v7700 = vmul.f32 %v6240, %v7584
        %v7701 = vmul.f32 %v6243, %v7588
        %v7702 = vmul.f32 %v6248, %v7592
        %v7703 = vmul.f32 %v6251, %v7596
        %v7704 = vmul.f32 %v6256, %v7600
        %v7705 = vmul.f32 %v6259, %v7604
        %v7706 = vmul.f32 %v6264, %v7608
        %v7707 = vmul.f32 %v6267, %v7612
        %v7708 = vmul.f32 %v6272, %v7616
        %v7709 = vmul.f32 %v6275, %v7620
        %v7710 = vmul.f32 %v6280, %v7624
        %v7711 = vmul.f32 %v6283, %v7628
        %v7712 = vmul.f32 %v6288, %v7632
        %v7713 = vmul.f32 %v6291, %v7636
        %v7714 = vmul.f32 %v6296, %v7640
        %v7715 = vmul.f32 %v6299, %v7644
        %v7716 = vmul.f32 %v6304, %v7648
        %v7717 = vmul.f32 %v6307, %v7652
        %7782 = vrot.lane.b32.xlu0 %v7654, 120
        %v7783 = vpop.permute.xlu0 %7782
        %7784 = vrot.lane.b32.xlu0 %v7655, 120
        %v7785 = vpop.permute.xlu0 %7784
        %7786 = vrot.lane.b32.xlu0 %v7656, 120
        %v7787 = vpop.permute.xlu0 %7786
        %7788 = vrot.lane.b32.xlu0 %v7657, 120
        %v7789 = vpop.permute.xlu0 %7788
        %7790 = vrot.lane.b32.xlu0 %v7658, 120
        %v7791 = vpop.permute.xlu0 %7790
        %7792 = vrot.lane.b32.xlu0 %v7659, 120
        %v7793 = vpop.permute.xlu0 %7792
        %7794 = vrot.lane.b32.xlu0 %v7660, 120
        %v7795 = vpop.permute.xlu0 %7794
        %7796 = vrot.lane.b32.xlu0 %v7661, 120
        %v7797 = vpop.permute.xlu0 %7796
        %7798 = vrot.lane.b32.xlu0 %v7662, 120
        %v7799 = vpop.permute.xlu0 %7798
        %7800 = vrot.lane.b32.xlu0 %v7663, 120
        %v7801 = vpop.permute.xlu0 %7800
        %7802 = vrot.lane.b32.xlu0 %v7664, 120
        %v7803 = vpop.permute.xlu0 %7802
        %7804 = vrot.lane.b32.xlu0 %v7665, 120
        %v7805 = vpop.permute.xlu0 %7804
        %7806 = vrot.lane.b32.xlu0 %v7666, 120
        %v7807 = vpop.permute.xlu0 %7806
        %7808 = vrot.lane.b32.xlu0 %v7667, 120
        %v7809 = vpop.permute.xlu0 %7808
        %7810 = vrot.lane.b32.xlu0 %v7668, 120
        %v7811 = vpop.permute.xlu0 %7810
        %7812 = vrot.lane.b32.xlu0 %v7669, 120
        %v7813 = vpop.permute.xlu0 %7812
        %7814 = vrot.lane.b32.xlu0 %v7670, 120
        %v7815 = vpop.permute.xlu0 %7814
        %7816 = vrot.lane.b32.xlu0 %v7671, 120
        %v7817 = vpop.permute.xlu0 %7816
        %7818 = vrot.lane.b32.xlu0 %v7672, 120
        %v7819 = vpop.permute.xlu0 %7818
        %7820 = vrot.lane.b32.xlu0 %v7673, 120
        %v7821 = vpop.permute.xlu0 %7820
        %7822 = vrot.lane.b32.xlu0 %v7674, 120
        %v7823 = vpop.permute.xlu0 %7822
        %7824 = vrot.lane.b32.xlu0 %v7675, 120
        %v7825 = vpop.permute.xlu0 %7824
        %7826 = vrot.lane.b32.xlu0 %v7676, 120
        %v7827 = vpop.permute.xlu0 %7826
        %7828 = vrot.lane.b32.xlu0 %v7677, 120
        %v7829 = vpop.permute.xlu0 %7828
        %7830 = vrot.lane.b32.xlu0 %v7678, 120
        %v7831 = vpop.permute.xlu0 %7830
        %7832 = vrot.lane.b32.xlu0 %v7679, 120
        %v7833 = vpop.permute.xlu0 %7832
        %7834 = vrot.lane.b32.xlu0 %v7680, 120
        %v7835 = vpop.permute.xlu0 %7834
        %7836 = vrot.lane.b32.xlu0 %v7681, 120
        %v7837 = vpop.permute.xlu0 %7836
        %7838 = vrot.lane.b32.xlu0 %v7682, 120
        %v7839 = vpop.permute.xlu0 %7838
        %7840 = vrot.lane.b32.xlu0 %v7683, 120
        %v7841 = vpop.permute.xlu0 %7840
        %7842 = vrot.lane.b32.xlu0 %v7684, 120
        %v7843 = vpop.permute.xlu0 %7842
        %7844 = vrot.lane.b32.xlu0 %v7685, 120
        %v7845 = vpop.permute.xlu0 %7844
        %7846 = vrot.lane.b32.xlu0 %v7686, 120
        %v7847 = vpop.permute.xlu0 %7846
        %7848 = vrot.lane.b32.xlu0 %v7687, 120
        %v7849 = vpop.permute.xlu0 %7848
        %7850 = vrot.lane.b32.xlu0 %v7688, 120
        %v7851 = vpop.permute.xlu0 %7850
        %7852 = vrot.lane.b32.xlu0 %v7689, 120
        %v7853 = vpop.permute.xlu0 %7852
        %7854 = vrot.lane.b32.xlu0 %v7690, 120
        %v7855 = vpop.permute.xlu0 %7854
        %7856 = vrot.lane.b32.xlu0 %v7691, 120
        %v7857 = vpop.permute.xlu0 %7856
        %7858 = vrot.lane.b32.xlu0 %v7692, 120
        %v7859 = vpop.permute.xlu0 %7858
        %7860 = vrot.lane.b32.xlu0 %v7693, 120
        %v7861 = vpop.permute.xlu0 %7860
        %7862 = vrot.lane.b32.xlu0 %v7694, 120
        %v7863 = vpop.permute.xlu0 %7862
        %7864 = vrot.lane.b32.xlu0 %v7695, 120
        %v7865 = vpop.permute.xlu0 %7864
        %7866 = vrot.lane.b32.xlu0 %v7696, 120
        %v7867 = vpop.permute.xlu0 %7866
        %7868 = vrot.lane.b32.xlu0 %v7697, 120
        %v7869 = vpop.permute.xlu0 %7868
        %7870 = vrot.lane.b32.xlu0 %v7698, 120
        %v7871 = vpop.permute.xlu0 %7870
        %7872 = vrot.lane.b32.xlu0 %v7699, 120
        %v7873 = vpop.permute.xlu0 %7872
        %7874 = vrot.lane.b32.xlu0 %v7700, 120
        %v7875 = vpop.permute.xlu0 %7874
        %7876 = vrot.lane.b32.xlu0 %v7701, 120
        %v7877 = vpop.permute.xlu0 %7876
        %7878 = vrot.lane.b32.xlu0 %v7702, 120
        %v7879 = vpop.permute.xlu0 %7878
        %7880 = vrot.lane.b32.xlu0 %v7703, 120
        %v7881 = vpop.permute.xlu0 %7880
        %7882 = vrot.lane.b32.xlu0 %v7704, 120
        %v7883 = vpop.permute.xlu0 %7882
        %7884 = vrot.lane.b32.xlu0 %v7705, 120
        %v7885 = vpop.permute.xlu0 %7884
        %7886 = vrot.lane.b32.xlu0 %v7706, 120
        %v7887 = vpop.permute.xlu0 %7886
        %7888 = vrot.lane.b32.xlu0 %v7707, 120
        %v7889 = vpop.permute.xlu0 %7888
        %7890 = vrot.lane.b32.xlu0 %v7708, 120
        %v7891 = vpop.permute.xlu0 %7890
        %7892 = vrot.lane.b32.xlu0 %v7709, 120
        %v7893 = vpop.permute.xlu0 %7892
        %7894 = vrot.lane.b32.xlu0 %v7710, 120
        %v7895 = vpop.permute.xlu0 %7894
        %7896 = vrot.lane.b32.xlu0 %v7711, 120
        %v7897 = vpop.permute.xlu0 %7896
        %7898 = vrot.lane.b32.xlu0 %v7712, 120
        %v7899 = vpop.permute.xlu0 %7898
        %7900 = vrot.lane.b32.xlu0 %v7713, 120
        %v7901 = vpop.permute.xlu0 %7900
        %7902 = vrot.lane.b32.xlu0 %v7714, 120
        %v7903 = vpop.permute.xlu0 %7902
        %7904 = vrot.lane.b32.xlu0 %v7715, 120
        %v7905 = vpop.permute.xlu0 %7904
        %7906 = vrot.lane.b32.xlu0 %v7716, 120
        %v7907 = vpop.permute.xlu0 %7906
        %7908 = vrot.lane.b32.xlu0 %v7717, 120
        %v7909 = vpop.permute.xlu0 %7908
        %v7974 = vadd.f32 %v7334, %v7783
        %v7975 = vadd.f32 %v7335, %v7785
        %v7976 = vadd.f32 %v7336, %v7787
        %v7977 = vadd.f32 %v7337, %v7789
        %v7978 = vadd.f32 %v7338, %v7791
        %v7979 = vadd.f32 %v7339, %v7793
        %v7980 = vadd.f32 %v7340, %v7795
        %v7981 = vadd.f32 %v7341, %v7797
        %v7982 = vadd.f32 %v7342, %v7799
        %v7983 = vadd.f32 %v7343, %v7801
        %v7984 = vadd.f32 %v7344, %v7803
        %v7985 = vadd.f32 %v7345, %v7805
        %v7986 = vadd.f32 %v7346, %v7807
        %v7987 = vadd.f32 %v7347, %v7809
        %v7988 = vadd.f32 %v7348, %v7811
        %v7989 = vadd.f32 %v7349, %v7813
        %v7990 = vadd.f32 %v7350, %v7815
        %v7991 = vadd.f32 %v7351, %v7817
        %v7992 = vadd.f32 %v7352, %v7819
        %v7993 = vadd.f32 %v7353, %v7821
        %v7994 = vadd.f32 %v7354, %v7823
        %v7995 = vadd.f32 %v7355, %v7825
        %v7996 = vadd.f32 %v7356, %v7827
        %v7997 = vadd.f32 %v7357, %v7829
        %v7998 = vadd.f32 %v7358, %v7831
        %v7999 = vadd.f32 %v7359, %v7833
        %v8000 = vadd.f32 %v7360, %v7835
        %v8001 = vadd.f32 %v7361, %v7837
        %v8002 = vadd.f32 %v7362, %v7839
        %v8003 = vadd.f32 %v7363, %v7841
        %v8004 = vadd.f32 %v7364, %v7843
        %v8005 = vadd.f32 %v7365, %v7845
        %v8006 = vadd.f32 %v7366, %v7847
        %v8007 = vadd.f32 %v7367, %v7849
        %v8008 = vadd.f32 %v7368, %v7851
        %v8009 = vadd.f32 %v7369, %v7853
        %v8010 = vadd.f32 %v7370, %v7855
        %v8011 = vadd.f32 %v7371, %v7857
        %v8012 = vadd.f32 %v7372, %v7859
        %v8013 = vadd.f32 %v7373, %v7861
        %v8014 = vadd.f32 %v7374, %v7863
        %v8015 = vadd.f32 %v7375, %v7865
        %v8016 = vadd.f32 %v7376, %v7867
        %v8017 = vadd.f32 %v7377, %v7869
        %v8018 = vadd.f32 %v7378, %v7871
        %v8019 = vadd.f32 %v7379, %v7873
        %v8020 = vadd.f32 %v7380, %v7875
        %v8021 = vadd.f32 %v7381, %v7877
        %v8022 = vadd.f32 %v7382, %v7879
        %v8023 = vadd.f32 %v7383, %v7881
        %v8024 = vadd.f32 %v7384, %v7883
        %v8025 = vadd.f32 %v7385, %v7885
        %v8026 = vadd.f32 %v7386, %v7887
        %v8027 = vadd.f32 %v7387, %v7889
        %v8028 = vadd.f32 %v7388, %v7891
        %v8029 = vadd.f32 %v7389, %v7893
        %v8030 = vadd.f32 %v7390, %v7895
        %v8031 = vadd.f32 %v7391, %v7897
        %v8032 = vadd.f32 %v7392, %v7899
        %v8033 = vadd.f32 %v7393, %v7901
        %v8034 = vadd.f32 %v7394, %v7903
        %v8035 = vadd.f32 %v7395, %v7905
        %v8036 = vadd.f32 %v7396, %v7907
        %v8037 = vadd.f32 %v7397, %v7909
        %8038 = vset.pattern.permute.xlu0 3
        %8039 = vperm.xlu0 %8038, %v6310
        %v8040 = vpop.permute.xlu0 %8039
        %8042 = vset.pattern.permute.xlu0 3
        %8043 = vperm.xlu0 %8042, %v6311
        %v8044 = vpop.permute.xlu0 %8043
        %8046 = vset.pattern.permute.xlu0 3
        %8047 = vperm.xlu0 %8046, %v6312
        %v8048 = vpop.permute.xlu0 %8047
        %8050 = vset.pattern.permute.xlu0 3
        %8051 = vperm.xlu0 %8050, %v6313
        %v8052 = vpop.permute.xlu0 %8051
        %8054 = vset.pattern.permute.xlu0 3
        %8055 = vperm.xlu0 %8054, %v6314
        %v8056 = vpop.permute.xlu0 %8055
        %8058 = vset.pattern.permute.xlu0 3
        %8059 = vperm.xlu0 %8058, %v6315
        %v8060 = vpop.permute.xlu0 %8059
        %8062 = vset.pattern.permute.xlu0 3
        %8063 = vperm.xlu0 %8062, %v6316
        %v8064 = vpop.permute.xlu0 %8063
        %8066 = vset.pattern.permute.xlu0 3
        %8067 = vperm.xlu0 %8066, %v6317
        %v8068 = vpop.permute.xlu0 %8067
        %8070 = vset.pattern.permute.xlu0 3
        %8071 = vperm.xlu0 %8070, %v6318
        %v8072 = vpop.permute.xlu0 %8071
        %8074 = vset.pattern.permute.xlu0 3
        %8075 = vperm.xlu0 %8074, %v6319
        %v8076 = vpop.permute.xlu0 %8075
        %8078 = vset.pattern.permute.xlu0 3
        %8079 = vperm.xlu0 %8078, %v6320
        %v8080 = vpop.permute.xlu0 %8079
        %8082 = vset.pattern.permute.xlu0 3
        %8083 = vperm.xlu0 %8082, %v6321
        %v8084 = vpop.permute.xlu0 %8083
        %8086 = vset.pattern.permute.xlu0 3
        %8087 = vperm.xlu0 %8086, %v6322
        %v8088 = vpop.permute.xlu0 %8087
        %8090 = vset.pattern.permute.xlu0 3
        %8091 = vperm.xlu0 %8090, %v6323
        %v8092 = vpop.permute.xlu0 %8091
        %8094 = vset.pattern.permute.xlu0 3
        %8095 = vperm.xlu0 %8094, %v6324
        %v8096 = vpop.permute.xlu0 %8095
        %8098 = vset.pattern.permute.xlu0 3
        %8099 = vperm.xlu0 %8098, %v6325
        %v8100 = vpop.permute.xlu0 %8099
        %8102 = vset.pattern.permute.xlu0 3
        %8103 = vperm.xlu0 %8102, %v6326
        %v8104 = vpop.permute.xlu0 %8103
        %8106 = vset.pattern.permute.xlu0 3
        %8107 = vperm.xlu0 %8106, %v6327
        %v8108 = vpop.permute.xlu0 %8107
        %8110 = vset.pattern.permute.xlu0 3
        %8111 = vperm.xlu0 %8110, %v6328
        %v8112 = vpop.permute.xlu0 %8111
        %8114 = vset.pattern.permute.xlu0 3
        %8115 = vperm.xlu0 %8114, %v6329
        %v8116 = vpop.permute.xlu0 %8115
        %8118 = vset.pattern.permute.xlu0 3
        %8119 = vperm.xlu0 %8118, %v6330
        %v8120 = vpop.permute.xlu0 %8119
        %8122 = vset.pattern.permute.xlu0 3
        %8123 = vperm.xlu0 %8122, %v6331
        %v8124 = vpop.permute.xlu0 %8123
        %8126 = vset.pattern.permute.xlu0 3
        %8127 = vperm.xlu0 %8126, %v6332
        %v8128 = vpop.permute.xlu0 %8127
        %8130 = vset.pattern.permute.xlu0 3
        %8131 = vperm.xlu0 %8130, %v6333
        %v8132 = vpop.permute.xlu0 %8131
        %8134 = vset.pattern.permute.xlu0 3
        %8135 = vperm.xlu0 %8134, %v6334
        %v8136 = vpop.permute.xlu0 %8135
        %8138 = vset.pattern.permute.xlu0 3
        %8139 = vperm.xlu0 %8138, %v6335
        %v8140 = vpop.permute.xlu0 %8139
        %8142 = vset.pattern.permute.xlu0 3
        %8143 = vperm.xlu0 %8142, %v6336
        %v8144 = vpop.permute.xlu0 %8143
        %8146 = vset.pattern.permute.xlu0 3
        %8147 = vperm.xlu0 %8146, %v6337
        %v8148 = vpop.permute.xlu0 %8147
        %8150 = vset.pattern.permute.xlu0 3
        %8151 = vperm.xlu0 %8150, %v6338
        %v8152 = vpop.permute.xlu0 %8151
        %8154 = vset.pattern.permute.xlu0 3
        %8155 = vperm.xlu0 %8154, %v6339
        %v8156 = vpop.permute.xlu0 %8155
        %8158 = vset.pattern.permute.xlu0 3
        %8159 = vperm.xlu0 %8158, %v6340
        %v8160 = vpop.permute.xlu0 %8159
        %8162 = vset.pattern.permute.xlu0 3
        %8163 = vperm.xlu0 %8162, %v6341
        %v8164 = vpop.permute.xlu0 %8163
        %8166 = vset.pattern.permute.xlu0 3
        %8167 = vperm.xlu0 %8166, %v6342
        %v8168 = vpop.permute.xlu0 %8167
        %8170 = vset.pattern.permute.xlu0 3
        %8171 = vperm.xlu0 %8170, %v6343
        %v8172 = vpop.permute.xlu0 %8171
        %8174 = vset.pattern.permute.xlu0 3
        %8175 = vperm.xlu0 %8174, %v6344
        %v8176 = vpop.permute.xlu0 %8175
        %8178 = vset.pattern.permute.xlu0 3
        %8179 = vperm.xlu0 %8178, %v6345
        %v8180 = vpop.permute.xlu0 %8179
        %8182 = vset.pattern.permute.xlu0 3
        %8183 = vperm.xlu0 %8182, %v6346
        %v8184 = vpop.permute.xlu0 %8183
        %8186 = vset.pattern.permute.xlu0 3
        %8187 = vperm.xlu0 %8186, %v6347
        %v8188 = vpop.permute.xlu0 %8187
        %8190 = vset.pattern.permute.xlu0 3
        %8191 = vperm.xlu0 %8190, %v6348
        %v8192 = vpop.permute.xlu0 %8191
        %8194 = vset.pattern.permute.xlu0 3
        %8195 = vperm.xlu0 %8194, %v6349
        %v8196 = vpop.permute.xlu0 %8195
        %8198 = vset.pattern.permute.xlu0 3
        %8199 = vperm.xlu0 %8198, %v6350
        %v8200 = vpop.permute.xlu0 %8199
        %8202 = vset.pattern.permute.xlu0 3
        %8203 = vperm.xlu0 %8202, %v6351
        %v8204 = vpop.permute.xlu0 %8203
        %8206 = vset.pattern.permute.xlu0 3
        %8207 = vperm.xlu0 %8206, %v6352
        %v8208 = vpop.permute.xlu0 %8207
        %8210 = vset.pattern.permute.xlu0 3
        %8211 = vperm.xlu0 %8210, %v6353
        %v8212 = vpop.permute.xlu0 %8211
        %8214 = vset.pattern.permute.xlu0 3
        %8215 = vperm.xlu0 %8214, %v6354
        %v8216 = vpop.permute.xlu0 %8215
        %8218 = vset.pattern.permute.xlu0 3
        %8219 = vperm.xlu0 %8218, %v6355
        %v8220 = vpop.permute.xlu0 %8219
        %8222 = vset.pattern.permute.xlu0 3
        %8223 = vperm.xlu0 %8222, %v6356
        %v8224 = vpop.permute.xlu0 %8223
        %8226 = vset.pattern.permute.xlu0 3
        %8227 = vperm.xlu0 %8226, %v6357
        %v8228 = vpop.permute.xlu0 %8227
        %8230 = vset.pattern.permute.xlu0 3
        %8231 = vperm.xlu0 %8230, %v6358
        %v8232 = vpop.permute.xlu0 %8231
        %8234 = vset.pattern.permute.xlu0 3
        %8235 = vperm.xlu0 %8234, %v6359
        %v8236 = vpop.permute.xlu0 %8235
        %8238 = vset.pattern.permute.xlu0 3
        %8239 = vperm.xlu0 %8238, %v6360
        %v8240 = vpop.permute.xlu0 %8239
        %8242 = vset.pattern.permute.xlu0 3
        %8243 = vperm.xlu0 %8242, %v6361
        %v8244 = vpop.permute.xlu0 %8243
        %8246 = vset.pattern.permute.xlu0 3
        %8247 = vperm.xlu0 %8246, %v6362
        %v8248 = vpop.permute.xlu0 %8247
        %8250 = vset.pattern.permute.xlu0 3
        %8251 = vperm.xlu0 %8250, %v6363
        %v8252 = vpop.permute.xlu0 %8251
        %8254 = vset.pattern.permute.xlu0 3
        %8255 = vperm.xlu0 %8254, %v6364
        %v8256 = vpop.permute.xlu0 %8255
        %8258 = vset.pattern.permute.xlu0 3
        %8259 = vperm.xlu0 %8258, %v6365
        %v8260 = vpop.permute.xlu0 %8259
        %8262 = vset.pattern.permute.xlu0 3
        %8263 = vperm.xlu0 %8262, %v6366
        %v8264 = vpop.permute.xlu0 %8263
        %8266 = vset.pattern.permute.xlu0 3
        %8267 = vperm.xlu0 %8266, %v6367
        %v8268 = vpop.permute.xlu0 %8267
        %8270 = vset.pattern.permute.xlu0 3
        %8271 = vperm.xlu0 %8270, %v6368
        %v8272 = vpop.permute.xlu0 %8271
        %8274 = vset.pattern.permute.xlu0 3
        %8275 = vperm.xlu0 %8274, %v6369
        %v8276 = vpop.permute.xlu0 %8275
        %8278 = vset.pattern.permute.xlu0 3
        %8279 = vperm.xlu0 %8278, %v6370
        %v8280 = vpop.permute.xlu0 %8279
        %8282 = vset.pattern.permute.xlu0 3
        %8283 = vperm.xlu0 %8282, %v6371
        %v8284 = vpop.permute.xlu0 %8283
        %8286 = vset.pattern.permute.xlu0 3
        %8287 = vperm.xlu0 %8286, %v6372
        %v8288 = vpop.permute.xlu0 %8287
        %8290 = vset.pattern.permute.xlu0 3
        %8291 = vperm.xlu0 %8290, %v6373
        %v8292 = vpop.permute.xlu0 %8291
        %v8294 = vmul.f32 %v6056, %v8040
        %v8295 = vmul.f32 %v6059, %v8044
        %v8296 = vmul.f32 %v6064, %v8048
        %v8297 = vmul.f32 %v6067, %v8052
        %v8298 = vmul.f32 %v6072, %v8056
        %v8299 = vmul.f32 %v6075, %v8060
        %v8300 = vmul.f32 %v6080, %v8064
        %v8301 = vmul.f32 %v6083, %v8068
        %v8302 = vmul.f32 %v6088, %v8072
        %v8303 = vmul.f32 %v6091, %v8076
        %v8304 = vmul.f32 %v6096, %v8080
        %v8305 = vmul.f32 %v6099, %v8084
        %v8306 = vmul.f32 %v6104, %v8088
        %v8307 = vmul.f32 %v6107, %v8092
        %v8308 = vmul.f32 %v6112, %v8096
        %v8309 = vmul.f32 %v6115, %v8100
        %v8310 = vmul.f32 %v6120, %v8104
        %v8311 = vmul.f32 %v6123, %v8108
        %v8312 = vmul.f32 %v6128, %v8112
        %v8313 = vmul.f32 %v6131, %v8116
        %v8314 = vmul.f32 %v6136, %v8120
        %v8315 = vmul.f32 %v6139, %v8124
        %v8316 = vmul.f32 %v6144, %v8128
        %v8317 = vmul.f32 %v6147, %v8132
        %v8318 = vmul.f32 %v6152, %v8136
        %v8319 = vmul.f32 %v6155, %v8140
        %v8320 = vmul.f32 %v6160, %v8144
        %v8321 = vmul.f32 %v6163, %v8148
        %v8322 = vmul.f32 %v6168, %v8152
        %v8323 = vmul.f32 %v6171, %v8156
        %v8324 = vmul.f32 %v6176, %v8160
        %v8325 = vmul.f32 %v6179, %v8164
        %v8326 = vmul.f32 %v6184, %v8168
        %v8327 = vmul.f32 %v6187, %v8172
        %v8328 = vmul.f32 %v6192, %v8176
        %v8329 = vmul.f32 %v6195, %v8180
        %v8330 = vmul.f32 %v6200, %v8184
        %v8331 = vmul.f32 %v6203, %v8188
        %v8332 = vmul.f32 %v6208, %v8192
        %v8333 = vmul.f32 %v6211, %v8196
        %v8334 = vmul.f32 %v6216, %v8200
        %v8335 = vmul.f32 %v6219, %v8204
        %v8336 = vmul.f32 %v6224, %v8208
        %v8337 = vmul.f32 %v6227, %v8212
        %v8338 = vmul.f32 %v6232, %v8216
        %v8339 = vmul.f32 %v6235, %v8220
        %v8340 = vmul.f32 %v6240, %v8224
        %v8341 = vmul.f32 %v6243, %v8228
        %v8342 = vmul.f32 %v6248, %v8232
        %v8343 = vmul.f32 %v6251, %v8236
        %v8344 = vmul.f32 %v6256, %v8240
        %v8345 = vmul.f32 %v6259, %v8244
        %v8346 = vmul.f32 %v6264, %v8248
        %v8347 = vmul.f32 %v6267, %v8252
        %v8348 = vmul.f32 %v6272, %v8256
        %v8349 = vmul.f32 %v6275, %v8260
        %v8350 = vmul.f32 %v6280, %v8264
        %v8351 = vmul.f32 %v6283, %v8268
        %v8352 = vmul.f32 %v6288, %v8272
        %v8353 = vmul.f32 %v6291, %v8276
        %v8354 = vmul.f32 %v6296, %v8280
        %v8355 = vmul.f32 %v6299, %v8284
        %v8356 = vmul.f32 %v6304, %v8288
        %v8357 = vmul.f32 %v6307, %v8292
        %8422 = vrot.lane.b32.xlu0 %v8294, 116
        %v8423 = vpop.permute.xlu0 %8422
        %8424 = vrot.lane.b32.xlu0 %v8295, 116
        %v8425 = vpop.permute.xlu0 %8424
        %8426 = vrot.lane.b32.xlu0 %v8296, 116
        %v8427 = vpop.permute.xlu0 %8426
        %8428 = vrot.lane.b32.xlu0 %v8297, 116
        %v8429 = vpop.permute.xlu0 %8428
        %8430 = vrot.lane.b32.xlu0 %v8298, 116
        %v8431 = vpop.permute.xlu0 %8430
        %8432 = vrot.lane.b32.xlu0 %v8299, 116
        %v8433 = vpop.permute.xlu0 %8432
        %8434 = vrot.lane.b32.xlu0 %v8300, 116
        %v8435 = vpop.permute.xlu0 %8434
        %8436 = vrot.lane.b32.xlu0 %v8301, 116
        %v8437 = vpop.permute.xlu0 %8436
        %8438 = vrot.lane.b32.xlu0 %v8302, 116
        %v8439 = vpop.permute.xlu0 %8438
        %8440 = vrot.lane.b32.xlu0 %v8303, 116
        %v8441 = vpop.permute.xlu0 %8440
        %8442 = vrot.lane.b32.xlu0 %v8304, 116
        %v8443 = vpop.permute.xlu0 %8442
        %8444 = vrot.lane.b32.xlu0 %v8305, 116
        %v8445 = vpop.permute.xlu0 %8444
        %8446 = vrot.lane.b32.xlu0 %v8306, 116
        %v8447 = vpop.permute.xlu0 %8446
        %8448 = vrot.lane.b32.xlu0 %v8307, 116
        %v8449 = vpop.permute.xlu0 %8448
        %8450 = vrot.lane.b32.xlu0 %v8308, 116
        %v8451 = vpop.permute.xlu0 %8450
        %8452 = vrot.lane.b32.xlu0 %v8309, 116
        %v8453 = vpop.permute.xlu0 %8452
        %8454 = vrot.lane.b32.xlu0 %v8310, 116
        %v8455 = vpop.permute.xlu0 %8454
        %8456 = vrot.lane.b32.xlu0 %v8311, 116
        %v8457 = vpop.permute.xlu0 %8456
        %8458 = vrot.lane.b32.xlu0 %v8312, 116
        %v8459 = vpop.permute.xlu0 %8458
        %8460 = vrot.lane.b32.xlu0 %v8313, 116
        %v8461 = vpop.permute.xlu0 %8460
        %8462 = vrot.lane.b32.xlu0 %v8314, 116
        %v8463 = vpop.permute.xlu0 %8462
        %8464 = vrot.lane.b32.xlu0 %v8315, 116
        %v8465 = vpop.permute.xlu0 %8464
        %8466 = vrot.lane.b32.xlu0 %v8316, 116
        %v8467 = vpop.permute.xlu0 %8466
        %8468 = vrot.lane.b32.xlu0 %v8317, 116
        %v8469 = vpop.permute.xlu0 %8468
        %8470 = vrot.lane.b32.xlu0 %v8318, 116
        %v8471 = vpop.permute.xlu0 %8470
        %8472 = vrot.lane.b32.xlu0 %v8319, 116
        %v8473 = vpop.permute.xlu0 %8472
        %8474 = vrot.lane.b32.xlu0 %v8320, 116
        %v8475 = vpop.permute.xlu0 %8474
        %8476 = vrot.lane.b32.xlu0 %v8321, 116
        %v8477 = vpop.permute.xlu0 %8476
        %8478 = vrot.lane.b32.xlu0 %v8322, 116
        %v8479 = vpop.permute.xlu0 %8478
        %8480 = vrot.lane.b32.xlu0 %v8323, 116
        %v8481 = vpop.permute.xlu0 %8480
        %8482 = vrot.lane.b32.xlu0 %v8324, 116
        %v8483 = vpop.permute.xlu0 %8482
        %8484 = vrot.lane.b32.xlu0 %v8325, 116
        %v8485 = vpop.permute.xlu0 %8484
        %8486 = vrot.lane.b32.xlu0 %v8326, 116
        %v8487 = vpop.permute.xlu0 %8486
        %8488 = vrot.lane.b32.xlu0 %v8327, 116
        %v8489 = vpop.permute.xlu0 %8488
        %8490 = vrot.lane.b32.xlu0 %v8328, 116
        %v8491 = vpop.permute.xlu0 %8490
        %8492 = vrot.lane.b32.xlu0 %v8329, 116
        %v8493 = vpop.permute.xlu0 %8492
        %8494 = vrot.lane.b32.xlu0 %v8330, 116
        %v8495 = vpop.permute.xlu0 %8494
        %8496 = vrot.lane.b32.xlu0 %v8331, 116
        %v8497 = vpop.permute.xlu0 %8496
        %8498 = vrot.lane.b32.xlu0 %v8332, 116
        %v8499 = vpop.permute.xlu0 %8498
        %8500 = vrot.lane.b32.xlu0 %v8333, 116
        %v8501 = vpop.permute.xlu0 %8500
        %8502 = vrot.lane.b32.xlu0 %v8334, 116
        %v8503 = vpop.permute.xlu0 %8502
        %8504 = vrot.lane.b32.xlu0 %v8335, 116
        %v8505 = vpop.permute.xlu0 %8504
        %8506 = vrot.lane.b32.xlu0 %v8336, 116
        %v8507 = vpop.permute.xlu0 %8506
        %8508 = vrot.lane.b32.xlu0 %v8337, 116
        %v8509 = vpop.permute.xlu0 %8508
        %8510 = vrot.lane.b32.xlu0 %v8338, 116
        %v8511 = vpop.permute.xlu0 %8510
        %8512 = vrot.lane.b32.xlu0 %v8339, 116
        %v8513 = vpop.permute.xlu0 %8512
        %8514 = vrot.lane.b32.xlu0 %v8340, 116
        %v8515 = vpop.permute.xlu0 %8514
        %8516 = vrot.lane.b32.xlu0 %v8341, 116
        %v8517 = vpop.permute.xlu0 %8516
        %8518 = vrot.lane.b32.xlu0 %v8342, 116
        %v8519 = vpop.permute.xlu0 %8518
        %8520 = vrot.lane.b32.xlu0 %v8343, 116
        %v8521 = vpop.permute.xlu0 %8520
        %8522 = vrot.lane.b32.xlu0 %v8344, 116
        %v8523 = vpop.permute.xlu0 %8522
        %8524 = vrot.lane.b32.xlu0 %v8345, 116
        %v8525 = vpop.permute.xlu0 %8524
        %8526 = vrot.lane.b32.xlu0 %v8346, 116
        %v8527 = vpop.permute.xlu0 %8526
        %8528 = vrot.lane.b32.xlu0 %v8347, 116
        %v8529 = vpop.permute.xlu0 %8528
        %8530 = vrot.lane.b32.xlu0 %v8348, 116
        %v8531 = vpop.permute.xlu0 %8530
        %8532 = vrot.lane.b32.xlu0 %v8349, 116
        %v8533 = vpop.permute.xlu0 %8532
        %8534 = vrot.lane.b32.xlu0 %v8350, 116
        %v8535 = vpop.permute.xlu0 %8534
        %8536 = vrot.lane.b32.xlu0 %v8351, 116
        %v8537 = vpop.permute.xlu0 %8536
        %8538 = vrot.lane.b32.xlu0 %v8352, 116
        %v8539 = vpop.permute.xlu0 %8538
        %8540 = vrot.lane.b32.xlu0 %v8353, 116
        %v8541 = vpop.permute.xlu0 %8540
        %8542 = vrot.lane.b32.xlu0 %v8354, 116
        %v8543 = vpop.permute.xlu0 %8542
        %8544 = vrot.lane.b32.xlu0 %v8355, 116
        %v8545 = vpop.permute.xlu0 %8544
        %8546 = vrot.lane.b32.xlu0 %v8356, 116
        %v8547 = vpop.permute.xlu0 %8546
        %8548 = vrot.lane.b32.xlu0 %v8357, 116
        %v8549 = vpop.permute.xlu0 %8548
        %v8614 = vadd.f32 %v7974, %v8423
        %v8615 = vadd.f32 %v7975, %v8425
        %v8616 = vadd.f32 %v7976, %v8427
        %v8617 = vadd.f32 %v7977, %v8429
        %v8618 = vadd.f32 %v7978, %v8431
        %v8619 = vadd.f32 %v7979, %v8433
        %v8620 = vadd.f32 %v7980, %v8435
        %v8621 = vadd.f32 %v7981, %v8437
        %v8622 = vadd.f32 %v7982, %v8439
        %v8623 = vadd.f32 %v7983, %v8441
        %v8624 = vadd.f32 %v7984, %v8443
        %v8625 = vadd.f32 %v7985, %v8445
        %v8626 = vadd.f32 %v7986, %v8447
        %v8627 = vadd.f32 %v7987, %v8449
        %v8628 = vadd.f32 %v7988, %v8451
        %v8629 = vadd.f32 %v7989, %v8453
        %v8630 = vadd.f32 %v7990, %v8455
        %v8631 = vadd.f32 %v7991, %v8457
        %v8632 = vadd.f32 %v7992, %v8459
        %v8633 = vadd.f32 %v7993, %v8461
        %v8634 = vadd.f32 %v7994, %v8463
        %v8635 = vadd.f32 %v7995, %v8465
        %v8636 = vadd.f32 %v7996, %v8467
        %v8637 = vadd.f32 %v7997, %v8469
        %v8638 = vadd.f32 %v7998, %v8471
        %v8639 = vadd.f32 %v7999, %v8473
        %v8640 = vadd.f32 %v8000, %v8475
        %v8641 = vadd.f32 %v8001, %v8477
        %v8642 = vadd.f32 %v8002, %v8479
        %v8643 = vadd.f32 %v8003, %v8481
        %v8644 = vadd.f32 %v8004, %v8483
        %v8645 = vadd.f32 %v8005, %v8485
        %v8646 = vadd.f32 %v8006, %v8487
        %v8647 = vadd.f32 %v8007, %v8489
        %v8648 = vadd.f32 %v8008, %v8491
        %v8649 = vadd.f32 %v8009, %v8493
        %v8650 = vadd.f32 %v8010, %v8495
        %v8651 = vadd.f32 %v8011, %v8497
        %v8652 = vadd.f32 %v8012, %v8499
        %v8653 = vadd.f32 %v8013, %v8501
        %v8654 = vadd.f32 %v8014, %v8503
        %v8655 = vadd.f32 %v8015, %v8505
        %v8656 = vadd.f32 %v8016, %v8507
        %v8657 = vadd.f32 %v8017, %v8509
        %v8658 = vadd.f32 %v8018, %v8511
        %v8659 = vadd.f32 %v8019, %v8513
        %v8660 = vadd.f32 %v8020, %v8515
        %v8661 = vadd.f32 %v8021, %v8517
        %v8662 = vadd.f32 %v8022, %v8519
        %v8663 = vadd.f32 %v8023, %v8521
        %v8664 = vadd.f32 %v8024, %v8523
        %v8665 = vadd.f32 %v8025, %v8525
        %v8666 = vadd.f32 %v8026, %v8527
        %v8667 = vadd.f32 %v8027, %v8529
        %v8668 = vadd.f32 %v8028, %v8531
        %v8669 = vadd.f32 %v8029, %v8533
        %v8670 = vadd.f32 %v8030, %v8535
        %v8671 = vadd.f32 %v8031, %v8537
        %v8672 = vadd.f32 %v8032, %v8539
        %v8673 = vadd.f32 %v8033, %v8541
        %v8674 = vadd.f32 %v8034, %v8543
        %v8675 = vadd.f32 %v8035, %v8545
        %v8676 = vadd.f32 %v8036, %v8547
        %v8677 = vadd.f32 %v8037, %v8549
        %vm8678 = vcmask 31744
        %8679 = vst.msk [vmem:[%s515] sm:$0xff] %vm8678, %v6056
        %8680 = vst.msk [vmem:[%s515 + $0x8] sm:$0xff] %vm8678, %v6059
        %8681 = vst.msk [vmem:[%s515 + $0x10] sm:$0xff] %vm8678, %v6064
        %8682 = vst.msk [vmem:[%s515 + $0x18] sm:$0xff] %vm8678, %v6067
        %8683 = vst.msk [vmem:[%s515 + $0x20] sm:$0xff] %vm8678, %v6072
        %8684 = vst.msk [vmem:[%s515 + $0x28] sm:$0xff] %vm8678, %v6075
        %8685 = vst.msk [vmem:[%s515 + $0x30] sm:$0xff] %vm8678, %v6080
        %8686 = vst.msk [vmem:[%s515 + $0x38] sm:$0xff] %vm8678, %v6083
        %8687 = vst.msk [vmem:[%s515 + $0x40] sm:$0xff] %vm8678, %v6088
        %8688 = vst.msk [vmem:[%s515 + $0x48] sm:$0xff] %vm8678, %v6091
        %8689 = vst.msk [vmem:[%s515 + $0x50] sm:$0xff] %vm8678, %v6096
        %8690 = vst.msk [vmem:[%s515 + $0x58] sm:$0xff] %vm8678, %v6099
        %8691 = vst.msk [vmem:[%s515 + $0x60] sm:$0xff] %vm8678, %v6104
        %8692 = vst.msk [vmem:[%s515 + $0x68] sm:$0xff] %vm8678, %v6107
        %8693 = vst.msk [vmem:[%s515 + $0x70] sm:$0xff] %vm8678, %v6112
        %8694 = vst.msk [vmem:[%s515 + $0x78] sm:$0xff] %vm8678, %v6115
        %8695 = vst.msk [vmem:[%s515 + $0x80] sm:$0xff] %vm8678, %v6120
        %8696 = vst.msk [vmem:[%s515 + $0x88] sm:$0xff] %vm8678, %v6123
        %8697 = vst.msk [vmem:[%s515 + $0x90] sm:$0xff] %vm8678, %v6128
        %8698 = vst.msk [vmem:[%s515 + $0x98] sm:$0xff] %vm8678, %v6131
        %8699 = vst.msk [vmem:[%s515 + $0xa0] sm:$0xff] %vm8678, %v6136
        %8700 = vst.msk [vmem:[%s515 + $0xa8] sm:$0xff] %vm8678, %v6139
        %8701 = vst.msk [vmem:[%s515 + $0xb0] sm:$0xff] %vm8678, %v6144
        %8702 = vst.msk [vmem:[%s515 + $0xb8] sm:$0xff] %vm8678, %v6147
        %8703 = vst.msk [vmem:[%s515 + $0xc0] sm:$0xff] %vm8678, %v6152
        %8704 = vst.msk [vmem:[%s515 + $0xc8] sm:$0xff] %vm8678, %v6155
        %8705 = vst.msk [vmem:[%s515 + $0xd0] sm:$0xff] %vm8678, %v6160
        %8706 = vst.msk [vmem:[%s515 + $0xd8] sm:$0xff] %vm8678, %v6163
        %8707 = vst.msk [vmem:[%s515 + $0xe0] sm:$0xff] %vm8678, %v6168
        %8708 = vst.msk [vmem:[%s515 + $0xe8] sm:$0xff] %vm8678, %v6171
        %8709 = vst.msk [vmem:[%s515 + $0xf0] sm:$0xff] %vm8678, %v6176
        %8710 = vst.msk [vmem:[%s515 + $0xf8] sm:$0xff] %vm8678, %v6179
        %8711 = vst.msk [vmem:[%s515 + $0x100] sm:$0xff] %vm8678, %v6184
        %8712 = vst.msk [vmem:[%s515 + $0x108] sm:$0xff] %vm8678, %v6187
        %8713 = vst.msk [vmem:[%s515 + $0x110] sm:$0xff] %vm8678, %v6192
        %8714 = vst.msk [vmem:[%s515 + $0x118] sm:$0xff] %vm8678, %v6195
        %8715 = vst.msk [vmem:[%s515 + $0x120] sm:$0xff] %vm8678, %v6200
        %8716 = vst.msk [vmem:[%s515 + $0x128] sm:$0xff] %vm8678, %v6203
        %8717 = vst.msk [vmem:[%s515 + $0x130] sm:$0xff] %vm8678, %v6208
        %8718 = vst.msk [vmem:[%s515 + $0x138] sm:$0xff] %vm8678, %v6211
        %8719 = vst.msk [vmem:[%s515 + $0x140] sm:$0xff] %vm8678, %v6216
        %8720 = vst.msk [vmem:[%s515 + $0x148] sm:$0xff] %vm8678, %v6219
        %8721 = vst.msk [vmem:[%s515 + $0x150] sm:$0xff] %vm8678, %v6224
        %8722 = vst.msk [vmem:[%s515 + $0x158] sm:$0xff] %vm8678, %v6227
        %8723 = vst.msk [vmem:[%s515 + $0x160] sm:$0xff] %vm8678, %v6232
        %8724 = vst.msk [vmem:[%s515 + $0x168] sm:$0xff] %vm8678, %v6235
        %8725 = vst.msk [vmem:[%s515 + $0x170] sm:$0xff] %vm8678, %v6240
        %8726 = vst.msk [vmem:[%s515 + $0x178] sm:$0xff] %vm8678, %v6243
        %8727 = vst.msk [vmem:[%s515 + $0x180] sm:$0xff] %vm8678, %v6248
        %8728 = vst.msk [vmem:[%s515 + $0x188] sm:$0xff] %vm8678, %v6251
        %8729 = vst.msk [vmem:[%s515 + $0x190] sm:$0xff] %vm8678, %v6256
        %8730 = vst.msk [vmem:[%s515 + $0x198] sm:$0xff] %vm8678, %v6259
        %8731 = vst.msk [vmem:[%s515 + $0x1a0] sm:$0xff] %vm8678, %v6264
        %8732 = vst.msk [vmem:[%s515 + $0x1a8] sm:$0xff] %vm8678, %v6267
        %8733 = vst.msk [vmem:[%s515 + $0x1b0] sm:$0xff] %vm8678, %v6272
        %8734 = vst.msk [vmem:[%s515 + $0x1b8] sm:$0xff] %vm8678, %v6275
        %8735 = vst.msk [vmem:[%s515 + $0x1c0] sm:$0xff] %vm8678, %v6280
        %8736 = vst.msk [vmem:[%s515 + $0x1c8] sm:$0xff] %vm8678, %v6283
        %8737 = vst.msk [vmem:[%s515 + $0x1d0] sm:$0xff] %vm8678, %v6288
        %8738 = vst.msk [vmem:[%s515 + $0x1d8] sm:$0xff] %vm8678, %v6291
        %8739 = vst.msk [vmem:[%s515 + $0x1e0] sm:$0xff] %vm8678, %v6296
        %8740 = vst.msk [vmem:[%s515 + $0x1e8] sm:$0xff] %vm8678, %v6299
        %8741 = vst.msk [vmem:[%s515 + $0x1f0] sm:$0xff] %vm8678, %v6304
        %8742 = vst.msk [vmem:[%s515 + $0x1f8] sm:$0xff] %vm8678, %v6307
        %p8743 = scmp.eq.s32.totalorder %s33, 0
        // Predicated region
        $region61: #{tpu_custom_call.1} parent=59 // pred_check
          %p8744 = pneg %p8743
        $region62: #{tpu_custom_call.1} parent=59 // pred_check_branch
          %8746 = sbr.rel (%p8744) target = $region64
        $region63: #{tpu_custom_call.1} parent=59 // pred_region
          %vm8747 = vcmask 24576
          %8748 = vst.msk [vmem:[%s476] sm:$0x1] %vm8747, 0.0
        $region64: #{tpu_custom_call.1} parent=59 // pred_fallthru
          _
        %v8749 = vld [vmem:[%s476] sm:$0x1]
        %vm8750 = vcmask 64544
        %v8751 = vsel %vm8750, %v8614, 0.0
        %v8752 = vsel %vm8750, %v8615, 0.0
        %v8753 = vadd.f32 %v8751, %v8752
        %v8754 = vsel %vm8750, %v8616, 0.0
        %v8755 = vadd.f32 %v8753, %v8754
        %v8756 = vsel %vm8750, %v8617, 0.0
        %v8757 = vadd.f32 %v8755, %v8756
        %v8758 = vsel %vm8750, %v8618, 0.0
        %v8759 = vadd.f32 %v8757, %v8758
        %v8760 = vsel %vm8750, %v8619, 0.0
        %v8761 = vadd.f32 %v8759, %v8760
        %v8762 = vsel %vm8750, %v8620, 0.0
        %v8763 = vadd.f32 %v8761, %v8762
        %v8764 = vsel %vm8750, %v8621, 0.0
        %v8765 = vadd.f32 %v8763, %v8764
        %v8766 = vsel %vm8750, %v8622, 0.0
        %v8767 = vadd.f32 %v8765, %v8766
        %v8768 = vsel %vm8750, %v8623, 0.0
        %v8769 = vadd.f32 %v8767, %v8768
        %v8770 = vsel %vm8750, %v8624, 0.0
        %v8771 = vadd.f32 %v8769, %v8770
        %v8772 = vsel %vm8750, %v8625, 0.0
        %v8773 = vadd.f32 %v8771, %v8772
        %v8774 = vsel %vm8750, %v8626, 0.0
        %v8775 = vadd.f32 %v8773, %v8774
        %v8776 = vsel %vm8750, %v8627, 0.0
        %v8777 = vadd.f32 %v8775, %v8776
        %v8778 = vsel %vm8750, %v8628, 0.0
        %v8779 = vadd.f32 %v8777, %v8778
        %v8780 = vsel %vm8750, %v8629, 0.0
        %v8781 = vadd.f32 %v8779, %v8780
        %v8782 = vsel %vm8750, %v8630, 0.0
        %v8783 = vadd.f32 %v8781, %v8782
        %v8784 = vsel %vm8750, %v8631, 0.0
        %v8785 = vadd.f32 %v8783, %v8784
        %v8786 = vsel %vm8750, %v8632, 0.0
        %v8787 = vadd.f32 %v8785, %v8786
        %v8788 = vsel %vm8750, %v8633, 0.0
        %v8789 = vadd.f32 %v8787, %v8788
        %v8790 = vsel %vm8750, %v8634, 0.0
        %v8791 = vadd.f32 %v8789, %v8790
        %v8792 = vsel %vm8750, %v8635, 0.0
        %v8793 = vadd.f32 %v8791, %v8792
        %v8794 = vsel %vm8750, %v8636, 0.0
        %v8795 = vadd.f32 %v8793, %v8794
        %v8796 = vsel %vm8750, %v8637, 0.0
        %v8797 = vadd.f32 %v8795, %v8796
        %v8798 = vsel %vm8750, %v8638, 0.0
        %v8799 = vadd.f32 %v8797, %v8798
        %v8800 = vsel %vm8750, %v8639, 0.0
        %v8801 = vadd.f32 %v8799, %v8800
        %v8802 = vsel %vm8750, %v8640, 0.0
        %v8803 = vadd.f32 %v8801, %v8802
        %v8804 = vsel %vm8750, %v8641, 0.0
        %v8805 = vadd.f32 %v8803, %v8804
        %v8806 = vsel %vm8750, %v8642, 0.0
        %v8807 = vadd.f32 %v8805, %v8806
        %v8808 = vsel %vm8750, %v8643, 0.0
        %v8809 = vadd.f32 %v8807, %v8808
        %v8810 = vsel %vm8750, %v8644, 0.0
        %v8811 = vadd.f32 %v8809, %v8810
        %v8812 = vsel %vm8750, %v8645, 0.0
        %v8813 = vadd.f32 %v8811, %v8812
        %v8814 = vsel %vm8750, %v8646, 0.0
        %v8815 = vadd.f32 %v8813, %v8814
        %v8816 = vsel %vm8750, %v8647, 0.0
        %v8817 = vadd.f32 %v8815, %v8816
        %v8818 = vsel %vm8750, %v8648, 0.0
        %v8819 = vadd.f32 %v8817, %v8818
        %v8820 = vsel %vm8750, %v8649, 0.0
        %v8821 = vadd.f32 %v8819, %v8820
        %v8822 = vsel %vm8750, %v8650, 0.0
        %v8823 = vadd.f32 %v8821, %v8822
        %v8824 = vsel %vm8750, %v8651, 0.0
        %v8825 = vadd.f32 %v8823, %v8824
        %v8826 = vsel %vm8750, %v8652, 0.0
        %v8827 = vadd.f32 %v8825, %v8826
        %v8828 = vsel %vm8750, %v8653, 0.0
        %v8829 = vadd.f32 %v8827, %v8828
        %v8830 = vsel %vm8750, %v8654, 0.0
        %v8831 = vadd.f32 %v8829, %v8830
        %v8832 = vsel %vm8750, %v8655, 0.0
        %v8833 = vadd.f32 %v8831, %v8832
        %v8834 = vsel %vm8750, %v8656, 0.0
        %v8835 = vadd.f32 %v8833, %v8834
        %v8836 = vsel %vm8750, %v8657, 0.0
        %v8837 = vadd.f32 %v8835, %v8836
        %v8838 = vsel %vm8750, %v8658, 0.0
        %v8839 = vadd.f32 %v8837, %v8838
        %v8840 = vsel %vm8750, %v8659, 0.0
        %v8841 = vadd.f32 %v8839, %v8840
        %v8842 = vsel %vm8750, %v8660, 0.0
        %v8843 = vadd.f32 %v8841, %v8842
        %v8844 = vsel %vm8750, %v8661, 0.0
        %v8845 = vadd.f32 %v8843, %v8844
        %v8846 = vsel %vm8750, %v8662, 0.0
        %v8847 = vadd.f32 %v8845, %v8846
        %v8848 = vsel %vm8750, %v8663, 0.0
        %v8849 = vadd.f32 %v8847, %v8848
        %v8850 = vsel %vm8750, %v8664, 0.0
        %v8851 = vadd.f32 %v8849, %v8850
        %v8852 = vsel %vm8750, %v8665, 0.0
        %v8853 = vadd.f32 %v8851, %v8852
        %v8854 = vsel %vm8750, %v8666, 0.0
        %v8855 = vadd.f32 %v8853, %v8854
        %v8856 = vsel %vm8750, %v8667, 0.0
        %v8857 = vadd.f32 %v8855, %v8856
        %v8858 = vsel %vm8750, %v8668, 0.0
        %v8859 = vadd.f32 %v8857, %v8858
        %v8860 = vsel %vm8750, %v8669, 0.0
        %v8861 = vadd.f32 %v8859, %v8860
        %v8862 = vsel %vm8750, %v8670, 0.0
        %v8863 = vadd.f32 %v8861, %v8862
        %v8864 = vsel %vm8750, %v8671, 0.0
        %v8865 = vadd.f32 %v8863, %v8864
        %v8866 = vsel %vm8750, %v8672, 0.0
        %v8867 = vadd.f32 %v8865, %v8866
        %v8868 = vsel %vm8750, %v8673, 0.0
        %v8869 = vadd.f32 %v8867, %v8868
        %v8870 = vsel %vm8750, %v8674, 0.0
        %v8871 = vadd.f32 %v8869, %v8870
        %v8872 = vsel %vm8750, %v8675, 0.0
        %v8873 = vadd.f32 %v8871, %v8872
        %v8874 = vsel %vm8750, %v8676, 0.0
        %v8875 = vadd.f32 %v8873, %v8874
        %v8876 = vsel %vm8750, %v8677, 0.0
        %v8877 = vadd.f32 %v8875, %v8876
        %v8878 = vrot.slane %v8877, 4
        %v8879 = vadd.f32 %v8877, %v8878
        %v8880 = vrot.slane %v8879, 2
        %v8881 = vadd.f32 %v8879, %v8880
        %v8882 = vrot.slane %v8881, 1
        %v8883 = vadd.f32 %v8881, %v8882
        %v8886 = vunpack.c.l.s4 1966171168
        %v8887 = vunpack.c.0.s8 %v8886
        %v8888 = vlaneseq
        %v8889 = vshrl.u32 %v8888, 7
        %v8890 = vsub.s32 %v8887, %v8889
        %v8891 = vrot.slane %v8883, %v8890
        %v8893 = vunpack.c.l.s4 1966171168
        %v8894 = vunpack.c.0.s8 %v8893
        %v8895 = vlaneseq
        %v8896 = vshrl.u32 %v8895, 7
        %v8897 = vsub.s32 %v8894, %v8896
        %v8898 = vrot.slane %v8891, %v8897
        %8899 = vrot.lane.b32.xlu0 %v8898, 124
        %v8900 = vpop.permute.xlu0 %8899
        %v8902 = vadd.f32 %v8749, %v8900
        %vm8903 = vcmask 24576
        %8904 = vst.msk [vmem:[%s476] sm:$0x1] %vm8903, %v8902
        %s8905 = smul.u32 %s32, 2
        %s8906 = sadd.s32 %s8905, %s33
        %s8907 = smul.u32 64, %s8906
        %p8908 = scmp.lt.s32.totalorder %s31, 1
        %s8909 = scalar_select %p8908, %s31, 1
        %p8910 = scmp.lt.s32.totalorder %s8907, 127
        %s8911 = scalar_select %p8910, %s8907, 127
        %s8912 = smul.addr %s8909, 128
        %s8913 = sadd.s32 %s8911, %s8912
        %s8914 = smul.addr %s8913, 8
        %s8915 = scalar_lea.vmem %s10, %s8914
        %s8916 = sand.u32 %s319, 1
        %s8917 = scalar_lea.sflag [#allocation3], %s8916
        %s8918 = sand.u32 %s319, 1
        %s8919 = scalar_lea.vmem [#allocation2], %s8918
        // Predicated region
        $region65: #{tpu_custom_call.1} parent=59 // pred_check
          %p8920 = pneg %p301
        $region66: #{tpu_custom_call.1} parent=59 // pred_check_branch
          %8922 = sbr.rel (%p8920) target = $region68
        $region67: #{tpu_custom_call.1} parent=59 // pred_region
          %s8923 = smul.u32 %s32, 2
          %s8924 = sadd.s32 %s8923, %s33
          %s8925 = smul.u32 64, %s8924
        $region68: #{tpu_custom_call.1} parent=59 // pred_fallthru
          _
        // Predicated region
        $region69: #{tpu_custom_call.1} parent=59 // pred_check
          %p8926 = pneg %p329
        $region70: #{tpu_custom_call.1} parent=59 // pred_check_branch
          %8928 = sbr.rel (%p8926) target = $region72
        $region71: #{tpu_custom_call.1} parent=59 // pred_region
          %s8930 = ssub.s32 16, 16
          %8931 = vsyncadd %s8917, %s8930
          %s8932 = sadd.s32 %s32, %s31
          %s8933 = smul.addr %s8932, 16
          %s8934 = scalar_lea.hbm %s11, %s8933
          %s8936 = sshll.u32 %s8919, 4
          %s8937 = int_to_ptr.vmem [resolvable:$true] %s8936
          %8939 = dma.vmem_to_hbm [thread:$0]  %s8937, 16, %s8934, %s8917
        $region72: #{tpu_custom_call.1} parent=59 // pred_fallthru
          _
      $region60: #{tpu_custom_call.1} parent=5 // pred_fallthru
        _
      %p8940 = scmp.le.s32.totalorder 2, %s21
      // Predicated region
      $region73: #{tpu_custom_call.1} parent=5 // pred_check
        %p8941 = pneg %p8940
      $region74: #{tpu_custom_call.1} parent=5 // pred_check_branch
        %8943 = sbr.rel (%p8941) target = $region76
      $region75: #{tpu_custom_call.1} parent=5 // pred_region
        %s8944 = ssub.s32 %s21, 2
        // Predicated region
        $region77: #{tpu_custom_call.1} parent=75 // pred_check
          %p8945 = pneg %p307
        $region78: #{tpu_custom_call.1} parent=75 // pred_check_branch
          %8947 = sbr.rel (%p8945) target = $region80
        $region79: #{tpu_custom_call.1} parent=75 // pred_region
          %s8948 = smul.u32 %s35, 2
          %s8949 = sadd.s32 %s8948, %s36
          %s8950 = smul.u32 64, %s8949
          %p8951 = scmp.lt.s32.totalorder %s34, 1
          %s8952 = scalar_select %p8951, %s34, 1
          %p8953 = scmp.lt.s32.totalorder %s8950, 127
          %s8954 = scalar_select %p8953, %s8950, 127
          %s8955 = smul.addr %s8952, 128
          %s8956 = sadd.s32 %s8954, %s8955
          %s8957 = smul.addr %s8956, 8
          %s8958 = scalar_lea.vmem %s10, %s8957
        $region80: #{tpu_custom_call.1} parent=75 // pred_fallthru
          _
        // Predicated region
        $region81: #{tpu_custom_call.1} parent=75 // pred_check
          %p8959 = pneg %p335
        $region82: #{tpu_custom_call.1} parent=75 // pred_check_branch
          %8961 = sbr.rel (%p8959) target = $region84
        $region83: #{tpu_custom_call.1} parent=75 // pred_region
          %s8962 = sand.u32 %s320, 1
          %s8963 = scalar_lea.sflag [#allocation3], %s8962
          %s8964 = sand.u32 %s320, 1
          %s8965 = scalar_lea.vmem [#allocation2], %s8964
          %8966 = dma.done %s8963, 16
        $region84: #{tpu_custom_call.1} parent=75 // pred_fallthru
          _
      $region76: #{tpu_custom_call.1} parent=5 // pred_fallthru
        _
    $region6: #{tpu_custom_call.1} parent=1 // loop_footer
      %s25 = sadd.s32 1, %s21
    $region7: #{tpu_custom_call.1} parent=1 // loop_footer_branch
      %20 = sbr.rel target = $region3
    $region8: #{tpu_custom_call.1} parent=1 // loop_exit
      _
    %8967 = vsyncpa [#allocation3], 1
    %s8968 = scalar_lea.sflag [#allocation3], 1
    %8969 = vsyncpa %s8968, 1

</llo_original>
